<compile_context>
chip_gen: v7x
topology: tpu7x:2x2x1
jax: 0.10.0
libtpu: 0.0.40
codegen_flags: <defaults>
</compile_context>

<pallas_src>
import numpy as np
import jax
import jax.numpy as jnp
from jax.experimental import pallas as pl
from jax.experimental.pallas import tpu as pltpu

# ----- module hyper-parameters (small but structurally faithful) -----
D_MODEL = 32
D_HEAD = 8
N_HEADS = 4
N_POINTS = 2
N_LEVELS = 5                      # MSDeformAttn.__init__ hard-codes n_levels = 5
SPATIAL_SHAPES = ((8, 8), (4, 8), (4, 4), (4, 2), (2, 2))   # (H_l, W_l)
LEVEL_START = (0, 64, 96, 112, 120)
LEN_IN = sum(h * w for h, w in SPATIAL_SHAPES)              # 124
LEN_PAD = 128                                               # flat value axis padded to full lane width
N_BATCH = 2
LEN_Q = 16

LP = N_LEVELS * N_POINTS                      # 10
OFF_DIM = N_HEADS * LP * 2                    # 80
ATT_DIM = N_HEADS * LP                        # 40
VAL_DIM = N_HEADS * D_HEAD                    # 32
QP_DIM = OFF_DIM + ATT_DIM                    # 120

# ----- host-side constant tables (layout only, no learned content) -----
_W_LP = np.array([SPATIAL_SHAPES[l][1] for l in range(N_LEVELS) for _ in range(N_POINTS)],
                 np.float32)
_H_LP = np.array([SPATIAL_SHAPES[l][0] for l in range(N_LEVELS) for _ in range(N_POINTS)],
                 np.float32)

# per-level pixel coordinates of every flattened value lane; out-of-window lanes
# get a huge sentinel so their tent weight is exactly 0 (also covers the 124->128 pad).
_PX = np.full((N_LEVELS, 1, LEN_PAD), 1e6, np.float32)
_PY = np.full((N_LEVELS, 1, LEN_PAD), 1e6, np.float32)
for _l, (_h, _w) in enumerate(SPATIAL_SHAPES):
    _s = LEVEL_START[_l]
    for _j in range(_h * _w):
        _PX[_l, 0, _s + _j] = _j % _w
        _PY[_l, 0, _s + _j] = _j // _w

# permutation of sampling_offsets columns: [m][l][p][xy] -> [m][xy][l*P+p]
_OFF_PERM = np.empty(OFF_DIM, np.int32)
for _m in range(N_HEADS):
    for _l in range(N_LEVELS):
        for _p in range(N_POINTS):
            for _xy in range(2):
                _src = ((_m * N_LEVELS + _l) * N_POINTS + _p) * 2 + _xy
                _dst = _m * 2 * LP + _xy * LP + _l * N_POINTS + _p
                _OFF_PERM[_dst] = _src


def deform_cross_attn_kernel(tgt_ref, pos_ref, src_ref, refx_ref, refy_ref,
                             wv_ref, bv_ref, wqp_ref, bqp_ref, wo_ref, bo_ref,
                             wlp_ref, hlp_ref, px_ref, py_ref,
                             out_ref, acc_ref, val_ref):
    rows = tgt_ref.shape[0]                                   # N_BATCH * LEN_Q

    # query = tgt + query_pos (with_pos_embed); both batches stacked along sublanes.
    q = tgt_ref[...] + pos_ref[...]                           # (rows, D_MODEL)

    # fused projections: value_proj for both batches, and one matmul for
    # [sampling_offsets | attention_weights].
    val_ref[...] = jnp.dot(src_ref[...], wv_ref[...],
                           preferred_element_type=jnp.float32) + bv_ref[...]
    qp = jnp.dot(q, wqp_ref[...],
                 preferred_element_type=jnp.float32) + bqp_ref[...]      # (rows, QP_DIM)

    # pixel-space base coords (align_corners=False):  px = loc*size - 0.5 with
    # loc = ref + off/size  =>  px = ref*size + off - 0.5.  Hoisted across heads.
    base_x = refx_ref[...] * wlp_ref[...] - 0.5               # (rows, LP)
    base_y = refy_ref[...] * hlp_ref[...] - 0.5               # (rows, LP)

    for m in range(N_HEADS):
        # per-head softmax over the n_levels*n_points logits (reciprocal on EUP)
        lg = qp[:, OFF_DIM + m * LP: OFF_DIM + (m + 1) * LP]  # (rows, LP)
        lg = lg - jnp.max(lg, axis=-1, keepdims=True)
        e = jnp.exp(lg)
        attn = e * pl.reciprocal(jnp.sum(e, axis=-1, keepdims=True), approx=True)

        # sampling coordinates for all (level, point) slots at once
        ox = qp[:, m * 2 * LP: m * 2 * LP + LP]               # (rows, LP)  x-offsets
        oy = qp[:, m * 2 * LP + LP: (m + 1) * 2 * LP]         # (rows, LP)  y-offsets
        x = base_x + ox
        y = base_y + oy

        # lane-dense (rows, LEN_PAD) gather/attention matrix over the flattened,
        # level-concatenated value axis.  Bilinear sampling with zeros padding ==
        # separable tent weights against the per-level pixel-coordinate rows.
        gw = jnp.zeros((rows, LEN_PAD), dtype=jnp.float32)
        for lp in range(LP):
            l = lp // N_POINTS
            wx = jnp.maximum(1.0 - jnp.abs(x[:, lp:lp + 1] - px_ref[l]), 0.0)
            wy = jnp.maximum(1.0 - jnp.abs(y[:, lp:lp + 1] - py_ref[l]), 0.0)
            gw = gw + (wx * wy) * attn[:, lp:lp + 1]

        # fused bilinear-gather + attention-weighted sum on the MXU, per batch;
        # results land in the head's D_HEAD column slice of the accumulator.
        for b in range(N_BATCH):
            acc_ref[b * LEN_Q:(b + 1) * LEN_Q, m * D_HEAD:(m + 1) * D_HEAD] = jnp.dot(
                gw[b * LEN_Q:(b + 1) * LEN_Q, :],
                val_ref[b * LEN_PAD:(b + 1) * LEN_PAD, m * D_HEAD:(m + 1) * D_HEAD],
                preferred_element_type=jnp.float32)

    # single K=VAL_DIM output projection.  nn.Dropout is identity in eval mode.
    out_ref[...] = (jnp.dot(acc_ref[...], wo_ref[...],
                            preferred_element_type=jnp.float32)
                    + bo_ref[...]).astype(out_ref.dtype)


def deformable_cross_attention(tgt, query_pos, src, reference_points, params):
    """Forward of DeformableTransformerCrossAttention (out_sample_loc=False)."""
    N, Lq, _ = tgt.shape
    assert N == N_BATCH and Lq == LEN_Q
    wv, bv, woff, boff, wa, ba, wo, bo = params

    # ---- host-side layout packing (pure data movement, no compute hoisting) ----
    wqp = jnp.concatenate([woff[:, _OFF_PERM], wa], axis=1)        # (D_MODEL, QP_DIM)
    bqp = jnp.concatenate([boff[:, _OFF_PERM], ba], axis=1)        # (1, QP_DIM)

    src_flat = jnp.pad(src, ((0, 0), (0, LEN_PAD - LEN_IN), (0, 0))
                       ).reshape(N * LEN_PAD, D_MODEL)
    refx = jnp.repeat(reference_points[..., 0], N_POINTS, axis=-1).reshape(N * Lq, LP)
    refy = jnp.repeat(reference_points[..., 1], N_POINTS, axis=-1).reshape(N * Lq, LP)
    tgt_flat = tgt.reshape(N * Lq, D_MODEL)
    pos_flat = query_pos.reshape(N * Lq, D_MODEL)

    wlp = jnp.asarray(_W_LP).reshape(1, LP)
    hlp = jnp.asarray(_H_LP).reshape(1, LP)
    px_tab = jnp.asarray(_PX)
    py_tab = jnp.asarray(_PY)

    # Whole problem fits trivially in VMEM, so the batch axis is collapsed into a
    # single invocation (best on single-TC v5e/v6e; on v7x a per-batch "parallel"
    # grid could be restored for larger batch counts).
    out = pl.pallas_call(
        deform_cross_attn_kernel,
        out_shape=jax.ShapeDtypeStruct((N * Lq, D_MODEL), jnp.float32),
        scratch_shapes=[pltpu.VMEM((N * Lq, VAL_DIM), jnp.float32),
                        pltpu.VMEM((N * LEN_PAD, VAL_DIM), jnp.float32)],
    )(tgt_flat, pos_flat, src_flat, refx, refy,
      wv, bv, wqp, bqp, wo, bo, wlp, hlp, px_tab, py_tab)
    return out.reshape(N, Lq, D_MODEL)


def reference_forward(tgt, query_pos, src, ref_points, params):
    """Pure-JAX reference of the same forward pass (for verification)."""
    wv, bv, woff, boff, wa, ba, wo, bo = params
    q = tgt + query_pos
    N, Lq, _ = q.shape
    value = (src @ wv + bv).reshape(N, LEN_IN, N_HEADS, D_HEAD)
    off = (q @ woff + boff).reshape(N, Lq, N_HEADS, N_LEVELS, N_POINTS, 2)
    attn = (q @ wa + ba).reshape(N, Lq, N_HEADS, N_LEVELS * N_POINTS)
    attn = jax.nn.softmax(attn, axis=-1).reshape(N, Lq, N_HEADS, N_LEVELS, N_POINTS)
    norm = jnp.array([[w, h] for (h, w) in SPATIAL_SHAPES], jnp.float32)
    loc = ref_points[:, :, None, :, None, :] + off / norm[None, None, None, :, None, :]

    acc = jnp.zeros((N, Lq, N_HEADS, D_HEAD), jnp.float32)
    for l, (H, W) in enumerate(SPATIAL_SHAPES):
        s = LEVEL_START[l]
        v_l = value[:, s:s + H * W].transpose(0, 2, 1, 3)        # (N, M, HW, Dh)
        x = loc[:, :, :, l, :, 0] * W - 0.5                      # (N, Lq, M, P)
        y = loc[:, :, :, l, :, 1] * H - 0.5
        x0 = jnp.floor(x)
        y0 = jnp.floor(y)
        a_l = attn[:, :, :, l, :]
        for dx in (0, 1):
            for dy in (0, 1):
                cx = x0 + dx
                cy = y0 + dy
                wgt = (1.0 - jnp.abs(x - cx)) * (1.0 - jnp.abs(y - cy))
                valid = ((cx >= 0) & (cx < W) & (cy >= 0) & (cy < H)).astype(jnp.float32)
                idx = jnp.clip((cy * W + cx).astype(jnp.int32), 0, H * W - 1)
                idx_t = idx.transpose(0, 2, 1, 3).reshape(N, N_HEADS, Lq * N_POINTS, 1)
                g = jnp.take_along_axis(v_l, idx_t, axis=2)
                g = g.reshape(N, N_HEADS, Lq, N_POINTS, D_HEAD).transpose(0, 2, 1, 3, 4)
                acc = acc + (g * (wgt * valid * a_l)[..., None]).sum(axis=3)
    feat = acc.reshape(N, Lq, N_HEADS * D_HEAD)
    return feat @ wo + bo


def make_params():
    key = jax.random.PRNGKey(0)
    ks = jax.random.split(key, 4)

    def xavier(k, shape):
        a = float(np.sqrt(6.0 / (shape[0] + shape[1])))
        return jax.random.uniform(k, shape, jnp.float32, -a, a)

    wv = xavier(ks[0], (D_MODEL, VAL_DIM))
    bv = jnp.zeros((1, VAL_DIM), jnp.float32)

    # small random weight (instead of exact 0-init) so offsets depend on the query;
    # bias follows the MSDeformAttn._reset_parameters grid initialization.
    woff = jax.random.normal(ks[1], (D_MODEL, OFF_DIM), jnp.float32) * 0.05
    thetas = np.arange(N_HEADS, dtype=np.float64) * (2.0 * np.pi / N_HEADS)
    grid = np.stack([np.cos(thetas), np.sin(thetas)], -1)
    grid = grid / np.abs(grid).max(-1, keepdims=True)
    grid = np.tile(grid[:, None, None, :], (1, N_LEVELS, N_POINTS, 1))
    for i in range(N_POINTS):
        grid[:, :, i, :] *= i + 1
    boff = jnp.asarray(grid.reshape(1, -1), jnp.float32)

    wa = jax.random.normal(ks[2], (D_MODEL, ATT_DIM), jnp.float32) * 0.05
    ba = jnp.zeros((1, ATT_DIM), jnp.float32)

    wo = xavier(ks[3], (VAL_DIM, D_MODEL))
    bo = jnp.zeros((1, D_MODEL), jnp.float32)
    return (wv, bv, woff, boff, wa, ba, wo, bo)


if __name__ == "__main__":
    key = jax.random.PRNGKey(0)
    k1, k2, k3, k4 = jax.random.split(key, 4)
    tgt = jax.random.normal(k1, (N_BATCH, LEN_Q, D_MODEL), jnp.float32)
    query_pos = jax.random.normal(k2, (N_BATCH, LEN_Q, D_MODEL), jnp.float32)
    src = jax.random.normal(k3, (N_BATCH, LEN_IN, D_MODEL), jnp.float32)
    reference_points = jax.random.uniform(k4, (N_BATCH, LEN_Q, N_LEVELS, 2),
                                          jnp.float32, 0.0, 1.0)
    params = make_params()

    out = deformable_cross_attention(tgt, query_pos, src, reference_points, params)
    out = jax.block_until_ready(out)

    ref = jax.block_until_ready(
        reference_forward(tgt, query_pos, src, reference_points, params))
    # tolerance accounts for the approximate EUP reciprocal used in the in-kernel softmax
    np.testing.assert_allclose(np.asarray(out), np.asarray(ref), rtol=2e-2, atol=2e-2)

    print("KERNEL_OK")
</pallas_src>

<mosaic_0001>
module attributes {stable_mosaic.version = 11 : i64} {
  func.func @deform_cross_attn_kernel(%arg0: memref<32x32xf32, #tpu.memory_space<vmem>>, %arg1: memref<32x32xf32, #tpu.memory_space<vmem>>, %arg2: memref<256x32xf32, #tpu.memory_space<vmem>>, %arg3: memref<32x10xf32, #tpu.memory_space<vmem>>, %arg4: memref<32x10xf32, #tpu.memory_space<vmem>>, %arg5: memref<32x32xf32, #tpu.memory_space<vmem>>, %arg6: memref<1x32xf32, #tpu.memory_space<vmem>>, %arg7: memref<32x120xf32, #tpu.memory_space<vmem>>, %arg8: memref<1x120xf32, #tpu.memory_space<vmem>>, %arg9: memref<32x32xf32, #tpu.memory_space<vmem>>, %arg10: memref<1x32xf32, #tpu.memory_space<vmem>>, %arg11: memref<1x10xf32, #tpu.memory_space<vmem>>, %arg12: memref<1x10xf32, #tpu.memory_space<vmem>>, %arg13: memref<5x1x128xf32, #tpu.memory_space<vmem>>, %arg14: memref<5x1x128xf32, #tpu.memory_space<vmem>>, %arg15: memref<32x32xf32, #tpu.memory_space<vmem>>, %arg16: memref<32x32xf32, #tpu.memory_space<vmem>>, %arg17: memref<256x32xf32, #tpu.memory_space<vmem>>) attributes {dimension_semantics = [], scalar_prefetch = 0 : i64, scratch_operands = 2 : i64, tpu.core_type = #tpu.core_type<tc>} {
    %c0 = arith.constant 0 : index
    %c0_0 = arith.constant 0 : index
    %0 = vector.load %arg0[%c0, %c0_0] : memref<32x32xf32, #tpu.memory_space<vmem>>, vector<32x32xf32>
    %c0_1 = arith.constant 0 : index
    %c0_2 = arith.constant 0 : index
    %1 = vector.load %arg1[%c0_1, %c0_2] : memref<32x32xf32, #tpu.memory_space<vmem>>, vector<32x32xf32>
    %2 = arith.addf %0, %1 : vector<32x32xf32>
    %c0_3 = arith.constant 0 : index
    %c0_4 = arith.constant 0 : index
    %3 = vector.load %arg2[%c0_3, %c0_4] : memref<256x32xf32, #tpu.memory_space<vmem>>, vector<256x32xf32>
    %c0_5 = arith.constant 0 : index
    %c0_6 = arith.constant 0 : index
    %4 = vector.load %arg5[%c0_5, %c0_6] : memref<32x32xf32, #tpu.memory_space<vmem>>, vector<32x32xf32>
    %cst = arith.constant dense<0.000000e+00> : vector<256x32xf32>
    %5 = tpu.matmul %3, %4, %cst {dimension_numbers = #tpu.dot_dimension_numbers<[1], [0], [0], [1], [0, 0, 1, 1], [], []>} : vector<256x32xf32>, vector<32x32xf32>, vector<256x32xf32> -> vector<256x32xf32>
    %c0_7 = arith.constant 0 : index
    %c0_8 = arith.constant 0 : index
    %6 = vector.load %arg6[%c0_7, %c0_8] : memref<1x32xf32, #tpu.memory_space<vmem>>, vector<1x32xf32>
    %7 = vector.broadcast %6 : vector<1x32xf32> to vector<256x32xf32>
    %8 = arith.addf %5, %7 : vector<256x32xf32>
    %c0_9 = arith.constant 0 : index
    %c0_10 = arith.constant 0 : index
    %9 = vector.load %arg17[%c0_9, %c0_10] : memref<256x32xf32, #tpu.memory_space<vmem>>, vector<256x32xf32>
    tpu.vector_store %arg17[%c0_9, %c0_10], %8 {strides = array<i32>} : memref<256x32xf32, #tpu.memory_space<vmem>>, vector<256x32xf32>,
    %c0_11 = arith.constant 0 : index
    %c0_12 = arith.constant 0 : index
    %10 = vector.load %arg7[%c0_11, %c0_12] : memref<32x120xf32, #tpu.memory_space<vmem>>, vector<32x120xf32>
    %cst_13 = arith.constant dense<0.000000e+00> : vector<32x120xf32>
    %11 = tpu.matmul %2, %10, %cst_13 {dimension_numbers = #tpu.dot_dimension_numbers<[1], [0], [0], [1], [0, 0, 1, 1], [], []>} : vector<32x32xf32>, vector<32x120xf32>, vector<32x120xf32> -> vector<32x120xf32>
    %c0_14 = arith.constant 0 : index
    %c0_15 = arith.constant 0 : index
    %12 = vector.load %arg8[%c0_14, %c0_15] : memref<1x120xf32, #tpu.memory_space<vmem>>, vector<1x120xf32>
    %13 = vector.broadcast %12 : vector<1x120xf32> to vector<32x120xf32>
    %14 = arith.addf %11, %13 : vector<32x120xf32>
    %c0_16 = arith.constant 0 : index
    %c0_17 = arith.constant 0 : index
    %15 = vector.load %arg3[%c0_16, %c0_17] : memref<32x10xf32, #tpu.memory_space<vmem>>, vector<32x10xf32>
    %c0_18 = arith.constant 0 : index
    %c0_19 = arith.constant 0 : index
    %16 = vector.load %arg11[%c0_18, %c0_19] : memref<1x10xf32, #tpu.memory_space<vmem>>, vector<1x10xf32>
    %17 = vector.broadcast %16 : vector<1x10xf32> to vector<32x10xf32>
    %18 = arith.mulf %15, %17 : vector<32x10xf32>
    %cst_20 = arith.constant 5.000000e-01 : f32
    %19 = vector.broadcast %cst_20 : f32 to vector<32x10xf32>
    %20 = arith.subf %18, %19 : vector<32x10xf32>
    %c0_21 = arith.constant 0 : index
    %c0_22 = arith.constant 0 : index
    %21 = vector.load %arg4[%c0_21, %c0_22] : memref<32x10xf32, #tpu.memory_space<vmem>>, vector<32x10xf32>
    %c0_23 = arith.constant 0 : index
    %c0_24 = arith.constant 0 : index
    %22 = vector.load %arg12[%c0_23, %c0_24] : memref<1x10xf32, #tpu.memory_space<vmem>>, vector<1x10xf32>
    %23 = vector.broadcast %22 : vector<1x10xf32> to vector<32x10xf32>
    %24 = arith.mulf %21, %23 : vector<32x10xf32>
    %cst_25 = arith.constant 5.000000e-01 : f32
    %25 = vector.broadcast %cst_25 : f32 to vector<32x10xf32>
    %26 = arith.subf %24, %25 : vector<32x10xf32>
    %27 = vector.extract_strided_slice %14 {offsets = [0, 80], sizes = [32, 10], strides = [1, 1]} : vector<32x120xf32> to vector<32x10xf32>
    %cst_26 = arith.constant dense<0xFF800000> : vector<32xf32>
    %28 = vector.multi_reduction <maximumf>, %27, %cst_26 [1] : vector<32x10xf32> to vector<32xf32>
    %29 = vector.shape_cast %28 : vector<32xf32> to vector<32x1xf32>
    %30 = vector.broadcast %29 : vector<32x1xf32> to vector<32x10xf32>
    %31 = arith.subf %27, %30 : vector<32x10xf32>
    %32 = math.exp %31 : vector<32x10xf32>
    %cst_27 = arith.constant dense<0.000000e+00> : vector<32xf32>
    %33 = vector.multi_reduction <add>, %32, %cst_27 [1] : vector<32x10xf32> to vector<32xf32>
    %34 = vector.shape_cast %33 : vector<32xf32> to vector<32x1xf32>
    %35 = tpu.reciprocal %34 {approx = true} : vector<32x1xf32> -> vector<32x1xf32>
    %36 = vector.broadcast %35 : vector<32x1xf32> to vector<32x10xf32>
    %37 = arith.mulf %32, %36 : vector<32x10xf32>
    %38 = vector.extract_strided_slice %14 {offsets = [0, 0], sizes = [32, 10], strides = [1, 1]} : vector<32x120xf32> to vector<32x10xf32>
    %39 = vector.extract_strided_slice %14 {offsets = [0, 10], sizes = [32, 10], strides = [1, 1]} : vector<32x120xf32> to vector<32x10xf32>
    %40 = arith.addf %20, %38 : vector<32x10xf32>
    %41 = arith.addf %26, %39 : vector<32x10xf32>
    %cst_28 = arith.constant 0.000000e+00 : f32
    %42 = vector.broadcast %cst_28 : f32 to vector<32x128xf32>
    %43 = vector.extract_strided_slice %40 {offsets = [0, 0], sizes = [32, 1], strides = [1, 1]} : vector<32x10xf32> to vector<32x1xf32>
    %c0_29 = arith.constant 0 : index
    %c0_30 = arith.constant 0 : index
    %c0_31 = arith.constant 0 : index
    %44 = vector.load %arg13[%c0_29, %c0_30, %c0_31] : memref<5x1x128xf32, #tpu.memory_space<vmem>>, vector<1x1x128xf32>
    %45 = vector.shape_cast %44 : vector<1x1x128xf32> to vector<1x128xf32>
    %46 = vector.broadcast %43 : vector<32x1xf32> to vector<32x128xf32>
    %47 = vector.broadcast %45 : vector<1x128xf32> to vector<32x128xf32>
    %48 = arith.subf %46, %47 : vector<32x128xf32>
    %49 = math.absf %48 : vector<32x128xf32>
    %cst_32 = arith.constant 1.000000e+00 : f32
    %50 = vector.broadcast %cst_32 : f32 to vector<32x128xf32>
    %51 = arith.subf %50, %49 : vector<32x128xf32>
    %cst_33 = arith.constant 0.000000e+00 : f32
    %52 = vector.broadcast %cst_33 : f32 to vector<32x128xf32>
    %53 = arith.maximumf %51, %52 : vector<32x128xf32>
    %54 = vector.extract_strided_slice %41 {offsets = [0, 0], sizes = [32, 1], strides = [1, 1]} : vector<32x10xf32> to vector<32x1xf32>
    %c0_34 = arith.constant 0 : index
    %c0_35 = arith.constant 0 : index
    %c0_36 = arith.constant 0 : index
    %55 = vector.load %arg14[%c0_34, %c0_35, %c0_36] : memref<5x1x128xf32, #tpu.memory_space<vmem>>, vector<1x1x128xf32>
    %56 = vector.shape_cast %55 : vector<1x1x128xf32> to vector<1x128xf32>
    %57 = vector.broadcast %54 : vector<32x1xf32> to vector<32x128xf32>
    %58 = vector.broadcast %56 : vector<1x128xf32> to vector<32x128xf32>
    %59 = arith.subf %57, %58 : vector<32x128xf32>
    %60 = math.absf %59 : vector<32x128xf32>
    %cst_37 = arith.constant 1.000000e+00 : f32
    %61 = vector.broadcast %cst_37 : f32 to vector<32x128xf32>
    %62 = arith.subf %61, %60 : vector<32x128xf32>
    %cst_38 = arith.constant 0.000000e+00 : f32
    %63 = vector.broadcast %cst_38 : f32 to vector<32x128xf32>
    %64 = arith.maximumf %62, %63 : vector<32x128xf32>
    %65 = arith.mulf %53, %64 : vector<32x128xf32>
    %66 = vector.extract_strided_slice %37 {offsets = [0, 0], sizes = [32, 1], strides = [1, 1]} : vector<32x10xf32> to vector<32x1xf32>
    %67 = vector.broadcast %66 : vector<32x1xf32> to vector<32x128xf32>
    %68 = arith.mulf %65, %67 : vector<32x128xf32>
    %69 = arith.addf %42, %68 : vector<32x128xf32>
    %70 = vector.extract_strided_slice %40 {offsets = [0, 1], sizes = [32, 1], strides = [1, 1]} : vector<32x10xf32> to vector<32x1xf32>
    %c0_39 = arith.constant 0 : index
    %c0_40 = arith.constant 0 : index
    %c0_41 = arith.constant 0 : index
    %71 = vector.load %arg13[%c0_39, %c0_40, %c0_41] : memref<5x1x128xf32, #tpu.memory_space<vmem>>, vector<1x1x128xf32>
    %72 = vector.shape_cast %71 : vector<1x1x128xf32> to vector<1x128xf32>
    %73 = vector.broadcast %70 : vector<32x1xf32> to vector<32x128xf32>
    %74 = vector.broadcast %72 : vector<1x128xf32> to vector<32x128xf32>
    %75 = arith.subf %73, %74 : vector<32x128xf32>
    %76 = math.absf %75 : vector<32x128xf32>
    %cst_42 = arith.constant 1.000000e+00 : f32
    %77 = vector.broadcast %cst_42 : f32 to vector<32x128xf32>
    %78 = arith.subf %77, %76 : vector<32x128xf32>
    %cst_43 = arith.constant 0.000000e+00 : f32
    %79 = vector.broadcast %cst_43 : f32 to vector<32x128xf32>
    %80 = arith.maximumf %78, %79 : vector<32x128xf32>
    %81 = vector.extract_strided_slice %41 {offsets = [0, 1], sizes = [32, 1], strides = [1, 1]} : vector<32x10xf32> to vector<32x1xf32>
    %c0_44 = arith.constant 0 : index
    %c0_45 = arith.constant 0 : index
    %c0_46 = arith.constant 0 : index
    %82 = vector.load %arg14[%c0_44, %c0_45, %c0_46] : memref<5x1x128xf32, #tpu.memory_space<vmem>>, vector<1x1x128xf32>
    %83 = vector.shape_cast %82 : vector<1x1x128xf32> to vector<1x128xf32>
    %84 = vector.broadcast %81 : vector<32x1xf32> to vector<32x128xf32>
    %85 = vector.broadcast %83 : vector<1x128xf32> to vector<32x128xf32>
    %86 = arith.subf %84, %85 : vector<32x128xf32>
    %87 = math.absf %86 : vector<32x128xf32>
    %cst_47 = arith.constant 1.000000e+00 : f32
    %88 = vector.broadcast %cst_47 : f32 to vector<32x128xf32>
    %89 = arith.subf %88, %87 : vector<32x128xf32>
    %cst_48 = arith.constant 0.000000e+00 : f32
    %90 = vector.broadcast %cst_48 : f32 to vector<32x128xf32>
    %91 = arith.maximumf %89, %90 : vector<32x128xf32>
    %92 = arith.mulf %80, %91 : vector<32x128xf32>
    %93 = vector.extract_strided_slice %37 {offsets = [0, 1], sizes = [32, 1], strides = [1, 1]} : vector<32x10xf32> to vector<32x1xf32>
    %94 = vector.broadcast %93 : vector<32x1xf32> to vector<32x128xf32>
    %95 = arith.mulf %92, %94 : vector<32x128xf32>
    %96 = arith.addf %69, %95 : vector<32x128xf32>
    %97 = vector.extract_strided_slice %40 {offsets = [0, 2], sizes = [32, 1], strides = [1, 1]} : vector<32x10xf32> to vector<32x1xf32>
    %c1 = arith.constant 1 : index
    %c0_49 = arith.constant 0 : index
    %c0_50 = arith.constant 0 : index
    %98 = vector.load %arg13[%c1, %c0_49, %c0_50] : memref<5x1x128xf32, #tpu.memory_space<vmem>>, vector<1x1x128xf32>
    %99 = vector.shape_cast %98 : vector<1x1x128xf32> to vector<1x128xf32>
    %100 = vector.broadcast %97 : vector<32x1xf32> to vector<32x128xf32>
    %101 = vector.broadcast %99 : vector<1x128xf32> to vector<32x128xf32>
    %102 = arith.subf %100, %101 : vector<32x128xf32>
    %103 = math.absf %102 : vector<32x128xf32>
    %cst_51 = arith.constant 1.000000e+00 : f32
    %104 = vector.broadcast %cst_51 : f32 to vector<32x128xf32>
    %105 = arith.subf %104, %103 : vector<32x128xf32>
    %cst_52 = arith.constant 0.000000e+00 : f32
    %106 = vector.broadcast %cst_52 : f32 to vector<32x128xf32>
    %107 = arith.maximumf %105, %106 : vector<32x128xf32>
    %108 = vector.extract_strided_slice %41 {offsets = [0, 2], sizes = [32, 1], strides = [1, 1]} : vector<32x10xf32> to vector<32x1xf32>
    %c1_53 = arith.constant 1 : index
    %c0_54 = arith.constant 0 : index
    %c0_55 = arith.constant 0 : index
    %109 = vector.load %arg14[%c1_53, %c0_54, %c0_55] : memref<5x1x128xf32, #tpu.memory_space<vmem>>, vector<1x1x128xf32>
    %110 = vector.shape_cast %109 : vector<1x1x128xf32> to vector<1x128xf32>
    %111 = vector.broadcast %108 : vector<32x1xf32> to vector<32x128xf32>
    %112 = vector.broadcast %110 : vector<1x128xf32> to vector<32x128xf32>
    %113 = arith.subf %111, %112 : vector<32x128xf32>
    %114 = math.absf %113 : vector<32x128xf32>
    %cst_56 = arith.constant 1.000000e+00 : f32
    %115 = vector.broadcast %cst_56 : f32 to vector<32x128xf32>
    %116 = arith.subf %115, %114 : vector<32x128xf32>
    %cst_57 = arith.constant 0.000000e+00 : f32
    %117 = vector.broadcast %cst_57 : f32 to vector<32x128xf32>
    %118 = arith.maximumf %116, %117 : vector<32x128xf32>
    %119 = arith.mulf %107, %118 : vector<32x128xf32>
    %120 = vector.extract_strided_slice %37 {offsets = [0, 2], sizes = [32, 1], strides = [1, 1]} : vector<32x10xf32> to vector<32x1xf32>
    %121 = vector.broadcast %120 : vector<32x1xf32> to vector<32x128xf32>
    %122 = arith.mulf %119, %121 : vector<32x128xf32>
    %123 = arith.addf %96, %122 : vector<32x128xf32>
    %124 = vector.extract_strided_slice %40 {offsets = [0, 3], sizes = [32, 1], strides = [1, 1]} : vector<32x10xf32> to vector<32x1xf32>
    %c1_58 = arith.constant 1 : index
    %c0_59 = arith.constant 0 : index
    %c0_60 = arith.constant 0 : index
    %125 = vector.load %arg13[%c1_58, %c0_59, %c0_60] : memref<5x1x128xf32, #tpu.memory_space<vmem>>, vector<1x1x128xf32>
    %126 = vector.shape_cast %125 : vector<1x1x128xf32> to vector<1x128xf32>
    %127 = vector.broadcast %124 : vector<32x1xf32> to vector<32x128xf32>
    %128 = vector.broadcast %126 : vector<1x128xf32> to vector<32x128xf32>
    %129 = arith.subf %127, %128 : vector<32x128xf32>
    %130 = math.absf %129 : vector<32x128xf32>
    %cst_61 = arith.constant 1.000000e+00 : f32
    %131 = vector.broadcast %cst_61 : f32 to vector<32x128xf32>
    %132 = arith.subf %131, %130 : vector<32x128xf32>
    %cst_62 = arith.constant 0.000000e+00 : f32
    %133 = vector.broadcast %cst_62 : f32 to vector<32x128xf32>
    %134 = arith.maximumf %132, %133 : vector<32x128xf32>
    %135 = vector.extract_strided_slice %41 {offsets = [0, 3], sizes = [32, 1], strides = [1, 1]} : vector<32x10xf32> to vector<32x1xf32>
    %c1_63 = arith.constant 1 : index
    %c0_64 = arith.constant 0 : index
    %c0_65 = arith.constant 0 : index
    %136 = vector.load %arg14[%c1_63, %c0_64, %c0_65] : memref<5x1x128xf32, #tpu.memory_space<vmem>>, vector<1x1x128xf32>
    %137 = vector.shape_cast %136 : vector<1x1x128xf32> to vector<1x128xf32>
    %138 = vector.broadcast %135 : vector<32x1xf32> to vector<32x128xf32>
    %139 = vector.broadcast %137 : vector<1x128xf32> to vector<32x128xf32>
    %140 = arith.subf %138, %139 : vector<32x128xf32>
    %141 = math.absf %140 : vector<32x128xf32>
    %cst_66 = arith.constant 1.000000e+00 : f32
    %142 = vector.broadcast %cst_66 : f32 to vector<32x128xf32>
    %143 = arith.subf %142, %141 : vector<32x128xf32>
    %cst_67 = arith.constant 0.000000e+00 : f32
    %144 = vector.broadcast %cst_67 : f32 to vector<32x128xf32>
    %145 = arith.maximumf %143, %144 : vector<32x128xf32>
    %146 = arith.mulf %134, %145 : vector<32x128xf32>
    %147 = vector.extract_strided_slice %37 {offsets = [0, 3], sizes = [32, 1], strides = [1, 1]} : vector<32x10xf32> to vector<32x1xf32>
    %148 = vector.broadcast %147 : vector<32x1xf32> to vector<32x128xf32>
    %149 = arith.mulf %146, %148 : vector<32x128xf32>
    %150 = arith.addf %123, %149 : vector<32x128xf32>
    %151 = vector.extract_strided_slice %40 {offsets = [0, 4], sizes = [32, 1], strides = [1, 1]} : vector<32x10xf32> to vector<32x1xf32>
    %c2 = arith.constant 2 : index
    %c0_68 = arith.constant 0 : index
    %c0_69 = arith.constant 0 : index
    %152 = vector.load %arg13[%c2, %c0_68, %c0_69] : memref<5x1x128xf32, #tpu.memory_space<vmem>>, vector<1x1x128xf32>
    %153 = vector.shape_cast %152 : vector<1x1x128xf32> to vector<1x128xf32>
    %154 = vector.broadcast %151 : vector<32x1xf32> to vector<32x128xf32>
    %155 = vector.broadcast %153 : vector<1x128xf32> to vector<32x128xf32>
    %156 = arith.subf %154, %155 : vector<32x128xf32>
    %157 = math.absf %156 : vector<32x128xf32>
    %cst_70 = arith.constant 1.000000e+00 : f32
    %158 = vector.broadcast %cst_70 : f32 to vector<32x128xf32>
    %159 = arith.subf %158, %157 : vector<32x128xf32>
    %cst_71 = arith.constant 0.000000e+00 : f32
    %160 = vector.broadcast %cst_71 : f32 to vector<32x128xf32>
    %161 = arith.maximumf %159, %160 : vector<32x128xf32>
    %162 = vector.extract_strided_slice %41 {offsets = [0, 4], sizes = [32, 1], strides = [1, 1]} : vector<32x10xf32> to vector<32x1xf32>
    %c2_72 = arith.constant 2 : index
    %c0_73 = arith.constant 0 : index
    %c0_74 = arith.constant 0 : index
    %163 = vector.load %arg14[%c2_72, %c0_73, %c0_74] : memref<5x1x128xf32, #tpu.memory_space<vmem>>, vector<1x1x128xf32>
    %164 = vector.shape_cast %163 : vector<1x1x128xf32> to vector<1x128xf32>
    %165 = vector.broadcast %162 : vector<32x1xf32> to vector<32x128xf32>
    %166 = vector.broadcast %164 : vector<1x128xf32> to vector<32x128xf32>
    %167 = arith.subf %165, %166 : vector<32x128xf32>
    %168 = math.absf %167 : vector<32x128xf32>
    %cst_75 = arith.constant 1.000000e+00 : f32
    %169 = vector.broadcast %cst_75 : f32 to vector<32x128xf32>
    %170 = arith.subf %169, %168 : vector<32x128xf32>
    %cst_76 = arith.constant 0.000000e+00 : f32
    %171 = vector.broadcast %cst_76 : f32 to vector<32x128xf32>
    %172 = arith.maximumf %170, %171 : vector<32x128xf32>
    %173 = arith.mulf %161, %172 : vector<32x128xf32>
    %174 = vector.extract_strided_slice %37 {offsets = [0, 4], sizes = [32, 1], strides = [1, 1]} : vector<32x10xf32> to vector<32x1xf32>
    %175 = vector.broadcast %174 : vector<32x1xf32> to vector<32x128xf32>
    %176 = arith.mulf %173, %175 : vector<32x128xf32>
    %177 = arith.addf %150, %176 : vector<32x128xf32>
    %178 = vector.extract_strided_slice %40 {offsets = [0, 5], sizes = [32, 1], strides = [1, 1]} : vector<32x10xf32> to vector<32x1xf32>
    %c2_77 = arith.constant 2 : index
    %c0_78 = arith.constant 0 : index
    %c0_79 = arith.constant 0 : index
    %179 = vector.load %arg13[%c2_77, %c0_78, %c0_79] : memref<5x1x128xf32, #tpu.memory_space<vmem>>, vector<1x1x128xf32>
    %180 = vector.shape_cast %179 : vector<1x1x128xf32> to vector<1x128xf32>
    %181 = vector.broadcast %178 : vector<32x1xf32> to vector<32x128xf32>
    %182 = vector.broadcast %180 : vector<1x128xf32> to vector<32x128xf32>
    %183 = arith.subf %181, %182 : vector<32x128xf32>
    %184 = math.absf %183 : vector<32x128xf32>
    %cst_80 = arith.constant 1.000000e+00 : f32
    %185 = vector.broadcast %cst_80 : f32 to vector<32x128xf32>
    %186 = arith.subf %185, %184 : vector<32x128xf32>
    %cst_81 = arith.constant 0.000000e+00 : f32
    %187 = vector.broadcast %cst_81 : f32 to vector<32x128xf32>
    %188 = arith.maximumf %186, %187 : vector<32x128xf32>
    %189 = vector.extract_strided_slice %41 {offsets = [0, 5], sizes = [32, 1], strides = [1, 1]} : vector<32x10xf32> to vector<32x1xf32>
    %c2_82 = arith.constant 2 : index
    %c0_83 = arith.constant 0 : index
    %c0_84 = arith.constant 0 : index
    %190 = vector.load %arg14[%c2_82, %c0_83, %c0_84] : memref<5x1x128xf32, #tpu.memory_space<vmem>>, vector<1x1x128xf32>
    %191 = vector.shape_cast %190 : vector<1x1x128xf32> to vector<1x128xf32>
    %192 = vector.broadcast %189 : vector<32x1xf32> to vector<32x128xf32>
    %193 = vector.broadcast %191 : vector<1x128xf32> to vector<32x128xf32>
    %194 = arith.subf %192, %193 : vector<32x128xf32>
    %195 = math.absf %194 : vector<32x128xf32>
    %cst_85 = arith.constant 1.000000e+00 : f32
    %196 = vector.broadcast %cst_85 : f32 to vector<32x128xf32>
    %197 = arith.subf %196, %195 : vector<32x128xf32>
    %cst_86 = arith.constant 0.000000e+00 : f32
    %198 = vector.broadcast %cst_86 : f32 to vector<32x128xf32>
    %199 = arith.maximumf %197, %198 : vector<32x128xf32>
    %200 = arith.mulf %188, %199 : vector<32x128xf32>
    %201 = vector.extract_strided_slice %37 {offsets = [0, 5], sizes = [32, 1], strides = [1, 1]} : vector<32x10xf32> to vector<32x1xf32>
    %202 = vector.broadcast %201 : vector<32x1xf32> to vector<32x128xf32>
    %203 = arith.mulf %200, %202 : vector<32x128xf32>
    %204 = arith.addf %177, %203 : vector<32x128xf32>
    %205 = vector.extract_strided_slice %40 {offsets = [0, 6], sizes = [32, 1], strides = [1, 1]} : vector<32x10xf32> to vector<32x1xf32>
    %c3 = arith.constant 3 : index
    %c0_87 = arith.constant 0 : index
    %c0_88 = arith.constant 0 : index
    %206 = vector.load %arg13[%c3, %c0_87, %c0_88] : memref<5x1x128xf32, #tpu.memory_space<vmem>>, vector<1x1x128xf32>
    %207 = vector.shape_cast %206 : vector<1x1x128xf32> to vector<1x128xf32>
    %208 = vector.broadcast %205 : vector<32x1xf32> to vector<32x128xf32>
    %209 = vector.broadcast %207 : vector<1x128xf32> to vector<32x128xf32>
    %210 = arith.subf %208, %209 : vector<32x128xf32>
    %211 = math.absf %210 : vector<32x128xf32>
    %cst_89 = arith.constant 1.000000e+00 : f32
    %212 = vector.broadcast %cst_89 : f32 to vector<32x128xf32>
    %213 = arith.subf %212, %211 : vector<32x128xf32>
    %cst_90 = arith.constant 0.000000e+00 : f32
    %214 = vector.broadcast %cst_90 : f32 to vector<32x128xf32>
    %215 = arith.maximumf %213, %214 : vector<32x128xf32>
    %216 = vector.extract_strided_slice %41 {offsets = [0, 6], sizes = [32, 1], strides = [1, 1]} : vector<32x10xf32> to vector<32x1xf32>
    %c3_91 = arith.constant 3 : index
    %c0_92 = arith.constant 0 : index
    %c0_93 = arith.constant 0 : index
    %217 = vector.load %arg14[%c3_91, %c0_92, %c0_93] : memref<5x1x128xf32, #tpu.memory_space<vmem>>, vector<1x1x128xf32>
    %218 = vector.shape_cast %217 : vector<1x1x128xf32> to vector<1x128xf32>
    %219 = vector.broadcast %216 : vector<32x1xf32> to vector<32x128xf32>
    %220 = vector.broadcast %218 : vector<1x128xf32> to vector<32x128xf32>
    %221 = arith.subf %219, %220 : vector<32x128xf32>
    %222 = math.absf %221 : vector<32x128xf32>
    %cst_94 = arith.constant 1.000000e+00 : f32
    %223 = vector.broadcast %cst_94 : f32 to vector<32x128xf32>
    %224 = arith.subf %223, %222 : vector<32x128xf32>
    %cst_95 = arith.constant 0.000000e+00 : f32
    %225 = vector.broadcast %cst_95 : f32 to vector<32x128xf32>
    %226 = arith.maximumf %224, %225 : vector<32x128xf32>
    %227 = arith.mulf %215, %226 : vector<32x128xf32>
    %228 = vector.extract_strided_slice %37 {offsets = [0, 6], sizes = [32, 1], strides = [1, 1]} : vector<32x10xf32> to vector<32x1xf32>
    %229 = vector.broadcast %228 : vector<32x1xf32> to vector<32x128xf32>
    %230 = arith.mulf %227, %229 : vector<32x128xf32>
    %231 = arith.addf %204, %230 : vector<32x128xf32>
    %232 = vector.extract_strided_slice %40 {offsets = [0, 7], sizes = [32, 1], strides = [1, 1]} : vector<32x10xf32> to vector<32x1xf32>
    %c3_96 = arith.constant 3 : index
    %c0_97 = arith.constant 0 : index
    %c0_98 = arith.constant 0 : index
    %233 = vector.load %arg13[%c3_96, %c0_97, %c0_98] : memref<5x1x128xf32, #tpu.memory_space<vmem>>, vector<1x1x128xf32>
    %234 = vector.shape_cast %233 : vector<1x1x128xf32> to vector<1x128xf32>
    %235 = vector.broadcast %232 : vector<32x1xf32> to vector<32x128xf32>
    %236 = vector.broadcast %234 : vector<1x128xf32> to vector<32x128xf32>
    %237 = arith.subf %235, %236 : vector<32x128xf32>
    %238 = math.absf %237 : vector<32x128xf32>
    %cst_99 = arith.constant 1.000000e+00 : f32
    %239 = vector.broadcast %cst_99 : f32 to vector<32x128xf32>
    %240 = arith.subf %239, %238 : vector<32x128xf32>
    %cst_100 = arith.constant 0.000000e+00 : f32
    %241 = vector.broadcast %cst_100 : f32 to vector<32x128xf32>
    %242 = arith.maximumf %240, %241 : vector<32x128xf32>
    %243 = vector.extract_strided_slice %41 {offsets = [0, 7], sizes = [32, 1], strides = [1, 1]} : vector<32x10xf32> to vector<32x1xf32>
    %c3_101 = arith.constant 3 : index
    %c0_102 = arith.constant 0 : index
    %c0_103 = arith.constant 0 : index
    %244 = vector.load %arg14[%c3_101, %c0_102, %c0_103] : memref<5x1x128xf32, #tpu.memory_space<vmem>>, vector<1x1x128xf32>
    %245 = vector.shape_cast %244 : vector<1x1x128xf32> to vector<1x128xf32>
    %246 = vector.broadcast %243 : vector<32x1xf32> to vector<32x128xf32>
    %247 = vector.broadcast %245 : vector<1x128xf32> to vector<32x128xf32>
    %248 = arith.subf %246, %247 : vector<32x128xf32>
    %249 = math.absf %248 : vector<32x128xf32>
    %cst_104 = arith.constant 1.000000e+00 : f32
    %250 = vector.broadcast %cst_104 : f32 to vector<32x128xf32>
    %251 = arith.subf %250, %249 : vector<32x128xf32>
    %cst_105 = arith.constant 0.000000e+00 : f32
    %252 = vector.broadcast %cst_105 : f32 to vector<32x128xf32>
    %253 = arith.maximumf %251, %252 : vector<32x128xf32>
    %254 = arith.mulf %242, %253 : vector<32x128xf32>
    %255 = vector.extract_strided_slice %37 {offsets = [0, 7], sizes = [32, 1], strides = [1, 1]} : vector<32x10xf32> to vector<32x1xf32>
    %256 = vector.broadcast %255 : vector<32x1xf32> to vector<32x128xf32>
    %257 = arith.mulf %254, %256 : vector<32x128xf32>
    %258 = arith.addf %231, %257 : vector<32x128xf32>
    %259 = vector.extract_strided_slice %40 {offsets = [0, 8], sizes = [32, 1], strides = [1, 1]} : vector<32x10xf32> to vector<32x1xf32>
    %c4 = arith.constant 4 : index
    %c0_106 = arith.constant 0 : index
    %c0_107 = arith.constant 0 : index
    %260 = vector.load %arg13[%c4, %c0_106, %c0_107] : memref<5x1x128xf32, #tpu.memory_space<vmem>>, vector<1x1x128xf32>
    %261 = vector.shape_cast %260 : vector<1x1x128xf32> to vector<1x128xf32>
    %262 = vector.broadcast %259 : vector<32x1xf32> to vector<32x128xf32>
    %263 = vector.broadcast %261 : vector<1x128xf32> to vector<32x128xf32>
    %264 = arith.subf %262, %263 : vector<32x128xf32>
    %265 = math.absf %264 : vector<32x128xf32>
    %cst_108 = arith.constant 1.000000e+00 : f32
    %266 = vector.broadcast %cst_108 : f32 to vector<32x128xf32>
    %267 = arith.subf %266, %265 : vector<32x128xf32>
    %cst_109 = arith.constant 0.000000e+00 : f32
    %268 = vector.broadcast %cst_109 : f32 to vector<32x128xf32>
    %269 = arith.maximumf %267, %268 : vector<32x128xf32>
    %270 = vector.extract_strided_slice %41 {offsets = [0, 8], sizes = [32, 1], strides = [1, 1]} : vector<32x10xf32> to vector<32x1xf32>
    %c4_110 = arith.constant 4 : index
    %c0_111 = arith.constant 0 : index
    %c0_112 = arith.constant 0 : index
    %271 = vector.load %arg14[%c4_110, %c0_111, %c0_112] : memref<5x1x128xf32, #tpu.memory_space<vmem>>, vector<1x1x128xf32>
    %272 = vector.shape_cast %271 : vector<1x1x128xf32> to vector<1x128xf32>
    %273 = vector.broadcast %270 : vector<32x1xf32> to vector<32x128xf32>
    %274 = vector.broadcast %272 : vector<1x128xf32> to vector<32x128xf32>
    %275 = arith.subf %273, %274 : vector<32x128xf32>
    %276 = math.absf %275 : vector<32x128xf32>
    %cst_113 = arith.constant 1.000000e+00 : f32
    %277 = vector.broadcast %cst_113 : f32 to vector<32x128xf32>
    %278 = arith.subf %277, %276 : vector<32x128xf32>
    %cst_114 = arith.constant 0.000000e+00 : f32
    %279 = vector.broadcast %cst_114 : f32 to vector<32x128xf32>
    %280 = arith.maximumf %278, %279 : vector<32x128xf32>
    %281 = arith.mulf %269, %280 : vector<32x128xf32>
    %282 = vector.extract_strided_slice %37 {offsets = [0, 8], sizes = [32, 1], strides = [1, 1]} : vector<32x10xf32> to vector<32x1xf32>
    %283 = vector.broadcast %282 : vector<32x1xf32> to vector<32x128xf32>
    %284 = arith.mulf %281, %283 : vector<32x128xf32>
    %285 = arith.addf %258, %284 : vector<32x128xf32>
    %286 = vector.extract_strided_slice %40 {offsets = [0, 9], sizes = [32, 1], strides = [1, 1]} : vector<32x10xf32> to vector<32x1xf32>
    %c4_115 = arith.constant 4 : index
    %c0_116 = arith.constant 0 : index
    %c0_117 = arith.constant 0 : index
    %287 = vector.load %arg13[%c4_115, %c0_116, %c0_117] : memref<5x1x128xf32, #tpu.memory_space<vmem>>, vector<1x1x128xf32>
    %288 = vector.shape_cast %287 : vector<1x1x128xf32> to vector<1x128xf32>
    %289 = vector.broadcast %286 : vector<32x1xf32> to vector<32x128xf32>
    %290 = vector.broadcast %288 : vector<1x128xf32> to vector<32x128xf32>
    %291 = arith.subf %289, %290 : vector<32x128xf32>
    %292 = math.absf %291 : vector<32x128xf32>
    %cst_118 = arith.constant 1.000000e+00 : f32
    %293 = vector.broadcast %cst_118 : f32 to vector<32x128xf32>
    %294 = arith.subf %293, %292 : vector<32x128xf32>
    %cst_119 = arith.constant 0.000000e+00 : f32
    %295 = vector.broadcast %cst_119 : f32 to vector<32x128xf32>
    %296 = arith.maximumf %294, %295 : vector<32x128xf32>
    %297 = vector.extract_strided_slice %41 {offsets = [0, 9], sizes = [32, 1], strides = [1, 1]} : vector<32x10xf32> to vector<32x1xf32>
    %c4_120 = arith.constant 4 : index
    %c0_121 = arith.constant 0 : index
    %c0_122 = arith.constant 0 : index
    %298 = vector.load %arg14[%c4_120, %c0_121, %c0_122] : memref<5x1x128xf32, #tpu.memory_space<vmem>>, vector<1x1x128xf32>
    %299 = vector.shape_cast %298 : vector<1x1x128xf32> to vector<1x128xf32>
    %300 = vector.broadcast %297 : vector<32x1xf32> to vector<32x128xf32>
    %301 = vector.broadcast %299 : vector<1x128xf32> to vector<32x128xf32>
    %302 = arith.subf %300, %301 : vector<32x128xf32>
    %303 = math.absf %302 : vector<32x128xf32>
    %cst_123 = arith.constant 1.000000e+00 : f32
    %304 = vector.broadcast %cst_123 : f32 to vector<32x128xf32>
    %305 = arith.subf %304, %303 : vector<32x128xf32>
    %cst_124 = arith.constant 0.000000e+00 : f32
    %306 = vector.broadcast %cst_124 : f32 to vector<32x128xf32>
    %307 = arith.maximumf %305, %306 : vector<32x128xf32>
    %308 = arith.mulf %296, %307 : vector<32x128xf32>
    %309 = vector.extract_strided_slice %37 {offsets = [0, 9], sizes = [32, 1], strides = [1, 1]} : vector<32x10xf32> to vector<32x1xf32>
    %310 = vector.broadcast %309 : vector<32x1xf32> to vector<32x128xf32>
    %311 = arith.mulf %308, %310 : vector<32x128xf32>
    %312 = arith.addf %285, %311 : vector<32x128xf32>
    %313 = vector.extract_strided_slice %312 {offsets = [0, 0], sizes = [16, 128], strides = [1, 1]} : vector<32x128xf32> to vector<16x128xf32>
    %c0_125 = arith.constant 0 : index
    %c0_126 = arith.constant 0 : index
    %314 = vector.load %arg17[%c0_125, %c0_126] : memref<256x32xf32, #tpu.memory_space<vmem>>, vector<128x8xf32>
    %cst_127 = arith.constant dense<0.000000e+00> : vector<16x8xf32>
    %315 = tpu.matmul %313, %314, %cst_127 {dimension_numbers = #tpu.dot_dimension_numbers<[1], [0], [0], [1], [0, 0, 1, 1], [], []>} : vector<16x128xf32>, vector<128x8xf32>, vector<16x8xf32> -> vector<16x8xf32>
    %c0_128 = arith.constant 0 : index
    %c0_129 = arith.constant 0 : index
    %316 = vector.load %arg16[%c0_128, %c0_129] : memref<32x32xf32, #tpu.memory_space<vmem>>, vector<16x8xf32>
    tpu.vector_store %arg16[%c0_128, %c0_129], %315 {strides = array<i32>} : memref<32x32xf32, #tpu.memory_space<vmem>>, vector<16x8xf32>,
    %317 = vector.extract_strided_slice %312 {offsets = [16, 0], sizes = [16, 128], strides = [1, 1]} : vector<32x128xf32> to vector<16x128xf32>
    %c128 = arith.constant 128 : index
    %c0_130 = arith.constant 0 : index
    %318 = vector.load %arg17[%c128, %c0_130] : memref<256x32xf32, #tpu.memory_space<vmem>>, vector<128x8xf32>
    %cst_131 = arith.constant dense<0.000000e+00> : vector<16x8xf32>
    %319 = tpu.matmul %317, %318, %cst_131 {dimension_numbers = #tpu.dot_dimension_numbers<[1], [0], [0], [1], [0, 0, 1, 1], [], []>} : vector<16x128xf32>, vector<128x8xf32>, vector<16x8xf32> -> vector<16x8xf32>
    %c16 = arith.constant 16 : index
    %c0_132 = arith.constant 0 : index
    %320 = vector.load %arg16[%c16, %c0_132] : memref<32x32xf32, #tpu.memory_space<vmem>>, vector<16x8xf32>
    tpu.vector_store %arg16[%c16, %c0_132], %319 {strides = array<i32>} : memref<32x32xf32, #tpu.memory_space<vmem>>, vector<16x8xf32>,
    %321 = vector.extract_strided_slice %14 {offsets = [0, 90], sizes = [32, 10], strides = [1, 1]} : vector<32x120xf32> to vector<32x10xf32>
    %cst_133 = arith.constant dense<0xFF800000> : vector<32xf32>
    %322 = vector.multi_reduction <maximumf>, %321, %cst_133 [1] : vector<32x10xf32> to vector<32xf32>
    %323 = vector.shape_cast %322 : vector<32xf32> to vector<32x1xf32>
    %324 = vector.broadcast %323 : vector<32x1xf32> to vector<32x10xf32>
    %325 = arith.subf %321, %324 : vector<32x10xf32>
    %326 = math.exp %325 : vector<32x10xf32>
    %cst_134 = arith.constant dense<0.000000e+00> : vector<32xf32>
    %327 = vector.multi_reduction <add>, %326, %cst_134 [1] : vector<32x10xf32> to vector<32xf32>
    %328 = vector.shape_cast %327 : vector<32xf32> to vector<32x1xf32>
    %329 = tpu.reciprocal %328 {approx = true} : vector<32x1xf32> -> vector<32x1xf32>
    %330 = vector.broadcast %329 : vector<32x1xf32> to vector<32x10xf32>
    %331 = arith.mulf %326, %330 : vector<32x10xf32>
    %332 = vector.extract_strided_slice %14 {offsets = [0, 20], sizes = [32, 10], strides = [1, 1]} : vector<32x120xf32> to vector<32x10xf32>
    %333 = vector.extract_strided_slice %14 {offsets = [0, 30], sizes = [32, 10], strides = [1, 1]} : vector<32x120xf32> to vector<32x10xf32>
    %334 = arith.addf %20, %332 : vector<32x10xf32>
    %335 = arith.addf %26, %333 : vector<32x10xf32>
    %cst_135 = arith.constant 0.000000e+00 : f32
    %336 = vector.broadcast %cst_135 : f32 to vector<32x128xf32>
    %337 = vector.extract_strided_slice %334 {offsets = [0, 0], sizes = [32, 1], strides = [1, 1]} : vector<32x10xf32> to vector<32x1xf32>
    %c0_136 = arith.constant 0 : index
    %c0_137 = arith.constant 0 : index
    %c0_138 = arith.constant 0 : index
    %338 = vector.load %arg13[%c0_136, %c0_137, %c0_138] : memref<5x1x128xf32, #tpu.memory_space<vmem>>, vector<1x1x128xf32>
    %339 = vector.shape_cast %338 : vector<1x1x128xf32> to vector<1x128xf32>
    %340 = vector.broadcast %337 : vector<32x1xf32> to vector<32x128xf32>
    %341 = vector.broadcast %339 : vector<1x128xf32> to vector<32x128xf32>
    %342 = arith.subf %340, %341 : vector<32x128xf32>
    %343 = math.absf %342 : vector<32x128xf32>
    %cst_139 = arith.constant 1.000000e+00 : f32
    %344 = vector.broadcast %cst_139 : f32 to vector<32x128xf32>
    %345 = arith.subf %344, %343 : vector<32x128xf32>
    %cst_140 = arith.constant 0.000000e+00 : f32
    %346 = vector.broadcast %cst_140 : f32 to vector<32x128xf32>
    %347 = arith.maximumf %345, %346 : vector<32x128xf32>
    %348 = vector.extract_strided_slice %335 {offsets = [0, 0], sizes = [32, 1], strides = [1, 1]} : vector<32x10xf32> to vector<32x1xf32>
    %c0_141 = arith.constant 0 : index
    %c0_142 = arith.constant 0 : index
    %c0_143 = arith.constant 0 : index
    %349 = vector.load %arg14[%c0_141, %c0_142, %c0_143] : memref<5x1x128xf32, #tpu.memory_space<vmem>>, vector<1x1x128xf32>
    %350 = vector.shape_cast %349 : vector<1x1x128xf32> to vector<1x128xf32>
    %351 = vector.broadcast %348 : vector<32x1xf32> to vector<32x128xf32>
    %352 = vector.broadcast %350 : vector<1x128xf32> to vector<32x128xf32>
    %353 = arith.subf %351, %352 : vector<32x128xf32>
    %354 = math.absf %353 : vector<32x128xf32>
    %cst_144 = arith.constant 1.000000e+00 : f32
    %355 = vector.broadcast %cst_144 : f32 to vector<32x128xf32>
    %356 = arith.subf %355, %354 : vector<32x128xf32>
    %cst_145 = arith.constant 0.000000e+00 : f32
    %357 = vector.broadcast %cst_145 : f32 to vector<32x128xf32>
    %358 = arith.maximumf %356, %357 : vector<32x128xf32>
    %359 = arith.mulf %347, %358 : vector<32x128xf32>
    %360 = vector.extract_strided_slice %331 {offsets = [0, 0], sizes = [32, 1], strides = [1, 1]} : vector<32x10xf32> to vector<32x1xf32>
    %361 = vector.broadcast %360 : vector<32x1xf32> to vector<32x128xf32>
    %362 = arith.mulf %359, %361 : vector<32x128xf32>
    %363 = arith.addf %336, %362 : vector<32x128xf32>
    %364 = vector.extract_strided_slice %334 {offsets = [0, 1], sizes = [32, 1], strides = [1, 1]} : vector<32x10xf32> to vector<32x1xf32>
    %c0_146 = arith.constant 0 : index
    %c0_147 = arith.constant 0 : index
    %c0_148 = arith.constant 0 : index
    %365 = vector.load %arg13[%c0_146, %c0_147, %c0_148] : memref<5x1x128xf32, #tpu.memory_space<vmem>>, vector<1x1x128xf32>
    %366 = vector.shape_cast %365 : vector<1x1x128xf32> to vector<1x128xf32>
    %367 = vector.broadcast %364 : vector<32x1xf32> to vector<32x128xf32>
    %368 = vector.broadcast %366 : vector<1x128xf32> to vector<32x128xf32>
    %369 = arith.subf %367, %368 : vector<32x128xf32>
    %370 = math.absf %369 : vector<32x128xf32>
    %cst_149 = arith.constant 1.000000e+00 : f32
    %371 = vector.broadcast %cst_149 : f32 to vector<32x128xf32>
    %372 = arith.subf %371, %370 : vector<32x128xf32>
    %cst_150 = arith.constant 0.000000e+00 : f32
    %373 = vector.broadcast %cst_150 : f32 to vector<32x128xf32>
    %374 = arith.maximumf %372, %373 : vector<32x128xf32>
    %375 = vector.extract_strided_slice %335 {offsets = [0, 1], sizes = [32, 1], strides = [1, 1]} : vector<32x10xf32> to vector<32x1xf32>
    %c0_151 = arith.constant 0 : index
    %c0_152 = arith.constant 0 : index
    %c0_153 = arith.constant 0 : index
    %376 = vector.load %arg14[%c0_151, %c0_152, %c0_153] : memref<5x1x128xf32, #tpu.memory_space<vmem>>, vector<1x1x128xf32>
    %377 = vector.shape_cast %376 : vector<1x1x128xf32> to vector<1x128xf32>
    %378 = vector.broadcast %375 : vector<32x1xf32> to vector<32x128xf32>
    %379 = vector.broadcast %377 : vector<1x128xf32> to vector<32x128xf32>
    %380 = arith.subf %378, %379 : vector<32x128xf32>
    %381 = math.absf %380 : vector<32x128xf32>
    %cst_154 = arith.constant 1.000000e+00 : f32
    %382 = vector.broadcast %cst_154 : f32 to vector<32x128xf32>
    %383 = arith.subf %382, %381 : vector<32x128xf32>
    %cst_155 = arith.constant 0.000000e+00 : f32
    %384 = vector.broadcast %cst_155 : f32 to vector<32x128xf32>
    %385 = arith.maximumf %383, %384 : vector<32x128xf32>
    %386 = arith.mulf %374, %385 : vector<32x128xf32>
    %387 = vector.extract_strided_slice %331 {offsets = [0, 1], sizes = [32, 1], strides = [1, 1]} : vector<32x10xf32> to vector<32x1xf32>
    %388 = vector.broadcast %387 : vector<32x1xf32> to vector<32x128xf32>
    %389 = arith.mulf %386, %388 : vector<32x128xf32>
    %390 = arith.addf %363, %389 : vector<32x128xf32>
    %391 = vector.extract_strided_slice %334 {offsets = [0, 2], sizes = [32, 1], strides = [1, 1]} : vector<32x10xf32> to vector<32x1xf32>
    %c1_156 = arith.constant 1 : index
    %c0_157 = arith.constant 0 : index
    %c0_158 = arith.constant 0 : index
    %392 = vector.load %arg13[%c1_156, %c0_157, %c0_158] : memref<5x1x128xf32, #tpu.memory_space<vmem>>, vector<1x1x128xf32>
    %393 = vector.shape_cast %392 : vector<1x1x128xf32> to vector<1x128xf32>
    %394 = vector.broadcast %391 : vector<32x1xf32> to vector<32x128xf32>
    %395 = vector.broadcast %393 : vector<1x128xf32> to vector<32x128xf32>
    %396 = arith.subf %394, %395 : vector<32x128xf32>
    %397 = math.absf %396 : vector<32x128xf32>
    %cst_159 = arith.constant 1.000000e+00 : f32
    %398 = vector.broadcast %cst_159 : f32 to vector<32x128xf32>
    %399 = arith.subf %398, %397 : vector<32x128xf32>
    %cst_160 = arith.constant 0.000000e+00 : f32
    %400 = vector.broadcast %cst_160 : f32 to vector<32x128xf32>
    %401 = arith.maximumf %399, %400 : vector<32x128xf32>
    %402 = vector.extract_strided_slice %335 {offsets = [0, 2], sizes = [32, 1], strides = [1, 1]} : vector<32x10xf32> to vector<32x1xf32>
    %c1_161 = arith.constant 1 : index
    %c0_162 = arith.constant 0 : index
    %c0_163 = arith.constant 0 : index
    %403 = vector.load %arg14[%c1_161, %c0_162, %c0_163] : memref<5x1x128xf32, #tpu.memory_space<vmem>>, vector<1x1x128xf32>
    %404 = vector.shape_cast %403 : vector<1x1x128xf32> to vector<1x128xf32>
    %405 = vector.broadcast %402 : vector<32x1xf32> to vector<32x128xf32>
    %406 = vector.broadcast %404 : vector<1x128xf32> to vector<32x128xf32>
    %407 = arith.subf %405, %406 : vector<32x128xf32>
    %408 = math.absf %407 : vector<32x128xf32>
    %cst_164 = arith.constant 1.000000e+00 : f32
    %409 = vector.broadcast %cst_164 : f32 to vector<32x128xf32>
    %410 = arith.subf %409, %408 : vector<32x128xf32>
    %cst_165 = arith.constant 0.000000e+00 : f32
    %411 = vector.broadcast %cst_165 : f32 to vector<32x128xf32>
    %412 = arith.maximumf %410, %411 : vector<32x128xf32>
    %413 = arith.mulf %401, %412 : vector<32x128xf32>
    %414 = vector.extract_strided_slice %331 {offsets = [0, 2], sizes = [32, 1], strides = [1, 1]} : vector<32x10xf32> to vector<32x1xf32>
    %415 = vector.broadcast %414 : vector<32x1xf32> to vector<32x128xf32>
    %416 = arith.mulf %413, %415 : vector<32x128xf32>
    %417 = arith.addf %390, %416 : vector<32x128xf32>
    %418 = vector.extract_strided_slice %334 {offsets = [0, 3], sizes = [32, 1], strides = [1, 1]} : vector<32x10xf32> to vector<32x1xf32>
    %c1_166 = arith.constant 1 : index
    %c0_167 = arith.constant 0 : index
    %c0_168 = arith.constant 0 : index
    %419 = vector.load %arg13[%c1_166, %c0_167, %c0_168] : memref<5x1x128xf32, #tpu.memory_space<vmem>>, vector<1x1x128xf32>
    %420 = vector.shape_cast %419 : vector<1x1x128xf32> to vector<1x128xf32>
    %421 = vector.broadcast %418 : vector<32x1xf32> to vector<32x128xf32>
    %422 = vector.broadcast %420 : vector<1x128xf32> to vector<32x128xf32>
    %423 = arith.subf %421, %422 : vector<32x128xf32>
    %424 = math.absf %423 : vector<32x128xf32>
    %cst_169 = arith.constant 1.000000e+00 : f32
    %425 = vector.broadcast %cst_169 : f32 to vector<32x128xf32>
    %426 = arith.subf %425, %424 : vector<32x128xf32>
    %cst_170 = arith.constant 0.000000e+00 : f32
    %427 = vector.broadcast %cst_170 : f32 to vector<32x128xf32>
    %428 = arith.maximumf %426, %427 : vector<32x128xf32>
    %429 = vector.extract_strided_slice %335 {offsets = [0, 3], sizes = [32, 1], strides = [1, 1]} : vector<32x10xf32> to vector<32x1xf32>
    %c1_171 = arith.constant 1 : index
    %c0_172 = arith.constant 0 : index
    %c0_173 = arith.constant 0 : index
    %430 = vector.load %arg14[%c1_171, %c0_172, %c0_173] : memref<5x1x128xf32, #tpu.memory_space<vmem>>, vector<1x1x128xf32>
    %431 = vector.shape_cast %430 : vector<1x1x128xf32> to vector<1x128xf32>
    %432 = vector.broadcast %429 : vector<32x1xf32> to vector<32x128xf32>
    %433 = vector.broadcast %431 : vector<1x128xf32> to vector<32x128xf32>
    %434 = arith.subf %432, %433 : vector<32x128xf32>
    %435 = math.absf %434 : vector<32x128xf32>
    %cst_174 = arith.constant 1.000000e+00 : f32
    %436 = vector.broadcast %cst_174 : f32 to vector<32x128xf32>
    %437 = arith.subf %436, %435 : vector<32x128xf32>
    %cst_175 = arith.constant 0.000000e+00 : f32
    %438 = vector.broadcast %cst_175 : f32 to vector<32x128xf32>
    %439 = arith.maximumf %437, %438 : vector<32x128xf32>
    %440 = arith.mulf %428, %439 : vector<32x128xf32>
    %441 = vector.extract_strided_slice %331 {offsets = [0, 3], sizes = [32, 1], strides = [1, 1]} : vector<32x10xf32> to vector<32x1xf32>
    %442 = vector.broadcast %441 : vector<32x1xf32> to vector<32x128xf32>
    %443 = arith.mulf %440, %442 : vector<32x128xf32>
    %444 = arith.addf %417, %443 : vector<32x128xf32>
    %445 = vector.extract_strided_slice %334 {offsets = [0, 4], sizes = [32, 1], strides = [1, 1]} : vector<32x10xf32> to vector<32x1xf32>
    %c2_176 = arith.constant 2 : index
    %c0_177 = arith.constant 0 : index
    %c0_178 = arith.constant 0 : index
    %446 = vector.load %arg13[%c2_176, %c0_177, %c0_178] : memref<5x1x128xf32, #tpu.memory_space<vmem>>, vector<1x1x128xf32>
    %447 = vector.shape_cast %446 : vector<1x1x128xf32> to vector<1x128xf32>
    %448 = vector.broadcast %445 : vector<32x1xf32> to vector<32x128xf32>
    %449 = vector.broadcast %447 : vector<1x128xf32> to vector<32x128xf32>
    %450 = arith.subf %448, %449 : vector<32x128xf32>
    %451 = math.absf %450 : vector<32x128xf32>
    %cst_179 = arith.constant 1.000000e+00 : f32
    %452 = vector.broadcast %cst_179 : f32 to vector<32x128xf32>
    %453 = arith.subf %452, %451 : vector<32x128xf32>
    %cst_180 = arith.constant 0.000000e+00 : f32
    %454 = vector.broadcast %cst_180 : f32 to vector<32x128xf32>
    %455 = arith.maximumf %453, %454 : vector<32x128xf32>
    %456 = vector.extract_strided_slice %335 {offsets = [0, 4], sizes = [32, 1], strides = [1, 1]} : vector<32x10xf32> to vector<32x1xf32>
    %c2_181 = arith.constant 2 : index
    %c0_182 = arith.constant 0 : index
    %c0_183 = arith.constant 0 : index
    %457 = vector.load %arg14[%c2_181, %c0_182, %c0_183] : memref<5x1x128xf32, #tpu.memory_space<vmem>>, vector<1x1x128xf32>
    %458 = vector.shape_cast %457 : vector<1x1x128xf32> to vector<1x128xf32>
    %459 = vector.broadcast %456 : vector<32x1xf32> to vector<32x128xf32>
    %460 = vector.broadcast %458 : vector<1x128xf32> to vector<32x128xf32>
    %461 = arith.subf %459, %460 : vector<32x128xf32>
    %462 = math.absf %461 : vector<32x128xf32>
    %cst_184 = arith.constant 1.000000e+00 : f32
    %463 = vector.broadcast %cst_184 : f32 to vector<32x128xf32>
    %464 = arith.subf %463, %462 : vector<32x128xf32>
    %cst_185 = arith.constant 0.000000e+00 : f32
    %465 = vector.broadcast %cst_185 : f32 to vector<32x128xf32>
    %466 = arith.maximumf %464, %465 : vector<32x128xf32>
    %467 = arith.mulf %455, %466 : vector<32x128xf32>
    %468 = vector.extract_strided_slice %331 {offsets = [0, 4], sizes = [32, 1], strides = [1, 1]} : vector<32x10xf32> to vector<32x1xf32>
    %469 = vector.broadcast %468 : vector<32x1xf32> to vector<32x128xf32>
    %470 = arith.mulf %467, %469 : vector<32x128xf32>
    %471 = arith.addf %444, %470 : vector<32x128xf32>
    %472 = vector.extract_strided_slice %334 {offsets = [0, 5], sizes = [32, 1], strides = [1, 1]} : vector<32x10xf32> to vector<32x1xf32>
    %c2_186 = arith.constant 2 : index
    %c0_187 = arith.constant 0 : index
    %c0_188 = arith.constant 0 : index
    %473 = vector.load %arg13[%c2_186, %c0_187, %c0_188] : memref<5x1x128xf32, #tpu.memory_space<vmem>>, vector<1x1x128xf32>
    %474 = vector.shape_cast %473 : vector<1x1x128xf32> to vector<1x128xf32>
    %475 = vector.broadcast %472 : vector<32x1xf32> to vector<32x128xf32>
    %476 = vector.broadcast %474 : vector<1x128xf32> to vector<32x128xf32>
    %477 = arith.subf %475, %476 : vector<32x128xf32>
    %478 = math.absf %477 : vector<32x128xf32>
    %cst_189 = arith.constant 1.000000e+00 : f32
    %479 = vector.broadcast %cst_189 : f32 to vector<32x128xf32>
    %480 = arith.subf %479, %478 : vector<32x128xf32>
    %cst_190 = arith.constant 0.000000e+00 : f32
    %481 = vector.broadcast %cst_190 : f32 to vector<32x128xf32>
    %482 = arith.maximumf %480, %481 : vector<32x128xf32>
    %483 = vector.extract_strided_slice %335 {offsets = [0, 5], sizes = [32, 1], strides = [1, 1]} : vector<32x10xf32> to vector<32x1xf32>
    %c2_191 = arith.constant 2 : index
    %c0_192 = arith.constant 0 : index
    %c0_193 = arith.constant 0 : index
    %484 = vector.load %arg14[%c2_191, %c0_192, %c0_193] : memref<5x1x128xf32, #tpu.memory_space<vmem>>, vector<1x1x128xf32>
    %485 = vector.shape_cast %484 : vector<1x1x128xf32> to vector<1x128xf32>
    %486 = vector.broadcast %483 : vector<32x1xf32> to vector<32x128xf32>
    %487 = vector.broadcast %485 : vector<1x128xf32> to vector<32x128xf32>
    %488 = arith.subf %486, %487 : vector<32x128xf32>
    %489 = math.absf %488 : vector<32x128xf32>
    %cst_194 = arith.constant 1.000000e+00 : f32
    %490 = vector.broadcast %cst_194 : f32 to vector<32x128xf32>
    %491 = arith.subf %490, %489 : vector<32x128xf32>
    %cst_195 = arith.constant 0.000000e+00 : f32
    %492 = vector.broadcast %cst_195 : f32 to vector<32x128xf32>
    %493 = arith.maximumf %491, %492 : vector<32x128xf32>
    %494 = arith.mulf %482, %493 : vector<32x128xf32>
    %495 = vector.extract_strided_slice %331 {offsets = [0, 5], sizes = [32, 1], strides = [1, 1]} : vector<32x10xf32> to vector<32x1xf32>
    %496 = vector.broadcast %495 : vector<32x1xf32> to vector<32x128xf32>
    %497 = arith.mulf %494, %496 : vector<32x128xf32>
    %498 = arith.addf %471, %497 : vector<32x128xf32>
    %499 = vector.extract_strided_slice %334 {offsets = [0, 6], sizes = [32, 1], strides = [1, 1]} : vector<32x10xf32> to vector<32x1xf32>
    %c3_196 = arith.constant 3 : index
    %c0_197 = arith.constant 0 : index
    %c0_198 = arith.constant 0 : index
    %500 = vector.load %arg13[%c3_196, %c0_197, %c0_198] : memref<5x1x128xf32, #tpu.memory_space<vmem>>, vector<1x1x128xf32>
    %501 = vector.shape_cast %500 : vector<1x1x128xf32> to vector<1x128xf32>
    %502 = vector.broadcast %499 : vector<32x1xf32> to vector<32x128xf32>
    %503 = vector.broadcast %501 : vector<1x128xf32> to vector<32x128xf32>
    %504 = arith.subf %502, %503 : vector<32x128xf32>
    %505 = math.absf %504 : vector<32x128xf32>
    %cst_199 = arith.constant 1.000000e+00 : f32
    %506 = vector.broadcast %cst_199 : f32 to vector<32x128xf32>
    %507 = arith.subf %506, %505 : vector<32x128xf32>
    %cst_200 = arith.constant 0.000000e+00 : f32
    %508 = vector.broadcast %cst_200 : f32 to vector<32x128xf32>
    %509 = arith.maximumf %507, %508 : vector<32x128xf32>
    %510 = vector.extract_strided_slice %335 {offsets = [0, 6], sizes = [32, 1], strides = [1, 1]} : vector<32x10xf32> to vector<32x1xf32>
    %c3_201 = arith.constant 3 : index
    %c0_202 = arith.constant 0 : index
    %c0_203 = arith.constant 0 : index
    %511 = vector.load %arg14[%c3_201, %c0_202, %c0_203] : memref<5x1x128xf32, #tpu.memory_space<vmem>>, vector<1x1x128xf32>
    %512 = vector.shape_cast %511 : vector<1x1x128xf32> to vector<1x128xf32>
    %513 = vector.broadcast %510 : vector<32x1xf32> to vector<32x128xf32>
    %514 = vector.broadcast %512 : vector<1x128xf32> to vector<32x128xf32>
    %515 = arith.subf %513, %514 : vector<32x128xf32>
    %516 = math.absf %515 : vector<32x128xf32>
    %cst_204 = arith.constant 1.000000e+00 : f32
    %517 = vector.broadcast %cst_204 : f32 to vector<32x128xf32>
    %518 = arith.subf %517, %516 : vector<32x128xf32>
    %cst_205 = arith.constant 0.000000e+00 : f32
    %519 = vector.broadcast %cst_205 : f32 to vector<32x128xf32>
    %520 = arith.maximumf %518, %519 : vector<32x128xf32>
    %521 = arith.mulf %509, %520 : vector<32x128xf32>
    %522 = vector.extract_strided_slice %331 {offsets = [0, 6], sizes = [32, 1], strides = [1, 1]} : vector<32x10xf32> to vector<32x1xf32>
    %523 = vector.broadcast %522 : vector<32x1xf32> to vector<32x128xf32>
    %524 = arith.mulf %521, %523 : vector<32x128xf32>
    %525 = arith.addf %498, %524 : vector<32x128xf32>
    %526 = vector.extract_strided_slice %334 {offsets = [0, 7], sizes = [32, 1], strides = [1, 1]} : vector<32x10xf32> to vector<32x1xf32>
    %c3_206 = arith.constant 3 : index
    %c0_207 = arith.constant 0 : index
    %c0_208 = arith.constant 0 : index
    %527 = vector.load %arg13[%c3_206, %c0_207, %c0_208] : memref<5x1x128xf32, #tpu.memory_space<vmem>>, vector<1x1x128xf32>
    %528 = vector.shape_cast %527 : vector<1x1x128xf32> to vector<1x128xf32>
    %529 = vector.broadcast %526 : vector<32x1xf32> to vector<32x128xf32>
    %530 = vector.broadcast %528 : vector<1x128xf32> to vector<32x128xf32>
    %531 = arith.subf %529, %530 : vector<32x128xf32>
    %532 = math.absf %531 : vector<32x128xf32>
    %cst_209 = arith.constant 1.000000e+00 : f32
    %533 = vector.broadcast %cst_209 : f32 to vector<32x128xf32>
    %534 = arith.subf %533, %532 : vector<32x128xf32>
    %cst_210 = arith.constant 0.000000e+00 : f32
    %535 = vector.broadcast %cst_210 : f32 to vector<32x128xf32>
    %536 = arith.maximumf %534, %535 : vector<32x128xf32>
    %537 = vector.extract_strided_slice %335 {offsets = [0, 7], sizes = [32, 1], strides = [1, 1]} : vector<32x10xf32> to vector<32x1xf32>
    %c3_211 = arith.constant 3 : index
    %c0_212 = arith.constant 0 : index
    %c0_213 = arith.constant 0 : index
    %538 = vector.load %arg14[%c3_211, %c0_212, %c0_213] : memref<5x1x128xf32, #tpu.memory_space<vmem>>, vector<1x1x128xf32>
    %539 = vector.shape_cast %538 : vector<1x1x128xf32> to vector<1x128xf32>
    %540 = vector.broadcast %537 : vector<32x1xf32> to vector<32x128xf32>
    %541 = vector.broadcast %539 : vector<1x128xf32> to vector<32x128xf32>
    %542 = arith.subf %540, %541 : vector<32x128xf32>
    %543 = math.absf %542 : vector<32x128xf32>
    %cst_214 = arith.constant 1.000000e+00 : f32
    %544 = vector.broadcast %cst_214 : f32 to vector<32x128xf32>
    %545 = arith.subf %544, %543 : vector<32x128xf32>
    %cst_215 = arith.constant 0.000000e+00 : f32
    %546 = vector.broadcast %cst_215 : f32 to vector<32x128xf32>
    %547 = arith.maximumf %545, %546 : vector<32x128xf32>
    %548 = arith.mulf %536, %547 : vector<32x128xf32>
    %549 = vector.extract_strided_slice %331 {offsets = [0, 7], sizes = [32, 1], strides = [1, 1]} : vector<32x10xf32> to vector<32x1xf32>
    %550 = vector.broadcast %549 : vector<32x1xf32> to vector<32x128xf32>
    %551 = arith.mulf %548, %550 : vector<32x128xf32>
    %552 = arith.addf %525, %551 : vector<32x128xf32>
    %553 = vector.extract_strided_slice %334 {offsets = [0, 8], sizes = [32, 1], strides = [1, 1]} : vector<32x10xf32> to vector<32x1xf32>
    %c4_216 = arith.constant 4 : index
    %c0_217 = arith.constant 0 : index
    %c0_218 = arith.constant 0 : index
    %554 = vector.load %arg13[%c4_216, %c0_217, %c0_218] : memref<5x1x128xf32, #tpu.memory_space<vmem>>, vector<1x1x128xf32>
    %555 = vector.shape_cast %554 : vector<1x1x128xf32> to vector<1x128xf32>
    %556 = vector.broadcast %553 : vector<32x1xf32> to vector<32x128xf32>
    %557 = vector.broadcast %555 : vector<1x128xf32> to vector<32x128xf32>
    %558 = arith.subf %556, %557 : vector<32x128xf32>
    %559 = math.absf %558 : vector<32x128xf32>
    %cst_219 = arith.constant 1.000000e+00 : f32
    %560 = vector.broadcast %cst_219 : f32 to vector<32x128xf32>
    %561 = arith.subf %560, %559 : vector<32x128xf32>
    %cst_220 = arith.constant 0.000000e+00 : f32
    %562 = vector.broadcast %cst_220 : f32 to vector<32x128xf32>
    %563 = arith.maximumf %561, %562 : vector<32x128xf32>
    %564 = vector.extract_strided_slice %335 {offsets = [0, 8], sizes = [32, 1], strides = [1, 1]} : vector<32x10xf32> to vector<32x1xf32>
    %c4_221 = arith.constant 4 : index
    %c0_222 = arith.constant 0 : index
    %c0_223 = arith.constant 0 : index
    %565 = vector.load %arg14[%c4_221, %c0_222, %c0_223] : memref<5x1x128xf32, #tpu.memory_space<vmem>>, vector<1x1x128xf32>
    %566 = vector.shape_cast %565 : vector<1x1x128xf32> to vector<1x128xf32>
    %567 = vector.broadcast %564 : vector<32x1xf32> to vector<32x128xf32>
    %568 = vector.broadcast %566 : vector<1x128xf32> to vector<32x128xf32>
    %569 = arith.subf %567, %568 : vector<32x128xf32>
    %570 = math.absf %569 : vector<32x128xf32>
    %cst_224 = arith.constant 1.000000e+00 : f32
    %571 = vector.broadcast %cst_224 : f32 to vector<32x128xf32>
    %572 = arith.subf %571, %570 : vector<32x128xf32>
    %cst_225 = arith.constant 0.000000e+00 : f32
    %573 = vector.broadcast %cst_225 : f32 to vector<32x128xf32>
    %574 = arith.maximumf %572, %573 : vector<32x128xf32>
    %575 = arith.mulf %563, %574 : vector<32x128xf32>
    %576 = vector.extract_strided_slice %331 {offsets = [0, 8], sizes = [32, 1], strides = [1, 1]} : vector<32x10xf32> to vector<32x1xf32>
    %577 = vector.broadcast %576 : vector<32x1xf32> to vector<32x128xf32>
    %578 = arith.mulf %575, %577 : vector<32x128xf32>
    %579 = arith.addf %552, %578 : vector<32x128xf32>
    %580 = vector.extract_strided_slice %334 {offsets = [0, 9], sizes = [32, 1], strides = [1, 1]} : vector<32x10xf32> to vector<32x1xf32>
    %c4_226 = arith.constant 4 : index
    %c0_227 = arith.constant 0 : index
    %c0_228 = arith.constant 0 : index
    %581 = vector.load %arg13[%c4_226, %c0_227, %c0_228] : memref<5x1x128xf32, #tpu.memory_space<vmem>>, vector<1x1x128xf32>
    %582 = vector.shape_cast %581 : vector<1x1x128xf32> to vector<1x128xf32>
    %583 = vector.broadcast %580 : vector<32x1xf32> to vector<32x128xf32>
    %584 = vector.broadcast %582 : vector<1x128xf32> to vector<32x128xf32>
    %585 = arith.subf %583, %584 : vector<32x128xf32>
    %586 = math.absf %585 : vector<32x128xf32>
    %cst_229 = arith.constant 1.000000e+00 : f32
    %587 = vector.broadcast %cst_229 : f32 to vector<32x128xf32>
    %588 = arith.subf %587, %586 : vector<32x128xf32>
    %cst_230 = arith.constant 0.000000e+00 : f32
    %589 = vector.broadcast %cst_230 : f32 to vector<32x128xf32>
    %590 = arith.maximumf %588, %589 : vector<32x128xf32>
    %591 = vector.extract_strided_slice %335 {offsets = [0, 9], sizes = [32, 1], strides = [1, 1]} : vector<32x10xf32> to vector<32x1xf32>
    %c4_231 = arith.constant 4 : index
    %c0_232 = arith.constant 0 : index
    %c0_233 = arith.constant 0 : index
    %592 = vector.load %arg14[%c4_231, %c0_232, %c0_233] : memref<5x1x128xf32, #tpu.memory_space<vmem>>, vector<1x1x128xf32>
    %593 = vector.shape_cast %592 : vector<1x1x128xf32> to vector<1x128xf32>
    %594 = vector.broadcast %591 : vector<32x1xf32> to vector<32x128xf32>
    %595 = vector.broadcast %593 : vector<1x128xf32> to vector<32x128xf32>
    %596 = arith.subf %594, %595 : vector<32x128xf32>
    %597 = math.absf %596 : vector<32x128xf32>
    %cst_234 = arith.constant 1.000000e+00 : f32
    %598 = vector.broadcast %cst_234 : f32 to vector<32x128xf32>
    %599 = arith.subf %598, %597 : vector<32x128xf32>
    %cst_235 = arith.constant 0.000000e+00 : f32
    %600 = vector.broadcast %cst_235 : f32 to vector<32x128xf32>
    %601 = arith.maximumf %599, %600 : vector<32x128xf32>
    %602 = arith.mulf %590, %601 : vector<32x128xf32>
    %603 = vector.extract_strided_slice %331 {offsets = [0, 9], sizes = [32, 1], strides = [1, 1]} : vector<32x10xf32> to vector<32x1xf32>
    %604 = vector.broadcast %603 : vector<32x1xf32> to vector<32x128xf32>
    %605 = arith.mulf %602, %604 : vector<32x128xf32>
    %606 = arith.addf %579, %605 : vector<32x128xf32>
    %607 = vector.extract_strided_slice %606 {offsets = [0, 0], sizes = [16, 128], strides = [1, 1]} : vector<32x128xf32> to vector<16x128xf32>
    %c0_236 = arith.constant 0 : index
    %c8 = arith.constant 8 : index
    %608 = vector.load %arg17[%c0_236, %c8] : memref<256x32xf32, #tpu.memory_space<vmem>>, vector<128x8xf32>
    %cst_237 = arith.constant dense<0.000000e+00> : vector<16x8xf32>
    %609 = tpu.matmul %607, %608, %cst_237 {dimension_numbers = #tpu.dot_dimension_numbers<[1], [0], [0], [1], [0, 0, 1, 1], [], []>} : vector<16x128xf32>, vector<128x8xf32>, vector<16x8xf32> -> vector<16x8xf32>
    %c0_238 = arith.constant 0 : index
    %c8_239 = arith.constant 8 : index
    %610 = vector.load %arg16[%c0_238, %c8_239] : memref<32x32xf32, #tpu.memory_space<vmem>>, vector<16x8xf32>
    tpu.vector_store %arg16[%c0_238, %c8_239], %609 {strides = array<i32>} : memref<32x32xf32, #tpu.memory_space<vmem>>, vector<16x8xf32>,
    %611 = vector.extract_strided_slice %606 {offsets = [16, 0], sizes = [16, 128], strides = [1, 1]} : vector<32x128xf32> to vector<16x128xf32>
    %c128_240 = arith.constant 128 : index
    %c8_241 = arith.constant 8 : index
    %612 = vector.load %arg17[%c128_240, %c8_241] : memref<256x32xf32, #tpu.memory_space<vmem>>, vector<128x8xf32>
    %cst_242 = arith.constant dense<0.000000e+00> : vector<16x8xf32>
    %613 = tpu.matmul %611, %612, %cst_242 {dimension_numbers = #tpu.dot_dimension_numbers<[1], [0], [0], [1], [0, 0, 1, 1], [], []>} : vector<16x128xf32>, vector<128x8xf32>, vector<16x8xf32> -> vector<16x8xf32>
    %c16_243 = arith.constant 16 : index
    %c8_244 = arith.constant 8 : index
    %614 = vector.load %arg16[%c16_243, %c8_244] : memref<32x32xf32, #tpu.memory_space<vmem>>, vector<16x8xf32>
    tpu.vector_store %arg16[%c16_243, %c8_244], %613 {strides = array<i32>} : memref<32x32xf32, #tpu.memory_space<vmem>>, vector<16x8xf32>,
    %615 = vector.extract_strided_slice %14 {offsets = [0, 100], sizes = [32, 10], strides = [1, 1]} : vector<32x120xf32> to vector<32x10xf32>
    %cst_245 = arith.constant dense<0xFF800000> : vector<32xf32>
    %616 = vector.multi_reduction <maximumf>, %615, %cst_245 [1] : vector<32x10xf32> to vector<32xf32>
    %617 = vector.shape_cast %616 : vector<32xf32> to vector<32x1xf32>
    %618 = vector.broadcast %617 : vector<32x1xf32> to vector<32x10xf32>
    %619 = arith.subf %615, %618 : vector<32x10xf32>
    %620 = math.exp %619 : vector<32x10xf32>
    %cst_246 = arith.constant dense<0.000000e+00> : vector<32xf32>
    %621 = vector.multi_reduction <add>, %620, %cst_246 [1] : vector<32x10xf32> to vector<32xf32>
    %622 = vector.shape_cast %621 : vector<32xf32> to vector<32x1xf32>
    %623 = tpu.reciprocal %622 {approx = true} : vector<32x1xf32> -> vector<32x1xf32>
    %624 = vector.broadcast %623 : vector<32x1xf32> to vector<32x10xf32>
    %625 = arith.mulf %620, %624 : vector<32x10xf32>
    %626 = vector.extract_strided_slice %14 {offsets = [0, 40], sizes = [32, 10], strides = [1, 1]} : vector<32x120xf32> to vector<32x10xf32>
    %627 = vector.extract_strided_slice %14 {offsets = [0, 50], sizes = [32, 10], strides = [1, 1]} : vector<32x120xf32> to vector<32x10xf32>
    %628 = arith.addf %20, %626 : vector<32x10xf32>
    %629 = arith.addf %26, %627 : vector<32x10xf32>
    %cst_247 = arith.constant 0.000000e+00 : f32
    %630 = vector.broadcast %cst_247 : f32 to vector<32x128xf32>
    %631 = vector.extract_strided_slice %628 {offsets = [0, 0], sizes = [32, 1], strides = [1, 1]} : vector<32x10xf32> to vector<32x1xf32>
    %c0_248 = arith.constant 0 : index
    %c0_249 = arith.constant 0 : index
    %c0_250 = arith.constant 0 : index
    %632 = vector.load %arg13[%c0_248, %c0_249, %c0_250] : memref<5x1x128xf32, #tpu.memory_space<vmem>>, vector<1x1x128xf32>
    %633 = vector.shape_cast %632 : vector<1x1x128xf32> to vector<1x128xf32>
    %634 = vector.broadcast %631 : vector<32x1xf32> to vector<32x128xf32>
    %635 = vector.broadcast %633 : vector<1x128xf32> to vector<32x128xf32>
    %636 = arith.subf %634, %635 : vector<32x128xf32>
    %637 = math.absf %636 : vector<32x128xf32>
    %cst_251 = arith.constant 1.000000e+00 : f32
    %638 = vector.broadcast %cst_251 : f32 to vector<32x128xf32>
    %639 = arith.subf %638, %637 : vector<32x128xf32>
    %cst_252 = arith.constant 0.000000e+00 : f32
    %640 = vector.broadcast %cst_252 : f32 to vector<32x128xf32>
    %641 = arith.maximumf %639, %640 : vector<32x128xf32>
    %642 = vector.extract_strided_slice %629 {offsets = [0, 0], sizes = [32, 1], strides = [1, 1]} : vector<32x10xf32> to vector<32x1xf32>
    %c0_253 = arith.constant 0 : index
    %c0_254 = arith.constant 0 : index
    %c0_255 = arith.constant 0 : index
    %643 = vector.load %arg14[%c0_253, %c0_254, %c0_255] : memref<5x1x128xf32, #tpu.memory_space<vmem>>, vector<1x1x128xf32>
    %644 = vector.shape_cast %643 : vector<1x1x128xf32> to vector<1x128xf32>
    %645 = vector.broadcast %642 : vector<32x1xf32> to vector<32x128xf32>
    %646 = vector.broadcast %644 : vector<1x128xf32> to vector<32x128xf32>
    %647 = arith.subf %645, %646 : vector<32x128xf32>
    %648 = math.absf %647 : vector<32x128xf32>
    %cst_256 = arith.constant 1.000000e+00 : f32
    %649 = vector.broadcast %cst_256 : f32 to vector<32x128xf32>
    %650 = arith.subf %649, %648 : vector<32x128xf32>
    %cst_257 = arith.constant 0.000000e+00 : f32
    %651 = vector.broadcast %cst_257 : f32 to vector<32x128xf32>
    %652 = arith.maximumf %650, %651 : vector<32x128xf32>
    %653 = arith.mulf %641, %652 : vector<32x128xf32>
    %654 = vector.extract_strided_slice %625 {offsets = [0, 0], sizes = [32, 1], strides = [1, 1]} : vector<32x10xf32> to vector<32x1xf32>
    %655 = vector.broadcast %654 : vector<32x1xf32> to vector<32x128xf32>
    %656 = arith.mulf %653, %655 : vector<32x128xf32>
    %657 = arith.addf %630, %656 : vector<32x128xf32>
    %658 = vector.extract_strided_slice %628 {offsets = [0, 1], sizes = [32, 1], strides = [1, 1]} : vector<32x10xf32> to vector<32x1xf32>
    %c0_258 = arith.constant 0 : index
    %c0_259 = arith.constant 0 : index
    %c0_260 = arith.constant 0 : index
    %659 = vector.load %arg13[%c0_258, %c0_259, %c0_260] : memref<5x1x128xf32, #tpu.memory_space<vmem>>, vector<1x1x128xf32>
    %660 = vector.shape_cast %659 : vector<1x1x128xf32> to vector<1x128xf32>
    %661 = vector.broadcast %658 : vector<32x1xf32> to vector<32x128xf32>
    %662 = vector.broadcast %660 : vector<1x128xf32> to vector<32x128xf32>
    %663 = arith.subf %661, %662 : vector<32x128xf32>
    %664 = math.absf %663 : vector<32x128xf32>
    %cst_261 = arith.constant 1.000000e+00 : f32
    %665 = vector.broadcast %cst_261 : f32 to vector<32x128xf32>
    %666 = arith.subf %665, %664 : vector<32x128xf32>
    %cst_262 = arith.constant 0.000000e+00 : f32
    %667 = vector.broadcast %cst_262 : f32 to vector<32x128xf32>
    %668 = arith.maximumf %666, %667 : vector<32x128xf32>
    %669 = vector.extract_strided_slice %629 {offsets = [0, 1], sizes = [32, 1], strides = [1, 1]} : vector<32x10xf32> to vector<32x1xf32>
    %c0_263 = arith.constant 0 : index
    %c0_264 = arith.constant 0 : index
    %c0_265 = arith.constant 0 : index
    %670 = vector.load %arg14[%c0_263, %c0_264, %c0_265] : memref<5x1x128xf32, #tpu.memory_space<vmem>>, vector<1x1x128xf32>
    %671 = vector.shape_cast %670 : vector<1x1x128xf32> to vector<1x128xf32>
    %672 = vector.broadcast %669 : vector<32x1xf32> to vector<32x128xf32>
    %673 = vector.broadcast %671 : vector<1x128xf32> to vector<32x128xf32>
    %674 = arith.subf %672, %673 : vector<32x128xf32>
    %675 = math.absf %674 : vector<32x128xf32>
    %cst_266 = arith.constant 1.000000e+00 : f32
    %676 = vector.broadcast %cst_266 : f32 to vector<32x128xf32>
    %677 = arith.subf %676, %675 : vector<32x128xf32>
    %cst_267 = arith.constant 0.000000e+00 : f32
    %678 = vector.broadcast %cst_267 : f32 to vector<32x128xf32>
    %679 = arith.maximumf %677, %678 : vector<32x128xf32>
    %680 = arith.mulf %668, %679 : vector<32x128xf32>
    %681 = vector.extract_strided_slice %625 {offsets = [0, 1], sizes = [32, 1], strides = [1, 1]} : vector<32x10xf32> to vector<32x1xf32>
    %682 = vector.broadcast %681 : vector<32x1xf32> to vector<32x128xf32>
    %683 = arith.mulf %680, %682 : vector<32x128xf32>
    %684 = arith.addf %657, %683 : vector<32x128xf32>
    %685 = vector.extract_strided_slice %628 {offsets = [0, 2], sizes = [32, 1], strides = [1, 1]} : vector<32x10xf32> to vector<32x1xf32>
    %c1_268 = arith.constant 1 : index
    %c0_269 = arith.constant 0 : index
    %c0_270 = arith.constant 0 : index
    %686 = vector.load %arg13[%c1_268, %c0_269, %c0_270] : memref<5x1x128xf32, #tpu.memory_space<vmem>>, vector<1x1x128xf32>
    %687 = vector.shape_cast %686 : vector<1x1x128xf32> to vector<1x128xf32>
    %688 = vector.broadcast %685 : vector<32x1xf32> to vector<32x128xf32>
    %689 = vector.broadcast %687 : vector<1x128xf32> to vector<32x128xf32>
    %690 = arith.subf %688, %689 : vector<32x128xf32>
    %691 = math.absf %690 : vector<32x128xf32>
    %cst_271 = arith.constant 1.000000e+00 : f32
    %692 = vector.broadcast %cst_271 : f32 to vector<32x128xf32>
    %693 = arith.subf %692, %691 : vector<32x128xf32>
    %cst_272 = arith.constant 0.000000e+00 : f32
    %694 = vector.broadcast %cst_272 : f32 to vector<32x128xf32>
    %695 = arith.maximumf %693, %694 : vector<32x128xf32>
    %696 = vector.extract_strided_slice %629 {offsets = [0, 2], sizes = [32, 1], strides = [1, 1]} : vector<32x10xf32> to vector<32x1xf32>
    %c1_273 = arith.constant 1 : index
    %c0_274 = arith.constant 0 : index
    %c0_275 = arith.constant 0 : index
    %697 = vector.load %arg14[%c1_273, %c0_274, %c0_275] : memref<5x1x128xf32, #tpu.memory_space<vmem>>, vector<1x1x128xf32>
    %698 = vector.shape_cast %697 : vector<1x1x128xf32> to vector<1x128xf32>
    %699 = vector.broadcast %696 : vector<32x1xf32> to vector<32x128xf32>
    %700 = vector.broadcast %698 : vector<1x128xf32> to vector<32x128xf32>
    %701 = arith.subf %699, %700 : vector<32x128xf32>
    %702 = math.absf %701 : vector<32x128xf32>
    %cst_276 = arith.constant 1.000000e+00 : f32
    %703 = vector.broadcast %cst_276 : f32 to vector<32x128xf32>
    %704 = arith.subf %703, %702 : vector<32x128xf32>
    %cst_277 = arith.constant 0.000000e+00 : f32
    %705 = vector.broadcast %cst_277 : f32 to vector<32x128xf32>
    %706 = arith.maximumf %704, %705 : vector<32x128xf32>
    %707 = arith.mulf %695, %706 : vector<32x128xf32>
    %708 = vector.extract_strided_slice %625 {offsets = [0, 2], sizes = [32, 1], strides = [1, 1]} : vector<32x10xf32> to vector<32x1xf32>
    %709 = vector.broadcast %708 : vector<32x1xf32> to vector<32x128xf32>
    %710 = arith.mulf %707, %709 : vector<32x128xf32>
    %711 = arith.addf %684, %710 : vector<32x128xf32>
    %712 = vector.extract_strided_slice %628 {offsets = [0, 3], sizes = [32, 1], strides = [1, 1]} : vector<32x10xf32> to vector<32x1xf32>
    %c1_278 = arith.constant 1 : index
    %c0_279 = arith.constant 0 : index
    %c0_280 = arith.constant 0 : index
    %713 = vector.load %arg13[%c1_278, %c0_279, %c0_280] : memref<5x1x128xf32, #tpu.memory_space<vmem>>, vector<1x1x128xf32>
    %714 = vector.shape_cast %713 : vector<1x1x128xf32> to vector<1x128xf32>
    %715 = vector.broadcast %712 : vector<32x1xf32> to vector<32x128xf32>
    %716 = vector.broadcast %714 : vector<1x128xf32> to vector<32x128xf32>
    %717 = arith.subf %715, %716 : vector<32x128xf32>
    %718 = math.absf %717 : vector<32x128xf32>
    %cst_281 = arith.constant 1.000000e+00 : f32
    %719 = vector.broadcast %cst_281 : f32 to vector<32x128xf32>
    %720 = arith.subf %719, %718 : vector<32x128xf32>
    %cst_282 = arith.constant 0.000000e+00 : f32
    %721 = vector.broadcast %cst_282 : f32 to vector<32x128xf32>
    %722 = arith.maximumf %720, %721 : vector<32x128xf32>
    %723 = vector.extract_strided_slice %629 {offsets = [0, 3], sizes = [32, 1], strides = [1, 1]} : vector<32x10xf32> to vector<32x1xf32>
    %c1_283 = arith.constant 1 : index
    %c0_284 = arith.constant 0 : index
    %c0_285 = arith.constant 0 : index
    %724 = vector.load %arg14[%c1_283, %c0_284, %c0_285] : memref<5x1x128xf32, #tpu.memory_space<vmem>>, vector<1x1x128xf32>
    %725 = vector.shape_cast %724 : vector<1x1x128xf32> to vector<1x128xf32>
    %726 = vector.broadcast %723 : vector<32x1xf32> to vector<32x128xf32>
    %727 = vector.broadcast %725 : vector<1x128xf32> to vector<32x128xf32>
    %728 = arith.subf %726, %727 : vector<32x128xf32>
    %729 = math.absf %728 : vector<32x128xf32>
    %cst_286 = arith.constant 1.000000e+00 : f32
    %730 = vector.broadcast %cst_286 : f32 to vector<32x128xf32>
    %731 = arith.subf %730, %729 : vector<32x128xf32>
    %cst_287 = arith.constant 0.000000e+00 : f32
    %732 = vector.broadcast %cst_287 : f32 to vector<32x128xf32>
    %733 = arith.maximumf %731, %732 : vector<32x128xf32>
    %734 = arith.mulf %722, %733 : vector<32x128xf32>
    %735 = vector.extract_strided_slice %625 {offsets = [0, 3], sizes = [32, 1], strides = [1, 1]} : vector<32x10xf32> to vector<32x1xf32>
    %736 = vector.broadcast %735 : vector<32x1xf32> to vector<32x128xf32>
    %737 = arith.mulf %734, %736 : vector<32x128xf32>
    %738 = arith.addf %711, %737 : vector<32x128xf32>
    %739 = vector.extract_strided_slice %628 {offsets = [0, 4], sizes = [32, 1], strides = [1, 1]} : vector<32x10xf32> to vector<32x1xf32>
    %c2_288 = arith.constant 2 : index
    %c0_289 = arith.constant 0 : index
    %c0_290 = arith.constant 0 : index
    %740 = vector.load %arg13[%c2_288, %c0_289, %c0_290] : memref<5x1x128xf32, #tpu.memory_space<vmem>>, vector<1x1x128xf32>
    %741 = vector.shape_cast %740 : vector<1x1x128xf32> to vector<1x128xf32>
    %742 = vector.broadcast %739 : vector<32x1xf32> to vector<32x128xf32>
    %743 = vector.broadcast %741 : vector<1x128xf32> to vector<32x128xf32>
    %744 = arith.subf %742, %743 : vector<32x128xf32>
    %745 = math.absf %744 : vector<32x128xf32>
    %cst_291 = arith.constant 1.000000e+00 : f32
    %746 = vector.broadcast %cst_291 : f32 to vector<32x128xf32>
    %747 = arith.subf %746, %745 : vector<32x128xf32>
    %cst_292 = arith.constant 0.000000e+00 : f32
    %748 = vector.broadcast %cst_292 : f32 to vector<32x128xf32>
    %749 = arith.maximumf %747, %748 : vector<32x128xf32>
    %750 = vector.extract_strided_slice %629 {offsets = [0, 4], sizes = [32, 1], strides = [1, 1]} : vector<32x10xf32> to vector<32x1xf32>
    %c2_293 = arith.constant 2 : index
    %c0_294 = arith.constant 0 : index
    %c0_295 = arith.constant 0 : index
    %751 = vector.load %arg14[%c2_293, %c0_294, %c0_295] : memref<5x1x128xf32, #tpu.memory_space<vmem>>, vector<1x1x128xf32>
    %752 = vector.shape_cast %751 : vector<1x1x128xf32> to vector<1x128xf32>
    %753 = vector.broadcast %750 : vector<32x1xf32> to vector<32x128xf32>
    %754 = vector.broadcast %752 : vector<1x128xf32> to vector<32x128xf32>
    %755 = arith.subf %753, %754 : vector<32x128xf32>
    %756 = math.absf %755 : vector<32x128xf32>
    %cst_296 = arith.constant 1.000000e+00 : f32
    %757 = vector.broadcast %cst_296 : f32 to vector<32x128xf32>
    %758 = arith.subf %757, %756 : vector<32x128xf32>
    %cst_297 = arith.constant 0.000000e+00 : f32
    %759 = vector.broadcast %cst_297 : f32 to vector<32x128xf32>
    %760 = arith.maximumf %758, %759 : vector<32x128xf32>
    %761 = arith.mulf %749, %760 : vector<32x128xf32>
    %762 = vector.extract_strided_slice %625 {offsets = [0, 4], sizes = [32, 1], strides = [1, 1]} : vector<32x10xf32> to vector<32x1xf32>
    %763 = vector.broadcast %762 : vector<32x1xf32> to vector<32x128xf32>
    %764 = arith.mulf %761, %763 : vector<32x128xf32>
    %765 = arith.addf %738, %764 : vector<32x128xf32>
    %766 = vector.extract_strided_slice %628 {offsets = [0, 5], sizes = [32, 1], strides = [1, 1]} : vector<32x10xf32> to vector<32x1xf32>
    %c2_298 = arith.constant 2 : index
    %c0_299 = arith.constant 0 : index
    %c0_300 = arith.constant 0 : index
    %767 = vector.load %arg13[%c2_298, %c0_299, %c0_300] : memref<5x1x128xf32, #tpu.memory_space<vmem>>, vector<1x1x128xf32>
    %768 = vector.shape_cast %767 : vector<1x1x128xf32> to vector<1x128xf32>
    %769 = vector.broadcast %766 : vector<32x1xf32> to vector<32x128xf32>
    %770 = vector.broadcast %768 : vector<1x128xf32> to vector<32x128xf32>
    %771 = arith.subf %769, %770 : vector<32x128xf32>
    %772 = math.absf %771 : vector<32x128xf32>
    %cst_301 = arith.constant 1.000000e+00 : f32
    %773 = vector.broadcast %cst_301 : f32 to vector<32x128xf32>
    %774 = arith.subf %773, %772 : vector<32x128xf32>
    %cst_302 = arith.constant 0.000000e+00 : f32
    %775 = vector.broadcast %cst_302 : f32 to vector<32x128xf32>
    %776 = arith.maximumf %774, %775 : vector<32x128xf32>
    %777 = vector.extract_strided_slice %629 {offsets = [0, 5], sizes = [32, 1], strides = [1, 1]} : vector<32x10xf32> to vector<32x1xf32>
    %c2_303 = arith.constant 2 : index
    %c0_304 = arith.constant 0 : index
    %c0_305 = arith.constant 0 : index
    %778 = vector.load %arg14[%c2_303, %c0_304, %c0_305] : memref<5x1x128xf32, #tpu.memory_space<vmem>>, vector<1x1x128xf32>
    %779 = vector.shape_cast %778 : vector<1x1x128xf32> to vector<1x128xf32>
    %780 = vector.broadcast %777 : vector<32x1xf32> to vector<32x128xf32>
    %781 = vector.broadcast %779 : vector<1x128xf32> to vector<32x128xf32>
    %782 = arith.subf %780, %781 : vector<32x128xf32>
    %783 = math.absf %782 : vector<32x128xf32>
    %cst_306 = arith.constant 1.000000e+00 : f32
    %784 = vector.broadcast %cst_306 : f32 to vector<32x128xf32>
    %785 = arith.subf %784, %783 : vector<32x128xf32>
    %cst_307 = arith.constant 0.000000e+00 : f32
    %786 = vector.broadcast %cst_307 : f32 to vector<32x128xf32>
    %787 = arith.maximumf %785, %786 : vector<32x128xf32>
    %788 = arith.mulf %776, %787 : vector<32x128xf32>
    %789 = vector.extract_strided_slice %625 {offsets = [0, 5], sizes = [32, 1], strides = [1, 1]} : vector<32x10xf32> to vector<32x1xf32>
    %790 = vector.broadcast %789 : vector<32x1xf32> to vector<32x128xf32>
    %791 = arith.mulf %788, %790 : vector<32x128xf32>
    %792 = arith.addf %765, %791 : vector<32x128xf32>
    %793 = vector.extract_strided_slice %628 {offsets = [0, 6], sizes = [32, 1], strides = [1, 1]} : vector<32x10xf32> to vector<32x1xf32>
    %c3_308 = arith.constant 3 : index
    %c0_309 = arith.constant 0 : index
    %c0_310 = arith.constant 0 : index
    %794 = vector.load %arg13[%c3_308, %c0_309, %c0_310] : memref<5x1x128xf32, #tpu.memory_space<vmem>>, vector<1x1x128xf32>
    %795 = vector.shape_cast %794 : vector<1x1x128xf32> to vector<1x128xf32>
    %796 = vector.broadcast %793 : vector<32x1xf32> to vector<32x128xf32>
    %797 = vector.broadcast %795 : vector<1x128xf32> to vector<32x128xf32>
    %798 = arith.subf %796, %797 : vector<32x128xf32>
    %799 = math.absf %798 : vector<32x128xf32>
    %cst_311 = arith.constant 1.000000e+00 : f32
    %800 = vector.broadcast %cst_311 : f32 to vector<32x128xf32>
    %801 = arith.subf %800, %799 : vector<32x128xf32>
    %cst_312 = arith.constant 0.000000e+00 : f32
    %802 = vector.broadcast %cst_312 : f32 to vector<32x128xf32>
    %803 = arith.maximumf %801, %802 : vector<32x128xf32>
    %804 = vector.extract_strided_slice %629 {offsets = [0, 6], sizes = [32, 1], strides = [1, 1]} : vector<32x10xf32> to vector<32x1xf32>
    %c3_313 = arith.constant 3 : index
    %c0_314 = arith.constant 0 : index
    %c0_315 = arith.constant 0 : index
    %805 = vector.load %arg14[%c3_313, %c0_314, %c0_315] : memref<5x1x128xf32, #tpu.memory_space<vmem>>, vector<1x1x128xf32>
    %806 = vector.shape_cast %805 : vector<1x1x128xf32> to vector<1x128xf32>
    %807 = vector.broadcast %804 : vector<32x1xf32> to vector<32x128xf32>
    %808 = vector.broadcast %806 : vector<1x128xf32> to vector<32x128xf32>
    %809 = arith.subf %807, %808 : vector<32x128xf32>
    %810 = math.absf %809 : vector<32x128xf32>
    %cst_316 = arith.constant 1.000000e+00 : f32
    %811 = vector.broadcast %cst_316 : f32 to vector<32x128xf32>
    %812 = arith.subf %811, %810 : vector<32x128xf32>
    %cst_317 = arith.constant 0.000000e+00 : f32
    %813 = vector.broadcast %cst_317 : f32 to vector<32x128xf32>
    %814 = arith.maximumf %812, %813 : vector<32x128xf32>
    %815 = arith.mulf %803, %814 : vector<32x128xf32>
    %816 = vector.extract_strided_slice %625 {offsets = [0, 6], sizes = [32, 1], strides = [1, 1]} : vector<32x10xf32> to vector<32x1xf32>
    %817 = vector.broadcast %816 : vector<32x1xf32> to vector<32x128xf32>
    %818 = arith.mulf %815, %817 : vector<32x128xf32>
    %819 = arith.addf %792, %818 : vector<32x128xf32>
    %820 = vector.extract_strided_slice %628 {offsets = [0, 7], sizes = [32, 1], strides = [1, 1]} : vector<32x10xf32> to vector<32x1xf32>
    %c3_318 = arith.constant 3 : index
    %c0_319 = arith.constant 0 : index
    %c0_320 = arith.constant 0 : index
    %821 = vector.load %arg13[%c3_318, %c0_319, %c0_320] : memref<5x1x128xf32, #tpu.memory_space<vmem>>, vector<1x1x128xf32>
    %822 = vector.shape_cast %821 : vector<1x1x128xf32> to vector<1x128xf32>
    %823 = vector.broadcast %820 : vector<32x1xf32> to vector<32x128xf32>
    %824 = vector.broadcast %822 : vector<1x128xf32> to vector<32x128xf32>
    %825 = arith.subf %823, %824 : vector<32x128xf32>
    %826 = math.absf %825 : vector<32x128xf32>
    %cst_321 = arith.constant 1.000000e+00 : f32
    %827 = vector.broadcast %cst_321 : f32 to vector<32x128xf32>
    %828 = arith.subf %827, %826 : vector<32x128xf32>
    %cst_322 = arith.constant 0.000000e+00 : f32
    %829 = vector.broadcast %cst_322 : f32 to vector<32x128xf32>
    %830 = arith.maximumf %828, %829 : vector<32x128xf32>
    %831 = vector.extract_strided_slice %629 {offsets = [0, 7], sizes = [32, 1], strides = [1, 1]} : vector<32x10xf32> to vector<32x1xf32>
    %c3_323 = arith.constant 3 : index
    %c0_324 = arith.constant 0 : index
    %c0_325 = arith.constant 0 : index
    %832 = vector.load %arg14[%c3_323, %c0_324, %c0_325] : memref<5x1x128xf32, #tpu.memory_space<vmem>>, vector<1x1x128xf32>
    %833 = vector.shape_cast %832 : vector<1x1x128xf32> to vector<1x128xf32>
    %834 = vector.broadcast %831 : vector<32x1xf32> to vector<32x128xf32>
    %835 = vector.broadcast %833 : vector<1x128xf32> to vector<32x128xf32>
    %836 = arith.subf %834, %835 : vector<32x128xf32>
    %837 = math.absf %836 : vector<32x128xf32>
    %cst_326 = arith.constant 1.000000e+00 : f32
    %838 = vector.broadcast %cst_326 : f32 to vector<32x128xf32>
    %839 = arith.subf %838, %837 : vector<32x128xf32>
    %cst_327 = arith.constant 0.000000e+00 : f32
    %840 = vector.broadcast %cst_327 : f32 to vector<32x128xf32>
    %841 = arith.maximumf %839, %840 : vector<32x128xf32>
    %842 = arith.mulf %830, %841 : vector<32x128xf32>
    %843 = vector.extract_strided_slice %625 {offsets = [0, 7], sizes = [32, 1], strides = [1, 1]} : vector<32x10xf32> to vector<32x1xf32>
    %844 = vector.broadcast %843 : vector<32x1xf32> to vector<32x128xf32>
    %845 = arith.mulf %842, %844 : vector<32x128xf32>
    %846 = arith.addf %819, %845 : vector<32x128xf32>
    %847 = vector.extract_strided_slice %628 {offsets = [0, 8], sizes = [32, 1], strides = [1, 1]} : vector<32x10xf32> to vector<32x1xf32>
    %c4_328 = arith.constant 4 : index
    %c0_329 = arith.constant 0 : index
    %c0_330 = arith.constant 0 : index
    %848 = vector.load %arg13[%c4_328, %c0_329, %c0_330] : memref<5x1x128xf32, #tpu.memory_space<vmem>>, vector<1x1x128xf32>
    %849 = vector.shape_cast %848 : vector<1x1x128xf32> to vector<1x128xf32>
    %850 = vector.broadcast %847 : vector<32x1xf32> to vector<32x128xf32>
    %851 = vector.broadcast %849 : vector<1x128xf32> to vector<32x128xf32>
    %852 = arith.subf %850, %851 : vector<32x128xf32>
    %853 = math.absf %852 : vector<32x128xf32>
    %cst_331 = arith.constant 1.000000e+00 : f32
    %854 = vector.broadcast %cst_331 : f32 to vector<32x128xf32>
    %855 = arith.subf %854, %853 : vector<32x128xf32>
    %cst_332 = arith.constant 0.000000e+00 : f32
    %856 = vector.broadcast %cst_332 : f32 to vector<32x128xf32>
    %857 = arith.maximumf %855, %856 : vector<32x128xf32>
    %858 = vector.extract_strided_slice %629 {offsets = [0, 8], sizes = [32, 1], strides = [1, 1]} : vector<32x10xf32> to vector<32x1xf32>
    %c4_333 = arith.constant 4 : index
    %c0_334 = arith.constant 0 : index
    %c0_335 = arith.constant 0 : index
    %859 = vector.load %arg14[%c4_333, %c0_334, %c0_335] : memref<5x1x128xf32, #tpu.memory_space<vmem>>, vector<1x1x128xf32>
    %860 = vector.shape_cast %859 : vector<1x1x128xf32> to vector<1x128xf32>
    %861 = vector.broadcast %858 : vector<32x1xf32> to vector<32x128xf32>
    %862 = vector.broadcast %860 : vector<1x128xf32> to vector<32x128xf32>
    %863 = arith.subf %861, %862 : vector<32x128xf32>
    %864 = math.absf %863 : vector<32x128xf32>
    %cst_336 = arith.constant 1.000000e+00 : f32
    %865 = vector.broadcast %cst_336 : f32 to vector<32x128xf32>
    %866 = arith.subf %865, %864 : vector<32x128xf32>
    %cst_337 = arith.constant 0.000000e+00 : f32
    %867 = vector.broadcast %cst_337 : f32 to vector<32x128xf32>
    %868 = arith.maximumf %866, %867 : vector<32x128xf32>
    %869 = arith.mulf %857, %868 : vector<32x128xf32>
    %870 = vector.extract_strided_slice %625 {offsets = [0, 8], sizes = [32, 1], strides = [1, 1]} : vector<32x10xf32> to vector<32x1xf32>
    %871 = vector.broadcast %870 : vector<32x1xf32> to vector<32x128xf32>
    %872 = arith.mulf %869, %871 : vector<32x128xf32>
    %873 = arith.addf %846, %872 : vector<32x128xf32>
    %874 = vector.extract_strided_slice %628 {offsets = [0, 9], sizes = [32, 1], strides = [1, 1]} : vector<32x10xf32> to vector<32x1xf32>
    %c4_338 = arith.constant 4 : index
    %c0_339 = arith.constant 0 : index
    %c0_340 = arith.constant 0 : index
    %875 = vector.load %arg13[%c4_338, %c0_339, %c0_340] : memref<5x1x128xf32, #tpu.memory_space<vmem>>, vector<1x1x128xf32>
    %876 = vector.shape_cast %875 : vector<1x1x128xf32> to vector<1x128xf32>
    %877 = vector.broadcast %874 : vector<32x1xf32> to vector<32x128xf32>
    %878 = vector.broadcast %876 : vector<1x128xf32> to vector<32x128xf32>
    %879 = arith.subf %877, %878 : vector<32x128xf32>
    %880 = math.absf %879 : vector<32x128xf32>
    %cst_341 = arith.constant 1.000000e+00 : f32
    %881 = vector.broadcast %cst_341 : f32 to vector<32x128xf32>
    %882 = arith.subf %881, %880 : vector<32x128xf32>
    %cst_342 = arith.constant 0.000000e+00 : f32
    %883 = vector.broadcast %cst_342 : f32 to vector<32x128xf32>
    %884 = arith.maximumf %882, %883 : vector<32x128xf32>
    %885 = vector.extract_strided_slice %629 {offsets = [0, 9], sizes = [32, 1], strides = [1, 1]} : vector<32x10xf32> to vector<32x1xf32>
    %c4_343 = arith.constant 4 : index
    %c0_344 = arith.constant 0 : index
    %c0_345 = arith.constant 0 : index
    %886 = vector.load %arg14[%c4_343, %c0_344, %c0_345] : memref<5x1x128xf32, #tpu.memory_space<vmem>>, vector<1x1x128xf32>
    %887 = vector.shape_cast %886 : vector<1x1x128xf32> to vector<1x128xf32>
    %888 = vector.broadcast %885 : vector<32x1xf32> to vector<32x128xf32>
    %889 = vector.broadcast %887 : vector<1x128xf32> to vector<32x128xf32>
    %890 = arith.subf %888, %889 : vector<32x128xf32>
    %891 = math.absf %890 : vector<32x128xf32>
    %cst_346 = arith.constant 1.000000e+00 : f32
    %892 = vector.broadcast %cst_346 : f32 to vector<32x128xf32>
    %893 = arith.subf %892, %891 : vector<32x128xf32>
    %cst_347 = arith.constant 0.000000e+00 : f32
    %894 = vector.broadcast %cst_347 : f32 to vector<32x128xf32>
    %895 = arith.maximumf %893, %894 : vector<32x128xf32>
    %896 = arith.mulf %884, %895 : vector<32x128xf32>
    %897 = vector.extract_strided_slice %625 {offsets = [0, 9], sizes = [32, 1], strides = [1, 1]} : vector<32x10xf32> to vector<32x1xf32>
    %898 = vector.broadcast %897 : vector<32x1xf32> to vector<32x128xf32>
    %899 = arith.mulf %896, %898 : vector<32x128xf32>
    %900 = arith.addf %873, %899 : vector<32x128xf32>
    %901 = vector.extract_strided_slice %900 {offsets = [0, 0], sizes = [16, 128], strides = [1, 1]} : vector<32x128xf32> to vector<16x128xf32>
    %c0_348 = arith.constant 0 : index
    %c16_349 = arith.constant 16 : index
    %902 = vector.load %arg17[%c0_348, %c16_349] : memref<256x32xf32, #tpu.memory_space<vmem>>, vector<128x8xf32>
    %cst_350 = arith.constant dense<0.000000e+00> : vector<16x8xf32>
    %903 = tpu.matmul %901, %902, %cst_350 {dimension_numbers = #tpu.dot_dimension_numbers<[1], [0], [0], [1], [0, 0, 1, 1], [], []>} : vector<16x128xf32>, vector<128x8xf32>, vector<16x8xf32> -> vector<16x8xf32>
    %c0_351 = arith.constant 0 : index
    %c16_352 = arith.constant 16 : index
    %904 = vector.load %arg16[%c0_351, %c16_352] : memref<32x32xf32, #tpu.memory_space<vmem>>, vector<16x8xf32>
    tpu.vector_store %arg16[%c0_351, %c16_352], %903 {strides = array<i32>} : memref<32x32xf32, #tpu.memory_space<vmem>>, vector<16x8xf32>,
    %905 = vector.extract_strided_slice %900 {offsets = [16, 0], sizes = [16, 128], strides = [1, 1]} : vector<32x128xf32> to vector<16x128xf32>
    %c128_353 = arith.constant 128 : index
    %c16_354 = arith.constant 16 : index
    %906 = vector.load %arg17[%c128_353, %c16_354] : memref<256x32xf32, #tpu.memory_space<vmem>>, vector<128x8xf32>
    %cst_355 = arith.constant dense<0.000000e+00> : vector<16x8xf32>
    %907 = tpu.matmul %905, %906, %cst_355 {dimension_numbers = #tpu.dot_dimension_numbers<[1], [0], [0], [1], [0, 0, 1, 1], [], []>} : vector<16x128xf32>, vector<128x8xf32>, vector<16x8xf32> -> vector<16x8xf32>
    %c16_356 = arith.constant 16 : index
    %c16_357 = arith.constant 16 : index
    %908 = vector.load %arg16[%c16_356, %c16_357] : memref<32x32xf32, #tpu.memory_space<vmem>>, vector<16x8xf32>
    tpu.vector_store %arg16[%c16_356, %c16_357], %907 {strides = array<i32>} : memref<32x32xf32, #tpu.memory_space<vmem>>, vector<16x8xf32>,
    %909 = vector.extract_strided_slice %14 {offsets = [0, 110], sizes = [32, 10], strides = [1, 1]} : vector<32x120xf32> to vector<32x10xf32>
    %cst_358 = arith.constant dense<0xFF800000> : vector<32xf32>
    %910 = vector.multi_reduction <maximumf>, %909, %cst_358 [1] : vector<32x10xf32> to vector<32xf32>
    %911 = vector.shape_cast %910 : vector<32xf32> to vector<32x1xf32>
    %912 = vector.broadcast %911 : vector<32x1xf32> to vector<32x10xf32>
    %913 = arith.subf %909, %912 : vector<32x10xf32>
    %914 = math.exp %913 : vector<32x10xf32>
    %cst_359 = arith.constant dense<0.000000e+00> : vector<32xf32>
    %915 = vector.multi_reduction <add>, %914, %cst_359 [1] : vector<32x10xf32> to vector<32xf32>
    %916 = vector.shape_cast %915 : vector<32xf32> to vector<32x1xf32>
    %917 = tpu.reciprocal %916 {approx = true} : vector<32x1xf32> -> vector<32x1xf32>
    %918 = vector.broadcast %917 : vector<32x1xf32> to vector<32x10xf32>
    %919 = arith.mulf %914, %918 : vector<32x10xf32>
    %920 = vector.extract_strided_slice %14 {offsets = [0, 60], sizes = [32, 10], strides = [1, 1]} : vector<32x120xf32> to vector<32x10xf32>
    %921 = vector.extract_strided_slice %14 {offsets = [0, 70], sizes = [32, 10], strides = [1, 1]} : vector<32x120xf32> to vector<32x10xf32>
    %922 = arith.addf %20, %920 : vector<32x10xf32>
    %923 = arith.addf %26, %921 : vector<32x10xf32>
    %cst_360 = arith.constant 0.000000e+00 : f32
    %924 = vector.broadcast %cst_360 : f32 to vector<32x128xf32>
    %925 = vector.extract_strided_slice %922 {offsets = [0, 0], sizes = [32, 1], strides = [1, 1]} : vector<32x10xf32> to vector<32x1xf32>
    %c0_361 = arith.constant 0 : index
    %c0_362 = arith.constant 0 : index
    %c0_363 = arith.constant 0 : index
    %926 = vector.load %arg13[%c0_361, %c0_362, %c0_363] : memref<5x1x128xf32, #tpu.memory_space<vmem>>, vector<1x1x128xf32>
    %927 = vector.shape_cast %926 : vector<1x1x128xf32> to vector<1x128xf32>
    %928 = vector.broadcast %925 : vector<32x1xf32> to vector<32x128xf32>
    %929 = vector.broadcast %927 : vector<1x128xf32> to vector<32x128xf32>
    %930 = arith.subf %928, %929 : vector<32x128xf32>
    %931 = math.absf %930 : vector<32x128xf32>
    %cst_364 = arith.constant 1.000000e+00 : f32
    %932 = vector.broadcast %cst_364 : f32 to vector<32x128xf32>
    %933 = arith.subf %932, %931 : vector<32x128xf32>
    %cst_365 = arith.constant 0.000000e+00 : f32
    %934 = vector.broadcast %cst_365 : f32 to vector<32x128xf32>
    %935 = arith.maximumf %933, %934 : vector<32x128xf32>
    %936 = vector.extract_strided_slice %923 {offsets = [0, 0], sizes = [32, 1], strides = [1, 1]} : vector<32x10xf32> to vector<32x1xf32>
    %c0_366 = arith.constant 0 : index
    %c0_367 = arith.constant 0 : index
    %c0_368 = arith.constant 0 : index
    %937 = vector.load %arg14[%c0_366, %c0_367, %c0_368] : memref<5x1x128xf32, #tpu.memory_space<vmem>>, vector<1x1x128xf32>
    %938 = vector.shape_cast %937 : vector<1x1x128xf32> to vector<1x128xf32>
    %939 = vector.broadcast %936 : vector<32x1xf32> to vector<32x128xf32>
    %940 = vector.broadcast %938 : vector<1x128xf32> to vector<32x128xf32>
    %941 = arith.subf %939, %940 : vector<32x128xf32>
    %942 = math.absf %941 : vector<32x128xf32>
    %cst_369 = arith.constant 1.000000e+00 : f32
    %943 = vector.broadcast %cst_369 : f32 to vector<32x128xf32>
    %944 = arith.subf %943, %942 : vector<32x128xf32>
    %cst_370 = arith.constant 0.000000e+00 : f32
    %945 = vector.broadcast %cst_370 : f32 to vector<32x128xf32>
    %946 = arith.maximumf %944, %945 : vector<32x128xf32>
    %947 = arith.mulf %935, %946 : vector<32x128xf32>
    %948 = vector.extract_strided_slice %919 {offsets = [0, 0], sizes = [32, 1], strides = [1, 1]} : vector<32x10xf32> to vector<32x1xf32>
    %949 = vector.broadcast %948 : vector<32x1xf32> to vector<32x128xf32>
    %950 = arith.mulf %947, %949 : vector<32x128xf32>
    %951 = arith.addf %924, %950 : vector<32x128xf32>
    %952 = vector.extract_strided_slice %922 {offsets = [0, 1], sizes = [32, 1], strides = [1, 1]} : vector<32x10xf32> to vector<32x1xf32>
    %c0_371 = arith.constant 0 : index
    %c0_372 = arith.constant 0 : index
    %c0_373 = arith.constant 0 : index
    %953 = vector.load %arg13[%c0_371, %c0_372, %c0_373] : memref<5x1x128xf32, #tpu.memory_space<vmem>>, vector<1x1x128xf32>
    %954 = vector.shape_cast %953 : vector<1x1x128xf32> to vector<1x128xf32>
    %955 = vector.broadcast %952 : vector<32x1xf32> to vector<32x128xf32>
    %956 = vector.broadcast %954 : vector<1x128xf32> to vector<32x128xf32>
    %957 = arith.subf %955, %956 : vector<32x128xf32>
    %958 = math.absf %957 : vector<32x128xf32>
    %cst_374 = arith.constant 1.000000e+00 : f32
    %959 = vector.broadcast %cst_374 : f32 to vector<32x128xf32>
    %960 = arith.subf %959, %958 : vector<32x128xf32>
    %cst_375 = arith.constant 0.000000e+00 : f32
    %961 = vector.broadcast %cst_375 : f32 to vector<32x128xf32>
    %962 = arith.maximumf %960, %961 : vector<32x128xf32>
    %963 = vector.extract_strided_slice %923 {offsets = [0, 1], sizes = [32, 1], strides = [1, 1]} : vector<32x10xf32> to vector<32x1xf32>
    %c0_376 = arith.constant 0 : index
    %c0_377 = arith.constant 0 : index
    %c0_378 = arith.constant 0 : index
    %964 = vector.load %arg14[%c0_376, %c0_377, %c0_378] : memref<5x1x128xf32, #tpu.memory_space<vmem>>, vector<1x1x128xf32>
    %965 = vector.shape_cast %964 : vector<1x1x128xf32> to vector<1x128xf32>
    %966 = vector.broadcast %963 : vector<32x1xf32> to vector<32x128xf32>
    %967 = vector.broadcast %965 : vector<1x128xf32> to vector<32x128xf32>
    %968 = arith.subf %966, %967 : vector<32x128xf32>
    %969 = math.absf %968 : vector<32x128xf32>
    %cst_379 = arith.constant 1.000000e+00 : f32
    %970 = vector.broadcast %cst_379 : f32 to vector<32x128xf32>
    %971 = arith.subf %970, %969 : vector<32x128xf32>
    %cst_380 = arith.constant 0.000000e+00 : f32
    %972 = vector.broadcast %cst_380 : f32 to vector<32x128xf32>
    %973 = arith.maximumf %971, %972 : vector<32x128xf32>
    %974 = arith.mulf %962, %973 : vector<32x128xf32>
    %975 = vector.extract_strided_slice %919 {offsets = [0, 1], sizes = [32, 1], strides = [1, 1]} : vector<32x10xf32> to vector<32x1xf32>
    %976 = vector.broadcast %975 : vector<32x1xf32> to vector<32x128xf32>
    %977 = arith.mulf %974, %976 : vector<32x128xf32>
    %978 = arith.addf %951, %977 : vector<32x128xf32>
    %979 = vector.extract_strided_slice %922 {offsets = [0, 2], sizes = [32, 1], strides = [1, 1]} : vector<32x10xf32> to vector<32x1xf32>
    %c1_381 = arith.constant 1 : index
    %c0_382 = arith.constant 0 : index
    %c0_383 = arith.constant 0 : index
    %980 = vector.load %arg13[%c1_381, %c0_382, %c0_383] : memref<5x1x128xf32, #tpu.memory_space<vmem>>, vector<1x1x128xf32>
    %981 = vector.shape_cast %980 : vector<1x1x128xf32> to vector<1x128xf32>
    %982 = vector.broadcast %979 : vector<32x1xf32> to vector<32x128xf32>
    %983 = vector.broadcast %981 : vector<1x128xf32> to vector<32x128xf32>
    %984 = arith.subf %982, %983 : vector<32x128xf32>
    %985 = math.absf %984 : vector<32x128xf32>
    %cst_384 = arith.constant 1.000000e+00 : f32
    %986 = vector.broadcast %cst_384 : f32 to vector<32x128xf32>
    %987 = arith.subf %986, %985 : vector<32x128xf32>
    %cst_385 = arith.constant 0.000000e+00 : f32
    %988 = vector.broadcast %cst_385 : f32 to vector<32x128xf32>
    %989 = arith.maximumf %987, %988 : vector<32x128xf32>
    %990 = vector.extract_strided_slice %923 {offsets = [0, 2], sizes = [32, 1], strides = [1, 1]} : vector<32x10xf32> to vector<32x1xf32>
    %c1_386 = arith.constant 1 : index
    %c0_387 = arith.constant 0 : index
    %c0_388 = arith.constant 0 : index
    %991 = vector.load %arg14[%c1_386, %c0_387, %c0_388] : memref<5x1x128xf32, #tpu.memory_space<vmem>>, vector<1x1x128xf32>
    %992 = vector.shape_cast %991 : vector<1x1x128xf32> to vector<1x128xf32>
    %993 = vector.broadcast %990 : vector<32x1xf32> to vector<32x128xf32>
    %994 = vector.broadcast %992 : vector<1x128xf32> to vector<32x128xf32>
    %995 = arith.subf %993, %994 : vector<32x128xf32>
    %996 = math.absf %995 : vector<32x128xf32>
    %cst_389 = arith.constant 1.000000e+00 : f32
    %997 = vector.broadcast %cst_389 : f32 to vector<32x128xf32>
    %998 = arith.subf %997, %996 : vector<32x128xf32>
    %cst_390 = arith.constant 0.000000e+00 : f32
    %999 = vector.broadcast %cst_390 : f32 to vector<32x128xf32>
    %1000 = arith.maximumf %998, %999 : vector<32x128xf32>
    %1001 = arith.mulf %989, %1000 : vector<32x128xf32>
    %1002 = vector.extract_strided_slice %919 {offsets = [0, 2], sizes = [32, 1], strides = [1, 1]} : vector<32x10xf32> to vector<32x1xf32>
    %1003 = vector.broadcast %1002 : vector<32x1xf32> to vector<32x128xf32>
    %1004 = arith.mulf %1001, %1003 : vector<32x128xf32>
    %1005 = arith.addf %978, %1004 : vector<32x128xf32>
    %1006 = vector.extract_strided_slice %922 {offsets = [0, 3], sizes = [32, 1], strides = [1, 1]} : vector<32x10xf32> to vector<32x1xf32>
    %c1_391 = arith.constant 1 : index
    %c0_392 = arith.constant 0 : index
    %c0_393 = arith.constant 0 : index
    %1007 = vector.load %arg13[%c1_391, %c0_392, %c0_393] : memref<5x1x128xf32, #tpu.memory_space<vmem>>, vector<1x1x128xf32>
    %1008 = vector.shape_cast %1007 : vector<1x1x128xf32> to vector<1x128xf32>
    %1009 = vector.broadcast %1006 : vector<32x1xf32> to vector<32x128xf32>
    %1010 = vector.broadcast %1008 : vector<1x128xf32> to vector<32x128xf32>
    %1011 = arith.subf %1009, %1010 : vector<32x128xf32>
    %1012 = math.absf %1011 : vector<32x128xf32>
    %cst_394 = arith.constant 1.000000e+00 : f32
    %1013 = vector.broadcast %cst_394 : f32 to vector<32x128xf32>
    %1014 = arith.subf %1013, %1012 : vector<32x128xf32>
    %cst_395 = arith.constant 0.000000e+00 : f32
    %1015 = vector.broadcast %cst_395 : f32 to vector<32x128xf32>
    %1016 = arith.maximumf %1014, %1015 : vector<32x128xf32>
    %1017 = vector.extract_strided_slice %923 {offsets = [0, 3], sizes = [32, 1], strides = [1, 1]} : vector<32x10xf32> to vector<32x1xf32>
    %c1_396 = arith.constant 1 : index
    %c0_397 = arith.constant 0 : index
    %c0_398 = arith.constant 0 : index
    %1018 = vector.load %arg14[%c1_396, %c0_397, %c0_398] : memref<5x1x128xf32, #tpu.memory_space<vmem>>, vector<1x1x128xf32>
    %1019 = vector.shape_cast %1018 : vector<1x1x128xf32> to vector<1x128xf32>
    %1020 = vector.broadcast %1017 : vector<32x1xf32> to vector<32x128xf32>
    %1021 = vector.broadcast %1019 : vector<1x128xf32> to vector<32x128xf32>
    %1022 = arith.subf %1020, %1021 : vector<32x128xf32>
    %1023 = math.absf %1022 : vector<32x128xf32>
    %cst_399 = arith.constant 1.000000e+00 : f32
    %1024 = vector.broadcast %cst_399 : f32 to vector<32x128xf32>
    %1025 = arith.subf %1024, %1023 : vector<32x128xf32>
    %cst_400 = arith.constant 0.000000e+00 : f32
    %1026 = vector.broadcast %cst_400 : f32 to vector<32x128xf32>
    %1027 = arith.maximumf %1025, %1026 : vector<32x128xf32>
    %1028 = arith.mulf %1016, %1027 : vector<32x128xf32>
    %1029 = vector.extract_strided_slice %919 {offsets = [0, 3], sizes = [32, 1], strides = [1, 1]} : vector<32x10xf32> to vector<32x1xf32>
    %1030 = vector.broadcast %1029 : vector<32x1xf32> to vector<32x128xf32>
    %1031 = arith.mulf %1028, %1030 : vector<32x128xf32>
    %1032 = arith.addf %1005, %1031 : vector<32x128xf32>
    %1033 = vector.extract_strided_slice %922 {offsets = [0, 4], sizes = [32, 1], strides = [1, 1]} : vector<32x10xf32> to vector<32x1xf32>
    %c2_401 = arith.constant 2 : index
    %c0_402 = arith.constant 0 : index
    %c0_403 = arith.constant 0 : index
    %1034 = vector.load %arg13[%c2_401, %c0_402, %c0_403] : memref<5x1x128xf32, #tpu.memory_space<vmem>>, vector<1x1x128xf32>
    %1035 = vector.shape_cast %1034 : vector<1x1x128xf32> to vector<1x128xf32>
    %1036 = vector.broadcast %1033 : vector<32x1xf32> to vector<32x128xf32>
    %1037 = vector.broadcast %1035 : vector<1x128xf32> to vector<32x128xf32>
    %1038 = arith.subf %1036, %1037 : vector<32x128xf32>
    %1039 = math.absf %1038 : vector<32x128xf32>
    %cst_404 = arith.constant 1.000000e+00 : f32
    %1040 = vector.broadcast %cst_404 : f32 to vector<32x128xf32>
    %1041 = arith.subf %1040, %1039 : vector<32x128xf32>
    %cst_405 = arith.constant 0.000000e+00 : f32
    %1042 = vector.broadcast %cst_405 : f32 to vector<32x128xf32>
    %1043 = arith.maximumf %1041, %1042 : vector<32x128xf32>
    %1044 = vector.extract_strided_slice %923 {offsets = [0, 4], sizes = [32, 1], strides = [1, 1]} : vector<32x10xf32> to vector<32x1xf32>
    %c2_406 = arith.constant 2 : index
    %c0_407 = arith.constant 0 : index
    %c0_408 = arith.constant 0 : index
    %1045 = vector.load %arg14[%c2_406, %c0_407, %c0_408] : memref<5x1x128xf32, #tpu.memory_space<vmem>>, vector<1x1x128xf32>
    %1046 = vector.shape_cast %1045 : vector<1x1x128xf32> to vector<1x128xf32>
    %1047 = vector.broadcast %1044 : vector<32x1xf32> to vector<32x128xf32>
    %1048 = vector.broadcast %1046 : vector<1x128xf32> to vector<32x128xf32>
    %1049 = arith.subf %1047, %1048 : vector<32x128xf32>
    %1050 = math.absf %1049 : vector<32x128xf32>
    %cst_409 = arith.constant 1.000000e+00 : f32
    %1051 = vector.broadcast %cst_409 : f32 to vector<32x128xf32>
    %1052 = arith.subf %1051, %1050 : vector<32x128xf32>
    %cst_410 = arith.constant 0.000000e+00 : f32
    %1053 = vector.broadcast %cst_410 : f32 to vector<32x128xf32>
    %1054 = arith.maximumf %1052, %1053 : vector<32x128xf32>
    %1055 = arith.mulf %1043, %1054 : vector<32x128xf32>
    %1056 = vector.extract_strided_slice %919 {offsets = [0, 4], sizes = [32, 1], strides = [1, 1]} : vector<32x10xf32> to vector<32x1xf32>
    %1057 = vector.broadcast %1056 : vector<32x1xf32> to vector<32x128xf32>
    %1058 = arith.mulf %1055, %1057 : vector<32x128xf32>
    %1059 = arith.addf %1032, %1058 : vector<32x128xf32>
    %1060 = vector.extract_strided_slice %922 {offsets = [0, 5], sizes = [32, 1], strides = [1, 1]} : vector<32x10xf32> to vector<32x1xf32>
    %c2_411 = arith.constant 2 : index
    %c0_412 = arith.constant 0 : index
    %c0_413 = arith.constant 0 : index
    %1061 = vector.load %arg13[%c2_411, %c0_412, %c0_413] : memref<5x1x128xf32, #tpu.memory_space<vmem>>, vector<1x1x128xf32>
    %1062 = vector.shape_cast %1061 : vector<1x1x128xf32> to vector<1x128xf32>
    %1063 = vector.broadcast %1060 : vector<32x1xf32> to vector<32x128xf32>
    %1064 = vector.broadcast %1062 : vector<1x128xf32> to vector<32x128xf32>
    %1065 = arith.subf %1063, %1064 : vector<32x128xf32>
    %1066 = math.absf %1065 : vector<32x128xf32>
    %cst_414 = arith.constant 1.000000e+00 : f32
    %1067 = vector.broadcast %cst_414 : f32 to vector<32x128xf32>
    %1068 = arith.subf %1067, %1066 : vector<32x128xf32>
    %cst_415 = arith.constant 0.000000e+00 : f32
    %1069 = vector.broadcast %cst_415 : f32 to vector<32x128xf32>
    %1070 = arith.maximumf %1068, %1069 : vector<32x128xf32>
    %1071 = vector.extract_strided_slice %923 {offsets = [0, 5], sizes = [32, 1], strides = [1, 1]} : vector<32x10xf32> to vector<32x1xf32>
    %c2_416 = arith.constant 2 : index
    %c0_417 = arith.constant 0 : index
    %c0_418 = arith.constant 0 : index
    %1072 = vector.load %arg14[%c2_416, %c0_417, %c0_418] : memref<5x1x128xf32, #tpu.memory_space<vmem>>, vector<1x1x128xf32>
    %1073 = vector.shape_cast %1072 : vector<1x1x128xf32> to vector<1x128xf32>
    %1074 = vector.broadcast %1071 : vector<32x1xf32> to vector<32x128xf32>
    %1075 = vector.broadcast %1073 : vector<1x128xf32> to vector<32x128xf32>
    %1076 = arith.subf %1074, %1075 : vector<32x128xf32>
    %1077 = math.absf %1076 : vector<32x128xf32>
    %cst_419 = arith.constant 1.000000e+00 : f32
    %1078 = vector.broadcast %cst_419 : f32 to vector<32x128xf32>
    %1079 = arith.subf %1078, %1077 : vector<32x128xf32>
    %cst_420 = arith.constant 0.000000e+00 : f32
    %1080 = vector.broadcast %cst_420 : f32 to vector<32x128xf32>
    %1081 = arith.maximumf %1079, %1080 : vector<32x128xf32>
    %1082 = arith.mulf %1070, %1081 : vector<32x128xf32>
    %1083 = vector.extract_strided_slice %919 {offsets = [0, 5], sizes = [32, 1], strides = [1, 1]} : vector<32x10xf32> to vector<32x1xf32>
    %1084 = vector.broadcast %1083 : vector<32x1xf32> to vector<32x128xf32>
    %1085 = arith.mulf %1082, %1084 : vector<32x128xf32>
    %1086 = arith.addf %1059, %1085 : vector<32x128xf32>
    %1087 = vector.extract_strided_slice %922 {offsets = [0, 6], sizes = [32, 1], strides = [1, 1]} : vector<32x10xf32> to vector<32x1xf32>
    %c3_421 = arith.constant 3 : index
    %c0_422 = arith.constant 0 : index
    %c0_423 = arith.constant 0 : index
    %1088 = vector.load %arg13[%c3_421, %c0_422, %c0_423] : memref<5x1x128xf32, #tpu.memory_space<vmem>>, vector<1x1x128xf32>
    %1089 = vector.shape_cast %1088 : vector<1x1x128xf32> to vector<1x128xf32>
    %1090 = vector.broadcast %1087 : vector<32x1xf32> to vector<32x128xf32>
    %1091 = vector.broadcast %1089 : vector<1x128xf32> to vector<32x128xf32>
    %1092 = arith.subf %1090, %1091 : vector<32x128xf32>
    %1093 = math.absf %1092 : vector<32x128xf32>
    %cst_424 = arith.constant 1.000000e+00 : f32
    %1094 = vector.broadcast %cst_424 : f32 to vector<32x128xf32>
    %1095 = arith.subf %1094, %1093 : vector<32x128xf32>
    %cst_425 = arith.constant 0.000000e+00 : f32
    %1096 = vector.broadcast %cst_425 : f32 to vector<32x128xf32>
    %1097 = arith.maximumf %1095, %1096 : vector<32x128xf32>
    %1098 = vector.extract_strided_slice %923 {offsets = [0, 6], sizes = [32, 1], strides = [1, 1]} : vector<32x10xf32> to vector<32x1xf32>
    %c3_426 = arith.constant 3 : index
    %c0_427 = arith.constant 0 : index
    %c0_428 = arith.constant 0 : index
    %1099 = vector.load %arg14[%c3_426, %c0_427, %c0_428] : memref<5x1x128xf32, #tpu.memory_space<vmem>>, vector<1x1x128xf32>
    %1100 = vector.shape_cast %1099 : vector<1x1x128xf32> to vector<1x128xf32>
    %1101 = vector.broadcast %1098 : vector<32x1xf32> to vector<32x128xf32>
    %1102 = vector.broadcast %1100 : vector<1x128xf32> to vector<32x128xf32>
    %1103 = arith.subf %1101, %1102 : vector<32x128xf32>
    %1104 = math.absf %1103 : vector<32x128xf32>
    %cst_429 = arith.constant 1.000000e+00 : f32
    %1105 = vector.broadcast %cst_429 : f32 to vector<32x128xf32>
    %1106 = arith.subf %1105, %1104 : vector<32x128xf32>
    %cst_430 = arith.constant 0.000000e+00 : f32
    %1107 = vector.broadcast %cst_430 : f32 to vector<32x128xf32>
    %1108 = arith.maximumf %1106, %1107 : vector<32x128xf32>
    %1109 = arith.mulf %1097, %1108 : vector<32x128xf32>
    %1110 = vector.extract_strided_slice %919 {offsets = [0, 6], sizes = [32, 1], strides = [1, 1]} : vector<32x10xf32> to vector<32x1xf32>
    %1111 = vector.broadcast %1110 : vector<32x1xf32> to vector<32x128xf32>
    %1112 = arith.mulf %1109, %1111 : vector<32x128xf32>
    %1113 = arith.addf %1086, %1112 : vector<32x128xf32>
    %1114 = vector.extract_strided_slice %922 {offsets = [0, 7], sizes = [32, 1], strides = [1, 1]} : vector<32x10xf32> to vector<32x1xf32>
    %c3_431 = arith.constant 3 : index
    %c0_432 = arith.constant 0 : index
    %c0_433 = arith.constant 0 : index
    %1115 = vector.load %arg13[%c3_431, %c0_432, %c0_433] : memref<5x1x128xf32, #tpu.memory_space<vmem>>, vector<1x1x128xf32>
    %1116 = vector.shape_cast %1115 : vector<1x1x128xf32> to vector<1x128xf32>
    %1117 = vector.broadcast %1114 : vector<32x1xf32> to vector<32x128xf32>
    %1118 = vector.broadcast %1116 : vector<1x128xf32> to vector<32x128xf32>
    %1119 = arith.subf %1117, %1118 : vector<32x128xf32>
    %1120 = math.absf %1119 : vector<32x128xf32>
    %cst_434 = arith.constant 1.000000e+00 : f32
    %1121 = vector.broadcast %cst_434 : f32 to vector<32x128xf32>
    %1122 = arith.subf %1121, %1120 : vector<32x128xf32>
    %cst_435 = arith.constant 0.000000e+00 : f32
    %1123 = vector.broadcast %cst_435 : f32 to vector<32x128xf32>
    %1124 = arith.maximumf %1122, %1123 : vector<32x128xf32>
    %1125 = vector.extract_strided_slice %923 {offsets = [0, 7], sizes = [32, 1], strides = [1, 1]} : vector<32x10xf32> to vector<32x1xf32>
    %c3_436 = arith.constant 3 : index
    %c0_437 = arith.constant 0 : index
    %c0_438 = arith.constant 0 : index
    %1126 = vector.load %arg14[%c3_436, %c0_437, %c0_438] : memref<5x1x128xf32, #tpu.memory_space<vmem>>, vector<1x1x128xf32>
    %1127 = vector.shape_cast %1126 : vector<1x1x128xf32> to vector<1x128xf32>
    %1128 = vector.broadcast %1125 : vector<32x1xf32> to vector<32x128xf32>
    %1129 = vector.broadcast %1127 : vector<1x128xf32> to vector<32x128xf32>
    %1130 = arith.subf %1128, %1129 : vector<32x128xf32>
    %1131 = math.absf %1130 : vector<32x128xf32>
    %cst_439 = arith.constant 1.000000e+00 : f32
    %1132 = vector.broadcast %cst_439 : f32 to vector<32x128xf32>
    %1133 = arith.subf %1132, %1131 : vector<32x128xf32>
    %cst_440 = arith.constant 0.000000e+00 : f32
    %1134 = vector.broadcast %cst_440 : f32 to vector<32x128xf32>
    %1135 = arith.maximumf %1133, %1134 : vector<32x128xf32>
    %1136 = arith.mulf %1124, %1135 : vector<32x128xf32>
    %1137 = vector.extract_strided_slice %919 {offsets = [0, 7], sizes = [32, 1], strides = [1, 1]} : vector<32x10xf32> to vector<32x1xf32>
    %1138 = vector.broadcast %1137 : vector<32x1xf32> to vector<32x128xf32>
    %1139 = arith.mulf %1136, %1138 : vector<32x128xf32>
    %1140 = arith.addf %1113, %1139 : vector<32x128xf32>
    %1141 = vector.extract_strided_slice %922 {offsets = [0, 8], sizes = [32, 1], strides = [1, 1]} : vector<32x10xf32> to vector<32x1xf32>
    %c4_441 = arith.constant 4 : index
    %c0_442 = arith.constant 0 : index
    %c0_443 = arith.constant 0 : index
    %1142 = vector.load %arg13[%c4_441, %c0_442, %c0_443] : memref<5x1x128xf32, #tpu.memory_space<vmem>>, vector<1x1x128xf32>
    %1143 = vector.shape_cast %1142 : vector<1x1x128xf32> to vector<1x128xf32>
    %1144 = vector.broadcast %1141 : vector<32x1xf32> to vector<32x128xf32>
    %1145 = vector.broadcast %1143 : vector<1x128xf32> to vector<32x128xf32>
    %1146 = arith.subf %1144, %1145 : vector<32x128xf32>
    %1147 = math.absf %1146 : vector<32x128xf32>
    %cst_444 = arith.constant 1.000000e+00 : f32
    %1148 = vector.broadcast %cst_444 : f32 to vector<32x128xf32>
    %1149 = arith.subf %1148, %1147 : vector<32x128xf32>
    %cst_445 = arith.constant 0.000000e+00 : f32
    %1150 = vector.broadcast %cst_445 : f32 to vector<32x128xf32>
    %1151 = arith.maximumf %1149, %1150 : vector<32x128xf32>
    %1152 = vector.extract_strided_slice %923 {offsets = [0, 8], sizes = [32, 1], strides = [1, 1]} : vector<32x10xf32> to vector<32x1xf32>
    %c4_446 = arith.constant 4 : index
    %c0_447 = arith.constant 0 : index
    %c0_448 = arith.constant 0 : index
    %1153 = vector.load %arg14[%c4_446, %c0_447, %c0_448] : memref<5x1x128xf32, #tpu.memory_space<vmem>>, vector<1x1x128xf32>
    %1154 = vector.shape_cast %1153 : vector<1x1x128xf32> to vector<1x128xf32>
    %1155 = vector.broadcast %1152 : vector<32x1xf32> to vector<32x128xf32>
    %1156 = vector.broadcast %1154 : vector<1x128xf32> to vector<32x128xf32>
    %1157 = arith.subf %1155, %1156 : vector<32x128xf32>
    %1158 = math.absf %1157 : vector<32x128xf32>
    %cst_449 = arith.constant 1.000000e+00 : f32
    %1159 = vector.broadcast %cst_449 : f32 to vector<32x128xf32>
    %1160 = arith.subf %1159, %1158 : vector<32x128xf32>
    %cst_450 = arith.constant 0.000000e+00 : f32
    %1161 = vector.broadcast %cst_450 : f32 to vector<32x128xf32>
    %1162 = arith.maximumf %1160, %1161 : vector<32x128xf32>
    %1163 = arith.mulf %1151, %1162 : vector<32x128xf32>
    %1164 = vector.extract_strided_slice %919 {offsets = [0, 8], sizes = [32, 1], strides = [1, 1]} : vector<32x10xf32> to vector<32x1xf32>
    %1165 = vector.broadcast %1164 : vector<32x1xf32> to vector<32x128xf32>
    %1166 = arith.mulf %1163, %1165 : vector<32x128xf32>
    %1167 = arith.addf %1140, %1166 : vector<32x128xf32>
    %1168 = vector.extract_strided_slice %922 {offsets = [0, 9], sizes = [32, 1], strides = [1, 1]} : vector<32x10xf32> to vector<32x1xf32>
    %c4_451 = arith.constant 4 : index
    %c0_452 = arith.constant 0 : index
    %c0_453 = arith.constant 0 : index
    %1169 = vector.load %arg13[%c4_451, %c0_452, %c0_453] : memref<5x1x128xf32, #tpu.memory_space<vmem>>, vector<1x1x128xf32>
    %1170 = vector.shape_cast %1169 : vector<1x1x128xf32> to vector<1x128xf32>
    %1171 = vector.broadcast %1168 : vector<32x1xf32> to vector<32x128xf32>
    %1172 = vector.broadcast %1170 : vector<1x128xf32> to vector<32x128xf32>
    %1173 = arith.subf %1171, %1172 : vector<32x128xf32>
    %1174 = math.absf %1173 : vector<32x128xf32>
    %cst_454 = arith.constant 1.000000e+00 : f32
    %1175 = vector.broadcast %cst_454 : f32 to vector<32x128xf32>
    %1176 = arith.subf %1175, %1174 : vector<32x128xf32>
    %cst_455 = arith.constant 0.000000e+00 : f32
    %1177 = vector.broadcast %cst_455 : f32 to vector<32x128xf32>
    %1178 = arith.maximumf %1176, %1177 : vector<32x128xf32>
    %1179 = vector.extract_strided_slice %923 {offsets = [0, 9], sizes = [32, 1], strides = [1, 1]} : vector<32x10xf32> to vector<32x1xf32>
    %c4_456 = arith.constant 4 : index
    %c0_457 = arith.constant 0 : index
    %c0_458 = arith.constant 0 : index
    %1180 = vector.load %arg14[%c4_456, %c0_457, %c0_458] : memref<5x1x128xf32, #tpu.memory_space<vmem>>, vector<1x1x128xf32>
    %1181 = vector.shape_cast %1180 : vector<1x1x128xf32> to vector<1x128xf32>
    %1182 = vector.broadcast %1179 : vector<32x1xf32> to vector<32x128xf32>
    %1183 = vector.broadcast %1181 : vector<1x128xf32> to vector<32x128xf32>
    %1184 = arith.subf %1182, %1183 : vector<32x128xf32>
    %1185 = math.absf %1184 : vector<32x128xf32>
    %cst_459 = arith.constant 1.000000e+00 : f32
    %1186 = vector.broadcast %cst_459 : f32 to vector<32x128xf32>
    %1187 = arith.subf %1186, %1185 : vector<32x128xf32>
    %cst_460 = arith.constant 0.000000e+00 : f32
    %1188 = vector.broadcast %cst_460 : f32 to vector<32x128xf32>
    %1189 = arith.maximumf %1187, %1188 : vector<32x128xf32>
    %1190 = arith.mulf %1178, %1189 : vector<32x128xf32>
    %1191 = vector.extract_strided_slice %919 {offsets = [0, 9], sizes = [32, 1], strides = [1, 1]} : vector<32x10xf32> to vector<32x1xf32>
    %1192 = vector.broadcast %1191 : vector<32x1xf32> to vector<32x128xf32>
    %1193 = arith.mulf %1190, %1192 : vector<32x128xf32>
    %1194 = arith.addf %1167, %1193 : vector<32x128xf32>
    %1195 = vector.extract_strided_slice %1194 {offsets = [0, 0], sizes = [16, 128], strides = [1, 1]} : vector<32x128xf32> to vector<16x128xf32>
    %c0_461 = arith.constant 0 : index
    %c24 = arith.constant 24 : index
    %1196 = vector.load %arg17[%c0_461, %c24] : memref<256x32xf32, #tpu.memory_space<vmem>>, vector<128x8xf32>
    %cst_462 = arith.constant dense<0.000000e+00> : vector<16x8xf32>
    %1197 = tpu.matmul %1195, %1196, %cst_462 {dimension_numbers = #tpu.dot_dimension_numbers<[1], [0], [0], [1], [0, 0, 1, 1], [], []>} : vector<16x128xf32>, vector<128x8xf32>, vector<16x8xf32> -> vector<16x8xf32>
    %c0_463 = arith.constant 0 : index
    %c24_464 = arith.constant 24 : index
    %1198 = vector.load %arg16[%c0_463, %c24_464] : memref<32x32xf32, #tpu.memory_space<vmem>>, vector<16x8xf32>
    tpu.vector_store %arg16[%c0_463, %c24_464], %1197 {strides = array<i32>} : memref<32x32xf32, #tpu.memory_space<vmem>>, vector<16x8xf32>,
    %1199 = vector.extract_strided_slice %1194 {offsets = [16, 0], sizes = [16, 128], strides = [1, 1]} : vector<32x128xf32> to vector<16x128xf32>
    %c128_465 = arith.constant 128 : index
    %c24_466 = arith.constant 24 : index
    %1200 = vector.load %arg17[%c128_465, %c24_466] : memref<256x32xf32, #tpu.memory_space<vmem>>, vector<128x8xf32>
    %cst_467 = arith.constant dense<0.000000e+00> : vector<16x8xf32>
    %1201 = tpu.matmul %1199, %1200, %cst_467 {dimension_numbers = #tpu.dot_dimension_numbers<[1], [0], [0], [1], [0, 0, 1, 1], [], []>} : vector<16x128xf32>, vector<128x8xf32>, vector<16x8xf32> -> vector<16x8xf32>
    %c16_468 = arith.constant 16 : index
    %c24_469 = arith.constant 24 : index
    %1202 = vector.load %arg16[%c16_468, %c24_469] : memref<32x32xf32, #tpu.memory_space<vmem>>, vector<16x8xf32>
    tpu.vector_store %arg16[%c16_468, %c24_469], %1201 {strides = array<i32>} : memref<32x32xf32, #tpu.memory_space<vmem>>, vector<16x8xf32>,
    %c0_470 = arith.constant 0 : index
    %c0_471 = arith.constant 0 : index
    %1203 = vector.load %arg16[%c0_470, %c0_471] : memref<32x32xf32, #tpu.memory_space<vmem>>, vector<32x32xf32>
    %c0_472 = arith.constant 0 : index
    %c0_473 = arith.constant 0 : index
    %1204 = vector.load %arg9[%c0_472, %c0_473] : memref<32x32xf32, #tpu.memory_space<vmem>>, vector<32x32xf32>
    %cst_474 = arith.constant dense<0.000000e+00> : vector<32x32xf32>
    %1205 = tpu.matmul %1203, %1204, %cst_474 {dimension_numbers = #tpu.dot_dimension_numbers<[1], [0], [0], [1], [0, 0, 1, 1], [], []>} : vector<32x32xf32>, vector<32x32xf32>, vector<32x32xf32> -> vector<32x32xf32>
    %c0_475 = arith.constant 0 : index
    %c0_476 = arith.constant 0 : index
    %1206 = vector.load %arg10[%c0_475, %c0_476] : memref<1x32xf32, #tpu.memory_space<vmem>>, vector<1x32xf32>
    %1207 = vector.broadcast %1206 : vector<1x32xf32> to vector<32x32xf32>
    %1208 = arith.addf %1205, %1207 : vector<32x32xf32>
    %c0_477 = arith.constant 0 : index
    %c0_478 = arith.constant 0 : index
    %1209 = vector.load %arg15[%c0_477, %c0_478] : memref<32x32xf32, #tpu.memory_space<vmem>>, vector<32x32xf32>
    tpu.vector_store %arg15[%c0_477, %c0_478], %1208 {strides = array<i32>} : memref<32x32xf32, #tpu.memory_space<vmem>>, vector<32x32xf32>,
    return
  }
}

</mosaic_0001>

<llo_original>
// kernel: tpu_custom_call.1
$region0: #{tpu_custom_call.1}
  #allocation0 [shape = 'u32[]', space=smem, size = 0x4, offset = 0x4, fixed_abs, tag = 'smem constant byte address 0x4 - core index']
  #allocation1 [shape = 'u32[144,128]{1,0:T(1,128)}', space=vmem, size = 0x12000, scoped, tag = 'internal scratch']
  #allocation2 [shape = 'f32[32,32]{1,0:T(8,128)}', space=vmem, size = 0x4000, scoped, tag = 'scratch operand']
  #allocation3 [shape = 'f32[256,32]{1,0:T(8,128)}', space=vmem, size = 0x20000, scoped, tag = 'scratch operand']
  %s0 = inlined_call_operand.vmem [shape: f32[32,32], index: 0, kind: input, shape index: {}]
  %s1 = inlined_call_operand.vmem [shape: f32[32,32], index: 1, kind: input, shape index: {}]
  %s2 = inlined_call_operand.vmem [shape: f32[256,32], index: 2, kind: input, shape index: {}]
  %s3 = inlined_call_operand.vmem [shape: f32[32,10], index: 3, kind: input, shape index: {}]
  %s4 = inlined_call_operand.vmem [shape: f32[32,10], index: 4, kind: input, shape index: {}]
  %s5 = inlined_call_operand.vmem [shape: f32[32,32], index: 5, kind: input, shape index: {}]
  %s6 = inlined_call_operand.vmem [shape: f32[1,32], index: 6, kind: input, shape index: {}]
  %s7 = inlined_call_operand.vmem [shape: f32[32,120], index: 7, kind: input, shape index: {}]
  %s8 = inlined_call_operand.vmem [shape: f32[1,120], index: 8, kind: input, shape index: {}]
  %s9 = inlined_call_operand.vmem [shape: f32[32,32], index: 9, kind: input, shape index: {}]
  %s10 = inlined_call_operand.vmem [shape: f32[1,32], index: 10, kind: input, shape index: {}]
  %s11 = inlined_call_operand.vmem [shape: f32[1,10], index: 11, kind: input, shape index: {}]
  %s12 = inlined_call_operand.vmem [shape: f32[1,10], index: 12, kind: input, shape index: {}]
  %s13 = inlined_call_operand.vmem [shape: f32[5,1,128], index: 13, kind: input, shape index: {}]
  %s14 = inlined_call_operand.vmem [shape: f32[5,1,128], index: 14, kind: input, shape index: {}]
  %s15 = inlined_call_operand.hbm [shape: f32[32,32], index: 15, kind: output, shape index: {}]
  %s16 = sld [smem:[#allocation0]]
  $region70: #{tpu_custom_call.1} parent=0
    _
  %s18 = ssub.s32 1, %s16
  %s19 = scalar_select 0, %s18, %s16
  $region1: #{tpu_custom_call.1} parent=0
    #allocation4 [shape = 'u8[16384]{0}', space=vmem, size = 0x4000, scoped, tag = 'output window, operand 0, single buffered']
    #allocation5 [shape = 's32[1]{0}', space=sflag, size = 0x4, scoped, tag = 'scoped memory for tpu_custom_call.1']
    %20 = vsyncpa [#allocation5], 0
    // Predicated region
    $region2: #{tpu_custom_call.1} parent=1 // pred_check
      _
    $region3: #{tpu_custom_call.1} parent=1 // pred_check_branch
      %22 = sbr.rel (0) target = $region5
    $region4: #{tpu_custom_call.1} parent=1 // pred_region
      _
    $region5: #{tpu_custom_call.1} parent=1 // pred_fallthru
      _
    // Predicated region
    $region6: #{tpu_custom_call.1} parent=1 // pred_check
      _
    $region7: #{tpu_custom_call.1} parent=1 // pred_check_branch
      %24 = sbr.rel (0) target = $region9
    $region8: #{tpu_custom_call.1} parent=1 // pred_region
      _
    $region9: #{tpu_custom_call.1} parent=1 // pred_fallthru
      _
    // Predicated region
    $region10: #{tpu_custom_call.1} parent=1 // pred_check
      _
    $region11: #{tpu_custom_call.1} parent=1 // pred_check_branch
      %26 = sbr.rel (0) target = $region13
    $region12: #{tpu_custom_call.1} parent=1 // pred_region
      _
    $region13: #{tpu_custom_call.1} parent=1 // pred_fallthru
      _
    // Predicated region
    $region14: #{tpu_custom_call.1} parent=1 // pred_check
      _
    $region15: #{tpu_custom_call.1} parent=1 // pred_check_branch
      %28 = sbr.rel (0) target = $region17
    $region16: #{tpu_custom_call.1} parent=1 // pred_region
      _
    $region17: #{tpu_custom_call.1} parent=1 // pred_fallthru
      _
    // Predicated region
    $region18: #{tpu_custom_call.1} parent=1 // pred_check
      _
    $region19: #{tpu_custom_call.1} parent=1 // pred_check_branch
      %30 = sbr.rel (0) target = $region21
    $region20: #{tpu_custom_call.1} parent=1 // pred_region
      _
    $region21: #{tpu_custom_call.1} parent=1 // pred_fallthru
      _
    // Predicated region
    $region22: #{tpu_custom_call.1} parent=1 // pred_check
      _
    $region23: #{tpu_custom_call.1} parent=1 // pred_check_branch
      %32 = sbr.rel (0) target = $region25
    $region24: #{tpu_custom_call.1} parent=1 // pred_region
      _
    $region25: #{tpu_custom_call.1} parent=1 // pred_fallthru
      _
    // Predicated region
    $region26: #{tpu_custom_call.1} parent=1 // pred_check
      _
    $region27: #{tpu_custom_call.1} parent=1 // pred_check_branch
      %34 = sbr.rel (0) target = $region29
    $region28: #{tpu_custom_call.1} parent=1 // pred_region
      _
    $region29: #{tpu_custom_call.1} parent=1 // pred_fallthru
      _
    // Predicated region
    $region30: #{tpu_custom_call.1} parent=1 // pred_check
      _
    $region31: #{tpu_custom_call.1} parent=1 // pred_check_branch
      %36 = sbr.rel (0) target = $region33
    $region32: #{tpu_custom_call.1} parent=1 // pred_region
      _
    $region33: #{tpu_custom_call.1} parent=1 // pred_fallthru
      _
    // Predicated region
    $region34: #{tpu_custom_call.1} parent=1 // pred_check
      _
    $region35: #{tpu_custom_call.1} parent=1 // pred_check_branch
      %38 = sbr.rel (0) target = $region37
    $region36: #{tpu_custom_call.1} parent=1 // pred_region
      _
    $region37: #{tpu_custom_call.1} parent=1 // pred_fallthru
      _
    // Predicated region
    $region38: #{tpu_custom_call.1} parent=1 // pred_check
      _
    $region39: #{tpu_custom_call.1} parent=1 // pred_check_branch
      %40 = sbr.rel (0) target = $region41
    $region40: #{tpu_custom_call.1} parent=1 // pred_region
      _
    $region41: #{tpu_custom_call.1} parent=1 // pred_fallthru
      _
    // Predicated region
    $region42: #{tpu_custom_call.1} parent=1 // pred_check
      _
    $region43: #{tpu_custom_call.1} parent=1 // pred_check_branch
      %42 = sbr.rel (0) target = $region45
    $region44: #{tpu_custom_call.1} parent=1 // pred_region
      _
    $region45: #{tpu_custom_call.1} parent=1 // pred_fallthru
      _
    // Predicated region
    $region46: #{tpu_custom_call.1} parent=1 // pred_check
      _
    $region47: #{tpu_custom_call.1} parent=1 // pred_check_branch
      %44 = sbr.rel (0) target = $region49
    $region48: #{tpu_custom_call.1} parent=1 // pred_region
      _
    $region49: #{tpu_custom_call.1} parent=1 // pred_fallthru
      _
    // Predicated region
    $region50: #{tpu_custom_call.1} parent=1 // pred_check
      _
    $region51: #{tpu_custom_call.1} parent=1 // pred_check_branch
      %46 = sbr.rel (0) target = $region53
    $region52: #{tpu_custom_call.1} parent=1 // pred_region
      _
    $region53: #{tpu_custom_call.1} parent=1 // pred_fallthru
      _
    // Predicated region
    $region54: #{tpu_custom_call.1} parent=1 // pred_check
      _
    $region55: #{tpu_custom_call.1} parent=1 // pred_check_branch
      %48 = sbr.rel (0) target = $region57
    $region56: #{tpu_custom_call.1} parent=1 // pred_region
      _
    $region57: #{tpu_custom_call.1} parent=1 // pred_fallthru
      _
    // Predicated region
    $region58: #{tpu_custom_call.1} parent=1 // pred_check
      _
    $region59: #{tpu_custom_call.1} parent=1 // pred_check_branch
      %50 = sbr.rel (0) target = $region61
    $region60: #{tpu_custom_call.1} parent=1 // pred_region
      _
    $region61: #{tpu_custom_call.1} parent=1 // pred_fallthru
      _
    %v51 = vld [vmem:[%s0] sm:$0xff]
    %v52 = vld [vmem:[%s0 + $0x8] sm:$0xff]
    %v53 = vld [vmem:[%s0 + $0x10] sm:$0xff]
    %v54 = vld [vmem:[%s0 + $0x18] sm:$0xff]
    %v55 = vld [vmem:[%s1] sm:$0xff]
    %v56 = vld [vmem:[%s1 + $0x8] sm:$0xff]
    %v57 = vld [vmem:[%s1 + $0x10] sm:$0xff]
    %v58 = vld [vmem:[%s1 + $0x18] sm:$0xff]
    %v59 = vadd.f32 %v51, %v55
    %v60 = vadd.f32 %v52, %v56
    %v61 = vadd.f32 %v53, %v57
    %v62 = vadd.f32 %v54, %v58
    %v63 = vld [vmem:[%s2] sm:$0xff]
    %v64 = vld [vmem:[%s2 + $0x8] sm:$0xff]
    %v65 = vld [vmem:[%s2 + $0x10] sm:$0xff]
    %v66 = vld [vmem:[%s2 + $0x18] sm:$0xff]
    %v67 = vld [vmem:[%s2 + $0x20] sm:$0xff]
    %v68 = vld [vmem:[%s2 + $0x28] sm:$0xff]
    %v69 = vld [vmem:[%s2 + $0x30] sm:$0xff]
    %v70 = vld [vmem:[%s2 + $0x38] sm:$0xff]
    %v71 = vld [vmem:[%s2 + $0x40] sm:$0xff]
    %v72 = vld [vmem:[%s2 + $0x48] sm:$0xff]
    %v73 = vld [vmem:[%s2 + $0x50] sm:$0xff]
    %v74 = vld [vmem:[%s2 + $0x58] sm:$0xff]
    %v75 = vld [vmem:[%s2 + $0x60] sm:$0xff]
    %v76 = vld [vmem:[%s2 + $0x68] sm:$0xff]
    %v77 = vld [vmem:[%s2 + $0x70] sm:$0xff]
    %v78 = vld [vmem:[%s2 + $0x78] sm:$0xff]
    %v79 = vld [vmem:[%s2 + $0x80] sm:$0xff]
    %v80 = vld [vmem:[%s2 + $0x88] sm:$0xff]
    %v81 = vld [vmem:[%s2 + $0x90] sm:$0xff]
    %v82 = vld [vmem:[%s2 + $0x98] sm:$0xff]
    %v83 = vld [vmem:[%s2 + $0xa0] sm:$0xff]
    %v84 = vld [vmem:[%s2 + $0xa8] sm:$0xff]
    %v85 = vld [vmem:[%s2 + $0xb0] sm:$0xff]
    %v86 = vld [vmem:[%s2 + $0xb8] sm:$0xff]
    %v87 = vld [vmem:[%s2 + $0xc0] sm:$0xff]
    %v88 = vld [vmem:[%s2 + $0xc8] sm:$0xff]
    %v89 = vld [vmem:[%s2 + $0xd0] sm:$0xff]
    %v90 = vld [vmem:[%s2 + $0xd8] sm:$0xff]
    %v91 = vld [vmem:[%s2 + $0xe0] sm:$0xff]
    %v92 = vld [vmem:[%s2 + $0xe8] sm:$0xff]
    %v93 = vld [vmem:[%s2 + $0xf0] sm:$0xff]
    %v94 = vld [vmem:[%s2 + $0xf8] sm:$0xff]
    %v95 = vld [vmem:[%s5] sm:$0xff]
    %v96 = vld [vmem:[%s5 + $0x8] sm:$0xff]
    %v97 = vld [vmem:[%s5 + $0x10] sm:$0xff]
    %v98 = vld [vmem:[%s5 + $0x18] sm:$0xff]
    %v99 = vld [vmem:[%s6] sm:$0x1]
    %v101 = vlaneseq
    %v102 = vshrl.u32 %v101, 7
    %v103 = vsub.s32 0, %v102
    %v104 = vrot.slane %v99, %v103
    %vm106 = vcmask 261120
    %v108 = vsel %vm106, %v63, 0
    %v111 = vsel %vm106, %v64, 0
    %v114 = vsel %vm106, %v65, 0
    %v117 = vsel %vm106, %v66, 0
    %v120 = vsel %vm106, %v67, 0
    %v123 = vsel %vm106, %v68, 0
    %v126 = vsel %vm106, %v69, 0
    %v129 = vsel %vm106, %v70, 0
    %v132 = vsel %vm106, %v71, 0
    %v135 = vsel %vm106, %v72, 0
    %v138 = vsel %vm106, %v73, 0
    %v141 = vsel %vm106, %v74, 0
    %v144 = vsel %vm106, %v75, 0
    %v147 = vsel %vm106, %v76, 0
    %v150 = vsel %vm106, %v77, 0
    %v153 = vsel %vm106, %v78, 0
    %v156 = vsel %vm106, %v79, 0
    %v159 = vsel %vm106, %v80, 0
    %v162 = vsel %vm106, %v81, 0
    %v165 = vsel %vm106, %v82, 0
    %v168 = vsel %vm106, %v83, 0
    %v171 = vsel %vm106, %v84, 0
    %v174 = vsel %vm106, %v85, 0
    %v177 = vsel %vm106, %v86, 0
    %v180 = vsel %vm106, %v87, 0
    %v183 = vsel %vm106, %v88, 0
    %v186 = vsel %vm106, %v89, 0
    %v189 = vsel %vm106, %v90, 0
    %v192 = vsel %vm106, %v91, 0
    %v195 = vsel %vm106, %v92, 0
    %v198 = vsel %vm106, %v93, 0
    %v201 = vsel %vm106, %v94, 0
    %203 = vmatprep.subr.mxu0 0.0
    %204 = vmatpush1.msra.mxu0 %v95
    %205 = vmatprep.subr.mxu0 0.0
    %206 = vmatpush1.msra.mxu0 %v96
    %207 = vmatprep.subr.mxu0 0.0
    %208 = vmatpush1.msra.mxu0 %v97
    %209 = vmatprep.subr.mxu0 0.0
    %210 = vmatpush1.msra.mxu0 %v98
    %211 = vmatprep.subr.mxu0 0.0
    %212 = vmatpush1.msra.mxu0 0.0
    %213 = vmatprep.subr.mxu0 0.0
    %214 = vmatpush1.msra.mxu0 0.0
    %215 = vmatprep.subr.mxu0 0.0
    %216 = vmatpush1.msra.mxu0 0.0
    %217 = vmatprep.subr.mxu0 0.0
    %218 = vmatpush1.msra.mxu0 0.0
    %219 = vmatprep.subr.mxu0 0.0
    %220 = vmatpush1.msra.mxu0 0.0
    %221 = vmatprep.subr.mxu0 0.0
    %222 = vmatpush1.msra.mxu0 0.0
    %223 = vmatprep.subr.mxu0 0.0
    %224 = vmatpush1.msra.mxu0 0.0
    %225 = vmatprep.subr.mxu0 0.0
    %226 = vmatpush1.msra.mxu0 0.0
    %227 = vmatprep.subr.mxu0 0.0
    %228 = vmatpush1.msra.mxu0 0.0
    %229 = vmatprep.subr.mxu0 0.0
    %230 = vmatpush1.msra.mxu0 0.0
    %231 = vmatprep.subr.mxu0 0.0
    %232 = vmatpush1.msra.mxu0 0.0
    %233 = vmatprep.subr.mxu0 0.0
    %234 = vmatpush1.msra.mxu0 0.0
    %235 = vmatprep.subr.mxu0 0.0
    %236 = vmatpush1.msra.mxu0 0.0
    %237 = vmatprep.subr.mxu0 0.0
    %238 = vmatpush1.msra.mxu0 0.0
    %239 = vmatprep.subr.mxu0 0.0
    %240 = vmatpush1.msra.mxu0 0.0
    %241 = vmatprep.subr.mxu0 0.0
    %242 = vmatpush1.msra.mxu0 0.0
    %243 = vmatprep.subr.mxu0 0.0
    %244 = vmatpush1.msra.mxu0 0.0
    %245 = vmatprep.subr.mxu0 0.0
    %246 = vmatpush1.msra.mxu0 0.0
    %247 = vmatprep.subr.mxu0 0.0
    %248 = vmatpush1.msra.mxu0 0.0
    %249 = vmatprep.subr.mxu0 0.0
    %250 = vmatpush1.msra.mxu0 0.0
    %251 = vmatprep.subr.mxu0 0.0
    %252 = vmatpush1.msra.mxu0 0.0
    %253 = vmatprep.subr.mxu0 0.0
    %254 = vmatpush1.msra.mxu0 0.0
    %255 = vmatprep.subr.mxu0 0.0
    %256 = vmatpush1.msra.mxu0 0.0
    %257 = vmatprep.subr.mxu0 0.0
    %258 = vmatpush1.msra.mxu0 0.0
    %259 = vmatprep.subr.mxu0 0.0
    %260 = vmatpush1.msra.mxu0 0.0
    %261 = vmatprep.subr.mxu0 0.0
    %262 = vmatpush1.msra.mxu0 0.0
    %263 = vmatprep.subr.mxu0 0.0
    %264 = vmatpush1.msra.mxu0 0.0
    %265 = vmatprep.subr.mxu0 0.0
    %266 = vmatpush1.msra.mxu0 0.0
    %267 = vmatprep.mubr.f32.mxu0 0.0
    %268 = vmatmul.mubr.f32.gmra.mrb[0].mxu0 %v108
    %v269 = vpop.f32.mrb[0].mxu0
    %v270 = vadd.f32 %v104, %v269
    %v271 = vpop.f32.mrb[0].mxu0
    %272 = vmatprep.mubr.f32.mxu0 0.0
    %273 = vmatmul.mubr.f32.gmra.mrb[0].mxu0 %v111
    %v274 = vpop.f32.mrb[0].mxu0
    %v275 = vadd.f32 %v104, %v274
    %v276 = vpop.f32.mrb[0].mxu0
    %277 = vmatprep.mubr.f32.mxu0 0.0
    %278 = vmatmul.mubr.f32.gmra.mrb[0].mxu0 %v114
    %v279 = vpop.f32.mrb[0].mxu0
    %v280 = vadd.f32 %v104, %v279
    %v281 = vpop.f32.mrb[0].mxu0
    %282 = vmatprep.mubr.f32.mxu0 0.0
    %283 = vmatmul.mubr.f32.gmra.mrb[0].mxu0 %v117
    %v284 = vpop.f32.mrb[0].mxu0
    %v285 = vadd.f32 %v104, %v284
    %v286 = vpop.f32.mrb[0].mxu0
    %287 = vmatprep.mubr.f32.mxu0 0.0
    %288 = vmatmul.mubr.f32.gmra.mrb[0].mxu0 %v120
    %v289 = vpop.f32.mrb[0].mxu0
    %v290 = vadd.f32 %v104, %v289
    %v291 = vpop.f32.mrb[0].mxu0
    %292 = vmatprep.mubr.f32.mxu0 0.0
    %293 = vmatmul.mubr.f32.gmra.mrb[0].mxu0 %v123
    %v294 = vpop.f32.mrb[0].mxu0
    %v295 = vadd.f32 %v104, %v294
    %v296 = vpop.f32.mrb[0].mxu0
    %297 = vmatprep.mubr.f32.mxu0 0.0
    %298 = vmatmul.mubr.f32.gmra.mrb[0].mxu0 %v126
    %v299 = vpop.f32.mrb[0].mxu0
    %v300 = vadd.f32 %v104, %v299
    %v301 = vpop.f32.mrb[0].mxu0
    %302 = vmatprep.mubr.f32.mxu0 0.0
    %303 = vmatmul.mubr.f32.gmra.mrb[0].mxu0 %v129
    %v304 = vpop.f32.mrb[0].mxu0
    %v305 = vadd.f32 %v104, %v304
    %v306 = vpop.f32.mrb[0].mxu0
    %307 = vmatprep.mubr.f32.mxu0 0.0
    %308 = vmatmul.mubr.f32.gmra.mrb[0].mxu0 %v132
    %v309 = vpop.f32.mrb[0].mxu0
    %v310 = vadd.f32 %v104, %v309
    %v311 = vpop.f32.mrb[0].mxu0
    %312 = vmatprep.mubr.f32.mxu0 0.0
    %313 = vmatmul.mubr.f32.gmra.mrb[0].mxu0 %v135
    %v314 = vpop.f32.mrb[0].mxu0
    %v315 = vadd.f32 %v104, %v314
    %v316 = vpop.f32.mrb[0].mxu0
    %317 = vmatprep.mubr.f32.mxu0 0.0
    %318 = vmatmul.mubr.f32.gmra.mrb[0].mxu0 %v138
    %v319 = vpop.f32.mrb[0].mxu0
    %v320 = vadd.f32 %v104, %v319
    %v321 = vpop.f32.mrb[0].mxu0
    %322 = vmatprep.mubr.f32.mxu0 0.0
    %323 = vmatmul.mubr.f32.gmra.mrb[0].mxu0 %v141
    %v324 = vpop.f32.mrb[0].mxu0
    %v325 = vadd.f32 %v104, %v324
    %v326 = vpop.f32.mrb[0].mxu0
    %327 = vmatprep.mubr.f32.mxu0 0.0
    %328 = vmatmul.mubr.f32.gmra.mrb[0].mxu0 %v144
    %v329 = vpop.f32.mrb[0].mxu0
    %v330 = vadd.f32 %v104, %v329
    %v331 = vpop.f32.mrb[0].mxu0
    %332 = vmatprep.mubr.f32.mxu0 0.0
    %333 = vmatmul.mubr.f32.gmra.mrb[0].mxu0 %v147
    %v334 = vpop.f32.mrb[0].mxu0
    %v335 = vadd.f32 %v104, %v334
    %v336 = vpop.f32.mrb[0].mxu0
    %337 = vmatprep.mubr.f32.mxu0 0.0
    %338 = vmatmul.mubr.f32.gmra.mrb[0].mxu0 %v150
    %v339 = vpop.f32.mrb[0].mxu0
    %v340 = vadd.f32 %v104, %v339
    %v341 = vpop.f32.mrb[0].mxu0
    %342 = vmatprep.mubr.f32.mxu0 0.0
    %343 = vmatmul.mubr.f32.gmra.mrb[0].mxu0 %v153
    %v344 = vpop.f32.mrb[0].mxu0
    %v345 = vadd.f32 %v104, %v344
    %v346 = vpop.f32.mrb[0].mxu0
    %347 = vmatprep.mubr.f32.mxu0 0.0
    %348 = vmatmul.mubr.f32.gmra.mrb[0].mxu0 %v156
    %v349 = vpop.f32.mrb[0].mxu0
    %v350 = vadd.f32 %v104, %v349
    %v351 = vpop.f32.mrb[0].mxu0
    %352 = vmatprep.mubr.f32.mxu0 0.0
    %353 = vmatmul.mubr.f32.gmra.mrb[0].mxu0 %v159
    %v354 = vpop.f32.mrb[0].mxu0
    %v355 = vadd.f32 %v104, %v354
    %v356 = vpop.f32.mrb[0].mxu0
    %357 = vmatprep.mubr.f32.mxu0 0.0
    %358 = vmatmul.mubr.f32.gmra.mrb[0].mxu0 %v162
    %v359 = vpop.f32.mrb[0].mxu0
    %v360 = vadd.f32 %v104, %v359
    %v361 = vpop.f32.mrb[0].mxu0
    %362 = vmatprep.mubr.f32.mxu0 0.0
    %363 = vmatmul.mubr.f32.gmra.mrb[0].mxu0 %v165
    %v364 = vpop.f32.mrb[0].mxu0
    %v365 = vadd.f32 %v104, %v364
    %v366 = vpop.f32.mrb[0].mxu0
    %367 = vmatprep.mubr.f32.mxu0 0.0
    %368 = vmatmul.mubr.f32.gmra.mrb[0].mxu0 %v168
    %v369 = vpop.f32.mrb[0].mxu0
    %v370 = vadd.f32 %v104, %v369
    %v371 = vpop.f32.mrb[0].mxu0
    %372 = vmatprep.mubr.f32.mxu0 0.0
    %373 = vmatmul.mubr.f32.gmra.mrb[0].mxu0 %v171
    %v374 = vpop.f32.mrb[0].mxu0
    %v375 = vadd.f32 %v104, %v374
    %v376 = vpop.f32.mrb[0].mxu0
    %377 = vmatprep.mubr.f32.mxu0 0.0
    %378 = vmatmul.mubr.f32.gmra.mrb[0].mxu0 %v174
    %v379 = vpop.f32.mrb[0].mxu0
    %v380 = vadd.f32 %v104, %v379
    %v381 = vpop.f32.mrb[0].mxu0
    %382 = vmatprep.mubr.f32.mxu0 0.0
    %383 = vmatmul.mubr.f32.gmra.mrb[0].mxu0 %v177
    %v384 = vpop.f32.mrb[0].mxu0
    %v385 = vadd.f32 %v104, %v384
    %v386 = vpop.f32.mrb[0].mxu0
    %387 = vmatprep.mubr.f32.mxu0 0.0
    %388 = vmatmul.mubr.f32.gmra.mrb[0].mxu0 %v180
    %v389 = vpop.f32.mrb[0].mxu0
    %v390 = vadd.f32 %v104, %v389
    %v391 = vpop.f32.mrb[0].mxu0
    %392 = vmatprep.mubr.f32.mxu0 0.0
    %393 = vmatmul.mubr.f32.gmra.mrb[0].mxu0 %v183
    %v394 = vpop.f32.mrb[0].mxu0
    %v395 = vadd.f32 %v104, %v394
    %v396 = vpop.f32.mrb[0].mxu0
    %397 = vmatprep.mubr.f32.mxu0 0.0
    %398 = vmatmul.mubr.f32.gmra.mrb[0].mxu0 %v186
    %v399 = vpop.f32.mrb[0].mxu0
    %v400 = vadd.f32 %v104, %v399
    %v401 = vpop.f32.mrb[0].mxu0
    %402 = vmatprep.mubr.f32.mxu0 0.0
    %403 = vmatmul.mubr.f32.gmra.mrb[0].mxu0 %v189
    %v404 = vpop.f32.mrb[0].mxu0
    %v405 = vadd.f32 %v104, %v404
    %v406 = vpop.f32.mrb[0].mxu0
    %407 = vmatprep.mubr.f32.mxu0 0.0
    %408 = vmatmul.mubr.f32.gmra.mrb[0].mxu0 %v192
    %v409 = vpop.f32.mrb[0].mxu0
    %v410 = vadd.f32 %v104, %v409
    %v411 = vpop.f32.mrb[0].mxu0
    %412 = vmatprep.mubr.f32.mxu0 0.0
    %413 = vmatmul.mubr.f32.gmra.mrb[0].mxu0 %v195
    %v414 = vpop.f32.mrb[0].mxu0
    %v415 = vadd.f32 %v104, %v414
    %v416 = vpop.f32.mrb[0].mxu0
    %417 = vmatprep.mubr.f32.mxu0 0.0
    %418 = vmatmul.mubr.f32.gmra.mrb[0].mxu0 %v198
    %v419 = vpop.f32.mrb[0].mxu0
    %v420 = vadd.f32 %v104, %v419
    %v421 = vpop.f32.mrb[0].mxu0
    %422 = vmatprep.mubr.f32.mxu0 0.0
    %423 = vmatmul.mubr.f32.gmra.mrb[0].mxu0 %v201
    %v424 = vpop.f32.mrb[0].mxu0
    %v425 = vadd.f32 %v104, %v424
    %v426 = vpop.f32.mrb[0].mxu0
    %427 = vdwg.mxu0
    %428 = vst.msk [vmem:[#allocation3] sm:$0xff] %vm106, %v270
    %429 = vst.msk [vmem:[#allocation3 + $0x8] sm:$0xff] %vm106, %v275
    %430 = vst.msk [vmem:[#allocation3 + $0x10] sm:$0xff] %vm106, %v280
    %431 = vst.msk [vmem:[#allocation3 + $0x18] sm:$0xff] %vm106, %v285
    %432 = vst.msk [vmem:[#allocation3 + $0x20] sm:$0xff] %vm106, %v290
    %433 = vst.msk [vmem:[#allocation3 + $0x28] sm:$0xff] %vm106, %v295
    %434 = vst.msk [vmem:[#allocation3 + $0x30] sm:$0xff] %vm106, %v300
    %435 = vst.msk [vmem:[#allocation3 + $0x38] sm:$0xff] %vm106, %v305
    %436 = vst.msk [vmem:[#allocation3 + $0x40] sm:$0xff] %vm106, %v310
    %437 = vst.msk [vmem:[#allocation3 + $0x48] sm:$0xff] %vm106, %v315
    %438 = vst.msk [vmem:[#allocation3 + $0x50] sm:$0xff] %vm106, %v320
    %439 = vst.msk [vmem:[#allocation3 + $0x58] sm:$0xff] %vm106, %v325
    %440 = vst.msk [vmem:[#allocation3 + $0x60] sm:$0xff] %vm106, %v330
    %441 = vst.msk [vmem:[#allocation3 + $0x68] sm:$0xff] %vm106, %v335
    %442 = vst.msk [vmem:[#allocation3 + $0x70] sm:$0xff] %vm106, %v340
    %443 = vst.msk [vmem:[#allocation3 + $0x78] sm:$0xff] %vm106, %v345
    %444 = vst.msk [vmem:[#allocation3 + $0x80] sm:$0xff] %vm106, %v350
    %445 = vst.msk [vmem:[#allocation3 + $0x88] sm:$0xff] %vm106, %v355
    %446 = vst.msk [vmem:[#allocation3 + $0x90] sm:$0xff] %vm106, %v360
    %447 = vst.msk [vmem:[#allocation3 + $0x98] sm:$0xff] %vm106, %v365
    %448 = vst.msk [vmem:[#allocation3 + $0xa0] sm:$0xff] %vm106, %v370
    %449 = vst.msk [vmem:[#allocation3 + $0xa8] sm:$0xff] %vm106, %v375
    %450 = vst.msk [vmem:[#allocation3 + $0xb0] sm:$0xff] %vm106, %v380
    %451 = vst.msk [vmem:[#allocation3 + $0xb8] sm:$0xff] %vm106, %v385
    %452 = vst.msk [vmem:[#allocation3 + $0xc0] sm:$0xff] %vm106, %v390
    %453 = vst.msk [vmem:[#allocation3 + $0xc8] sm:$0xff] %vm106, %v395
    %454 = vst.msk [vmem:[#allocation3 + $0xd0] sm:$0xff] %vm106, %v400
    %455 = vst.msk [vmem:[#allocation3 + $0xd8] sm:$0xff] %vm106, %v405
    %456 = vst.msk [vmem:[#allocation3 + $0xe0] sm:$0xff] %vm106, %v410
    %457 = vst.msk [vmem:[#allocation3 + $0xe8] sm:$0xff] %vm106, %v415
    %458 = vst.msk [vmem:[#allocation3 + $0xf0] sm:$0xff] %vm106, %v420
    %459 = vst.msk [vmem:[#allocation3 + $0xf8] sm:$0xff] %vm106, %v425
    %v460 = vld [vmem:[%s7] sm:$0xff]
    %v461 = vld [vmem:[%s7 + $0x8] sm:$0xff]
    %v462 = vld [vmem:[%s7 + $0x10] sm:$0xff]
    %v463 = vld [vmem:[%s7 + $0x18] sm:$0xff]
    %v464 = vld [vmem:[%s8] sm:$0x1]
    %v466 = vlaneseq
    %v467 = vshrl.u32 %v466, 7
    %v468 = vsub.s32 0, %v467
    %v469 = vrot.slane %v464, %v468
    %v472 = vsel %vm106, %v59, 0
    %v475 = vsel %vm106, %v60, 0
    %v478 = vsel %vm106, %v61, 0
    %v481 = vsel %vm106, %v62, 0
    %483 = vmatprep.subr.mxu0 0.0
    %484 = vmatpush1.msra.mxu0 %v460
    %485 = vmatprep.subr.mxu0 0.0
    %486 = vmatpush1.msra.mxu0 %v461
    %487 = vmatprep.subr.mxu0 0.0
    %488 = vmatpush1.msra.mxu0 %v462
    %489 = vmatprep.subr.mxu0 0.0
    %490 = vmatpush1.msra.mxu0 %v463
    %491 = vmatprep.subr.mxu0 0.0
    %492 = vmatpush1.msra.mxu0 0.0
    %493 = vmatprep.subr.mxu0 0.0
    %494 = vmatpush1.msra.mxu0 0.0
    %495 = vmatprep.subr.mxu0 0.0
    %496 = vmatpush1.msra.mxu0 0.0
    %497 = vmatprep.subr.mxu0 0.0
    %498 = vmatpush1.msra.mxu0 0.0
    %499 = vmatprep.subr.mxu0 0.0
    %500 = vmatpush1.msra.mxu0 0.0
    %501 = vmatprep.subr.mxu0 0.0
    %502 = vmatpush1.msra.mxu0 0.0
    %503 = vmatprep.subr.mxu0 0.0
    %504 = vmatpush1.msra.mxu0 0.0
    %505 = vmatprep.subr.mxu0 0.0
    %506 = vmatpush1.msra.mxu0 0.0
    %507 = vmatprep.subr.mxu0 0.0
    %508 = vmatpush1.msra.mxu0 0.0
    %509 = vmatprep.subr.mxu0 0.0
    %510 = vmatpush1.msra.mxu0 0.0
    %511 = vmatprep.subr.mxu0 0.0
    %512 = vmatpush1.msra.mxu0 0.0
    %513 = vmatprep.subr.mxu0 0.0
    %514 = vmatpush1.msra.mxu0 0.0
    %515 = vmatprep.subr.mxu0 0.0
    %516 = vmatpush1.msra.mxu0 0.0
    %517 = vmatprep.subr.mxu0 0.0
    %518 = vmatpush1.msra.mxu0 0.0
    %519 = vmatprep.subr.mxu0 0.0
    %520 = vmatpush1.msra.mxu0 0.0
    %521 = vmatprep.subr.mxu0 0.0
    %522 = vmatpush1.msra.mxu0 0.0
    %523 = vmatprep.subr.mxu0 0.0
    %524 = vmatpush1.msra.mxu0 0.0
    %525 = vmatprep.subr.mxu0 0.0
    %526 = vmatpush1.msra.mxu0 0.0
    %527 = vmatprep.subr.mxu0 0.0
    %528 = vmatpush1.msra.mxu0 0.0
    %529 = vmatprep.subr.mxu0 0.0
    %530 = vmatpush1.msra.mxu0 0.0
    %531 = vmatprep.subr.mxu0 0.0
    %532 = vmatpush1.msra.mxu0 0.0
    %533 = vmatprep.subr.mxu0 0.0
    %534 = vmatpush1.msra.mxu0 0.0
    %535 = vmatprep.subr.mxu0 0.0
    %536 = vmatpush1.msra.mxu0 0.0
    %537 = vmatprep.subr.mxu0 0.0
    %538 = vmatpush1.msra.mxu0 0.0
    %539 = vmatprep.subr.mxu0 0.0
    %540 = vmatpush1.msra.mxu0 0.0
    %541 = vmatprep.subr.mxu0 0.0
    %542 = vmatpush1.msra.mxu0 0.0
    %543 = vmatprep.subr.mxu0 0.0
    %544 = vmatpush1.msra.mxu0 0.0
    %545 = vmatprep.subr.mxu0 0.0
    %546 = vmatpush1.msra.mxu0 0.0
    %547 = vmatprep.mubr.f32.mxu0 0.0
    %548 = vmatmul.mubr.f32.gmra.mrb[0].mxu0 %v472
    %v549 = vpop.f32.mrb[0].mxu0
    %v550 = vadd.f32 %v469, %v549
    %v551 = vpop.f32.mrb[0].mxu0
    %552 = vmatprep.mubr.f32.mxu0 0.0
    %553 = vmatmul.mubr.f32.gmra.mrb[0].mxu0 %v475
    %v554 = vpop.f32.mrb[0].mxu0
    %v555 = vadd.f32 %v469, %v554
    %v556 = vpop.f32.mrb[0].mxu0
    %557 = vmatprep.mubr.f32.mxu0 0.0
    %558 = vmatmul.mubr.f32.gmra.mrb[0].mxu0 %v478
    %v559 = vpop.f32.mrb[0].mxu0
    %v560 = vadd.f32 %v469, %v559
    %v561 = vpop.f32.mrb[0].mxu0
    %562 = vmatprep.mubr.f32.mxu0 0.0
    %563 = vmatmul.mubr.f32.gmra.mrb[0].mxu0 %v481
    %v564 = vpop.f32.mrb[0].mxu0
    %v565 = vadd.f32 %v469, %v564
    %v566 = vpop.f32.mrb[0].mxu0
    %567 = vdwg.mxu0
    %v568 = vld [vmem:[%s3] sm:$0xff]
    %v569 = vld [vmem:[%s3 + $0x8] sm:$0xff]
    %v570 = vld [vmem:[%s3 + $0x10] sm:$0xff]
    %v571 = vld [vmem:[%s3 + $0x18] sm:$0xff]
    %v572 = vld [vmem:[%s11] sm:$0x1]
    %v574 = vlaneseq
    %v575 = vshrl.u32 %v574, 7
    %v576 = vsub.s32 0, %v575
    %v577 = vrot.slane %v572, %v576
    %v579 = vmul.f32 %v568, %v577
    %v580 = vmul.f32 %v569, %v577
    %v581 = vmul.f32 %v570, %v577
    %v582 = vmul.f32 %v571, %v577
    %v583 = vsub.f32 %v579, 0.5
    %v584 = vsub.f32 %v580, 0.5
    %v585 = vsub.f32 %v581, 0.5
    %v586 = vsub.f32 %v582, 0.5
    %v587 = vld [vmem:[%s4] sm:$0xff]
    %v588 = vld [vmem:[%s4 + $0x8] sm:$0xff]
    %v589 = vld [vmem:[%s4 + $0x10] sm:$0xff]
    %v590 = vld [vmem:[%s4 + $0x18] sm:$0xff]
    %v591 = vld [vmem:[%s12] sm:$0x1]
    %v593 = vlaneseq
    %v594 = vshrl.u32 %v593, 7
    %v595 = vsub.s32 0, %v594
    %v596 = vrot.slane %v591, %v595
    %v598 = vmul.f32 %v587, %v596
    %v599 = vmul.f32 %v588, %v596
    %v600 = vmul.f32 %v589, %v596
    %v601 = vmul.f32 %v590, %v596
    %v602 = vsub.f32 %v598, 0.5
    %v603 = vsub.f32 %v599, 0.5
    %v604 = vsub.f32 %v600, 0.5
    %v605 = vsub.f32 %v601, 0.5
    %vm606 = vcmask 736896
    %v607 = vsel %vm606, %v550, -inf
    %608 = vmax.xlane.f32.xlu0 %v607
    %v609 = vpop.xlane.xlu0 %608
    %v610 = vsel %vm606, %v555, -inf
    %611 = vmax.xlane.f32.xlu0 %v610
    %v612 = vpop.xlane.xlu0 %611
    %v613 = vsel %vm606, %v560, -inf
    %614 = vmax.xlane.f32.xlu0 %v613
    %v615 = vpop.xlane.xlu0 %614
    %v616 = vsel %vm606, %v565, -inf
    %617 = vmax.xlane.f32.xlu0 %v616
    %v618 = vpop.xlane.xlu0 %617
    %v619 = vsub.f32 %v550, %v609
    %v620 = vsub.f32 %v555, %v612
    %v621 = vsub.f32 %v560, %v615
    %v622 = vsub.f32 %v565, %v618
    %v623 = vmul.f32 %v619, 1.442695
    %v624 = vpow.pop %v623
    %v625 = vmul.f32 %v620, 1.442695
    %v626 = vpow.pop %v625
    %v627 = vmul.f32 %v621, 1.442695
    %v628 = vpow.pop %v627
    %v629 = vmul.f32 %v622, 1.442695
    %v630 = vpow.pop %v629
    %635 = vrot.lane.b32.xlu0 %v624, 48
    %v636 = vpop.permute.xlu0 %635
    %637 = vrot.lane.b32.xlu0 %v626, 48
    %v638 = vpop.permute.xlu0 %637
    %639 = vrot.lane.b32.xlu0 %v628, 48
    %v640 = vpop.permute.xlu0 %639
    %641 = vrot.lane.b32.xlu0 %v630, 48
    %v642 = vpop.permute.xlu0 %641
    %vm647 = vcmask 80896
    %v648 = vsel %vm647, %v636, 0.0
    %649 = vadd.xlane.f32.xlu0 %v648
    %v650 = vpop.xlane.xlu0 %649
    %v651 = vsel %vm647, %v638, 0.0
    %652 = vadd.xlane.f32.xlu0 %v651
    %v653 = vpop.xlane.xlu0 %652
    %v654 = vsel %vm647, %v640, 0.0
    %655 = vadd.xlane.f32.xlu0 %v654
    %v656 = vpop.xlane.xlu0 %655
    %v657 = vsel %vm647, %v642, 0.0
    %658 = vadd.xlane.f32.xlu0 %v657
    %v659 = vpop.xlane.xlu0 %658
    %v660 = vrcp.pop %v650
    %v661 = vrcp.pop %v653
    %v662 = vrcp.pop %v656
    %v663 = vrcp.pop %v659
    %v664 = vmul.f32 %v624, %v660
    %v665 = vmul.f32 %v626, %v661
    %v666 = vmul.f32 %v628, %v662
    %v667 = vmul.f32 %v630, %v663
    %v668 = vadd.f32 %v583, %v550
    %v669 = vadd.f32 %v584, %v555
    %v670 = vadd.f32 %v585, %v560
    %v671 = vadd.f32 %v586, %v565
    %676 = vrot.lane.b32.xlu0 %v550, 118
    %v677 = vpop.permute.xlu0 %676
    %678 = vrot.lane.b32.xlu0 %v555, 118
    %v679 = vpop.permute.xlu0 %678
    %680 = vrot.lane.b32.xlu0 %v560, 118
    %v681 = vpop.permute.xlu0 %680
    %682 = vrot.lane.b32.xlu0 %v565, 118
    %v683 = vpop.permute.xlu0 %682
    %v688 = vadd.f32 %v602, %v677
    %v689 = vadd.f32 %v603, %v679
    %v690 = vadd.f32 %v604, %v681
    %v691 = vadd.f32 %v605, %v683
    %v692 = vld [vmem:[%s13] sm:$0x1]
    %694 = vset.pattern.permute.xlu0 0
    %695 = vperm.xlu0 %694, %v668
    %v696 = vpop.permute.xlu0 %695
    %699 = vset.pattern.permute.xlu0 0
    %700 = vperm.xlu0 %699, %v669
    %v701 = vpop.permute.xlu0 %700
    %704 = vset.pattern.permute.xlu0 0
    %705 = vperm.xlu0 %704, %v670
    %v706 = vpop.permute.xlu0 %705
    %709 = vset.pattern.permute.xlu0 0
    %710 = vperm.xlu0 %709, %v671
    %v711 = vpop.permute.xlu0 %710
    %v714 = vlaneseq
    %v715 = vshrl.u32 %v714, 7
    %v716 = vsub.s32 0, %v715
    %v717 = vrot.slane %v692, %v716
    %v719 = vsub.f32 %v696, %v717
    %v720 = vsub.f32 %v701, %v717
    %v721 = vsub.f32 %v706, %v717
    %v722 = vsub.f32 %v711, %v717
    %v723 = vand.u32 2147483647, %v719
    %v724 = vand.u32 2147483647, %v720
    %v725 = vand.u32 2147483647, %v721
    %v726 = vand.u32 2147483647, %v722
    %v727 = vsub.f32 1.0, %v723
    %v728 = vsub.f32 1.0, %v724
    %v729 = vsub.f32 1.0, %v725
    %v730 = vsub.f32 1.0, %v726
    %v731 = vmax.f32 %v727, 0.0
    %v732 = vmax.f32 %v728, 0.0
    %v733 = vmax.f32 %v729, 0.0
    %v734 = vmax.f32 %v730, 0.0
    %v735 = vld [vmem:[%s14] sm:$0x1]
    %737 = vset.pattern.permute.xlu0 0
    %738 = vperm.xlu0 %737, %v688
    %v739 = vpop.permute.xlu0 %738
    %742 = vset.pattern.permute.xlu0 0
    %743 = vperm.xlu0 %742, %v689
    %v744 = vpop.permute.xlu0 %743
    %747 = vset.pattern.permute.xlu0 0
    %748 = vperm.xlu0 %747, %v690
    %v749 = vpop.permute.xlu0 %748
    %752 = vset.pattern.permute.xlu0 0
    %753 = vperm.xlu0 %752, %v691
    %v754 = vpop.permute.xlu0 %753
    %v757 = vlaneseq
    %v758 = vshrl.u32 %v757, 7
    %v759 = vsub.s32 0, %v758
    %v760 = vrot.slane %v735, %v759
    %v762 = vsub.f32 %v739, %v760
    %v763 = vsub.f32 %v744, %v760
    %v764 = vsub.f32 %v749, %v760
    %v765 = vsub.f32 %v754, %v760
    %v766 = vand.u32 2147483647, %v762
    %v767 = vand.u32 2147483647, %v763
    %v768 = vand.u32 2147483647, %v764
    %v769 = vand.u32 2147483647, %v765
    %v770 = vsub.f32 1.0, %v766
    %v771 = vsub.f32 1.0, %v767
    %v772 = vsub.f32 1.0, %v768
    %v773 = vsub.f32 1.0, %v769
    %v774 = vmax.f32 %v770, 0.0
    %v775 = vmax.f32 %v771, 0.0
    %v776 = vmax.f32 %v772, 0.0
    %v777 = vmax.f32 %v773, 0.0
    %v778 = vmul.f32 %v731, %v774
    %v779 = vmul.f32 %v732, %v775
    %v780 = vmul.f32 %v733, %v776
    %v781 = vmul.f32 %v734, %v777
    %783 = vset.pattern.permute.xlu0 80
    %784 = vperm.xlu0 %783, %v664
    %v785 = vpop.permute.xlu0 %784
    %788 = vset.pattern.permute.xlu0 80
    %789 = vperm.xlu0 %788, %v665
    %v790 = vpop.permute.xlu0 %789
    %793 = vset.pattern.permute.xlu0 80
    %794 = vperm.xlu0 %793, %v666
    %v795 = vpop.permute.xlu0 %794
    %798 = vset.pattern.permute.xlu0 80
    %799 = vperm.xlu0 %798, %v667
    %v800 = vpop.permute.xlu0 %799
    %v802 = vmul.f32 %v778, %v785
    %v803 = vmul.f32 %v779, %v790
    %v804 = vmul.f32 %v780, %v795
    %v805 = vmul.f32 %v781, %v800
    %v806 = vadd.f32 %v802, 0.0
    %v807 = vadd.f32 %v803, 0.0
    %v808 = vadd.f32 %v804, 0.0
    %v809 = vadd.f32 %v805, 0.0
    %810 = vset.pattern.permute.xlu0 1
    %811 = vperm.xlu0 %810, %v668
    %v812 = vpop.permute.xlu0 %811
    %814 = vset.pattern.permute.xlu0 1
    %815 = vperm.xlu0 %814, %v669
    %v816 = vpop.permute.xlu0 %815
    %818 = vset.pattern.permute.xlu0 1
    %819 = vperm.xlu0 %818, %v670
    %v820 = vpop.permute.xlu0 %819
    %822 = vset.pattern.permute.xlu0 1
    %823 = vperm.xlu0 %822, %v671
    %v824 = vpop.permute.xlu0 %823
    %v826 = vsub.f32 %v812, %v717
    %v827 = vsub.f32 %v816, %v717
    %v828 = vsub.f32 %v820, %v717
    %v829 = vsub.f32 %v824, %v717
    %v830 = vand.u32 2147483647, %v826
    %v831 = vand.u32 2147483647, %v827
    %v832 = vand.u32 2147483647, %v828
    %v833 = vand.u32 2147483647, %v829
    %v834 = vsub.f32 1.0, %v830
    %v835 = vsub.f32 1.0, %v831
    %v836 = vsub.f32 1.0, %v832
    %v837 = vsub.f32 1.0, %v833
    %v838 = vmax.f32 %v834, 0.0
    %v839 = vmax.f32 %v835, 0.0
    %v840 = vmax.f32 %v836, 0.0
    %v841 = vmax.f32 %v837, 0.0
    %842 = vset.pattern.permute.xlu0 1
    %843 = vperm.xlu0 %842, %v688
    %v844 = vpop.permute.xlu0 %843
    %846 = vset.pattern.permute.xlu0 1
    %847 = vperm.xlu0 %846, %v689
    %v848 = vpop.permute.xlu0 %847
    %850 = vset.pattern.permute.xlu0 1
    %851 = vperm.xlu0 %850, %v690
    %v852 = vpop.permute.xlu0 %851
    %854 = vset.pattern.permute.xlu0 1
    %855 = vperm.xlu0 %854, %v691
    %v856 = vpop.permute.xlu0 %855
    %v858 = vsub.f32 %v844, %v760
    %v859 = vsub.f32 %v848, %v760
    %v860 = vsub.f32 %v852, %v760
    %v861 = vsub.f32 %v856, %v760
    %v862 = vand.u32 2147483647, %v858
    %v863 = vand.u32 2147483647, %v859
    %v864 = vand.u32 2147483647, %v860
    %v865 = vand.u32 2147483647, %v861
    %v866 = vsub.f32 1.0, %v862
    %v867 = vsub.f32 1.0, %v863
    %v868 = vsub.f32 1.0, %v864
    %v869 = vsub.f32 1.0, %v865
    %v870 = vmax.f32 %v866, 0.0
    %v871 = vmax.f32 %v867, 0.0
    %v872 = vmax.f32 %v868, 0.0
    %v873 = vmax.f32 %v869, 0.0
    %v874 = vmul.f32 %v838, %v870
    %v875 = vmul.f32 %v839, %v871
    %v876 = vmul.f32 %v840, %v872
    %v877 = vmul.f32 %v841, %v873
    %878 = vset.pattern.permute.xlu0 81
    %879 = vperm.xlu0 %878, %v664
    %v880 = vpop.permute.xlu0 %879
    %882 = vset.pattern.permute.xlu0 81
    %883 = vperm.xlu0 %882, %v665
    %v884 = vpop.permute.xlu0 %883
    %886 = vset.pattern.permute.xlu0 81
    %887 = vperm.xlu0 %886, %v666
    %v888 = vpop.permute.xlu0 %887
    %890 = vset.pattern.permute.xlu0 81
    %891 = vperm.xlu0 %890, %v667
    %v892 = vpop.permute.xlu0 %891
    %v894 = vmul.f32 %v874, %v880
    %v895 = vmul.f32 %v875, %v884
    %v896 = vmul.f32 %v876, %v888
    %v897 = vmul.f32 %v877, %v892
    %v898 = vadd.f32 %v806, %v894
    %v899 = vadd.f32 %v807, %v895
    %v900 = vadd.f32 %v808, %v896
    %v901 = vadd.f32 %v809, %v897
    %s902 = scalar_lea.vmem %s13, 1
    %v903 = vld [vmem:[%s902] sm:$0x1]
    %904 = vset.pattern.permute.xlu0 2
    %905 = vperm.xlu0 %904, %v668
    %v906 = vpop.permute.xlu0 %905
    %908 = vset.pattern.permute.xlu0 2
    %909 = vperm.xlu0 %908, %v669
    %v910 = vpop.permute.xlu0 %909
    %912 = vset.pattern.permute.xlu0 2
    %913 = vperm.xlu0 %912, %v670
    %v914 = vpop.permute.xlu0 %913
    %916 = vset.pattern.permute.xlu0 2
    %917 = vperm.xlu0 %916, %v671
    %v918 = vpop.permute.xlu0 %917
    %v921 = vlaneseq
    %v922 = vshrl.u32 %v921, 7
    %v923 = vsub.s32 0, %v922
    %v924 = vrot.slane %v903, %v923
    %v926 = vsub.f32 %v906, %v924
    %v927 = vsub.f32 %v910, %v924
    %v928 = vsub.f32 %v914, %v924
    %v929 = vsub.f32 %v918, %v924
    %v930 = vand.u32 2147483647, %v926
    %v931 = vand.u32 2147483647, %v927
    %v932 = vand.u32 2147483647, %v928
    %v933 = vand.u32 2147483647, %v929
    %v934 = vsub.f32 1.0, %v930
    %v935 = vsub.f32 1.0, %v931
    %v936 = vsub.f32 1.0, %v932
    %v937 = vsub.f32 1.0, %v933
    %v938 = vmax.f32 %v934, 0.0
    %v939 = vmax.f32 %v935, 0.0
    %v940 = vmax.f32 %v936, 0.0
    %v941 = vmax.f32 %v937, 0.0
    %s942 = scalar_lea.vmem %s14, 1
    %v943 = vld [vmem:[%s942] sm:$0x1]
    %944 = vset.pattern.permute.xlu0 2
    %945 = vperm.xlu0 %944, %v688
    %v946 = vpop.permute.xlu0 %945
    %948 = vset.pattern.permute.xlu0 2
    %949 = vperm.xlu0 %948, %v689
    %v950 = vpop.permute.xlu0 %949
    %952 = vset.pattern.permute.xlu0 2
    %953 = vperm.xlu0 %952, %v690
    %v954 = vpop.permute.xlu0 %953
    %956 = vset.pattern.permute.xlu0 2
    %957 = vperm.xlu0 %956, %v691
    %v958 = vpop.permute.xlu0 %957
    %v961 = vlaneseq
    %v962 = vshrl.u32 %v961, 7
    %v963 = vsub.s32 0, %v962
    %v964 = vrot.slane %v943, %v963
    %v966 = vsub.f32 %v946, %v964
    %v967 = vsub.f32 %v950, %v964
    %v968 = vsub.f32 %v954, %v964
    %v969 = vsub.f32 %v958, %v964
    %v970 = vand.u32 2147483647, %v966
    %v971 = vand.u32 2147483647, %v967
    %v972 = vand.u32 2147483647, %v968
    %v973 = vand.u32 2147483647, %v969
    %v974 = vsub.f32 1.0, %v970
    %v975 = vsub.f32 1.0, %v971
    %v976 = vsub.f32 1.0, %v972
    %v977 = vsub.f32 1.0, %v973
    %v978 = vmax.f32 %v974, 0.0
    %v979 = vmax.f32 %v975, 0.0
    %v980 = vmax.f32 %v976, 0.0
    %v981 = vmax.f32 %v977, 0.0
    %v982 = vmul.f32 %v938, %v978
    %v983 = vmul.f32 %v939, %v979
    %v984 = vmul.f32 %v940, %v980
    %v985 = vmul.f32 %v941, %v981
    %986 = vset.pattern.permute.xlu0 82
    %987 = vperm.xlu0 %986, %v664
    %v988 = vpop.permute.xlu0 %987
    %990 = vset.pattern.permute.xlu0 82
    %991 = vperm.xlu0 %990, %v665
    %v992 = vpop.permute.xlu0 %991
    %994 = vset.pattern.permute.xlu0 82
    %995 = vperm.xlu0 %994, %v666
    %v996 = vpop.permute.xlu0 %995
    %998 = vset.pattern.permute.xlu0 82
    %999 = vperm.xlu0 %998, %v667
    %v1000 = vpop.permute.xlu0 %999
    %v1002 = vmul.f32 %v982, %v988
    %v1003 = vmul.f32 %v983, %v992
    %v1004 = vmul.f32 %v984, %v996
    %v1005 = vmul.f32 %v985, %v1000
    %v1006 = vadd.f32 %v898, %v1002
    %v1007 = vadd.f32 %v899, %v1003
    %v1008 = vadd.f32 %v900, %v1004
    %v1009 = vadd.f32 %v901, %v1005
    %1010 = vset.pattern.permute.xlu0 3
    %1011 = vperm.xlu0 %1010, %v668
    %v1012 = vpop.permute.xlu0 %1011
    %1014 = vset.pattern.permute.xlu0 3
    %1015 = vperm.xlu0 %1014, %v669
    %v1016 = vpop.permute.xlu0 %1015
    %1018 = vset.pattern.permute.xlu0 3
    %1019 = vperm.xlu0 %1018, %v670
    %v1020 = vpop.permute.xlu0 %1019
    %1022 = vset.pattern.permute.xlu0 3
    %1023 = vperm.xlu0 %1022, %v671
    %v1024 = vpop.permute.xlu0 %1023
    %v1026 = vsub.f32 %v1012, %v924
    %v1027 = vsub.f32 %v1016, %v924
    %v1028 = vsub.f32 %v1020, %v924
    %v1029 = vsub.f32 %v1024, %v924
    %v1030 = vand.u32 2147483647, %v1026
    %v1031 = vand.u32 2147483647, %v1027
    %v1032 = vand.u32 2147483647, %v1028
    %v1033 = vand.u32 2147483647, %v1029
    %v1034 = vsub.f32 1.0, %v1030
    %v1035 = vsub.f32 1.0, %v1031
    %v1036 = vsub.f32 1.0, %v1032
    %v1037 = vsub.f32 1.0, %v1033
    %v1038 = vmax.f32 %v1034, 0.0
    %v1039 = vmax.f32 %v1035, 0.0
    %v1040 = vmax.f32 %v1036, 0.0
    %v1041 = vmax.f32 %v1037, 0.0
    %1042 = vset.pattern.permute.xlu0 3
    %1043 = vperm.xlu0 %1042, %v688
    %v1044 = vpop.permute.xlu0 %1043
    %1046 = vset.pattern.permute.xlu0 3
    %1047 = vperm.xlu0 %1046, %v689
    %v1048 = vpop.permute.xlu0 %1047
    %1050 = vset.pattern.permute.xlu0 3
    %1051 = vperm.xlu0 %1050, %v690
    %v1052 = vpop.permute.xlu0 %1051
    %1054 = vset.pattern.permute.xlu0 3
    %1055 = vperm.xlu0 %1054, %v691
    %v1056 = vpop.permute.xlu0 %1055
    %v1058 = vsub.f32 %v1044, %v964
    %v1059 = vsub.f32 %v1048, %v964
    %v1060 = vsub.f32 %v1052, %v964
    %v1061 = vsub.f32 %v1056, %v964
    %v1062 = vand.u32 2147483647, %v1058
    %v1063 = vand.u32 2147483647, %v1059
    %v1064 = vand.u32 2147483647, %v1060
    %v1065 = vand.u32 2147483647, %v1061
    %v1066 = vsub.f32 1.0, %v1062
    %v1067 = vsub.f32 1.0, %v1063
    %v1068 = vsub.f32 1.0, %v1064
    %v1069 = vsub.f32 1.0, %v1065
    %v1070 = vmax.f32 %v1066, 0.0
    %v1071 = vmax.f32 %v1067, 0.0
    %v1072 = vmax.f32 %v1068, 0.0
    %v1073 = vmax.f32 %v1069, 0.0
    %v1074 = vmul.f32 %v1038, %v1070
    %v1075 = vmul.f32 %v1039, %v1071
    %v1076 = vmul.f32 %v1040, %v1072
    %v1077 = vmul.f32 %v1041, %v1073
    %1078 = vset.pattern.permute.xlu0 83
    %1079 = vperm.xlu0 %1078, %v664
    %v1080 = vpop.permute.xlu0 %1079
    %1082 = vset.pattern.permute.xlu0 83
    %1083 = vperm.xlu0 %1082, %v665
    %v1084 = vpop.permute.xlu0 %1083
    %1086 = vset.pattern.permute.xlu0 83
    %1087 = vperm.xlu0 %1086, %v666
    %v1088 = vpop.permute.xlu0 %1087
    %1090 = vset.pattern.permute.xlu0 83
    %1091 = vperm.xlu0 %1090, %v667
    %v1092 = vpop.permute.xlu0 %1091
    %v1094 = vmul.f32 %v1074, %v1080
    %v1095 = vmul.f32 %v1075, %v1084
    %v1096 = vmul.f32 %v1076, %v1088
    %v1097 = vmul.f32 %v1077, %v1092
    %v1098 = vadd.f32 %v1006, %v1094
    %v1099 = vadd.f32 %v1007, %v1095
    %v1100 = vadd.f32 %v1008, %v1096
    %v1101 = vadd.f32 %v1009, %v1097
    %s1102 = scalar_lea.vmem %s13, 2
    %v1103 = vld [vmem:[%s1102] sm:$0x1]
    %1104 = vset.pattern.permute.xlu0 4
    %1105 = vperm.xlu0 %1104, %v668
    %v1106 = vpop.permute.xlu0 %1105
    %1108 = vset.pattern.permute.xlu0 4
    %1109 = vperm.xlu0 %1108, %v669
    %v1110 = vpop.permute.xlu0 %1109
    %1112 = vset.pattern.permute.xlu0 4
    %1113 = vperm.xlu0 %1112, %v670
    %v1114 = vpop.permute.xlu0 %1113
    %1116 = vset.pattern.permute.xlu0 4
    %1117 = vperm.xlu0 %1116, %v671
    %v1118 = vpop.permute.xlu0 %1117
    %v1121 = vlaneseq
    %v1122 = vshrl.u32 %v1121, 7
    %v1123 = vsub.s32 0, %v1122
    %v1124 = vrot.slane %v1103, %v1123
    %v1126 = vsub.f32 %v1106, %v1124
    %v1127 = vsub.f32 %v1110, %v1124
    %v1128 = vsub.f32 %v1114, %v1124
    %v1129 = vsub.f32 %v1118, %v1124
    %v1130 = vand.u32 2147483647, %v1126
    %v1131 = vand.u32 2147483647, %v1127
    %v1132 = vand.u32 2147483647, %v1128
    %v1133 = vand.u32 2147483647, %v1129
    %v1134 = vsub.f32 1.0, %v1130
    %v1135 = vsub.f32 1.0, %v1131
    %v1136 = vsub.f32 1.0, %v1132
    %v1137 = vsub.f32 1.0, %v1133
    %v1138 = vmax.f32 %v1134, 0.0
    %v1139 = vmax.f32 %v1135, 0.0
    %v1140 = vmax.f32 %v1136, 0.0
    %v1141 = vmax.f32 %v1137, 0.0
    %s1142 = scalar_lea.vmem %s14, 2
    %v1143 = vld [vmem:[%s1142] sm:$0x1]
    %1144 = vset.pattern.permute.xlu0 4
    %1145 = vperm.xlu0 %1144, %v688
    %v1146 = vpop.permute.xlu0 %1145
    %1148 = vset.pattern.permute.xlu0 4
    %1149 = vperm.xlu0 %1148, %v689
    %v1150 = vpop.permute.xlu0 %1149
    %1152 = vset.pattern.permute.xlu0 4
    %1153 = vperm.xlu0 %1152, %v690
    %v1154 = vpop.permute.xlu0 %1153
    %1156 = vset.pattern.permute.xlu0 4
    %1157 = vperm.xlu0 %1156, %v691
    %v1158 = vpop.permute.xlu0 %1157
    %v1161 = vlaneseq
    %v1162 = vshrl.u32 %v1161, 7
    %v1163 = vsub.s32 0, %v1162
    %v1164 = vrot.slane %v1143, %v1163
    %v1166 = vsub.f32 %v1146, %v1164
    %v1167 = vsub.f32 %v1150, %v1164
    %v1168 = vsub.f32 %v1154, %v1164
    %v1169 = vsub.f32 %v1158, %v1164
    %v1170 = vand.u32 2147483647, %v1166
    %v1171 = vand.u32 2147483647, %v1167
    %v1172 = vand.u32 2147483647, %v1168
    %v1173 = vand.u32 2147483647, %v1169
    %v1174 = vsub.f32 1.0, %v1170
    %v1175 = vsub.f32 1.0, %v1171
    %v1176 = vsub.f32 1.0, %v1172
    %v1177 = vsub.f32 1.0, %v1173
    %v1178 = vmax.f32 %v1174, 0.0
    %v1179 = vmax.f32 %v1175, 0.0
    %v1180 = vmax.f32 %v1176, 0.0
    %v1181 = vmax.f32 %v1177, 0.0
    %v1182 = vmul.f32 %v1138, %v1178
    %v1183 = vmul.f32 %v1139, %v1179
    %v1184 = vmul.f32 %v1140, %v1180
    %v1185 = vmul.f32 %v1141, %v1181
    %1186 = vset.pattern.permute.xlu0 84
    %1187 = vperm.xlu0 %1186, %v664
    %v1188 = vpop.permute.xlu0 %1187
    %1190 = vset.pattern.permute.xlu0 84
    %1191 = vperm.xlu0 %1190, %v665
    %v1192 = vpop.permute.xlu0 %1191
    %1194 = vset.pattern.permute.xlu0 84
    %1195 = vperm.xlu0 %1194, %v666
    %v1196 = vpop.permute.xlu0 %1195
    %1198 = vset.pattern.permute.xlu0 84
    %1199 = vperm.xlu0 %1198, %v667
    %v1200 = vpop.permute.xlu0 %1199
    %v1202 = vmul.f32 %v1182, %v1188
    %v1203 = vmul.f32 %v1183, %v1192
    %v1204 = vmul.f32 %v1184, %v1196
    %v1205 = vmul.f32 %v1185, %v1200
    %v1206 = vadd.f32 %v1098, %v1202
    %v1207 = vadd.f32 %v1099, %v1203
    %v1208 = vadd.f32 %v1100, %v1204
    %v1209 = vadd.f32 %v1101, %v1205
    %1210 = vset.pattern.permute.xlu0 5
    %1211 = vperm.xlu0 %1210, %v668
    %v1212 = vpop.permute.xlu0 %1211
    %1214 = vset.pattern.permute.xlu0 5
    %1215 = vperm.xlu0 %1214, %v669
    %v1216 = vpop.permute.xlu0 %1215
    %1218 = vset.pattern.permute.xlu0 5
    %1219 = vperm.xlu0 %1218, %v670
    %v1220 = vpop.permute.xlu0 %1219
    %1222 = vset.pattern.permute.xlu0 5
    %1223 = vperm.xlu0 %1222, %v671
    %v1224 = vpop.permute.xlu0 %1223
    %v1226 = vsub.f32 %v1212, %v1124
    %v1227 = vsub.f32 %v1216, %v1124
    %v1228 = vsub.f32 %v1220, %v1124
    %v1229 = vsub.f32 %v1224, %v1124
    %v1230 = vand.u32 2147483647, %v1226
    %v1231 = vand.u32 2147483647, %v1227
    %v1232 = vand.u32 2147483647, %v1228
    %v1233 = vand.u32 2147483647, %v1229
    %v1234 = vsub.f32 1.0, %v1230
    %v1235 = vsub.f32 1.0, %v1231
    %v1236 = vsub.f32 1.0, %v1232
    %v1237 = vsub.f32 1.0, %v1233
    %v1238 = vmax.f32 %v1234, 0.0
    %v1239 = vmax.f32 %v1235, 0.0
    %v1240 = vmax.f32 %v1236, 0.0
    %v1241 = vmax.f32 %v1237, 0.0
    %1242 = vset.pattern.permute.xlu0 5
    %1243 = vperm.xlu0 %1242, %v688
    %v1244 = vpop.permute.xlu0 %1243
    %1246 = vset.pattern.permute.xlu0 5
    %1247 = vperm.xlu0 %1246, %v689
    %v1248 = vpop.permute.xlu0 %1247
    %1250 = vset.pattern.permute.xlu0 5
    %1251 = vperm.xlu0 %1250, %v690
    %v1252 = vpop.permute.xlu0 %1251
    %1254 = vset.pattern.permute.xlu0 5
    %1255 = vperm.xlu0 %1254, %v691
    %v1256 = vpop.permute.xlu0 %1255
    %v1258 = vsub.f32 %v1244, %v1164
    %v1259 = vsub.f32 %v1248, %v1164
    %v1260 = vsub.f32 %v1252, %v1164
    %v1261 = vsub.f32 %v1256, %v1164
    %v1262 = vand.u32 2147483647, %v1258
    %v1263 = vand.u32 2147483647, %v1259
    %v1264 = vand.u32 2147483647, %v1260
    %v1265 = vand.u32 2147483647, %v1261
    %v1266 = vsub.f32 1.0, %v1262
    %v1267 = vsub.f32 1.0, %v1263
    %v1268 = vsub.f32 1.0, %v1264
    %v1269 = vsub.f32 1.0, %v1265
    %v1270 = vmax.f32 %v1266, 0.0
    %v1271 = vmax.f32 %v1267, 0.0
    %v1272 = vmax.f32 %v1268, 0.0
    %v1273 = vmax.f32 %v1269, 0.0
    %v1274 = vmul.f32 %v1238, %v1270
    %v1275 = vmul.f32 %v1239, %v1271
    %v1276 = vmul.f32 %v1240, %v1272
    %v1277 = vmul.f32 %v1241, %v1273
    %1278 = vset.pattern.permute.xlu0 85
    %1279 = vperm.xlu0 %1278, %v664
    %v1280 = vpop.permute.xlu0 %1279
    %1282 = vset.pattern.permute.xlu0 85
    %1283 = vperm.xlu0 %1282, %v665
    %v1284 = vpop.permute.xlu0 %1283
    %1286 = vset.pattern.permute.xlu0 85
    %1287 = vperm.xlu0 %1286, %v666
    %v1288 = vpop.permute.xlu0 %1287
    %1290 = vset.pattern.permute.xlu0 85
    %1291 = vperm.xlu0 %1290, %v667
    %v1292 = vpop.permute.xlu0 %1291
    %v1294 = vmul.f32 %v1274, %v1280
    %v1295 = vmul.f32 %v1275, %v1284
    %v1296 = vmul.f32 %v1276, %v1288
    %v1297 = vmul.f32 %v1277, %v1292
    %v1298 = vadd.f32 %v1206, %v1294
    %v1299 = vadd.f32 %v1207, %v1295
    %v1300 = vadd.f32 %v1208, %v1296
    %v1301 = vadd.f32 %v1209, %v1297
    %s1302 = scalar_lea.vmem %s13, 3
    %v1303 = vld [vmem:[%s1302] sm:$0x1]
    %1304 = vset.pattern.permute.xlu0 6
    %1305 = vperm.xlu0 %1304, %v668
    %v1306 = vpop.permute.xlu0 %1305
    %1308 = vset.pattern.permute.xlu0 6
    %1309 = vperm.xlu0 %1308, %v669
    %v1310 = vpop.permute.xlu0 %1309
    %1312 = vset.pattern.permute.xlu0 6
    %1313 = vperm.xlu0 %1312, %v670
    %v1314 = vpop.permute.xlu0 %1313
    %1316 = vset.pattern.permute.xlu0 6
    %1317 = vperm.xlu0 %1316, %v671
    %v1318 = vpop.permute.xlu0 %1317
    %v1321 = vlaneseq
    %v1322 = vshrl.u32 %v1321, 7
    %v1323 = vsub.s32 0, %v1322
    %v1324 = vrot.slane %v1303, %v1323
    %v1326 = vsub.f32 %v1306, %v1324
    %v1327 = vsub.f32 %v1310, %v1324
    %v1328 = vsub.f32 %v1314, %v1324
    %v1329 = vsub.f32 %v1318, %v1324
    %v1330 = vand.u32 2147483647, %v1326
    %v1331 = vand.u32 2147483647, %v1327
    %v1332 = vand.u32 2147483647, %v1328
    %v1333 = vand.u32 2147483647, %v1329
    %v1334 = vsub.f32 1.0, %v1330
    %v1335 = vsub.f32 1.0, %v1331
    %v1336 = vsub.f32 1.0, %v1332
    %v1337 = vsub.f32 1.0, %v1333
    %v1338 = vmax.f32 %v1334, 0.0
    %v1339 = vmax.f32 %v1335, 0.0
    %v1340 = vmax.f32 %v1336, 0.0
    %v1341 = vmax.f32 %v1337, 0.0
    %s1342 = scalar_lea.vmem %s14, 3
    %v1343 = vld [vmem:[%s1342] sm:$0x1]
    %1344 = vset.pattern.permute.xlu0 6
    %1345 = vperm.xlu0 %1344, %v688
    %v1346 = vpop.permute.xlu0 %1345
    %1348 = vset.pattern.permute.xlu0 6
    %1349 = vperm.xlu0 %1348, %v689
    %v1350 = vpop.permute.xlu0 %1349
    %1352 = vset.pattern.permute.xlu0 6
    %1353 = vperm.xlu0 %1352, %v690
    %v1354 = vpop.permute.xlu0 %1353
    %1356 = vset.pattern.permute.xlu0 6
    %1357 = vperm.xlu0 %1356, %v691
    %v1358 = vpop.permute.xlu0 %1357
    %v1361 = vlaneseq
    %v1362 = vshrl.u32 %v1361, 7
    %v1363 = vsub.s32 0, %v1362
    %v1364 = vrot.slane %v1343, %v1363
    %v1366 = vsub.f32 %v1346, %v1364
    %v1367 = vsub.f32 %v1350, %v1364
    %v1368 = vsub.f32 %v1354, %v1364
    %v1369 = vsub.f32 %v1358, %v1364
    %v1370 = vand.u32 2147483647, %v1366
    %v1371 = vand.u32 2147483647, %v1367
    %v1372 = vand.u32 2147483647, %v1368
    %v1373 = vand.u32 2147483647, %v1369
    %v1374 = vsub.f32 1.0, %v1370
    %v1375 = vsub.f32 1.0, %v1371
    %v1376 = vsub.f32 1.0, %v1372
    %v1377 = vsub.f32 1.0, %v1373
    %v1378 = vmax.f32 %v1374, 0.0
    %v1379 = vmax.f32 %v1375, 0.0
    %v1380 = vmax.f32 %v1376, 0.0
    %v1381 = vmax.f32 %v1377, 0.0
    %v1382 = vmul.f32 %v1338, %v1378
    %v1383 = vmul.f32 %v1339, %v1379
    %v1384 = vmul.f32 %v1340, %v1380
    %v1385 = vmul.f32 %v1341, %v1381
    %1386 = vset.pattern.permute.xlu0 86
    %1387 = vperm.xlu0 %1386, %v664
    %v1388 = vpop.permute.xlu0 %1387
    %1390 = vset.pattern.permute.xlu0 86
    %1391 = vperm.xlu0 %1390, %v665
    %v1392 = vpop.permute.xlu0 %1391
    %1394 = vset.pattern.permute.xlu0 86
    %1395 = vperm.xlu0 %1394, %v666
    %v1396 = vpop.permute.xlu0 %1395
    %1398 = vset.pattern.permute.xlu0 86
    %1399 = vperm.xlu0 %1398, %v667
    %v1400 = vpop.permute.xlu0 %1399
    %v1402 = vmul.f32 %v1382, %v1388
    %v1403 = vmul.f32 %v1383, %v1392
    %v1404 = vmul.f32 %v1384, %v1396
    %v1405 = vmul.f32 %v1385, %v1400
    %v1406 = vadd.f32 %v1298, %v1402
    %v1407 = vadd.f32 %v1299, %v1403
    %v1408 = vadd.f32 %v1300, %v1404
    %v1409 = vadd.f32 %v1301, %v1405
    %1410 = vset.pattern.permute.xlu0 7
    %1411 = vperm.xlu0 %1410, %v668
    %v1412 = vpop.permute.xlu0 %1411
    %1414 = vset.pattern.permute.xlu0 7
    %1415 = vperm.xlu0 %1414, %v669
    %v1416 = vpop.permute.xlu0 %1415
    %1418 = vset.pattern.permute.xlu0 7
    %1419 = vperm.xlu0 %1418, %v670
    %v1420 = vpop.permute.xlu0 %1419
    %1422 = vset.pattern.permute.xlu0 7
    %1423 = vperm.xlu0 %1422, %v671
    %v1424 = vpop.permute.xlu0 %1423
    %v1426 = vsub.f32 %v1412, %v1324
    %v1427 = vsub.f32 %v1416, %v1324
    %v1428 = vsub.f32 %v1420, %v1324
    %v1429 = vsub.f32 %v1424, %v1324
    %v1430 = vand.u32 2147483647, %v1426
    %v1431 = vand.u32 2147483647, %v1427
    %v1432 = vand.u32 2147483647, %v1428
    %v1433 = vand.u32 2147483647, %v1429
    %v1434 = vsub.f32 1.0, %v1430
    %v1435 = vsub.f32 1.0, %v1431
    %v1436 = vsub.f32 1.0, %v1432
    %v1437 = vsub.f32 1.0, %v1433
    %v1438 = vmax.f32 %v1434, 0.0
    %v1439 = vmax.f32 %v1435, 0.0
    %v1440 = vmax.f32 %v1436, 0.0
    %v1441 = vmax.f32 %v1437, 0.0
    %1442 = vset.pattern.permute.xlu0 7
    %1443 = vperm.xlu0 %1442, %v688
    %v1444 = vpop.permute.xlu0 %1443
    %1446 = vset.pattern.permute.xlu0 7
    %1447 = vperm.xlu0 %1446, %v689
    %v1448 = vpop.permute.xlu0 %1447
    %1450 = vset.pattern.permute.xlu0 7
    %1451 = vperm.xlu0 %1450, %v690
    %v1452 = vpop.permute.xlu0 %1451
    %1454 = vset.pattern.permute.xlu0 7
    %1455 = vperm.xlu0 %1454, %v691
    %v1456 = vpop.permute.xlu0 %1455
    %v1458 = vsub.f32 %v1444, %v1364
    %v1459 = vsub.f32 %v1448, %v1364
    %v1460 = vsub.f32 %v1452, %v1364
    %v1461 = vsub.f32 %v1456, %v1364
    %v1462 = vand.u32 2147483647, %v1458
    %v1463 = vand.u32 2147483647, %v1459
    %v1464 = vand.u32 2147483647, %v1460
    %v1465 = vand.u32 2147483647, %v1461
    %v1466 = vsub.f32 1.0, %v1462
    %v1467 = vsub.f32 1.0, %v1463
    %v1468 = vsub.f32 1.0, %v1464
    %v1469 = vsub.f32 1.0, %v1465
    %v1470 = vmax.f32 %v1466, 0.0
    %v1471 = vmax.f32 %v1467, 0.0
    %v1472 = vmax.f32 %v1468, 0.0
    %v1473 = vmax.f32 %v1469, 0.0
    %v1474 = vmul.f32 %v1438, %v1470
    %v1475 = vmul.f32 %v1439, %v1471
    %v1476 = vmul.f32 %v1440, %v1472
    %v1477 = vmul.f32 %v1441, %v1473
    %1478 = vset.pattern.permute.xlu0 87
    %1479 = vperm.xlu0 %1478, %v664
    %v1480 = vpop.permute.xlu0 %1479
    %1482 = vset.pattern.permute.xlu0 87
    %1483 = vperm.xlu0 %1482, %v665
    %v1484 = vpop.permute.xlu0 %1483
    %1486 = vset.pattern.permute.xlu0 87
    %1487 = vperm.xlu0 %1486, %v666
    %v1488 = vpop.permute.xlu0 %1487
    %1490 = vset.pattern.permute.xlu0 87
    %1491 = vperm.xlu0 %1490, %v667
    %v1492 = vpop.permute.xlu0 %1491
    %v1494 = vmul.f32 %v1474, %v1480
    %v1495 = vmul.f32 %v1475, %v1484
    %v1496 = vmul.f32 %v1476, %v1488
    %v1497 = vmul.f32 %v1477, %v1492
    %v1498 = vadd.f32 %v1406, %v1494
    %v1499 = vadd.f32 %v1407, %v1495
    %v1500 = vadd.f32 %v1408, %v1496
    %v1501 = vadd.f32 %v1409, %v1497
    %s1502 = scalar_lea.vmem %s13, 4
    %v1503 = vld [vmem:[%s1502] sm:$0x1]
    %1504 = vset.pattern.permute.xlu0 8
    %1505 = vperm.xlu0 %1504, %v668
    %v1506 = vpop.permute.xlu0 %1505
    %1508 = vset.pattern.permute.xlu0 8
    %1509 = vperm.xlu0 %1508, %v669
    %v1510 = vpop.permute.xlu0 %1509
    %1512 = vset.pattern.permute.xlu0 8
    %1513 = vperm.xlu0 %1512, %v670
    %v1514 = vpop.permute.xlu0 %1513
    %1516 = vset.pattern.permute.xlu0 8
    %1517 = vperm.xlu0 %1516, %v671
    %v1518 = vpop.permute.xlu0 %1517
    %v1521 = vlaneseq
    %v1522 = vshrl.u32 %v1521, 7
    %v1523 = vsub.s32 0, %v1522
    %v1524 = vrot.slane %v1503, %v1523
    %v1526 = vsub.f32 %v1506, %v1524
    %v1527 = vsub.f32 %v1510, %v1524
    %v1528 = vsub.f32 %v1514, %v1524
    %v1529 = vsub.f32 %v1518, %v1524
    %v1530 = vand.u32 2147483647, %v1526
    %v1531 = vand.u32 2147483647, %v1527
    %v1532 = vand.u32 2147483647, %v1528
    %v1533 = vand.u32 2147483647, %v1529
    %v1534 = vsub.f32 1.0, %v1530
    %v1535 = vsub.f32 1.0, %v1531
    %v1536 = vsub.f32 1.0, %v1532
    %v1537 = vsub.f32 1.0, %v1533
    %v1538 = vmax.f32 %v1534, 0.0
    %v1539 = vmax.f32 %v1535, 0.0
    %v1540 = vmax.f32 %v1536, 0.0
    %v1541 = vmax.f32 %v1537, 0.0
    %s1542 = scalar_lea.vmem %s14, 4
    %v1543 = vld [vmem:[%s1542] sm:$0x1]
    %1544 = vset.pattern.permute.xlu0 8
    %1545 = vperm.xlu0 %1544, %v688
    %v1546 = vpop.permute.xlu0 %1545
    %1548 = vset.pattern.permute.xlu0 8
    %1549 = vperm.xlu0 %1548, %v689
    %v1550 = vpop.permute.xlu0 %1549
    %1552 = vset.pattern.permute.xlu0 8
    %1553 = vperm.xlu0 %1552, %v690
    %v1554 = vpop.permute.xlu0 %1553
    %1556 = vset.pattern.permute.xlu0 8
    %1557 = vperm.xlu0 %1556, %v691
    %v1558 = vpop.permute.xlu0 %1557
    %v1561 = vlaneseq
    %v1562 = vshrl.u32 %v1561, 7
    %v1563 = vsub.s32 0, %v1562
    %v1564 = vrot.slane %v1543, %v1563
    %v1566 = vsub.f32 %v1546, %v1564
    %v1567 = vsub.f32 %v1550, %v1564
    %v1568 = vsub.f32 %v1554, %v1564
    %v1569 = vsub.f32 %v1558, %v1564
    %v1570 = vand.u32 2147483647, %v1566
    %v1571 = vand.u32 2147483647, %v1567
    %v1572 = vand.u32 2147483647, %v1568
    %v1573 = vand.u32 2147483647, %v1569
    %v1574 = vsub.f32 1.0, %v1570
    %v1575 = vsub.f32 1.0, %v1571
    %v1576 = vsub.f32 1.0, %v1572
    %v1577 = vsub.f32 1.0, %v1573
    %v1578 = vmax.f32 %v1574, 0.0
    %v1579 = vmax.f32 %v1575, 0.0
    %v1580 = vmax.f32 %v1576, 0.0
    %v1581 = vmax.f32 %v1577, 0.0
    %v1582 = vmul.f32 %v1538, %v1578
    %v1583 = vmul.f32 %v1539, %v1579
    %v1584 = vmul.f32 %v1540, %v1580
    %v1585 = vmul.f32 %v1541, %v1581
    %1586 = vset.pattern.permute.xlu0 88
    %1587 = vperm.xlu0 %1586, %v664
    %v1588 = vpop.permute.xlu0 %1587
    %1590 = vset.pattern.permute.xlu0 88
    %1591 = vperm.xlu0 %1590, %v665
    %v1592 = vpop.permute.xlu0 %1591
    %1594 = vset.pattern.permute.xlu0 88
    %1595 = vperm.xlu0 %1594, %v666
    %v1596 = vpop.permute.xlu0 %1595
    %1598 = vset.pattern.permute.xlu0 88
    %1599 = vperm.xlu0 %1598, %v667
    %v1600 = vpop.permute.xlu0 %1599
    %v1602 = vmul.f32 %v1582, %v1588
    %v1603 = vmul.f32 %v1583, %v1592
    %v1604 = vmul.f32 %v1584, %v1596
    %v1605 = vmul.f32 %v1585, %v1600
    %v1606 = vadd.f32 %v1498, %v1602
    %v1607 = vadd.f32 %v1499, %v1603
    %v1608 = vadd.f32 %v1500, %v1604
    %v1609 = vadd.f32 %v1501, %v1605
    %1610 = vset.pattern.permute.xlu0 9
    %1611 = vperm.xlu0 %1610, %v668
    %v1612 = vpop.permute.xlu0 %1611
    %1614 = vset.pattern.permute.xlu0 9
    %1615 = vperm.xlu0 %1614, %v669
    %v1616 = vpop.permute.xlu0 %1615
    %1618 = vset.pattern.permute.xlu0 9
    %1619 = vperm.xlu0 %1618, %v670
    %v1620 = vpop.permute.xlu0 %1619
    %1622 = vset.pattern.permute.xlu0 9
    %1623 = vperm.xlu0 %1622, %v671
    %v1624 = vpop.permute.xlu0 %1623
    %v1626 = vsub.f32 %v1612, %v1524
    %v1627 = vsub.f32 %v1616, %v1524
    %v1628 = vsub.f32 %v1620, %v1524
    %v1629 = vsub.f32 %v1624, %v1524
    %v1630 = vand.u32 2147483647, %v1626
    %v1631 = vand.u32 2147483647, %v1627
    %v1632 = vand.u32 2147483647, %v1628
    %v1633 = vand.u32 2147483647, %v1629
    %v1634 = vsub.f32 1.0, %v1630
    %v1635 = vsub.f32 1.0, %v1631
    %v1636 = vsub.f32 1.0, %v1632
    %v1637 = vsub.f32 1.0, %v1633
    %v1638 = vmax.f32 %v1634, 0.0
    %v1639 = vmax.f32 %v1635, 0.0
    %v1640 = vmax.f32 %v1636, 0.0
    %v1641 = vmax.f32 %v1637, 0.0
    %1642 = vset.pattern.permute.xlu0 9
    %1643 = vperm.xlu0 %1642, %v688
    %v1644 = vpop.permute.xlu0 %1643
    %1646 = vset.pattern.permute.xlu0 9
    %1647 = vperm.xlu0 %1646, %v689
    %v1648 = vpop.permute.xlu0 %1647
    %1650 = vset.pattern.permute.xlu0 9
    %1651 = vperm.xlu0 %1650, %v690
    %v1652 = vpop.permute.xlu0 %1651
    %1654 = vset.pattern.permute.xlu0 9
    %1655 = vperm.xlu0 %1654, %v691
    %v1656 = vpop.permute.xlu0 %1655
    %v1658 = vsub.f32 %v1644, %v1564
    %v1659 = vsub.f32 %v1648, %v1564
    %v1660 = vsub.f32 %v1652, %v1564
    %v1661 = vsub.f32 %v1656, %v1564
    %v1662 = vand.u32 2147483647, %v1658
    %v1663 = vand.u32 2147483647, %v1659
    %v1664 = vand.u32 2147483647, %v1660
    %v1665 = vand.u32 2147483647, %v1661
    %v1666 = vsub.f32 1.0, %v1662
    %v1667 = vsub.f32 1.0, %v1663
    %v1668 = vsub.f32 1.0, %v1664
    %v1669 = vsub.f32 1.0, %v1665
    %v1670 = vmax.f32 %v1666, 0.0
    %v1671 = vmax.f32 %v1667, 0.0
    %v1672 = vmax.f32 %v1668, 0.0
    %v1673 = vmax.f32 %v1669, 0.0
    %v1674 = vmul.f32 %v1638, %v1670
    %v1675 = vmul.f32 %v1639, %v1671
    %v1676 = vmul.f32 %v1640, %v1672
    %v1677 = vmul.f32 %v1641, %v1673
    %1678 = vset.pattern.permute.xlu0 89
    %1679 = vperm.xlu0 %1678, %v664
    %v1680 = vpop.permute.xlu0 %1679
    %1682 = vset.pattern.permute.xlu0 89
    %1683 = vperm.xlu0 %1682, %v665
    %v1684 = vpop.permute.xlu0 %1683
    %1686 = vset.pattern.permute.xlu0 89
    %1687 = vperm.xlu0 %1686, %v666
    %v1688 = vpop.permute.xlu0 %1687
    %1690 = vset.pattern.permute.xlu0 89
    %1691 = vperm.xlu0 %1690, %v667
    %v1692 = vpop.permute.xlu0 %1691
    %v1694 = vmul.f32 %v1674, %v1680
    %v1695 = vmul.f32 %v1675, %v1684
    %v1696 = vmul.f32 %v1676, %v1688
    %v1697 = vmul.f32 %v1677, %v1692
    %v1698 = vadd.f32 %v1606, %v1694
    %v1699 = vadd.f32 %v1607, %v1695
    %v1700 = vadd.f32 %v1608, %v1696
    %v1701 = vadd.f32 %v1609, %v1697
    %v1702 = vld [vmem:[#allocation3] sm:$0xff]
    %v1703 = vld [vmem:[#allocation3 + $0x8] sm:$0xff]
    %v1704 = vld [vmem:[#allocation3 + $0x10] sm:$0xff]
    %v1705 = vld [vmem:[#allocation3 + $0x18] sm:$0xff]
    %v1706 = vld [vmem:[#allocation3 + $0x20] sm:$0xff]
    %v1707 = vld [vmem:[#allocation3 + $0x28] sm:$0xff]
    %v1708 = vld [vmem:[#allocation3 + $0x30] sm:$0xff]
    %v1709 = vld [vmem:[#allocation3 + $0x38] sm:$0xff]
    %v1710 = vld [vmem:[#allocation3 + $0x40] sm:$0xff]
    %v1711 = vld [vmem:[#allocation3 + $0x48] sm:$0xff]
    %v1712 = vld [vmem:[#allocation3 + $0x50] sm:$0xff]
    %v1713 = vld [vmem:[#allocation3 + $0x58] sm:$0xff]
    %v1714 = vld [vmem:[#allocation3 + $0x60] sm:$0xff]
    %v1715 = vld [vmem:[#allocation3 + $0x68] sm:$0xff]
    %v1716 = vld [vmem:[#allocation3 + $0x70] sm:$0xff]
    %v1717 = vld [vmem:[#allocation3 + $0x78] sm:$0xff]
    %1718 = vmatprep.subr.mxu0 0.0
    %1719 = vmatpush1.msra.mxu0 %v1702
    %1720 = vmatprep.subr.mxu0 0.0
    %1721 = vmatpush1.msra.mxu0 %v1703
    %1722 = vmatprep.subr.mxu0 0.0
    %1723 = vmatpush1.msra.mxu0 %v1704
    %1724 = vmatprep.subr.mxu0 0.0
    %1725 = vmatpush1.msra.mxu0 %v1705
    %1726 = vmatprep.subr.mxu0 0.0
    %1727 = vmatpush1.msra.mxu0 %v1706
    %1728 = vmatprep.subr.mxu0 0.0
    %1729 = vmatpush1.msra.mxu0 %v1707
    %1730 = vmatprep.subr.mxu0 0.0
    %1731 = vmatpush1.msra.mxu0 %v1708
    %1732 = vmatprep.subr.mxu0 0.0
    %1733 = vmatpush1.msra.mxu0 %v1709
    %1734 = vmatprep.subr.mxu0 0.0
    %1735 = vmatpush1.msra.mxu0 %v1710
    %1736 = vmatprep.subr.mxu0 0.0
    %1737 = vmatpush1.msra.mxu0 %v1711
    %1738 = vmatprep.subr.mxu0 0.0
    %1739 = vmatpush1.msra.mxu0 %v1712
    %1740 = vmatprep.subr.mxu0 0.0
    %1741 = vmatpush1.msra.mxu0 %v1713
    %1742 = vmatprep.subr.mxu0 0.0
    %1743 = vmatpush1.msra.mxu0 %v1714
    %1744 = vmatprep.subr.mxu0 0.0
    %1745 = vmatpush1.msra.mxu0 %v1715
    %1746 = vmatprep.subr.mxu0 0.0
    %1747 = vmatpush1.msra.mxu0 %v1716
    %1748 = vmatprep.subr.mxu0 0.0
    %1749 = vmatpush1.msra.mxu0 %v1717
    %1750 = vmatprep.subr.mxu0 0.0
    %1751 = vmatpush1.msra.mxu0 0.0
    %1752 = vmatprep.subr.mxu0 0.0
    %1753 = vmatpush1.msra.mxu0 0.0
    %1754 = vmatprep.subr.mxu0 0.0
    %1755 = vmatpush1.msra.mxu0 0.0
    %1756 = vmatprep.subr.mxu0 0.0
    %1757 = vmatpush1.msra.mxu0 0.0
    %1758 = vmatprep.subr.mxu0 0.0
    %1759 = vmatpush1.msra.mxu0 0.0
    %1760 = vmatprep.subr.mxu0 0.0
    %1761 = vmatpush1.msra.mxu0 0.0
    %1762 = vmatprep.subr.mxu0 0.0
    %1763 = vmatpush1.msra.mxu0 0.0
    %1764 = vmatprep.subr.mxu0 0.0
    %1765 = vmatpush1.msra.mxu0 0.0
    %1766 = vmatprep.subr.mxu0 0.0
    %1767 = vmatpush1.msra.mxu0 0.0
    %1768 = vmatprep.subr.mxu0 0.0
    %1769 = vmatpush1.msra.mxu0 0.0
    %1770 = vmatprep.subr.mxu0 0.0
    %1771 = vmatpush1.msra.mxu0 0.0
    %1772 = vmatprep.subr.mxu0 0.0
    %1773 = vmatpush1.msra.mxu0 0.0
    %1774 = vmatprep.subr.mxu0 0.0
    %1775 = vmatpush1.msra.mxu0 0.0
    %1776 = vmatprep.subr.mxu0 0.0
    %1777 = vmatpush1.msra.mxu0 0.0
    %1778 = vmatprep.subr.mxu0 0.0
    %1779 = vmatpush1.msra.mxu0 0.0
    %1780 = vmatprep.subr.mxu0 0.0
    %1781 = vmatpush1.msra.mxu0 0.0
    %1782 = vmatprep.mubr.f32.mxu0 0.0
    %1783 = vmatmul.mubr.f32.gmra.mrb[0].mxu0 %v1698
    %v1784 = vpop.f32.mrb[0].mxu0
    %v1785 = vadd.f32 0.0, %v1784
    %v1786 = vpop.f32.mrb[0].mxu0
    %1787 = vmatprep.mubr.f32.mxu0 0.0
    %1788 = vmatmul.mubr.f32.gmra.mrb[0].mxu0 %v1699
    %v1789 = vpop.f32.mrb[0].mxu0
    %v1790 = vadd.f32 0.0, %v1789
    %v1791 = vpop.f32.mrb[0].mxu0
    %1792 = vdwg.mxu0
    %vm1793 = vcmask 64512
    %1794 = vst.msk [vmem:[#allocation2] sm:$0xff] %vm1793, %v1785
    %1795 = vst.msk [vmem:[#allocation2 + $0x8] sm:$0xff] %vm1793, %v1790
    %v1796 = vld [vmem:[#allocation3 + $0x80] sm:$0xff]
    %v1797 = vld [vmem:[#allocation3 + $0x88] sm:$0xff]
    %v1798 = vld [vmem:[#allocation3 + $0x90] sm:$0xff]
    %v1799 = vld [vmem:[#allocation3 + $0x98] sm:$0xff]
    %v1800 = vld [vmem:[#allocation3 + $0xa0] sm:$0xff]
    %v1801 = vld [vmem:[#allocation3 + $0xa8] sm:$0xff]
    %v1802 = vld [vmem:[#allocation3 + $0xb0] sm:$0xff]
    %v1803 = vld [vmem:[#allocation3 + $0xb8] sm:$0xff]
    %v1804 = vld [vmem:[#allocation3 + $0xc0] sm:$0xff]
    %v1805 = vld [vmem:[#allocation3 + $0xc8] sm:$0xff]
    %v1806 = vld [vmem:[#allocation3 + $0xd0] sm:$0xff]
    %v1807 = vld [vmem:[#allocation3 + $0xd8] sm:$0xff]
    %v1808 = vld [vmem:[#allocation3 + $0xe0] sm:$0xff]
    %v1809 = vld [vmem:[#allocation3 + $0xe8] sm:$0xff]
    %v1810 = vld [vmem:[#allocation3 + $0xf0] sm:$0xff]
    %v1811 = vld [vmem:[#allocation3 + $0xf8] sm:$0xff]
    %1812 = vmatprep.subr.mxu0 0.0
    %1813 = vmatpush1.msra.mxu0 %v1796
    %1814 = vmatprep.subr.mxu0 0.0
    %1815 = vmatpush1.msra.mxu0 %v1797
    %1816 = vmatprep.subr.mxu0 0.0
    %1817 = vmatpush1.msra.mxu0 %v1798
    %1818 = vmatprep.subr.mxu0 0.0
    %1819 = vmatpush1.msra.mxu0 %v1799
    %1820 = vmatprep.subr.mxu0 0.0
    %1821 = vmatpush1.msra.mxu0 %v1800
    %1822 = vmatprep.subr.mxu0 0.0
    %1823 = vmatpush1.msra.mxu0 %v1801
    %1824 = vmatprep.subr.mxu0 0.0
    %1825 = vmatpush1.msra.mxu0 %v1802
    %1826 = vmatprep.subr.mxu0 0.0
    %1827 = vmatpush1.msra.mxu0 %v1803
    %1828 = vmatprep.subr.mxu0 0.0
    %1829 = vmatpush1.msra.mxu0 %v1804
    %1830 = vmatprep.subr.mxu0 0.0
    %1831 = vmatpush1.msra.mxu0 %v1805
    %1832 = vmatprep.subr.mxu0 0.0
    %1833 = vmatpush1.msra.mxu0 %v1806
    %1834 = vmatprep.subr.mxu0 0.0
    %1835 = vmatpush1.msra.mxu0 %v1807
    %1836 = vmatprep.subr.mxu0 0.0
    %1837 = vmatpush1.msra.mxu0 %v1808
    %1838 = vmatprep.subr.mxu0 0.0
    %1839 = vmatpush1.msra.mxu0 %v1809
    %1840 = vmatprep.subr.mxu0 0.0
    %1841 = vmatpush1.msra.mxu0 %v1810
    %1842 = vmatprep.subr.mxu0 0.0
    %1843 = vmatpush1.msra.mxu0 %v1811
    %1844 = vmatprep.subr.mxu0 0.0
    %1845 = vmatpush1.msra.mxu0 0.0
    %1846 = vmatprep.subr.mxu0 0.0
    %1847 = vmatpush1.msra.mxu0 0.0
    %1848 = vmatprep.subr.mxu0 0.0
    %1849 = vmatpush1.msra.mxu0 0.0
    %1850 = vmatprep.subr.mxu0 0.0
    %1851 = vmatpush1.msra.mxu0 0.0
    %1852 = vmatprep.subr.mxu0 0.0
    %1853 = vmatpush1.msra.mxu0 0.0
    %1854 = vmatprep.subr.mxu0 0.0
    %1855 = vmatpush1.msra.mxu0 0.0
    %1856 = vmatprep.subr.mxu0 0.0
    %1857 = vmatpush1.msra.mxu0 0.0
    %1858 = vmatprep.subr.mxu0 0.0
    %1859 = vmatpush1.msra.mxu0 0.0
    %1860 = vmatprep.subr.mxu0 0.0
    %1861 = vmatpush1.msra.mxu0 0.0
    %1862 = vmatprep.subr.mxu0 0.0
    %1863 = vmatpush1.msra.mxu0 0.0
    %1864 = vmatprep.subr.mxu0 0.0
    %1865 = vmatpush1.msra.mxu0 0.0
    %1866 = vmatprep.subr.mxu0 0.0
    %1867 = vmatpush1.msra.mxu0 0.0
    %1868 = vmatprep.subr.mxu0 0.0
    %1869 = vmatpush1.msra.mxu0 0.0
    %1870 = vmatprep.subr.mxu0 0.0
    %1871 = vmatpush1.msra.mxu0 0.0
    %1872 = vmatprep.subr.mxu0 0.0
    %1873 = vmatpush1.msra.mxu0 0.0
    %1874 = vmatprep.subr.mxu0 0.0
    %1875 = vmatpush1.msra.mxu0 0.0
    %1876 = vmatprep.mubr.f32.mxu0 0.0
    %1877 = vmatmul.mubr.f32.gmra.mrb[0].mxu0 %v1700
    %v1878 = vpop.f32.mrb[0].mxu0
    %v1879 = vadd.f32 0.0, %v1878
    %v1880 = vpop.f32.mrb[0].mxu0
    %1881 = vmatprep.mubr.f32.mxu0 0.0
    %1882 = vmatmul.mubr.f32.gmra.mrb[0].mxu0 %v1701
    %v1883 = vpop.f32.mrb[0].mxu0
    %v1884 = vadd.f32 0.0, %v1883
    %v1885 = vpop.f32.mrb[0].mxu0
    %1886 = vdwg.mxu0
    %1887 = vst.msk [vmem:[#allocation2 + $0x10] sm:$0xff] %vm1793, %v1879
    %1888 = vst.msk [vmem:[#allocation2 + $0x18] sm:$0xff] %vm1793, %v1884
    %vm1889 = vcmask 818896
    %v1890 = vsel %vm1889, %v550, -inf
    %1891 = vmax.xlane.f32.xlu0 %v1890
    %v1892 = vpop.xlane.xlu0 %1891
    %v1893 = vsel %vm1889, %v555, -inf
    %1894 = vmax.xlane.f32.xlu0 %v1893
    %v1895 = vpop.xlane.xlu0 %1894
    %v1896 = vsel %vm1889, %v560, -inf
    %1897 = vmax.xlane.f32.xlu0 %v1896
    %v1898 = vpop.xlane.xlu0 %1897
    %v1899 = vsel %vm1889, %v565, -inf
    %1900 = vmax.xlane.f32.xlu0 %v1899
    %v1901 = vpop.xlane.xlu0 %1900
    %v1902 = vsub.f32 %v550, %v1892
    %v1903 = vsub.f32 %v555, %v1895
    %v1904 = vsub.f32 %v560, %v1898
    %v1905 = vsub.f32 %v565, %v1901
    %v1906 = vmul.f32 %v1902, 1.442695
    %v1907 = vpow.pop %v1906
    %v1908 = vmul.f32 %v1903, 1.442695
    %v1909 = vpow.pop %v1908
    %v1910 = vmul.f32 %v1904, 1.442695
    %v1911 = vpow.pop %v1910
    %v1912 = vmul.f32 %v1905, 1.442695
    %v1913 = vpow.pop %v1912
    %1918 = vrot.lane.b32.xlu0 %v1907, 38
    %v1919 = vpop.permute.xlu0 %1918
    %1920 = vrot.lane.b32.xlu0 %v1909, 38
    %v1921 = vpop.permute.xlu0 %1920
    %1922 = vrot.lane.b32.xlu0 %v1911, 38
    %v1923 = vpop.permute.xlu0 %1922
    %1924 = vrot.lane.b32.xlu0 %v1913, 38
    %v1925 = vpop.permute.xlu0 %1924
    %v1930 = vsel %vm647, %v1919, 0.0
    %1931 = vadd.xlane.f32.xlu0 %v1930
    %v1932 = vpop.xlane.xlu0 %1931
    %v1933 = vsel %vm647, %v1921, 0.0
    %1934 = vadd.xlane.f32.xlu0 %v1933
    %v1935 = vpop.xlane.xlu0 %1934
    %v1936 = vsel %vm647, %v1923, 0.0
    %1937 = vadd.xlane.f32.xlu0 %v1936
    %v1938 = vpop.xlane.xlu0 %1937
    %v1939 = vsel %vm647, %v1925, 0.0
    %1940 = vadd.xlane.f32.xlu0 %v1939
    %v1941 = vpop.xlane.xlu0 %1940
    %v1942 = vrcp.pop %v1932
    %v1943 = vrcp.pop %v1935
    %v1944 = vrcp.pop %v1938
    %v1945 = vrcp.pop %v1941
    %v1946 = vmul.f32 %v1907, %v1942
    %v1947 = vmul.f32 %v1909, %v1943
    %v1948 = vmul.f32 %v1911, %v1944
    %v1949 = vmul.f32 %v1913, %v1945
    %1950 = vrot.lane.b32.xlu0 %v550, 108
    %v1951 = vpop.permute.xlu0 %1950
    %1952 = vrot.lane.b32.xlu0 %v555, 108
    %v1953 = vpop.permute.xlu0 %1952
    %1954 = vrot.lane.b32.xlu0 %v560, 108
    %v1955 = vpop.permute.xlu0 %1954
    %1956 = vrot.lane.b32.xlu0 %v565, 108
    %v1957 = vpop.permute.xlu0 %1956
    %v1962 = vadd.f32 %v583, %v1951
    %v1963 = vadd.f32 %v584, %v1953
    %v1964 = vadd.f32 %v585, %v1955
    %v1965 = vadd.f32 %v586, %v1957
    %1966 = vrot.lane.b32.xlu0 %v550, 98
    %v1967 = vpop.permute.xlu0 %1966
    %1968 = vrot.lane.b32.xlu0 %v555, 98
    %v1969 = vpop.permute.xlu0 %1968
    %1970 = vrot.lane.b32.xlu0 %v560, 98
    %v1971 = vpop.permute.xlu0 %1970
    %1972 = vrot.lane.b32.xlu0 %v565, 98
    %v1973 = vpop.permute.xlu0 %1972
    %v1978 = vadd.f32 %v602, %v1967
    %v1979 = vadd.f32 %v603, %v1969
    %v1980 = vadd.f32 %v604, %v1971
    %v1981 = vadd.f32 %v605, %v1973
    %v1982 = vld [vmem:[%s13] sm:$0x1]
    %1984 = vset.pattern.permute.xlu0 0
    %1985 = vperm.xlu0 %1984, %v1962
    %v1986 = vpop.permute.xlu0 %1985
    %1989 = vset.pattern.permute.xlu0 0
    %1990 = vperm.xlu0 %1989, %v1963
    %v1991 = vpop.permute.xlu0 %1990
    %1994 = vset.pattern.permute.xlu0 0
    %1995 = vperm.xlu0 %1994, %v1964
    %v1996 = vpop.permute.xlu0 %1995
    %1999 = vset.pattern.permute.xlu0 0
    %2000 = vperm.xlu0 %1999, %v1965
    %v2001 = vpop.permute.xlu0 %2000
    %v2004 = vlaneseq
    %v2005 = vshrl.u32 %v2004, 7
    %v2006 = vsub.s32 0, %v2005
    %v2007 = vrot.slane %v1982, %v2006
    %v2009 = vsub.f32 %v1986, %v2007
    %v2010 = vsub.f32 %v1991, %v2007
    %v2011 = vsub.f32 %v1996, %v2007
    %v2012 = vsub.f32 %v2001, %v2007
    %v2013 = vand.u32 2147483647, %v2009
    %v2014 = vand.u32 2147483647, %v2010
    %v2015 = vand.u32 2147483647, %v2011
    %v2016 = vand.u32 2147483647, %v2012
    %v2017 = vsub.f32 1.0, %v2013
    %v2018 = vsub.f32 1.0, %v2014
    %v2019 = vsub.f32 1.0, %v2015
    %v2020 = vsub.f32 1.0, %v2016
    %v2021 = vmax.f32 %v2017, 0.0
    %v2022 = vmax.f32 %v2018, 0.0
    %v2023 = vmax.f32 %v2019, 0.0
    %v2024 = vmax.f32 %v2020, 0.0
    %v2025 = vld [vmem:[%s14] sm:$0x1]
    %2027 = vset.pattern.permute.xlu0 0
    %2028 = vperm.xlu0 %2027, %v1978
    %v2029 = vpop.permute.xlu0 %2028
    %2032 = vset.pattern.permute.xlu0 0
    %2033 = vperm.xlu0 %2032, %v1979
    %v2034 = vpop.permute.xlu0 %2033
    %2037 = vset.pattern.permute.xlu0 0
    %2038 = vperm.xlu0 %2037, %v1980
    %v2039 = vpop.permute.xlu0 %2038
    %2042 = vset.pattern.permute.xlu0 0
    %2043 = vperm.xlu0 %2042, %v1981
    %v2044 = vpop.permute.xlu0 %2043
    %v2047 = vlaneseq
    %v2048 = vshrl.u32 %v2047, 7
    %v2049 = vsub.s32 0, %v2048
    %v2050 = vrot.slane %v2025, %v2049
    %v2052 = vsub.f32 %v2029, %v2050
    %v2053 = vsub.f32 %v2034, %v2050
    %v2054 = vsub.f32 %v2039, %v2050
    %v2055 = vsub.f32 %v2044, %v2050
    %v2056 = vand.u32 2147483647, %v2052
    %v2057 = vand.u32 2147483647, %v2053
    %v2058 = vand.u32 2147483647, %v2054
    %v2059 = vand.u32 2147483647, %v2055
    %v2060 = vsub.f32 1.0, %v2056
    %v2061 = vsub.f32 1.0, %v2057
    %v2062 = vsub.f32 1.0, %v2058
    %v2063 = vsub.f32 1.0, %v2059
    %v2064 = vmax.f32 %v2060, 0.0
    %v2065 = vmax.f32 %v2061, 0.0
    %v2066 = vmax.f32 %v2062, 0.0
    %v2067 = vmax.f32 %v2063, 0.0
    %v2068 = vmul.f32 %v2021, %v2064
    %v2069 = vmul.f32 %v2022, %v2065
    %v2070 = vmul.f32 %v2023, %v2066
    %v2071 = vmul.f32 %v2024, %v2067
    %2073 = vset.pattern.permute.xlu0 90
    %2074 = vperm.xlu0 %2073, %v1946
    %v2075 = vpop.permute.xlu0 %2074
    %2078 = vset.pattern.permute.xlu0 90
    %2079 = vperm.xlu0 %2078, %v1947
    %v2080 = vpop.permute.xlu0 %2079
    %2083 = vset.pattern.permute.xlu0 90
    %2084 = vperm.xlu0 %2083, %v1948
    %v2085 = vpop.permute.xlu0 %2084
    %2088 = vset.pattern.permute.xlu0 90
    %2089 = vperm.xlu0 %2088, %v1949
    %v2090 = vpop.permute.xlu0 %2089
    %v2092 = vmul.f32 %v2068, %v2075
    %v2093 = vmul.f32 %v2069, %v2080
    %v2094 = vmul.f32 %v2070, %v2085
    %v2095 = vmul.f32 %v2071, %v2090
    %v2096 = vadd.f32 %v2092, 0.0
    %v2097 = vadd.f32 %v2093, 0.0
    %v2098 = vadd.f32 %v2094, 0.0
    %v2099 = vadd.f32 %v2095, 0.0
    %2100 = vset.pattern.permute.xlu0 1
    %2101 = vperm.xlu0 %2100, %v1962
    %v2102 = vpop.permute.xlu0 %2101
    %2104 = vset.pattern.permute.xlu0 1
    %2105 = vperm.xlu0 %2104, %v1963
    %v2106 = vpop.permute.xlu0 %2105
    %2108 = vset.pattern.permute.xlu0 1
    %2109 = vperm.xlu0 %2108, %v1964
    %v2110 = vpop.permute.xlu0 %2109
    %2112 = vset.pattern.permute.xlu0 1
    %2113 = vperm.xlu0 %2112, %v1965
    %v2114 = vpop.permute.xlu0 %2113
    %v2116 = vsub.f32 %v2102, %v2007
    %v2117 = vsub.f32 %v2106, %v2007
    %v2118 = vsub.f32 %v2110, %v2007
    %v2119 = vsub.f32 %v2114, %v2007
    %v2120 = vand.u32 2147483647, %v2116
    %v2121 = vand.u32 2147483647, %v2117
    %v2122 = vand.u32 2147483647, %v2118
    %v2123 = vand.u32 2147483647, %v2119
    %v2124 = vsub.f32 1.0, %v2120
    %v2125 = vsub.f32 1.0, %v2121
    %v2126 = vsub.f32 1.0, %v2122
    %v2127 = vsub.f32 1.0, %v2123
    %v2128 = vmax.f32 %v2124, 0.0
    %v2129 = vmax.f32 %v2125, 0.0
    %v2130 = vmax.f32 %v2126, 0.0
    %v2131 = vmax.f32 %v2127, 0.0
    %2132 = vset.pattern.permute.xlu0 1
    %2133 = vperm.xlu0 %2132, %v1978
    %v2134 = vpop.permute.xlu0 %2133
    %2136 = vset.pattern.permute.xlu0 1
    %2137 = vperm.xlu0 %2136, %v1979
    %v2138 = vpop.permute.xlu0 %2137
    %2140 = vset.pattern.permute.xlu0 1
    %2141 = vperm.xlu0 %2140, %v1980
    %v2142 = vpop.permute.xlu0 %2141
    %2144 = vset.pattern.permute.xlu0 1
    %2145 = vperm.xlu0 %2144, %v1981
    %v2146 = vpop.permute.xlu0 %2145
    %v2148 = vsub.f32 %v2134, %v2050
    %v2149 = vsub.f32 %v2138, %v2050
    %v2150 = vsub.f32 %v2142, %v2050
    %v2151 = vsub.f32 %v2146, %v2050
    %v2152 = vand.u32 2147483647, %v2148
    %v2153 = vand.u32 2147483647, %v2149
    %v2154 = vand.u32 2147483647, %v2150
    %v2155 = vand.u32 2147483647, %v2151
    %v2156 = vsub.f32 1.0, %v2152
    %v2157 = vsub.f32 1.0, %v2153
    %v2158 = vsub.f32 1.0, %v2154
    %v2159 = vsub.f32 1.0, %v2155
    %v2160 = vmax.f32 %v2156, 0.0
    %v2161 = vmax.f32 %v2157, 0.0
    %v2162 = vmax.f32 %v2158, 0.0
    %v2163 = vmax.f32 %v2159, 0.0
    %v2164 = vmul.f32 %v2128, %v2160
    %v2165 = vmul.f32 %v2129, %v2161
    %v2166 = vmul.f32 %v2130, %v2162
    %v2167 = vmul.f32 %v2131, %v2163
    %2168 = vset.pattern.permute.xlu0 91
    %2169 = vperm.xlu0 %2168, %v1946
    %v2170 = vpop.permute.xlu0 %2169
    %2172 = vset.pattern.permute.xlu0 91
    %2173 = vperm.xlu0 %2172, %v1947
    %v2174 = vpop.permute.xlu0 %2173
    %2176 = vset.pattern.permute.xlu0 91
    %2177 = vperm.xlu0 %2176, %v1948
    %v2178 = vpop.permute.xlu0 %2177
    %2180 = vset.pattern.permute.xlu0 91
    %2181 = vperm.xlu0 %2180, %v1949
    %v2182 = vpop.permute.xlu0 %2181
    %v2184 = vmul.f32 %v2164, %v2170
    %v2185 = vmul.f32 %v2165, %v2174
    %v2186 = vmul.f32 %v2166, %v2178
    %v2187 = vmul.f32 %v2167, %v2182
    %v2188 = vadd.f32 %v2096, %v2184
    %v2189 = vadd.f32 %v2097, %v2185
    %v2190 = vadd.f32 %v2098, %v2186
    %v2191 = vadd.f32 %v2099, %v2187
    %v2192 = vld [vmem:[%s902] sm:$0x1]
    %2193 = vset.pattern.permute.xlu0 2
    %2194 = vperm.xlu0 %2193, %v1962
    %v2195 = vpop.permute.xlu0 %2194
    %2197 = vset.pattern.permute.xlu0 2
    %2198 = vperm.xlu0 %2197, %v1963
    %v2199 = vpop.permute.xlu0 %2198
    %2201 = vset.pattern.permute.xlu0 2
    %2202 = vperm.xlu0 %2201, %v1964
    %v2203 = vpop.permute.xlu0 %2202
    %2205 = vset.pattern.permute.xlu0 2
    %2206 = vperm.xlu0 %2205, %v1965
    %v2207 = vpop.permute.xlu0 %2206
    %v2210 = vlaneseq
    %v2211 = vshrl.u32 %v2210, 7
    %v2212 = vsub.s32 0, %v2211
    %v2213 = vrot.slane %v2192, %v2212
    %v2215 = vsub.f32 %v2195, %v2213
    %v2216 = vsub.f32 %v2199, %v2213
    %v2217 = vsub.f32 %v2203, %v2213
    %v2218 = vsub.f32 %v2207, %v2213
    %v2219 = vand.u32 2147483647, %v2215
    %v2220 = vand.u32 2147483647, %v2216
    %v2221 = vand.u32 2147483647, %v2217
    %v2222 = vand.u32 2147483647, %v2218
    %v2223 = vsub.f32 1.0, %v2219
    %v2224 = vsub.f32 1.0, %v2220
    %v2225 = vsub.f32 1.0, %v2221
    %v2226 = vsub.f32 1.0, %v2222
    %v2227 = vmax.f32 %v2223, 0.0
    %v2228 = vmax.f32 %v2224, 0.0
    %v2229 = vmax.f32 %v2225, 0.0
    %v2230 = vmax.f32 %v2226, 0.0
    %v2231 = vld [vmem:[%s942] sm:$0x1]
    %2232 = vset.pattern.permute.xlu0 2
    %2233 = vperm.xlu0 %2232, %v1978
    %v2234 = vpop.permute.xlu0 %2233
    %2236 = vset.pattern.permute.xlu0 2
    %2237 = vperm.xlu0 %2236, %v1979
    %v2238 = vpop.permute.xlu0 %2237
    %2240 = vset.pattern.permute.xlu0 2
    %2241 = vperm.xlu0 %2240, %v1980
    %v2242 = vpop.permute.xlu0 %2241
    %2244 = vset.pattern.permute.xlu0 2
    %2245 = vperm.xlu0 %2244, %v1981
    %v2246 = vpop.permute.xlu0 %2245
    %v2249 = vlaneseq
    %v2250 = vshrl.u32 %v2249, 7
    %v2251 = vsub.s32 0, %v2250
    %v2252 = vrot.slane %v2231, %v2251
    %v2254 = vsub.f32 %v2234, %v2252
    %v2255 = vsub.f32 %v2238, %v2252
    %v2256 = vsub.f32 %v2242, %v2252
    %v2257 = vsub.f32 %v2246, %v2252
    %v2258 = vand.u32 2147483647, %v2254
    %v2259 = vand.u32 2147483647, %v2255
    %v2260 = vand.u32 2147483647, %v2256
    %v2261 = vand.u32 2147483647, %v2257
    %v2262 = vsub.f32 1.0, %v2258
    %v2263 = vsub.f32 1.0, %v2259
    %v2264 = vsub.f32 1.0, %v2260
    %v2265 = vsub.f32 1.0, %v2261
    %v2266 = vmax.f32 %v2262, 0.0
    %v2267 = vmax.f32 %v2263, 0.0
    %v2268 = vmax.f32 %v2264, 0.0
    %v2269 = vmax.f32 %v2265, 0.0
    %v2270 = vmul.f32 %v2227, %v2266
    %v2271 = vmul.f32 %v2228, %v2267
    %v2272 = vmul.f32 %v2229, %v2268
    %v2273 = vmul.f32 %v2230, %v2269
    %2274 = vset.pattern.permute.xlu0 92
    %2275 = vperm.xlu0 %2274, %v1946
    %v2276 = vpop.permute.xlu0 %2275
    %2278 = vset.pattern.permute.xlu0 92
    %2279 = vperm.xlu0 %2278, %v1947
    %v2280 = vpop.permute.xlu0 %2279
    %2282 = vset.pattern.permute.xlu0 92
    %2283 = vperm.xlu0 %2282, %v1948
    %v2284 = vpop.permute.xlu0 %2283
    %2286 = vset.pattern.permute.xlu0 92
    %2287 = vperm.xlu0 %2286, %v1949
    %v2288 = vpop.permute.xlu0 %2287
    %v2290 = vmul.f32 %v2270, %v2276
    %v2291 = vmul.f32 %v2271, %v2280
    %v2292 = vmul.f32 %v2272, %v2284
    %v2293 = vmul.f32 %v2273, %v2288
    %v2294 = vadd.f32 %v2188, %v2290
    %v2295 = vadd.f32 %v2189, %v2291
    %v2296 = vadd.f32 %v2190, %v2292
    %v2297 = vadd.f32 %v2191, %v2293
    %2298 = vset.pattern.permute.xlu0 3
    %2299 = vperm.xlu0 %2298, %v1962
    %v2300 = vpop.permute.xlu0 %2299
    %2302 = vset.pattern.permute.xlu0 3
    %2303 = vperm.xlu0 %2302, %v1963
    %v2304 = vpop.permute.xlu0 %2303
    %2306 = vset.pattern.permute.xlu0 3
    %2307 = vperm.xlu0 %2306, %v1964
    %v2308 = vpop.permute.xlu0 %2307
    %2310 = vset.pattern.permute.xlu0 3
    %2311 = vperm.xlu0 %2310, %v1965
    %v2312 = vpop.permute.xlu0 %2311
    %v2314 = vsub.f32 %v2300, %v2213
    %v2315 = vsub.f32 %v2304, %v2213
    %v2316 = vsub.f32 %v2308, %v2213
    %v2317 = vsub.f32 %v2312, %v2213
    %v2318 = vand.u32 2147483647, %v2314
    %v2319 = vand.u32 2147483647, %v2315
    %v2320 = vand.u32 2147483647, %v2316
    %v2321 = vand.u32 2147483647, %v2317
    %v2322 = vsub.f32 1.0, %v2318
    %v2323 = vsub.f32 1.0, %v2319
    %v2324 = vsub.f32 1.0, %v2320
    %v2325 = vsub.f32 1.0, %v2321
    %v2326 = vmax.f32 %v2322, 0.0
    %v2327 = vmax.f32 %v2323, 0.0
    %v2328 = vmax.f32 %v2324, 0.0
    %v2329 = vmax.f32 %v2325, 0.0
    %2330 = vset.pattern.permute.xlu0 3
    %2331 = vperm.xlu0 %2330, %v1978
    %v2332 = vpop.permute.xlu0 %2331
    %2334 = vset.pattern.permute.xlu0 3
    %2335 = vperm.xlu0 %2334, %v1979
    %v2336 = vpop.permute.xlu0 %2335
    %2338 = vset.pattern.permute.xlu0 3
    %2339 = vperm.xlu0 %2338, %v1980
    %v2340 = vpop.permute.xlu0 %2339
    %2342 = vset.pattern.permute.xlu0 3
    %2343 = vperm.xlu0 %2342, %v1981
    %v2344 = vpop.permute.xlu0 %2343
    %v2346 = vsub.f32 %v2332, %v2252
    %v2347 = vsub.f32 %v2336, %v2252
    %v2348 = vsub.f32 %v2340, %v2252
    %v2349 = vsub.f32 %v2344, %v2252
    %v2350 = vand.u32 2147483647, %v2346
    %v2351 = vand.u32 2147483647, %v2347
    %v2352 = vand.u32 2147483647, %v2348
    %v2353 = vand.u32 2147483647, %v2349
    %v2354 = vsub.f32 1.0, %v2350
    %v2355 = vsub.f32 1.0, %v2351
    %v2356 = vsub.f32 1.0, %v2352
    %v2357 = vsub.f32 1.0, %v2353
    %v2358 = vmax.f32 %v2354, 0.0
    %v2359 = vmax.f32 %v2355, 0.0
    %v2360 = vmax.f32 %v2356, 0.0
    %v2361 = vmax.f32 %v2357, 0.0
    %v2362 = vmul.f32 %v2326, %v2358
    %v2363 = vmul.f32 %v2327, %v2359
    %v2364 = vmul.f32 %v2328, %v2360
    %v2365 = vmul.f32 %v2329, %v2361
    %2366 = vset.pattern.permute.xlu0 93
    %2367 = vperm.xlu0 %2366, %v1946
    %v2368 = vpop.permute.xlu0 %2367
    %2370 = vset.pattern.permute.xlu0 93
    %2371 = vperm.xlu0 %2370, %v1947
    %v2372 = vpop.permute.xlu0 %2371
    %2374 = vset.pattern.permute.xlu0 93
    %2375 = vperm.xlu0 %2374, %v1948
    %v2376 = vpop.permute.xlu0 %2375
    %2378 = vset.pattern.permute.xlu0 93
    %2379 = vperm.xlu0 %2378, %v1949
    %v2380 = vpop.permute.xlu0 %2379
    %v2382 = vmul.f32 %v2362, %v2368
    %v2383 = vmul.f32 %v2363, %v2372
    %v2384 = vmul.f32 %v2364, %v2376
    %v2385 = vmul.f32 %v2365, %v2380
    %v2386 = vadd.f32 %v2294, %v2382
    %v2387 = vadd.f32 %v2295, %v2383
    %v2388 = vadd.f32 %v2296, %v2384
    %v2389 = vadd.f32 %v2297, %v2385
    %v2390 = vld [vmem:[%s1102] sm:$0x1]
    %2391 = vset.pattern.permute.xlu0 4
    %2392 = vperm.xlu0 %2391, %v1962
    %v2393 = vpop.permute.xlu0 %2392
    %2395 = vset.pattern.permute.xlu0 4
    %2396 = vperm.xlu0 %2395, %v1963
    %v2397 = vpop.permute.xlu0 %2396
    %2399 = vset.pattern.permute.xlu0 4
    %2400 = vperm.xlu0 %2399, %v1964
    %v2401 = vpop.permute.xlu0 %2400
    %2403 = vset.pattern.permute.xlu0 4
    %2404 = vperm.xlu0 %2403, %v1965
    %v2405 = vpop.permute.xlu0 %2404
    %v2408 = vlaneseq
    %v2409 = vshrl.u32 %v2408, 7
    %v2410 = vsub.s32 0, %v2409
    %v2411 = vrot.slane %v2390, %v2410
    %v2413 = vsub.f32 %v2393, %v2411
    %v2414 = vsub.f32 %v2397, %v2411
    %v2415 = vsub.f32 %v2401, %v2411
    %v2416 = vsub.f32 %v2405, %v2411
    %v2417 = vand.u32 2147483647, %v2413
    %v2418 = vand.u32 2147483647, %v2414
    %v2419 = vand.u32 2147483647, %v2415
    %v2420 = vand.u32 2147483647, %v2416
    %v2421 = vsub.f32 1.0, %v2417
    %v2422 = vsub.f32 1.0, %v2418
    %v2423 = vsub.f32 1.0, %v2419
    %v2424 = vsub.f32 1.0, %v2420
    %v2425 = vmax.f32 %v2421, 0.0
    %v2426 = vmax.f32 %v2422, 0.0
    %v2427 = vmax.f32 %v2423, 0.0
    %v2428 = vmax.f32 %v2424, 0.0
    %v2429 = vld [vmem:[%s1142] sm:$0x1]
    %2430 = vset.pattern.permute.xlu0 4
    %2431 = vperm.xlu0 %2430, %v1978
    %v2432 = vpop.permute.xlu0 %2431
    %2434 = vset.pattern.permute.xlu0 4
    %2435 = vperm.xlu0 %2434, %v1979
    %v2436 = vpop.permute.xlu0 %2435
    %2438 = vset.pattern.permute.xlu0 4
    %2439 = vperm.xlu0 %2438, %v1980
    %v2440 = vpop.permute.xlu0 %2439
    %2442 = vset.pattern.permute.xlu0 4
    %2443 = vperm.xlu0 %2442, %v1981
    %v2444 = vpop.permute.xlu0 %2443
    %v2447 = vlaneseq
    %v2448 = vshrl.u32 %v2447, 7
    %v2449 = vsub.s32 0, %v2448
    %v2450 = vrot.slane %v2429, %v2449
    %v2452 = vsub.f32 %v2432, %v2450
    %v2453 = vsub.f32 %v2436, %v2450
    %v2454 = vsub.f32 %v2440, %v2450
    %v2455 = vsub.f32 %v2444, %v2450
    %v2456 = vand.u32 2147483647, %v2452
    %v2457 = vand.u32 2147483647, %v2453
    %v2458 = vand.u32 2147483647, %v2454
    %v2459 = vand.u32 2147483647, %v2455
    %v2460 = vsub.f32 1.0, %v2456
    %v2461 = vsub.f32 1.0, %v2457
    %v2462 = vsub.f32 1.0, %v2458
    %v2463 = vsub.f32 1.0, %v2459
    %v2464 = vmax.f32 %v2460, 0.0
    %v2465 = vmax.f32 %v2461, 0.0
    %v2466 = vmax.f32 %v2462, 0.0
    %v2467 = vmax.f32 %v2463, 0.0
    %v2468 = vmul.f32 %v2425, %v2464
    %v2469 = vmul.f32 %v2426, %v2465
    %v2470 = vmul.f32 %v2427, %v2466
    %v2471 = vmul.f32 %v2428, %v2467
    %2472 = vset.pattern.permute.xlu0 94
    %2473 = vperm.xlu0 %2472, %v1946
    %v2474 = vpop.permute.xlu0 %2473
    %2476 = vset.pattern.permute.xlu0 94
    %2477 = vperm.xlu0 %2476, %v1947
    %v2478 = vpop.permute.xlu0 %2477
    %2480 = vset.pattern.permute.xlu0 94
    %2481 = vperm.xlu0 %2480, %v1948
    %v2482 = vpop.permute.xlu0 %2481
    %2484 = vset.pattern.permute.xlu0 94
    %2485 = vperm.xlu0 %2484, %v1949
    %v2486 = vpop.permute.xlu0 %2485
    %v2488 = vmul.f32 %v2468, %v2474
    %v2489 = vmul.f32 %v2469, %v2478
    %v2490 = vmul.f32 %v2470, %v2482
    %v2491 = vmul.f32 %v2471, %v2486
    %v2492 = vadd.f32 %v2386, %v2488
    %v2493 = vadd.f32 %v2387, %v2489
    %v2494 = vadd.f32 %v2388, %v2490
    %v2495 = vadd.f32 %v2389, %v2491
    %2496 = vset.pattern.permute.xlu0 5
    %2497 = vperm.xlu0 %2496, %v1962
    %v2498 = vpop.permute.xlu0 %2497
    %2500 = vset.pattern.permute.xlu0 5
    %2501 = vperm.xlu0 %2500, %v1963
    %v2502 = vpop.permute.xlu0 %2501
    %2504 = vset.pattern.permute.xlu0 5
    %2505 = vperm.xlu0 %2504, %v1964
    %v2506 = vpop.permute.xlu0 %2505
    %2508 = vset.pattern.permute.xlu0 5
    %2509 = vperm.xlu0 %2508, %v1965
    %v2510 = vpop.permute.xlu0 %2509
    %v2512 = vsub.f32 %v2498, %v2411
    %v2513 = vsub.f32 %v2502, %v2411
    %v2514 = vsub.f32 %v2506, %v2411
    %v2515 = vsub.f32 %v2510, %v2411
    %v2516 = vand.u32 2147483647, %v2512
    %v2517 = vand.u32 2147483647, %v2513
    %v2518 = vand.u32 2147483647, %v2514
    %v2519 = vand.u32 2147483647, %v2515
    %v2520 = vsub.f32 1.0, %v2516
    %v2521 = vsub.f32 1.0, %v2517
    %v2522 = vsub.f32 1.0, %v2518
    %v2523 = vsub.f32 1.0, %v2519
    %v2524 = vmax.f32 %v2520, 0.0
    %v2525 = vmax.f32 %v2521, 0.0
    %v2526 = vmax.f32 %v2522, 0.0
    %v2527 = vmax.f32 %v2523, 0.0
    %2528 = vset.pattern.permute.xlu0 5
    %2529 = vperm.xlu0 %2528, %v1978
    %v2530 = vpop.permute.xlu0 %2529
    %2532 = vset.pattern.permute.xlu0 5
    %2533 = vperm.xlu0 %2532, %v1979
    %v2534 = vpop.permute.xlu0 %2533
    %2536 = vset.pattern.permute.xlu0 5
    %2537 = vperm.xlu0 %2536, %v1980
    %v2538 = vpop.permute.xlu0 %2537
    %2540 = vset.pattern.permute.xlu0 5
    %2541 = vperm.xlu0 %2540, %v1981
    %v2542 = vpop.permute.xlu0 %2541
    %v2544 = vsub.f32 %v2530, %v2450
    %v2545 = vsub.f32 %v2534, %v2450
    %v2546 = vsub.f32 %v2538, %v2450
    %v2547 = vsub.f32 %v2542, %v2450
    %v2548 = vand.u32 2147483647, %v2544
    %v2549 = vand.u32 2147483647, %v2545
    %v2550 = vand.u32 2147483647, %v2546
    %v2551 = vand.u32 2147483647, %v2547
    %v2552 = vsub.f32 1.0, %v2548
    %v2553 = vsub.f32 1.0, %v2549
    %v2554 = vsub.f32 1.0, %v2550
    %v2555 = vsub.f32 1.0, %v2551
    %v2556 = vmax.f32 %v2552, 0.0
    %v2557 = vmax.f32 %v2553, 0.0
    %v2558 = vmax.f32 %v2554, 0.0
    %v2559 = vmax.f32 %v2555, 0.0
    %v2560 = vmul.f32 %v2524, %v2556
    %v2561 = vmul.f32 %v2525, %v2557
    %v2562 = vmul.f32 %v2526, %v2558
    %v2563 = vmul.f32 %v2527, %v2559
    %2564 = vset.pattern.permute.xlu0 95
    %2565 = vperm.xlu0 %2564, %v1946
    %v2566 = vpop.permute.xlu0 %2565
    %2568 = vset.pattern.permute.xlu0 95
    %2569 = vperm.xlu0 %2568, %v1947
    %v2570 = vpop.permute.xlu0 %2569
    %2572 = vset.pattern.permute.xlu0 95
    %2573 = vperm.xlu0 %2572, %v1948
    %v2574 = vpop.permute.xlu0 %2573
    %2576 = vset.pattern.permute.xlu0 95
    %2577 = vperm.xlu0 %2576, %v1949
    %v2578 = vpop.permute.xlu0 %2577
    %v2580 = vmul.f32 %v2560, %v2566
    %v2581 = vmul.f32 %v2561, %v2570
    %v2582 = vmul.f32 %v2562, %v2574
    %v2583 = vmul.f32 %v2563, %v2578
    %v2584 = vadd.f32 %v2492, %v2580
    %v2585 = vadd.f32 %v2493, %v2581
    %v2586 = vadd.f32 %v2494, %v2582
    %v2587 = vadd.f32 %v2495, %v2583
    %v2588 = vld [vmem:[%s1302] sm:$0x1]
    %2589 = vset.pattern.permute.xlu0 6
    %2590 = vperm.xlu0 %2589, %v1962
    %v2591 = vpop.permute.xlu0 %2590
    %2593 = vset.pattern.permute.xlu0 6
    %2594 = vperm.xlu0 %2593, %v1963
    %v2595 = vpop.permute.xlu0 %2594
    %2597 = vset.pattern.permute.xlu0 6
    %2598 = vperm.xlu0 %2597, %v1964
    %v2599 = vpop.permute.xlu0 %2598
    %2601 = vset.pattern.permute.xlu0 6
    %2602 = vperm.xlu0 %2601, %v1965
    %v2603 = vpop.permute.xlu0 %2602
    %v2606 = vlaneseq
    %v2607 = vshrl.u32 %v2606, 7
    %v2608 = vsub.s32 0, %v2607
    %v2609 = vrot.slane %v2588, %v2608
    %v2611 = vsub.f32 %v2591, %v2609
    %v2612 = vsub.f32 %v2595, %v2609
    %v2613 = vsub.f32 %v2599, %v2609
    %v2614 = vsub.f32 %v2603, %v2609
    %v2615 = vand.u32 2147483647, %v2611
    %v2616 = vand.u32 2147483647, %v2612
    %v2617 = vand.u32 2147483647, %v2613
    %v2618 = vand.u32 2147483647, %v2614
    %v2619 = vsub.f32 1.0, %v2615
    %v2620 = vsub.f32 1.0, %v2616
    %v2621 = vsub.f32 1.0, %v2617
    %v2622 = vsub.f32 1.0, %v2618
    %v2623 = vmax.f32 %v2619, 0.0
    %v2624 = vmax.f32 %v2620, 0.0
    %v2625 = vmax.f32 %v2621, 0.0
    %v2626 = vmax.f32 %v2622, 0.0
    %v2627 = vld [vmem:[%s1342] sm:$0x1]
    %2628 = vset.pattern.permute.xlu0 6
    %2629 = vperm.xlu0 %2628, %v1978
    %v2630 = vpop.permute.xlu0 %2629
    %2632 = vset.pattern.permute.xlu0 6
    %2633 = vperm.xlu0 %2632, %v1979
    %v2634 = vpop.permute.xlu0 %2633
    %2636 = vset.pattern.permute.xlu0 6
    %2637 = vperm.xlu0 %2636, %v1980
    %v2638 = vpop.permute.xlu0 %2637
    %2640 = vset.pattern.permute.xlu0 6
    %2641 = vperm.xlu0 %2640, %v1981
    %v2642 = vpop.permute.xlu0 %2641
    %v2645 = vlaneseq
    %v2646 = vshrl.u32 %v2645, 7
    %v2647 = vsub.s32 0, %v2646
    %v2648 = vrot.slane %v2627, %v2647
    %v2650 = vsub.f32 %v2630, %v2648
    %v2651 = vsub.f32 %v2634, %v2648
    %v2652 = vsub.f32 %v2638, %v2648
    %v2653 = vsub.f32 %v2642, %v2648
    %v2654 = vand.u32 2147483647, %v2650
    %v2655 = vand.u32 2147483647, %v2651
    %v2656 = vand.u32 2147483647, %v2652
    %v2657 = vand.u32 2147483647, %v2653
    %v2658 = vsub.f32 1.0, %v2654
    %v2659 = vsub.f32 1.0, %v2655
    %v2660 = vsub.f32 1.0, %v2656
    %v2661 = vsub.f32 1.0, %v2657
    %v2662 = vmax.f32 %v2658, 0.0
    %v2663 = vmax.f32 %v2659, 0.0
    %v2664 = vmax.f32 %v2660, 0.0
    %v2665 = vmax.f32 %v2661, 0.0
    %v2666 = vmul.f32 %v2623, %v2662
    %v2667 = vmul.f32 %v2624, %v2663
    %v2668 = vmul.f32 %v2625, %v2664
    %v2669 = vmul.f32 %v2626, %v2665
    %2670 = vset.pattern.permute.xlu0 96
    %2671 = vperm.xlu0 %2670, %v1946
    %v2672 = vpop.permute.xlu0 %2671
    %2674 = vset.pattern.permute.xlu0 96
    %2675 = vperm.xlu0 %2674, %v1947
    %v2676 = vpop.permute.xlu0 %2675
    %2678 = vset.pattern.permute.xlu0 96
    %2679 = vperm.xlu0 %2678, %v1948
    %v2680 = vpop.permute.xlu0 %2679
    %2682 = vset.pattern.permute.xlu0 96
    %2683 = vperm.xlu0 %2682, %v1949
    %v2684 = vpop.permute.xlu0 %2683
    %v2686 = vmul.f32 %v2666, %v2672
    %v2687 = vmul.f32 %v2667, %v2676
    %v2688 = vmul.f32 %v2668, %v2680
    %v2689 = vmul.f32 %v2669, %v2684
    %v2690 = vadd.f32 %v2584, %v2686
    %v2691 = vadd.f32 %v2585, %v2687
    %v2692 = vadd.f32 %v2586, %v2688
    %v2693 = vadd.f32 %v2587, %v2689
    %2694 = vset.pattern.permute.xlu0 7
    %2695 = vperm.xlu0 %2694, %v1962
    %v2696 = vpop.permute.xlu0 %2695
    %2698 = vset.pattern.permute.xlu0 7
    %2699 = vperm.xlu0 %2698, %v1963
    %v2700 = vpop.permute.xlu0 %2699
    %2702 = vset.pattern.permute.xlu0 7
    %2703 = vperm.xlu0 %2702, %v1964
    %v2704 = vpop.permute.xlu0 %2703
    %2706 = vset.pattern.permute.xlu0 7
    %2707 = vperm.xlu0 %2706, %v1965
    %v2708 = vpop.permute.xlu0 %2707
    %v2710 = vsub.f32 %v2696, %v2609
    %v2711 = vsub.f32 %v2700, %v2609
    %v2712 = vsub.f32 %v2704, %v2609
    %v2713 = vsub.f32 %v2708, %v2609
    %v2714 = vand.u32 2147483647, %v2710
    %v2715 = vand.u32 2147483647, %v2711
    %v2716 = vand.u32 2147483647, %v2712
    %v2717 = vand.u32 2147483647, %v2713
    %v2718 = vsub.f32 1.0, %v2714
    %v2719 = vsub.f32 1.0, %v2715
    %v2720 = vsub.f32 1.0, %v2716
    %v2721 = vsub.f32 1.0, %v2717
    %v2722 = vmax.f32 %v2718, 0.0
    %v2723 = vmax.f32 %v2719, 0.0
    %v2724 = vmax.f32 %v2720, 0.0
    %v2725 = vmax.f32 %v2721, 0.0
    %2726 = vset.pattern.permute.xlu0 7
    %2727 = vperm.xlu0 %2726, %v1978
    %v2728 = vpop.permute.xlu0 %2727
    %2730 = vset.pattern.permute.xlu0 7
    %2731 = vperm.xlu0 %2730, %v1979
    %v2732 = vpop.permute.xlu0 %2731
    %2734 = vset.pattern.permute.xlu0 7
    %2735 = vperm.xlu0 %2734, %v1980
    %v2736 = vpop.permute.xlu0 %2735
    %2738 = vset.pattern.permute.xlu0 7
    %2739 = vperm.xlu0 %2738, %v1981
    %v2740 = vpop.permute.xlu0 %2739
    %v2742 = vsub.f32 %v2728, %v2648
    %v2743 = vsub.f32 %v2732, %v2648
    %v2744 = vsub.f32 %v2736, %v2648
    %v2745 = vsub.f32 %v2740, %v2648
    %v2746 = vand.u32 2147483647, %v2742
    %v2747 = vand.u32 2147483647, %v2743
    %v2748 = vand.u32 2147483647, %v2744
    %v2749 = vand.u32 2147483647, %v2745
    %v2750 = vsub.f32 1.0, %v2746
    %v2751 = vsub.f32 1.0, %v2747
    %v2752 = vsub.f32 1.0, %v2748
    %v2753 = vsub.f32 1.0, %v2749
    %v2754 = vmax.f32 %v2750, 0.0
    %v2755 = vmax.f32 %v2751, 0.0
    %v2756 = vmax.f32 %v2752, 0.0
    %v2757 = vmax.f32 %v2753, 0.0
    %v2758 = vmul.f32 %v2722, %v2754
    %v2759 = vmul.f32 %v2723, %v2755
    %v2760 = vmul.f32 %v2724, %v2756
    %v2761 = vmul.f32 %v2725, %v2757
    %2762 = vset.pattern.permute.xlu0 97
    %2763 = vperm.xlu0 %2762, %v1946
    %v2764 = vpop.permute.xlu0 %2763
    %2766 = vset.pattern.permute.xlu0 97
    %2767 = vperm.xlu0 %2766, %v1947
    %v2768 = vpop.permute.xlu0 %2767
    %2770 = vset.pattern.permute.xlu0 97
    %2771 = vperm.xlu0 %2770, %v1948
    %v2772 = vpop.permute.xlu0 %2771
    %2774 = vset.pattern.permute.xlu0 97
    %2775 = vperm.xlu0 %2774, %v1949
    %v2776 = vpop.permute.xlu0 %2775
    %v2778 = vmul.f32 %v2758, %v2764
    %v2779 = vmul.f32 %v2759, %v2768
    %v2780 = vmul.f32 %v2760, %v2772
    %v2781 = vmul.f32 %v2761, %v2776
    %v2782 = vadd.f32 %v2690, %v2778
    %v2783 = vadd.f32 %v2691, %v2779
    %v2784 = vadd.f32 %v2692, %v2780
    %v2785 = vadd.f32 %v2693, %v2781
    %v2786 = vld [vmem:[%s1502] sm:$0x1]
    %2787 = vset.pattern.permute.xlu0 8
    %2788 = vperm.xlu0 %2787, %v1962
    %v2789 = vpop.permute.xlu0 %2788
    %2791 = vset.pattern.permute.xlu0 8
    %2792 = vperm.xlu0 %2791, %v1963
    %v2793 = vpop.permute.xlu0 %2792
    %2795 = vset.pattern.permute.xlu0 8
    %2796 = vperm.xlu0 %2795, %v1964
    %v2797 = vpop.permute.xlu0 %2796
    %2799 = vset.pattern.permute.xlu0 8
    %2800 = vperm.xlu0 %2799, %v1965
    %v2801 = vpop.permute.xlu0 %2800
    %v2804 = vlaneseq
    %v2805 = vshrl.u32 %v2804, 7
    %v2806 = vsub.s32 0, %v2805
    %v2807 = vrot.slane %v2786, %v2806
    %v2809 = vsub.f32 %v2789, %v2807
    %v2810 = vsub.f32 %v2793, %v2807
    %v2811 = vsub.f32 %v2797, %v2807
    %v2812 = vsub.f32 %v2801, %v2807
    %v2813 = vand.u32 2147483647, %v2809
    %v2814 = vand.u32 2147483647, %v2810
    %v2815 = vand.u32 2147483647, %v2811
    %v2816 = vand.u32 2147483647, %v2812
    %v2817 = vsub.f32 1.0, %v2813
    %v2818 = vsub.f32 1.0, %v2814
    %v2819 = vsub.f32 1.0, %v2815
    %v2820 = vsub.f32 1.0, %v2816
    %v2821 = vmax.f32 %v2817, 0.0
    %v2822 = vmax.f32 %v2818, 0.0
    %v2823 = vmax.f32 %v2819, 0.0
    %v2824 = vmax.f32 %v2820, 0.0
    %v2825 = vld [vmem:[%s1542] sm:$0x1]
    %2826 = vset.pattern.permute.xlu0 8
    %2827 = vperm.xlu0 %2826, %v1978
    %v2828 = vpop.permute.xlu0 %2827
    %2830 = vset.pattern.permute.xlu0 8
    %2831 = vperm.xlu0 %2830, %v1979
    %v2832 = vpop.permute.xlu0 %2831
    %2834 = vset.pattern.permute.xlu0 8
    %2835 = vperm.xlu0 %2834, %v1980
    %v2836 = vpop.permute.xlu0 %2835
    %2838 = vset.pattern.permute.xlu0 8
    %2839 = vperm.xlu0 %2838, %v1981
    %v2840 = vpop.permute.xlu0 %2839
    %v2843 = vlaneseq
    %v2844 = vshrl.u32 %v2843, 7
    %v2845 = vsub.s32 0, %v2844
    %v2846 = vrot.slane %v2825, %v2845
    %v2848 = vsub.f32 %v2828, %v2846
    %v2849 = vsub.f32 %v2832, %v2846
    %v2850 = vsub.f32 %v2836, %v2846
    %v2851 = vsub.f32 %v2840, %v2846
    %v2852 = vand.u32 2147483647, %v2848
    %v2853 = vand.u32 2147483647, %v2849
    %v2854 = vand.u32 2147483647, %v2850
    %v2855 = vand.u32 2147483647, %v2851
    %v2856 = vsub.f32 1.0, %v2852
    %v2857 = vsub.f32 1.0, %v2853
    %v2858 = vsub.f32 1.0, %v2854
    %v2859 = vsub.f32 1.0, %v2855
    %v2860 = vmax.f32 %v2856, 0.0
    %v2861 = vmax.f32 %v2857, 0.0
    %v2862 = vmax.f32 %v2858, 0.0
    %v2863 = vmax.f32 %v2859, 0.0
    %v2864 = vmul.f32 %v2821, %v2860
    %v2865 = vmul.f32 %v2822, %v2861
    %v2866 = vmul.f32 %v2823, %v2862
    %v2867 = vmul.f32 %v2824, %v2863
    %2868 = vset.pattern.permute.xlu0 98
    %2869 = vperm.xlu0 %2868, %v1946
    %v2870 = vpop.permute.xlu0 %2869
    %2872 = vset.pattern.permute.xlu0 98
    %2873 = vperm.xlu0 %2872, %v1947
    %v2874 = vpop.permute.xlu0 %2873
    %2876 = vset.pattern.permute.xlu0 98
    %2877 = vperm.xlu0 %2876, %v1948
    %v2878 = vpop.permute.xlu0 %2877
    %2880 = vset.pattern.permute.xlu0 98
    %2881 = vperm.xlu0 %2880, %v1949
    %v2882 = vpop.permute.xlu0 %2881
    %v2884 = vmul.f32 %v2864, %v2870
    %v2885 = vmul.f32 %v2865, %v2874
    %v2886 = vmul.f32 %v2866, %v2878
    %v2887 = vmul.f32 %v2867, %v2882
    %v2888 = vadd.f32 %v2782, %v2884
    %v2889 = vadd.f32 %v2783, %v2885
    %v2890 = vadd.f32 %v2784, %v2886
    %v2891 = vadd.f32 %v2785, %v2887
    %2892 = vset.pattern.permute.xlu0 9
    %2893 = vperm.xlu0 %2892, %v1962
    %v2894 = vpop.permute.xlu0 %2893
    %2896 = vset.pattern.permute.xlu0 9
    %2897 = vperm.xlu0 %2896, %v1963
    %v2898 = vpop.permute.xlu0 %2897
    %2900 = vset.pattern.permute.xlu0 9
    %2901 = vperm.xlu0 %2900, %v1964
    %v2902 = vpop.permute.xlu0 %2901
    %2904 = vset.pattern.permute.xlu0 9
    %2905 = vperm.xlu0 %2904, %v1965
    %v2906 = vpop.permute.xlu0 %2905
    %v2908 = vsub.f32 %v2894, %v2807
    %v2909 = vsub.f32 %v2898, %v2807
    %v2910 = vsub.f32 %v2902, %v2807
    %v2911 = vsub.f32 %v2906, %v2807
    %v2912 = vand.u32 2147483647, %v2908
    %v2913 = vand.u32 2147483647, %v2909
    %v2914 = vand.u32 2147483647, %v2910
    %v2915 = vand.u32 2147483647, %v2911
    %v2916 = vsub.f32 1.0, %v2912
    %v2917 = vsub.f32 1.0, %v2913
    %v2918 = vsub.f32 1.0, %v2914
    %v2919 = vsub.f32 1.0, %v2915
    %v2920 = vmax.f32 %v2916, 0.0
    %v2921 = vmax.f32 %v2917, 0.0
    %v2922 = vmax.f32 %v2918, 0.0
    %v2923 = vmax.f32 %v2919, 0.0
    %2924 = vset.pattern.permute.xlu0 9
    %2925 = vperm.xlu0 %2924, %v1978
    %v2926 = vpop.permute.xlu0 %2925
    %2928 = vset.pattern.permute.xlu0 9
    %2929 = vperm.xlu0 %2928, %v1979
    %v2930 = vpop.permute.xlu0 %2929
    %2932 = vset.pattern.permute.xlu0 9
    %2933 = vperm.xlu0 %2932, %v1980
    %v2934 = vpop.permute.xlu0 %2933
    %2936 = vset.pattern.permute.xlu0 9
    %2937 = vperm.xlu0 %2936, %v1981
    %v2938 = vpop.permute.xlu0 %2937
    %v2940 = vsub.f32 %v2926, %v2846
    %v2941 = vsub.f32 %v2930, %v2846
    %v2942 = vsub.f32 %v2934, %v2846
    %v2943 = vsub.f32 %v2938, %v2846
    %v2944 = vand.u32 2147483647, %v2940
    %v2945 = vand.u32 2147483647, %v2941
    %v2946 = vand.u32 2147483647, %v2942
    %v2947 = vand.u32 2147483647, %v2943
    %v2948 = vsub.f32 1.0, %v2944
    %v2949 = vsub.f32 1.0, %v2945
    %v2950 = vsub.f32 1.0, %v2946
    %v2951 = vsub.f32 1.0, %v2947
    %v2952 = vmax.f32 %v2948, 0.0
    %v2953 = vmax.f32 %v2949, 0.0
    %v2954 = vmax.f32 %v2950, 0.0
    %v2955 = vmax.f32 %v2951, 0.0
    %v2956 = vmul.f32 %v2920, %v2952
    %v2957 = vmul.f32 %v2921, %v2953
    %v2958 = vmul.f32 %v2922, %v2954
    %v2959 = vmul.f32 %v2923, %v2955
    %2960 = vset.pattern.permute.xlu0 99
    %2961 = vperm.xlu0 %2960, %v1946
    %v2962 = vpop.permute.xlu0 %2961
    %2964 = vset.pattern.permute.xlu0 99
    %2965 = vperm.xlu0 %2964, %v1947
    %v2966 = vpop.permute.xlu0 %2965
    %2968 = vset.pattern.permute.xlu0 99
    %2969 = vperm.xlu0 %2968, %v1948
    %v2970 = vpop.permute.xlu0 %2969
    %2972 = vset.pattern.permute.xlu0 99
    %2973 = vperm.xlu0 %2972, %v1949
    %v2974 = vpop.permute.xlu0 %2973
    %v2976 = vmul.f32 %v2956, %v2962
    %v2977 = vmul.f32 %v2957, %v2966
    %v2978 = vmul.f32 %v2958, %v2970
    %v2979 = vmul.f32 %v2959, %v2974
    %v2980 = vadd.f32 %v2888, %v2976
    %v2981 = vadd.f32 %v2889, %v2977
    %v2982 = vadd.f32 %v2890, %v2978
    %v2983 = vadd.f32 %v2891, %v2979
    %v2984 = vld [vmem:[#allocation3] sm:$0xff]
    %v2985 = vld [vmem:[#allocation3 + $0x8] sm:$0xff]
    %v2986 = vld [vmem:[#allocation3 + $0x10] sm:$0xff]
    %v2987 = vld [vmem:[#allocation3 + $0x18] sm:$0xff]
    %v2988 = vld [vmem:[#allocation3 + $0x20] sm:$0xff]
    %v2989 = vld [vmem:[#allocation3 + $0x28] sm:$0xff]
    %v2990 = vld [vmem:[#allocation3 + $0x30] sm:$0xff]
    %v2991 = vld [vmem:[#allocation3 + $0x38] sm:$0xff]
    %v2992 = vld [vmem:[#allocation3 + $0x40] sm:$0xff]
    %v2993 = vld [vmem:[#allocation3 + $0x48] sm:$0xff]
    %v2994 = vld [vmem:[#allocation3 + $0x50] sm:$0xff]
    %v2995 = vld [vmem:[#allocation3 + $0x58] sm:$0xff]
    %v2996 = vld [vmem:[#allocation3 + $0x60] sm:$0xff]
    %v2997 = vld [vmem:[#allocation3 + $0x68] sm:$0xff]
    %v2998 = vld [vmem:[#allocation3 + $0x70] sm:$0xff]
    %v2999 = vld [vmem:[#allocation3 + $0x78] sm:$0xff]
    %3016 = vrot.lane.b32.xlu0 %v2984, 120
    %v3017 = vpop.permute.xlu0 %3016
    %3018 = vrot.lane.b32.xlu0 %v2985, 120
    %v3019 = vpop.permute.xlu0 %3018
    %3020 = vrot.lane.b32.xlu0 %v2986, 120
    %v3021 = vpop.permute.xlu0 %3020
    %3022 = vrot.lane.b32.xlu0 %v2987, 120
    %v3023 = vpop.permute.xlu0 %3022
    %3024 = vrot.lane.b32.xlu0 %v2988, 120
    %v3025 = vpop.permute.xlu0 %3024
    %3026 = vrot.lane.b32.xlu0 %v2989, 120
    %v3027 = vpop.permute.xlu0 %3026
    %3028 = vrot.lane.b32.xlu0 %v2990, 120
    %v3029 = vpop.permute.xlu0 %3028
    %3030 = vrot.lane.b32.xlu0 %v2991, 120
    %v3031 = vpop.permute.xlu0 %3030
    %3032 = vrot.lane.b32.xlu0 %v2992, 120
    %v3033 = vpop.permute.xlu0 %3032
    %3034 = vrot.lane.b32.xlu0 %v2993, 120
    %v3035 = vpop.permute.xlu0 %3034
    %3036 = vrot.lane.b32.xlu0 %v2994, 120
    %v3037 = vpop.permute.xlu0 %3036
    %3038 = vrot.lane.b32.xlu0 %v2995, 120
    %v3039 = vpop.permute.xlu0 %3038
    %3040 = vrot.lane.b32.xlu0 %v2996, 120
    %v3041 = vpop.permute.xlu0 %3040
    %3042 = vrot.lane.b32.xlu0 %v2997, 120
    %v3043 = vpop.permute.xlu0 %3042
    %3044 = vrot.lane.b32.xlu0 %v2998, 120
    %v3045 = vpop.permute.xlu0 %3044
    %3046 = vrot.lane.b32.xlu0 %v2999, 120
    %v3047 = vpop.permute.xlu0 %3046
    %3064 = vmatprep.subr.mxu0 0.0
    %3065 = vmatpush1.msra.mxu0 %v3017
    %3066 = vmatprep.subr.mxu0 0.0
    %3067 = vmatpush1.msra.mxu0 %v3019
    %3068 = vmatprep.subr.mxu0 0.0
    %3069 = vmatpush1.msra.mxu0 %v3021
    %3070 = vmatprep.subr.mxu0 0.0
    %3071 = vmatpush1.msra.mxu0 %v3023
    %3072 = vmatprep.subr.mxu0 0.0
    %3073 = vmatpush1.msra.mxu0 %v3025
    %3074 = vmatprep.subr.mxu0 0.0
    %3075 = vmatpush1.msra.mxu0 %v3027
    %3076 = vmatprep.subr.mxu0 0.0
    %3077 = vmatpush1.msra.mxu0 %v3029
    %3078 = vmatprep.subr.mxu0 0.0
    %3079 = vmatpush1.msra.mxu0 %v3031
    %3080 = vmatprep.subr.mxu0 0.0
    %3081 = vmatpush1.msra.mxu0 %v3033
    %3082 = vmatprep.subr.mxu0 0.0
    %3083 = vmatpush1.msra.mxu0 %v3035
    %3084 = vmatprep.subr.mxu0 0.0
    %3085 = vmatpush1.msra.mxu0 %v3037
    %3086 = vmatprep.subr.mxu0 0.0
    %3087 = vmatpush1.msra.mxu0 %v3039
    %3088 = vmatprep.subr.mxu0 0.0
    %3089 = vmatpush1.msra.mxu0 %v3041
    %3090 = vmatprep.subr.mxu0 0.0
    %3091 = vmatpush1.msra.mxu0 %v3043
    %3092 = vmatprep.subr.mxu0 0.0
    %3093 = vmatpush1.msra.mxu0 %v3045
    %3094 = vmatprep.subr.mxu0 0.0
    %3095 = vmatpush1.msra.mxu0 %v3047
    %3096 = vmatprep.subr.mxu0 0.0
    %3097 = vmatpush1.msra.mxu0 0.0
    %3098 = vmatprep.subr.mxu0 0.0
    %3099 = vmatpush1.msra.mxu0 0.0
    %3100 = vmatprep.subr.mxu0 0.0
    %3101 = vmatpush1.msra.mxu0 0.0
    %3102 = vmatprep.subr.mxu0 0.0
    %3103 = vmatpush1.msra.mxu0 0.0
    %3104 = vmatprep.subr.mxu0 0.0
    %3105 = vmatpush1.msra.mxu0 0.0
    %3106 = vmatprep.subr.mxu0 0.0
    %3107 = vmatpush1.msra.mxu0 0.0
    %3108 = vmatprep.subr.mxu0 0.0
    %3109 = vmatpush1.msra.mxu0 0.0
    %3110 = vmatprep.subr.mxu0 0.0
    %3111 = vmatpush1.msra.mxu0 0.0
    %3112 = vmatprep.subr.mxu0 0.0
    %3113 = vmatpush1.msra.mxu0 0.0
    %3114 = vmatprep.subr.mxu0 0.0
    %3115 = vmatpush1.msra.mxu0 0.0
    %3116 = vmatprep.subr.mxu0 0.0
    %3117 = vmatpush1.msra.mxu0 0.0
    %3118 = vmatprep.subr.mxu0 0.0
    %3119 = vmatpush1.msra.mxu0 0.0
    %3120 = vmatprep.subr.mxu0 0.0
    %3121 = vmatpush1.msra.mxu0 0.0
    %3122 = vmatprep.subr.mxu0 0.0
    %3123 = vmatpush1.msra.mxu0 0.0
    %3124 = vmatprep.subr.mxu0 0.0
    %3125 = vmatpush1.msra.mxu0 0.0
    %3126 = vmatprep.subr.mxu0 0.0
    %3127 = vmatpush1.msra.mxu0 0.0
    %3128 = vmatprep.mubr.f32.mxu0 0.0
    %3129 = vmatmul.mubr.f32.gmra.mrb[0].mxu0 %v2980
    %v3130 = vpop.f32.mrb[0].mxu0
    %v3131 = vadd.f32 0.0, %v3130
    %v3132 = vpop.f32.mrb[0].mxu0
    %3133 = vmatprep.mubr.f32.mxu0 0.0
    %3134 = vmatmul.mubr.f32.gmra.mrb[0].mxu0 %v2981
    %v3135 = vpop.f32.mrb[0].mxu0
    %v3136 = vadd.f32 0.0, %v3135
    %v3137 = vpop.f32.mrb[0].mxu0
    %3138 = vdwg.mxu0
    %3141 = vrot.lane.b32.xlu0 %v3131, 8
    %v3142 = vpop.permute.xlu0 %3141
    %3143 = vrot.lane.b32.xlu0 %v3136, 8
    %v3144 = vpop.permute.xlu0 %3143
    %vm3147 = vcmask 130112
    %3148 = vst.msk [vmem:[#allocation2] sm:$0xff] %vm3147, %v3142
    %3149 = vst.msk [vmem:[#allocation2 + $0x8] sm:$0xff] %vm3147, %v3144
    %v3150 = vld [vmem:[#allocation3 + $0x80] sm:$0xff]
    %v3151 = vld [vmem:[#allocation3 + $0x88] sm:$0xff]
    %v3152 = vld [vmem:[#allocation3 + $0x90] sm:$0xff]
    %v3153 = vld [vmem:[#allocation3 + $0x98] sm:$0xff]
    %v3154 = vld [vmem:[#allocation3 + $0xa0] sm:$0xff]
    %v3155 = vld [vmem:[#allocation3 + $0xa8] sm:$0xff]
    %v3156 = vld [vmem:[#allocation3 + $0xb0] sm:$0xff]
    %v3157 = vld [vmem:[#allocation3 + $0xb8] sm:$0xff]
    %v3158 = vld [vmem:[#allocation3 + $0xc0] sm:$0xff]
    %v3159 = vld [vmem:[#allocation3 + $0xc8] sm:$0xff]
    %v3160 = vld [vmem:[#allocation3 + $0xd0] sm:$0xff]
    %v3161 = vld [vmem:[#allocation3 + $0xd8] sm:$0xff]
    %v3162 = vld [vmem:[#allocation3 + $0xe0] sm:$0xff]
    %v3163 = vld [vmem:[#allocation3 + $0xe8] sm:$0xff]
    %v3164 = vld [vmem:[#allocation3 + $0xf0] sm:$0xff]
    %v3165 = vld [vmem:[#allocation3 + $0xf8] sm:$0xff]
    %3182 = vrot.lane.b32.xlu0 %v3150, 120
    %v3183 = vpop.permute.xlu0 %3182
    %3184 = vrot.lane.b32.xlu0 %v3151, 120
    %v3185 = vpop.permute.xlu0 %3184
    %3186 = vrot.lane.b32.xlu0 %v3152, 120
    %v3187 = vpop.permute.xlu0 %3186
    %3188 = vrot.lane.b32.xlu0 %v3153, 120
    %v3189 = vpop.permute.xlu0 %3188
    %3190 = vrot.lane.b32.xlu0 %v3154, 120
    %v3191 = vpop.permute.xlu0 %3190
    %3192 = vrot.lane.b32.xlu0 %v3155, 120
    %v3193 = vpop.permute.xlu0 %3192
    %3194 = vrot.lane.b32.xlu0 %v3156, 120
    %v3195 = vpop.permute.xlu0 %3194
    %3196 = vrot.lane.b32.xlu0 %v3157, 120
    %v3197 = vpop.permute.xlu0 %3196
    %3198 = vrot.lane.b32.xlu0 %v3158, 120
    %v3199 = vpop.permute.xlu0 %3198
    %3200 = vrot.lane.b32.xlu0 %v3159, 120
    %v3201 = vpop.permute.xlu0 %3200
    %3202 = vrot.lane.b32.xlu0 %v3160, 120
    %v3203 = vpop.permute.xlu0 %3202
    %3204 = vrot.lane.b32.xlu0 %v3161, 120
    %v3205 = vpop.permute.xlu0 %3204
    %3206 = vrot.lane.b32.xlu0 %v3162, 120
    %v3207 = vpop.permute.xlu0 %3206
    %3208 = vrot.lane.b32.xlu0 %v3163, 120
    %v3209 = vpop.permute.xlu0 %3208
    %3210 = vrot.lane.b32.xlu0 %v3164, 120
    %v3211 = vpop.permute.xlu0 %3210
    %3212 = vrot.lane.b32.xlu0 %v3165, 120
    %v3213 = vpop.permute.xlu0 %3212
    %3230 = vmatprep.subr.mxu0 0.0
    %3231 = vmatpush1.msra.mxu0 %v3183
    %3232 = vmatprep.subr.mxu0 0.0
    %3233 = vmatpush1.msra.mxu0 %v3185
    %3234 = vmatprep.subr.mxu0 0.0
    %3235 = vmatpush1.msra.mxu0 %v3187
    %3236 = vmatprep.subr.mxu0 0.0
    %3237 = vmatpush1.msra.mxu0 %v3189
    %3238 = vmatprep.subr.mxu0 0.0
    %3239 = vmatpush1.msra.mxu0 %v3191
    %3240 = vmatprep.subr.mxu0 0.0
    %3241 = vmatpush1.msra.mxu0 %v3193
    %3242 = vmatprep.subr.mxu0 0.0
    %3243 = vmatpush1.msra.mxu0 %v3195
    %3244 = vmatprep.subr.mxu0 0.0
    %3245 = vmatpush1.msra.mxu0 %v3197
    %3246 = vmatprep.subr.mxu0 0.0
    %3247 = vmatpush1.msra.mxu0 %v3199
    %3248 = vmatprep.subr.mxu0 0.0
    %3249 = vmatpush1.msra.mxu0 %v3201
    %3250 = vmatprep.subr.mxu0 0.0
    %3251 = vmatpush1.msra.mxu0 %v3203
    %3252 = vmatprep.subr.mxu0 0.0
    %3253 = vmatpush1.msra.mxu0 %v3205
    %3254 = vmatprep.subr.mxu0 0.0
    %3255 = vmatpush1.msra.mxu0 %v3207
    %3256 = vmatprep.subr.mxu0 0.0
    %3257 = vmatpush1.msra.mxu0 %v3209
    %3258 = vmatprep.subr.mxu0 0.0
    %3259 = vmatpush1.msra.mxu0 %v3211
    %3260 = vmatprep.subr.mxu0 0.0
    %3261 = vmatpush1.msra.mxu0 %v3213
    %3262 = vmatprep.subr.mxu0 0.0
    %3263 = vmatpush1.msra.mxu0 0.0
    %3264 = vmatprep.subr.mxu0 0.0
    %3265 = vmatpush1.msra.mxu0 0.0
    %3266 = vmatprep.subr.mxu0 0.0
    %3267 = vmatpush1.msra.mxu0 0.0
    %3268 = vmatprep.subr.mxu0 0.0
    %3269 = vmatpush1.msra.mxu0 0.0
    %3270 = vmatprep.subr.mxu0 0.0
    %3271 = vmatpush1.msra.mxu0 0.0
    %3272 = vmatprep.subr.mxu0 0.0
    %3273 = vmatpush1.msra.mxu0 0.0
    %3274 = vmatprep.subr.mxu0 0.0
    %3275 = vmatpush1.msra.mxu0 0.0
    %3276 = vmatprep.subr.mxu0 0.0
    %3277 = vmatpush1.msra.mxu0 0.0
    %3278 = vmatprep.subr.mxu0 0.0
    %3279 = vmatpush1.msra.mxu0 0.0
    %3280 = vmatprep.subr.mxu0 0.0
    %3281 = vmatpush1.msra.mxu0 0.0
    %3282 = vmatprep.subr.mxu0 0.0
    %3283 = vmatpush1.msra.mxu0 0.0
    %3284 = vmatprep.subr.mxu0 0.0
    %3285 = vmatpush1.msra.mxu0 0.0
    %3286 = vmatprep.subr.mxu0 0.0
    %3287 = vmatpush1.msra.mxu0 0.0
    %3288 = vmatprep.subr.mxu0 0.0
    %3289 = vmatpush1.msra.mxu0 0.0
    %3290 = vmatprep.subr.mxu0 0.0
    %3291 = vmatpush1.msra.mxu0 0.0
    %3292 = vmatprep.subr.mxu0 0.0
    %3293 = vmatpush1.msra.mxu0 0.0
    %3294 = vmatprep.mubr.f32.mxu0 0.0
    %3295 = vmatmul.mubr.f32.gmra.mrb[0].mxu0 %v2982
    %v3296 = vpop.f32.mrb[0].mxu0
    %v3297 = vadd.f32 0.0, %v3296
    %v3298 = vpop.f32.mrb[0].mxu0
    %3299 = vmatprep.mubr.f32.mxu0 0.0
    %3300 = vmatmul.mubr.f32.gmra.mrb[0].mxu0 %v2983
    %v3301 = vpop.f32.mrb[0].mxu0
    %v3302 = vadd.f32 0.0, %v3301
    %v3303 = vpop.f32.mrb[0].mxu0
    %3304 = vdwg.mxu0
    %3307 = vrot.lane.b32.xlu0 %v3297, 8
    %v3308 = vpop.permute.xlu0 %3307
    %3309 = vrot.lane.b32.xlu0 %v3302, 8
    %v3310 = vpop.permute.xlu0 %3309
    %3313 = vst.msk [vmem:[#allocation2 + $0x10] sm:$0xff] %vm3147, %v3308
    %3314 = vst.msk [vmem:[#allocation2 + $0x18] sm:$0xff] %vm3147, %v3310
    %vm3315 = vcmask 900896
    %v3316 = vsel %vm3315, %v550, -inf
    %3317 = vmax.xlane.f32.xlu0 %v3316
    %v3318 = vpop.xlane.xlu0 %3317
    %v3319 = vsel %vm3315, %v555, -inf
    %3320 = vmax.xlane.f32.xlu0 %v3319
    %v3321 = vpop.xlane.xlu0 %3320
    %v3322 = vsel %vm3315, %v560, -inf
    %3323 = vmax.xlane.f32.xlu0 %v3322
    %v3324 = vpop.xlane.xlu0 %3323
    %v3325 = vsel %vm3315, %v565, -inf
    %3326 = vmax.xlane.f32.xlu0 %v3325
    %v3327 = vpop.xlane.xlu0 %3326
    %v3328 = vsub.f32 %v550, %v3318
    %v3329 = vsub.f32 %v555, %v3321
    %v3330 = vsub.f32 %v560, %v3324
    %v3331 = vsub.f32 %v565, %v3327
    %v3332 = vmul.f32 %v3328, 1.442695
    %v3333 = vpow.pop %v3332
    %v3334 = vmul.f32 %v3329, 1.442695
    %v3335 = vpow.pop %v3334
    %v3336 = vmul.f32 %v3330, 1.442695
    %v3337 = vpow.pop %v3336
    %v3338 = vmul.f32 %v3331, 1.442695
    %v3339 = vpow.pop %v3338
    %3344 = vrot.lane.b32.xlu0 %v3333, 28
    %v3345 = vpop.permute.xlu0 %3344
    %3346 = vrot.lane.b32.xlu0 %v3335, 28
    %v3347 = vpop.permute.xlu0 %3346
    %3348 = vrot.lane.b32.xlu0 %v3337, 28
    %v3349 = vpop.permute.xlu0 %3348
    %3350 = vrot.lane.b32.xlu0 %v3339, 28
    %v3351 = vpop.permute.xlu0 %3350
    %v3356 = vsel %vm647, %v3345, 0.0
    %3357 = vadd.xlane.f32.xlu0 %v3356
    %v3358 = vpop.xlane.xlu0 %3357
    %v3359 = vsel %vm647, %v3347, 0.0
    %3360 = vadd.xlane.f32.xlu0 %v3359
    %v3361 = vpop.xlane.xlu0 %3360
    %v3362 = vsel %vm647, %v3349, 0.0
    %3363 = vadd.xlane.f32.xlu0 %v3362
    %v3364 = vpop.xlane.xlu0 %3363
    %v3365 = vsel %vm647, %v3351, 0.0
    %3366 = vadd.xlane.f32.xlu0 %v3365
    %v3367 = vpop.xlane.xlu0 %3366
    %v3368 = vrcp.pop %v3358
    %v3369 = vrcp.pop %v3361
    %v3370 = vrcp.pop %v3364
    %v3371 = vrcp.pop %v3367
    %v3372 = vmul.f32 %v3333, %v3368
    %v3373 = vmul.f32 %v3335, %v3369
    %v3374 = vmul.f32 %v3337, %v3370
    %v3375 = vmul.f32 %v3339, %v3371
    %3376 = vrot.lane.b32.xlu0 %v550, 88
    %v3377 = vpop.permute.xlu0 %3376
    %3378 = vrot.lane.b32.xlu0 %v555, 88
    %v3379 = vpop.permute.xlu0 %3378
    %3380 = vrot.lane.b32.xlu0 %v560, 88
    %v3381 = vpop.permute.xlu0 %3380
    %3382 = vrot.lane.b32.xlu0 %v565, 88
    %v3383 = vpop.permute.xlu0 %3382
    %v3388 = vadd.f32 %v583, %v3377
    %v3389 = vadd.f32 %v584, %v3379
    %v3390 = vadd.f32 %v585, %v3381
    %v3391 = vadd.f32 %v586, %v3383
    %3392 = vrot.lane.b32.xlu0 %v550, 78
    %v3393 = vpop.permute.xlu0 %3392
    %3394 = vrot.lane.b32.xlu0 %v555, 78
    %v3395 = vpop.permute.xlu0 %3394
    %3396 = vrot.lane.b32.xlu0 %v560, 78
    %v3397 = vpop.permute.xlu0 %3396
    %3398 = vrot.lane.b32.xlu0 %v565, 78
    %v3399 = vpop.permute.xlu0 %3398
    %v3404 = vadd.f32 %v602, %v3393
    %v3405 = vadd.f32 %v603, %v3395
    %v3406 = vadd.f32 %v604, %v3397
    %v3407 = vadd.f32 %v605, %v3399
    %v3408 = vld [vmem:[%s13] sm:$0x1]
    %3410 = vset.pattern.permute.xlu0 0
    %3411 = vperm.xlu0 %3410, %v3388
    %v3412 = vpop.permute.xlu0 %3411
    %3415 = vset.pattern.permute.xlu0 0
    %3416 = vperm.xlu0 %3415, %v3389
    %v3417 = vpop.permute.xlu0 %3416
    %3420 = vset.pattern.permute.xlu0 0
    %3421 = vperm.xlu0 %3420, %v3390
    %v3422 = vpop.permute.xlu0 %3421
    %3425 = vset.pattern.permute.xlu0 0
    %3426 = vperm.xlu0 %3425, %v3391
    %v3427 = vpop.permute.xlu0 %3426
    %v3430 = vlaneseq
    %v3431 = vshrl.u32 %v3430, 7
    %v3432 = vsub.s32 0, %v3431
    %v3433 = vrot.slane %v3408, %v3432
    %v3435 = vsub.f32 %v3412, %v3433
    %v3436 = vsub.f32 %v3417, %v3433
    %v3437 = vsub.f32 %v3422, %v3433
    %v3438 = vsub.f32 %v3427, %v3433
    %v3439 = vand.u32 2147483647, %v3435
    %v3440 = vand.u32 2147483647, %v3436
    %v3441 = vand.u32 2147483647, %v3437
    %v3442 = vand.u32 2147483647, %v3438
    %v3443 = vsub.f32 1.0, %v3439
    %v3444 = vsub.f32 1.0, %v3440
    %v3445 = vsub.f32 1.0, %v3441
    %v3446 = vsub.f32 1.0, %v3442
    %v3447 = vmax.f32 %v3443, 0.0
    %v3448 = vmax.f32 %v3444, 0.0
    %v3449 = vmax.f32 %v3445, 0.0
    %v3450 = vmax.f32 %v3446, 0.0
    %v3451 = vld [vmem:[%s14] sm:$0x1]
    %3453 = vset.pattern.permute.xlu0 0
    %3454 = vperm.xlu0 %3453, %v3404
    %v3455 = vpop.permute.xlu0 %3454
    %3458 = vset.pattern.permute.xlu0 0
    %3459 = vperm.xlu0 %3458, %v3405
    %v3460 = vpop.permute.xlu0 %3459
    %3463 = vset.pattern.permute.xlu0 0
    %3464 = vperm.xlu0 %3463, %v3406
    %v3465 = vpop.permute.xlu0 %3464
    %3468 = vset.pattern.permute.xlu0 0
    %3469 = vperm.xlu0 %3468, %v3407
    %v3470 = vpop.permute.xlu0 %3469
    %v3473 = vlaneseq
    %v3474 = vshrl.u32 %v3473, 7
    %v3475 = vsub.s32 0, %v3474
    %v3476 = vrot.slane %v3451, %v3475
    %v3478 = vsub.f32 %v3455, %v3476
    %v3479 = vsub.f32 %v3460, %v3476
    %v3480 = vsub.f32 %v3465, %v3476
    %v3481 = vsub.f32 %v3470, %v3476
    %v3482 = vand.u32 2147483647, %v3478
    %v3483 = vand.u32 2147483647, %v3479
    %v3484 = vand.u32 2147483647, %v3480
    %v3485 = vand.u32 2147483647, %v3481
    %v3486 = vsub.f32 1.0, %v3482
    %v3487 = vsub.f32 1.0, %v3483
    %v3488 = vsub.f32 1.0, %v3484
    %v3489 = vsub.f32 1.0, %v3485
    %v3490 = vmax.f32 %v3486, 0.0
    %v3491 = vmax.f32 %v3487, 0.0
    %v3492 = vmax.f32 %v3488, 0.0
    %v3493 = vmax.f32 %v3489, 0.0
    %v3494 = vmul.f32 %v3447, %v3490
    %v3495 = vmul.f32 %v3448, %v3491
    %v3496 = vmul.f32 %v3449, %v3492
    %v3497 = vmul.f32 %v3450, %v3493
    %3499 = vset.pattern.permute.xlu0 100
    %3500 = vperm.xlu0 %3499, %v3372
    %v3501 = vpop.permute.xlu0 %3500
    %3504 = vset.pattern.permute.xlu0 100
    %3505 = vperm.xlu0 %3504, %v3373
    %v3506 = vpop.permute.xlu0 %3505
    %3509 = vset.pattern.permute.xlu0 100
    %3510 = vperm.xlu0 %3509, %v3374
    %v3511 = vpop.permute.xlu0 %3510
    %3514 = vset.pattern.permute.xlu0 100
    %3515 = vperm.xlu0 %3514, %v3375
    %v3516 = vpop.permute.xlu0 %3515
    %v3518 = vmul.f32 %v3494, %v3501
    %v3519 = vmul.f32 %v3495, %v3506
    %v3520 = vmul.f32 %v3496, %v3511
    %v3521 = vmul.f32 %v3497, %v3516
    %v3522 = vadd.f32 %v3518, 0.0
    %v3523 = vadd.f32 %v3519, 0.0
    %v3524 = vadd.f32 %v3520, 0.0
    %v3525 = vadd.f32 %v3521, 0.0
    %3526 = vset.pattern.permute.xlu0 1
    %3527 = vperm.xlu0 %3526, %v3388
    %v3528 = vpop.permute.xlu0 %3527
    %3530 = vset.pattern.permute.xlu0 1
    %3531 = vperm.xlu0 %3530, %v3389
    %v3532 = vpop.permute.xlu0 %3531
    %3534 = vset.pattern.permute.xlu0 1
    %3535 = vperm.xlu0 %3534, %v3390
    %v3536 = vpop.permute.xlu0 %3535
    %3538 = vset.pattern.permute.xlu0 1
    %3539 = vperm.xlu0 %3538, %v3391
    %v3540 = vpop.permute.xlu0 %3539
    %v3542 = vsub.f32 %v3528, %v3433
    %v3543 = vsub.f32 %v3532, %v3433
    %v3544 = vsub.f32 %v3536, %v3433
    %v3545 = vsub.f32 %v3540, %v3433
    %v3546 = vand.u32 2147483647, %v3542
    %v3547 = vand.u32 2147483647, %v3543
    %v3548 = vand.u32 2147483647, %v3544
    %v3549 = vand.u32 2147483647, %v3545
    %v3550 = vsub.f32 1.0, %v3546
    %v3551 = vsub.f32 1.0, %v3547
    %v3552 = vsub.f32 1.0, %v3548
    %v3553 = vsub.f32 1.0, %v3549
    %v3554 = vmax.f32 %v3550, 0.0
    %v3555 = vmax.f32 %v3551, 0.0
    %v3556 = vmax.f32 %v3552, 0.0
    %v3557 = vmax.f32 %v3553, 0.0
    %3558 = vset.pattern.permute.xlu0 1
    %3559 = vperm.xlu0 %3558, %v3404
    %v3560 = vpop.permute.xlu0 %3559
    %3562 = vset.pattern.permute.xlu0 1
    %3563 = vperm.xlu0 %3562, %v3405
    %v3564 = vpop.permute.xlu0 %3563
    %3566 = vset.pattern.permute.xlu0 1
    %3567 = vperm.xlu0 %3566, %v3406
    %v3568 = vpop.permute.xlu0 %3567
    %3570 = vset.pattern.permute.xlu0 1
    %3571 = vperm.xlu0 %3570, %v3407
    %v3572 = vpop.permute.xlu0 %3571
    %v3574 = vsub.f32 %v3560, %v3476
    %v3575 = vsub.f32 %v3564, %v3476
    %v3576 = vsub.f32 %v3568, %v3476
    %v3577 = vsub.f32 %v3572, %v3476
    %v3578 = vand.u32 2147483647, %v3574
    %v3579 = vand.u32 2147483647, %v3575
    %v3580 = vand.u32 2147483647, %v3576
    %v3581 = vand.u32 2147483647, %v3577
    %v3582 = vsub.f32 1.0, %v3578
    %v3583 = vsub.f32 1.0, %v3579
    %v3584 = vsub.f32 1.0, %v3580
    %v3585 = vsub.f32 1.0, %v3581
    %v3586 = vmax.f32 %v3582, 0.0
    %v3587 = vmax.f32 %v3583, 0.0
    %v3588 = vmax.f32 %v3584, 0.0
    %v3589 = vmax.f32 %v3585, 0.0
    %v3590 = vmul.f32 %v3554, %v3586
    %v3591 = vmul.f32 %v3555, %v3587
    %v3592 = vmul.f32 %v3556, %v3588
    %v3593 = vmul.f32 %v3557, %v3589
    %3594 = vset.pattern.permute.xlu0 101
    %3595 = vperm.xlu0 %3594, %v3372
    %v3596 = vpop.permute.xlu0 %3595
    %3598 = vset.pattern.permute.xlu0 101
    %3599 = vperm.xlu0 %3598, %v3373
    %v3600 = vpop.permute.xlu0 %3599
    %3602 = vset.pattern.permute.xlu0 101
    %3603 = vperm.xlu0 %3602, %v3374
    %v3604 = vpop.permute.xlu0 %3603
    %3606 = vset.pattern.permute.xlu0 101
    %3607 = vperm.xlu0 %3606, %v3375
    %v3608 = vpop.permute.xlu0 %3607
    %v3610 = vmul.f32 %v3590, %v3596
    %v3611 = vmul.f32 %v3591, %v3600
    %v3612 = vmul.f32 %v3592, %v3604
    %v3613 = vmul.f32 %v3593, %v3608
    %v3614 = vadd.f32 %v3522, %v3610
    %v3615 = vadd.f32 %v3523, %v3611
    %v3616 = vadd.f32 %v3524, %v3612
    %v3617 = vadd.f32 %v3525, %v3613
    %v3618 = vld [vmem:[%s902] sm:$0x1]
    %3619 = vset.pattern.permute.xlu0 2
    %3620 = vperm.xlu0 %3619, %v3388
    %v3621 = vpop.permute.xlu0 %3620
    %3623 = vset.pattern.permute.xlu0 2
    %3624 = vperm.xlu0 %3623, %v3389
    %v3625 = vpop.permute.xlu0 %3624
    %3627 = vset.pattern.permute.xlu0 2
    %3628 = vperm.xlu0 %3627, %v3390
    %v3629 = vpop.permute.xlu0 %3628
    %3631 = vset.pattern.permute.xlu0 2
    %3632 = vperm.xlu0 %3631, %v3391
    %v3633 = vpop.permute.xlu0 %3632
    %v3636 = vlaneseq
    %v3637 = vshrl.u32 %v3636, 7
    %v3638 = vsub.s32 0, %v3637
    %v3639 = vrot.slane %v3618, %v3638
    %v3641 = vsub.f32 %v3621, %v3639
    %v3642 = vsub.f32 %v3625, %v3639
    %v3643 = vsub.f32 %v3629, %v3639
    %v3644 = vsub.f32 %v3633, %v3639
    %v3645 = vand.u32 2147483647, %v3641
    %v3646 = vand.u32 2147483647, %v3642
    %v3647 = vand.u32 2147483647, %v3643
    %v3648 = vand.u32 2147483647, %v3644
    %v3649 = vsub.f32 1.0, %v3645
    %v3650 = vsub.f32 1.0, %v3646
    %v3651 = vsub.f32 1.0, %v3647
    %v3652 = vsub.f32 1.0, %v3648
    %v3653 = vmax.f32 %v3649, 0.0
    %v3654 = vmax.f32 %v3650, 0.0
    %v3655 = vmax.f32 %v3651, 0.0
    %v3656 = vmax.f32 %v3652, 0.0
    %v3657 = vld [vmem:[%s942] sm:$0x1]
    %3658 = vset.pattern.permute.xlu0 2
    %3659 = vperm.xlu0 %3658, %v3404
    %v3660 = vpop.permute.xlu0 %3659
    %3662 = vset.pattern.permute.xlu0 2
    %3663 = vperm.xlu0 %3662, %v3405
    %v3664 = vpop.permute.xlu0 %3663
    %3666 = vset.pattern.permute.xlu0 2
    %3667 = vperm.xlu0 %3666, %v3406
    %v3668 = vpop.permute.xlu0 %3667
    %3670 = vset.pattern.permute.xlu0 2
    %3671 = vperm.xlu0 %3670, %v3407
    %v3672 = vpop.permute.xlu0 %3671
    %v3675 = vlaneseq
    %v3676 = vshrl.u32 %v3675, 7
    %v3677 = vsub.s32 0, %v3676
    %v3678 = vrot.slane %v3657, %v3677
    %v3680 = vsub.f32 %v3660, %v3678
    %v3681 = vsub.f32 %v3664, %v3678
    %v3682 = vsub.f32 %v3668, %v3678
    %v3683 = vsub.f32 %v3672, %v3678
    %v3684 = vand.u32 2147483647, %v3680
    %v3685 = vand.u32 2147483647, %v3681
    %v3686 = vand.u32 2147483647, %v3682
    %v3687 = vand.u32 2147483647, %v3683
    %v3688 = vsub.f32 1.0, %v3684
    %v3689 = vsub.f32 1.0, %v3685
    %v3690 = vsub.f32 1.0, %v3686
    %v3691 = vsub.f32 1.0, %v3687
    %v3692 = vmax.f32 %v3688, 0.0
    %v3693 = vmax.f32 %v3689, 0.0
    %v3694 = vmax.f32 %v3690, 0.0
    %v3695 = vmax.f32 %v3691, 0.0
    %v3696 = vmul.f32 %v3653, %v3692
    %v3697 = vmul.f32 %v3654, %v3693
    %v3698 = vmul.f32 %v3655, %v3694
    %v3699 = vmul.f32 %v3656, %v3695
    %3700 = vset.pattern.permute.xlu0 102
    %3701 = vperm.xlu0 %3700, %v3372
    %v3702 = vpop.permute.xlu0 %3701
    %3704 = vset.pattern.permute.xlu0 102
    %3705 = vperm.xlu0 %3704, %v3373
    %v3706 = vpop.permute.xlu0 %3705
    %3708 = vset.pattern.permute.xlu0 102
    %3709 = vperm.xlu0 %3708, %v3374
    %v3710 = vpop.permute.xlu0 %3709
    %3712 = vset.pattern.permute.xlu0 102
    %3713 = vperm.xlu0 %3712, %v3375
    %v3714 = vpop.permute.xlu0 %3713
    %v3716 = vmul.f32 %v3696, %v3702
    %v3717 = vmul.f32 %v3697, %v3706
    %v3718 = vmul.f32 %v3698, %v3710
    %v3719 = vmul.f32 %v3699, %v3714
    %v3720 = vadd.f32 %v3614, %v3716
    %v3721 = vadd.f32 %v3615, %v3717
    %v3722 = vadd.f32 %v3616, %v3718
    %v3723 = vadd.f32 %v3617, %v3719
    %3724 = vset.pattern.permute.xlu0 3
    %3725 = vperm.xlu0 %3724, %v3388
    %v3726 = vpop.permute.xlu0 %3725
    %3728 = vset.pattern.permute.xlu0 3
    %3729 = vperm.xlu0 %3728, %v3389
    %v3730 = vpop.permute.xlu0 %3729
    %3732 = vset.pattern.permute.xlu0 3
    %3733 = vperm.xlu0 %3732, %v3390
    %v3734 = vpop.permute.xlu0 %3733
    %3736 = vset.pattern.permute.xlu0 3
    %3737 = vperm.xlu0 %3736, %v3391
    %v3738 = vpop.permute.xlu0 %3737
    %v3740 = vsub.f32 %v3726, %v3639
    %v3741 = vsub.f32 %v3730, %v3639
    %v3742 = vsub.f32 %v3734, %v3639
    %v3743 = vsub.f32 %v3738, %v3639
    %v3744 = vand.u32 2147483647, %v3740
    %v3745 = vand.u32 2147483647, %v3741
    %v3746 = vand.u32 2147483647, %v3742
    %v3747 = vand.u32 2147483647, %v3743
    %v3748 = vsub.f32 1.0, %v3744
    %v3749 = vsub.f32 1.0, %v3745
    %v3750 = vsub.f32 1.0, %v3746
    %v3751 = vsub.f32 1.0, %v3747
    %v3752 = vmax.f32 %v3748, 0.0
    %v3753 = vmax.f32 %v3749, 0.0
    %v3754 = vmax.f32 %v3750, 0.0
    %v3755 = vmax.f32 %v3751, 0.0
    %3756 = vset.pattern.permute.xlu0 3
    %3757 = vperm.xlu0 %3756, %v3404
    %v3758 = vpop.permute.xlu0 %3757
    %3760 = vset.pattern.permute.xlu0 3
    %3761 = vperm.xlu0 %3760, %v3405
    %v3762 = vpop.permute.xlu0 %3761
    %3764 = vset.pattern.permute.xlu0 3
    %3765 = vperm.xlu0 %3764, %v3406
    %v3766 = vpop.permute.xlu0 %3765
    %3768 = vset.pattern.permute.xlu0 3
    %3769 = vperm.xlu0 %3768, %v3407
    %v3770 = vpop.permute.xlu0 %3769
    %v3772 = vsub.f32 %v3758, %v3678
    %v3773 = vsub.f32 %v3762, %v3678
    %v3774 = vsub.f32 %v3766, %v3678
    %v3775 = vsub.f32 %v3770, %v3678
    %v3776 = vand.u32 2147483647, %v3772
    %v3777 = vand.u32 2147483647, %v3773
    %v3778 = vand.u32 2147483647, %v3774
    %v3779 = vand.u32 2147483647, %v3775
    %v3780 = vsub.f32 1.0, %v3776
    %v3781 = vsub.f32 1.0, %v3777
    %v3782 = vsub.f32 1.0, %v3778
    %v3783 = vsub.f32 1.0, %v3779
    %v3784 = vmax.f32 %v3780, 0.0
    %v3785 = vmax.f32 %v3781, 0.0
    %v3786 = vmax.f32 %v3782, 0.0
    %v3787 = vmax.f32 %v3783, 0.0
    %v3788 = vmul.f32 %v3752, %v3784
    %v3789 = vmul.f32 %v3753, %v3785
    %v3790 = vmul.f32 %v3754, %v3786
    %v3791 = vmul.f32 %v3755, %v3787
    %3792 = vset.pattern.permute.xlu0 103
    %3793 = vperm.xlu0 %3792, %v3372
    %v3794 = vpop.permute.xlu0 %3793
    %3796 = vset.pattern.permute.xlu0 103
    %3797 = vperm.xlu0 %3796, %v3373
    %v3798 = vpop.permute.xlu0 %3797
    %3800 = vset.pattern.permute.xlu0 103
    %3801 = vperm.xlu0 %3800, %v3374
    %v3802 = vpop.permute.xlu0 %3801
    %3804 = vset.pattern.permute.xlu0 103
    %3805 = vperm.xlu0 %3804, %v3375
    %v3806 = vpop.permute.xlu0 %3805
    %v3808 = vmul.f32 %v3788, %v3794
    %v3809 = vmul.f32 %v3789, %v3798
    %v3810 = vmul.f32 %v3790, %v3802
    %v3811 = vmul.f32 %v3791, %v3806
    %v3812 = vadd.f32 %v3720, %v3808
    %v3813 = vadd.f32 %v3721, %v3809
    %v3814 = vadd.f32 %v3722, %v3810
    %v3815 = vadd.f32 %v3723, %v3811
    %v3816 = vld [vmem:[%s1102] sm:$0x1]
    %3817 = vset.pattern.permute.xlu0 4
    %3818 = vperm.xlu0 %3817, %v3388
    %v3819 = vpop.permute.xlu0 %3818
    %3821 = vset.pattern.permute.xlu0 4
    %3822 = vperm.xlu0 %3821, %v3389
    %v3823 = vpop.permute.xlu0 %3822
    %3825 = vset.pattern.permute.xlu0 4
    %3826 = vperm.xlu0 %3825, %v3390
    %v3827 = vpop.permute.xlu0 %3826
    %3829 = vset.pattern.permute.xlu0 4
    %3830 = vperm.xlu0 %3829, %v3391
    %v3831 = vpop.permute.xlu0 %3830
    %v3834 = vlaneseq
    %v3835 = vshrl.u32 %v3834, 7
    %v3836 = vsub.s32 0, %v3835
    %v3837 = vrot.slane %v3816, %v3836
    %v3839 = vsub.f32 %v3819, %v3837
    %v3840 = vsub.f32 %v3823, %v3837
    %v3841 = vsub.f32 %v3827, %v3837
    %v3842 = vsub.f32 %v3831, %v3837
    %v3843 = vand.u32 2147483647, %v3839
    %v3844 = vand.u32 2147483647, %v3840
    %v3845 = vand.u32 2147483647, %v3841
    %v3846 = vand.u32 2147483647, %v3842
    %v3847 = vsub.f32 1.0, %v3843
    %v3848 = vsub.f32 1.0, %v3844
    %v3849 = vsub.f32 1.0, %v3845
    %v3850 = vsub.f32 1.0, %v3846
    %v3851 = vmax.f32 %v3847, 0.0
    %v3852 = vmax.f32 %v3848, 0.0
    %v3853 = vmax.f32 %v3849, 0.0
    %v3854 = vmax.f32 %v3850, 0.0
    %v3855 = vld [vmem:[%s1142] sm:$0x1]
    %3856 = vset.pattern.permute.xlu0 4
    %3857 = vperm.xlu0 %3856, %v3404
    %v3858 = vpop.permute.xlu0 %3857
    %3860 = vset.pattern.permute.xlu0 4
    %3861 = vperm.xlu0 %3860, %v3405
    %v3862 = vpop.permute.xlu0 %3861
    %3864 = vset.pattern.permute.xlu0 4
    %3865 = vperm.xlu0 %3864, %v3406
    %v3866 = vpop.permute.xlu0 %3865
    %3868 = vset.pattern.permute.xlu0 4
    %3869 = vperm.xlu0 %3868, %v3407
    %v3870 = vpop.permute.xlu0 %3869
    %v3873 = vlaneseq
    %v3874 = vshrl.u32 %v3873, 7
    %v3875 = vsub.s32 0, %v3874
    %v3876 = vrot.slane %v3855, %v3875
    %v3878 = vsub.f32 %v3858, %v3876
    %v3879 = vsub.f32 %v3862, %v3876
    %v3880 = vsub.f32 %v3866, %v3876
    %v3881 = vsub.f32 %v3870, %v3876
    %v3882 = vand.u32 2147483647, %v3878
    %v3883 = vand.u32 2147483647, %v3879
    %v3884 = vand.u32 2147483647, %v3880
    %v3885 = vand.u32 2147483647, %v3881
    %v3886 = vsub.f32 1.0, %v3882
    %v3887 = vsub.f32 1.0, %v3883
    %v3888 = vsub.f32 1.0, %v3884
    %v3889 = vsub.f32 1.0, %v3885
    %v3890 = vmax.f32 %v3886, 0.0
    %v3891 = vmax.f32 %v3887, 0.0
    %v3892 = vmax.f32 %v3888, 0.0
    %v3893 = vmax.f32 %v3889, 0.0
    %v3894 = vmul.f32 %v3851, %v3890
    %v3895 = vmul.f32 %v3852, %v3891
    %v3896 = vmul.f32 %v3853, %v3892
    %v3897 = vmul.f32 %v3854, %v3893
    %3898 = vset.pattern.permute.xlu0 104
    %3899 = vperm.xlu0 %3898, %v3372
    %v3900 = vpop.permute.xlu0 %3899
    %3902 = vset.pattern.permute.xlu0 104
    %3903 = vperm.xlu0 %3902, %v3373
    %v3904 = vpop.permute.xlu0 %3903
    %3906 = vset.pattern.permute.xlu0 104
    %3907 = vperm.xlu0 %3906, %v3374
    %v3908 = vpop.permute.xlu0 %3907
    %3910 = vset.pattern.permute.xlu0 104
    %3911 = vperm.xlu0 %3910, %v3375
    %v3912 = vpop.permute.xlu0 %3911
    %v3914 = vmul.f32 %v3894, %v3900
    %v3915 = vmul.f32 %v3895, %v3904
    %v3916 = vmul.f32 %v3896, %v3908
    %v3917 = vmul.f32 %v3897, %v3912
    %v3918 = vadd.f32 %v3812, %v3914
    %v3919 = vadd.f32 %v3813, %v3915
    %v3920 = vadd.f32 %v3814, %v3916
    %v3921 = vadd.f32 %v3815, %v3917
    %3922 = vset.pattern.permute.xlu0 5
    %3923 = vperm.xlu0 %3922, %v3388
    %v3924 = vpop.permute.xlu0 %3923
    %3926 = vset.pattern.permute.xlu0 5
    %3927 = vperm.xlu0 %3926, %v3389
    %v3928 = vpop.permute.xlu0 %3927
    %3930 = vset.pattern.permute.xlu0 5
    %3931 = vperm.xlu0 %3930, %v3390
    %v3932 = vpop.permute.xlu0 %3931
    %3934 = vset.pattern.permute.xlu0 5
    %3935 = vperm.xlu0 %3934, %v3391
    %v3936 = vpop.permute.xlu0 %3935
    %v3938 = vsub.f32 %v3924, %v3837
    %v3939 = vsub.f32 %v3928, %v3837
    %v3940 = vsub.f32 %v3932, %v3837
    %v3941 = vsub.f32 %v3936, %v3837
    %v3942 = vand.u32 2147483647, %v3938
    %v3943 = vand.u32 2147483647, %v3939
    %v3944 = vand.u32 2147483647, %v3940
    %v3945 = vand.u32 2147483647, %v3941
    %v3946 = vsub.f32 1.0, %v3942
    %v3947 = vsub.f32 1.0, %v3943
    %v3948 = vsub.f32 1.0, %v3944
    %v3949 = vsub.f32 1.0, %v3945
    %v3950 = vmax.f32 %v3946, 0.0
    %v3951 = vmax.f32 %v3947, 0.0
    %v3952 = vmax.f32 %v3948, 0.0
    %v3953 = vmax.f32 %v3949, 0.0
    %3954 = vset.pattern.permute.xlu0 5
    %3955 = vperm.xlu0 %3954, %v3404
    %v3956 = vpop.permute.xlu0 %3955
    %3958 = vset.pattern.permute.xlu0 5
    %3959 = vperm.xlu0 %3958, %v3405
    %v3960 = vpop.permute.xlu0 %3959
    %3962 = vset.pattern.permute.xlu0 5
    %3963 = vperm.xlu0 %3962, %v3406
    %v3964 = vpop.permute.xlu0 %3963
    %3966 = vset.pattern.permute.xlu0 5
    %3967 = vperm.xlu0 %3966, %v3407
    %v3968 = vpop.permute.xlu0 %3967
    %v3970 = vsub.f32 %v3956, %v3876
    %v3971 = vsub.f32 %v3960, %v3876
    %v3972 = vsub.f32 %v3964, %v3876
    %v3973 = vsub.f32 %v3968, %v3876
    %v3974 = vand.u32 2147483647, %v3970
    %v3975 = vand.u32 2147483647, %v3971
    %v3976 = vand.u32 2147483647, %v3972
    %v3977 = vand.u32 2147483647, %v3973
    %v3978 = vsub.f32 1.0, %v3974
    %v3979 = vsub.f32 1.0, %v3975
    %v3980 = vsub.f32 1.0, %v3976
    %v3981 = vsub.f32 1.0, %v3977
    %v3982 = vmax.f32 %v3978, 0.0
    %v3983 = vmax.f32 %v3979, 0.0
    %v3984 = vmax.f32 %v3980, 0.0
    %v3985 = vmax.f32 %v3981, 0.0
    %v3986 = vmul.f32 %v3950, %v3982
    %v3987 = vmul.f32 %v3951, %v3983
    %v3988 = vmul.f32 %v3952, %v3984
    %v3989 = vmul.f32 %v3953, %v3985
    %3990 = vset.pattern.permute.xlu0 105
    %3991 = vperm.xlu0 %3990, %v3372
    %v3992 = vpop.permute.xlu0 %3991
    %3994 = vset.pattern.permute.xlu0 105
    %3995 = vperm.xlu0 %3994, %v3373
    %v3996 = vpop.permute.xlu0 %3995
    %3998 = vset.pattern.permute.xlu0 105
    %3999 = vperm.xlu0 %3998, %v3374
    %v4000 = vpop.permute.xlu0 %3999
    %4002 = vset.pattern.permute.xlu0 105
    %4003 = vperm.xlu0 %4002, %v3375
    %v4004 = vpop.permute.xlu0 %4003
    %v4006 = vmul.f32 %v3986, %v3992
    %v4007 = vmul.f32 %v3987, %v3996
    %v4008 = vmul.f32 %v3988, %v4000
    %v4009 = vmul.f32 %v3989, %v4004
    %v4010 = vadd.f32 %v3918, %v4006
    %v4011 = vadd.f32 %v3919, %v4007
    %v4012 = vadd.f32 %v3920, %v4008
    %v4013 = vadd.f32 %v3921, %v4009
    %v4014 = vld [vmem:[%s1302] sm:$0x1]
    %4015 = vset.pattern.permute.xlu0 6
    %4016 = vperm.xlu0 %4015, %v3388
    %v4017 = vpop.permute.xlu0 %4016
    %4019 = vset.pattern.permute.xlu0 6
    %4020 = vperm.xlu0 %4019, %v3389
    %v4021 = vpop.permute.xlu0 %4020
    %4023 = vset.pattern.permute.xlu0 6
    %4024 = vperm.xlu0 %4023, %v3390
    %v4025 = vpop.permute.xlu0 %4024
    %4027 = vset.pattern.permute.xlu0 6
    %4028 = vperm.xlu0 %4027, %v3391
    %v4029 = vpop.permute.xlu0 %4028
    %v4032 = vlaneseq
    %v4033 = vshrl.u32 %v4032, 7
    %v4034 = vsub.s32 0, %v4033
    %v4035 = vrot.slane %v4014, %v4034
    %v4037 = vsub.f32 %v4017, %v4035
    %v4038 = vsub.f32 %v4021, %v4035
    %v4039 = vsub.f32 %v4025, %v4035
    %v4040 = vsub.f32 %v4029, %v4035
    %v4041 = vand.u32 2147483647, %v4037
    %v4042 = vand.u32 2147483647, %v4038
    %v4043 = vand.u32 2147483647, %v4039
    %v4044 = vand.u32 2147483647, %v4040
    %v4045 = vsub.f32 1.0, %v4041
    %v4046 = vsub.f32 1.0, %v4042
    %v4047 = vsub.f32 1.0, %v4043
    %v4048 = vsub.f32 1.0, %v4044
    %v4049 = vmax.f32 %v4045, 0.0
    %v4050 = vmax.f32 %v4046, 0.0
    %v4051 = vmax.f32 %v4047, 0.0
    %v4052 = vmax.f32 %v4048, 0.0
    %v4053 = vld [vmem:[%s1342] sm:$0x1]
    %4054 = vset.pattern.permute.xlu0 6
    %4055 = vperm.xlu0 %4054, %v3404
    %v4056 = vpop.permute.xlu0 %4055
    %4058 = vset.pattern.permute.xlu0 6
    %4059 = vperm.xlu0 %4058, %v3405
    %v4060 = vpop.permute.xlu0 %4059
    %4062 = vset.pattern.permute.xlu0 6
    %4063 = vperm.xlu0 %4062, %v3406
    %v4064 = vpop.permute.xlu0 %4063
    %4066 = vset.pattern.permute.xlu0 6
    %4067 = vperm.xlu0 %4066, %v3407
    %v4068 = vpop.permute.xlu0 %4067
    %v4071 = vlaneseq
    %v4072 = vshrl.u32 %v4071, 7
    %v4073 = vsub.s32 0, %v4072
    %v4074 = vrot.slane %v4053, %v4073
    %v4076 = vsub.f32 %v4056, %v4074
    %v4077 = vsub.f32 %v4060, %v4074
    %v4078 = vsub.f32 %v4064, %v4074
    %v4079 = vsub.f32 %v4068, %v4074
    %v4080 = vand.u32 2147483647, %v4076
    %v4081 = vand.u32 2147483647, %v4077
    %v4082 = vand.u32 2147483647, %v4078
    %v4083 = vand.u32 2147483647, %v4079
    %v4084 = vsub.f32 1.0, %v4080
    %v4085 = vsub.f32 1.0, %v4081
    %v4086 = vsub.f32 1.0, %v4082
    %v4087 = vsub.f32 1.0, %v4083
    %v4088 = vmax.f32 %v4084, 0.0
    %v4089 = vmax.f32 %v4085, 0.0
    %v4090 = vmax.f32 %v4086, 0.0
    %v4091 = vmax.f32 %v4087, 0.0
    %v4092 = vmul.f32 %v4049, %v4088
    %v4093 = vmul.f32 %v4050, %v4089
    %v4094 = vmul.f32 %v4051, %v4090
    %v4095 = vmul.f32 %v4052, %v4091
    %4096 = vset.pattern.permute.xlu0 106
    %4097 = vperm.xlu0 %4096, %v3372
    %v4098 = vpop.permute.xlu0 %4097
    %4100 = vset.pattern.permute.xlu0 106
    %4101 = vperm.xlu0 %4100, %v3373
    %v4102 = vpop.permute.xlu0 %4101
    %4104 = vset.pattern.permute.xlu0 106
    %4105 = vperm.xlu0 %4104, %v3374
    %v4106 = vpop.permute.xlu0 %4105
    %4108 = vset.pattern.permute.xlu0 106
    %4109 = vperm.xlu0 %4108, %v3375
    %v4110 = vpop.permute.xlu0 %4109
    %v4112 = vmul.f32 %v4092, %v4098
    %v4113 = vmul.f32 %v4093, %v4102
    %v4114 = vmul.f32 %v4094, %v4106
    %v4115 = vmul.f32 %v4095, %v4110
    %v4116 = vadd.f32 %v4010, %v4112
    %v4117 = vadd.f32 %v4011, %v4113
    %v4118 = vadd.f32 %v4012, %v4114
    %v4119 = vadd.f32 %v4013, %v4115
    %4120 = vset.pattern.permute.xlu0 7
    %4121 = vperm.xlu0 %4120, %v3388
    %v4122 = vpop.permute.xlu0 %4121
    %4124 = vset.pattern.permute.xlu0 7
    %4125 = vperm.xlu0 %4124, %v3389
    %v4126 = vpop.permute.xlu0 %4125
    %4128 = vset.pattern.permute.xlu0 7
    %4129 = vperm.xlu0 %4128, %v3390
    %v4130 = vpop.permute.xlu0 %4129
    %4132 = vset.pattern.permute.xlu0 7
    %4133 = vperm.xlu0 %4132, %v3391
    %v4134 = vpop.permute.xlu0 %4133
    %v4136 = vsub.f32 %v4122, %v4035
    %v4137 = vsub.f32 %v4126, %v4035
    %v4138 = vsub.f32 %v4130, %v4035
    %v4139 = vsub.f32 %v4134, %v4035
    %v4140 = vand.u32 2147483647, %v4136
    %v4141 = vand.u32 2147483647, %v4137
    %v4142 = vand.u32 2147483647, %v4138
    %v4143 = vand.u32 2147483647, %v4139
    %v4144 = vsub.f32 1.0, %v4140
    %v4145 = vsub.f32 1.0, %v4141
    %v4146 = vsub.f32 1.0, %v4142
    %v4147 = vsub.f32 1.0, %v4143
    %v4148 = vmax.f32 %v4144, 0.0
    %v4149 = vmax.f32 %v4145, 0.0
    %v4150 = vmax.f32 %v4146, 0.0
    %v4151 = vmax.f32 %v4147, 0.0
    %4152 = vset.pattern.permute.xlu0 7
    %4153 = vperm.xlu0 %4152, %v3404
    %v4154 = vpop.permute.xlu0 %4153
    %4156 = vset.pattern.permute.xlu0 7
    %4157 = vperm.xlu0 %4156, %v3405
    %v4158 = vpop.permute.xlu0 %4157
    %4160 = vset.pattern.permute.xlu0 7
    %4161 = vperm.xlu0 %4160, %v3406
    %v4162 = vpop.permute.xlu0 %4161
    %4164 = vset.pattern.permute.xlu0 7
    %4165 = vperm.xlu0 %4164, %v3407
    %v4166 = vpop.permute.xlu0 %4165
    %v4168 = vsub.f32 %v4154, %v4074
    %v4169 = vsub.f32 %v4158, %v4074
    %v4170 = vsub.f32 %v4162, %v4074
    %v4171 = vsub.f32 %v4166, %v4074
    %v4172 = vand.u32 2147483647, %v4168
    %v4173 = vand.u32 2147483647, %v4169
    %v4174 = vand.u32 2147483647, %v4170
    %v4175 = vand.u32 2147483647, %v4171
    %v4176 = vsub.f32 1.0, %v4172
    %v4177 = vsub.f32 1.0, %v4173
    %v4178 = vsub.f32 1.0, %v4174
    %v4179 = vsub.f32 1.0, %v4175
    %v4180 = vmax.f32 %v4176, 0.0
    %v4181 = vmax.f32 %v4177, 0.0
    %v4182 = vmax.f32 %v4178, 0.0
    %v4183 = vmax.f32 %v4179, 0.0
    %v4184 = vmul.f32 %v4148, %v4180
    %v4185 = vmul.f32 %v4149, %v4181
    %v4186 = vmul.f32 %v4150, %v4182
    %v4187 = vmul.f32 %v4151, %v4183
    %4188 = vset.pattern.permute.xlu0 107
    %4189 = vperm.xlu0 %4188, %v3372
    %v4190 = vpop.permute.xlu0 %4189
    %4192 = vset.pattern.permute.xlu0 107
    %4193 = vperm.xlu0 %4192, %v3373
    %v4194 = vpop.permute.xlu0 %4193
    %4196 = vset.pattern.permute.xlu0 107
    %4197 = vperm.xlu0 %4196, %v3374
    %v4198 = vpop.permute.xlu0 %4197
    %4200 = vset.pattern.permute.xlu0 107
    %4201 = vperm.xlu0 %4200, %v3375
    %v4202 = vpop.permute.xlu0 %4201
    %v4204 = vmul.f32 %v4184, %v4190
    %v4205 = vmul.f32 %v4185, %v4194
    %v4206 = vmul.f32 %v4186, %v4198
    %v4207 = vmul.f32 %v4187, %v4202
    %v4208 = vadd.f32 %v4116, %v4204
    %v4209 = vadd.f32 %v4117, %v4205
    %v4210 = vadd.f32 %v4118, %v4206
    %v4211 = vadd.f32 %v4119, %v4207
    %v4212 = vld [vmem:[%s1502] sm:$0x1]
    %4213 = vset.pattern.permute.xlu0 8
    %4214 = vperm.xlu0 %4213, %v3388
    %v4215 = vpop.permute.xlu0 %4214
    %4217 = vset.pattern.permute.xlu0 8
    %4218 = vperm.xlu0 %4217, %v3389
    %v4219 = vpop.permute.xlu0 %4218
    %4221 = vset.pattern.permute.xlu0 8
    %4222 = vperm.xlu0 %4221, %v3390
    %v4223 = vpop.permute.xlu0 %4222
    %4225 = vset.pattern.permute.xlu0 8
    %4226 = vperm.xlu0 %4225, %v3391
    %v4227 = vpop.permute.xlu0 %4226
    %v4230 = vlaneseq
    %v4231 = vshrl.u32 %v4230, 7
    %v4232 = vsub.s32 0, %v4231
    %v4233 = vrot.slane %v4212, %v4232
    %v4235 = vsub.f32 %v4215, %v4233
    %v4236 = vsub.f32 %v4219, %v4233
    %v4237 = vsub.f32 %v4223, %v4233
    %v4238 = vsub.f32 %v4227, %v4233
    %v4239 = vand.u32 2147483647, %v4235
    %v4240 = vand.u32 2147483647, %v4236
    %v4241 = vand.u32 2147483647, %v4237
    %v4242 = vand.u32 2147483647, %v4238
    %v4243 = vsub.f32 1.0, %v4239
    %v4244 = vsub.f32 1.0, %v4240
    %v4245 = vsub.f32 1.0, %v4241
    %v4246 = vsub.f32 1.0, %v4242
    %v4247 = vmax.f32 %v4243, 0.0
    %v4248 = vmax.f32 %v4244, 0.0
    %v4249 = vmax.f32 %v4245, 0.0
    %v4250 = vmax.f32 %v4246, 0.0
    %v4251 = vld [vmem:[%s1542] sm:$0x1]
    %4252 = vset.pattern.permute.xlu0 8
    %4253 = vperm.xlu0 %4252, %v3404
    %v4254 = vpop.permute.xlu0 %4253
    %4256 = vset.pattern.permute.xlu0 8
    %4257 = vperm.xlu0 %4256, %v3405
    %v4258 = vpop.permute.xlu0 %4257
    %4260 = vset.pattern.permute.xlu0 8
    %4261 = vperm.xlu0 %4260, %v3406
    %v4262 = vpop.permute.xlu0 %4261
    %4264 = vset.pattern.permute.xlu0 8
    %4265 = vperm.xlu0 %4264, %v3407
    %v4266 = vpop.permute.xlu0 %4265
    %v4269 = vlaneseq
    %v4270 = vshrl.u32 %v4269, 7
    %v4271 = vsub.s32 0, %v4270
    %v4272 = vrot.slane %v4251, %v4271
    %v4274 = vsub.f32 %v4254, %v4272
    %v4275 = vsub.f32 %v4258, %v4272
    %v4276 = vsub.f32 %v4262, %v4272
    %v4277 = vsub.f32 %v4266, %v4272
    %v4278 = vand.u32 2147483647, %v4274
    %v4279 = vand.u32 2147483647, %v4275
    %v4280 = vand.u32 2147483647, %v4276
    %v4281 = vand.u32 2147483647, %v4277
    %v4282 = vsub.f32 1.0, %v4278
    %v4283 = vsub.f32 1.0, %v4279
    %v4284 = vsub.f32 1.0, %v4280
    %v4285 = vsub.f32 1.0, %v4281
    %v4286 = vmax.f32 %v4282, 0.0
    %v4287 = vmax.f32 %v4283, 0.0
    %v4288 = vmax.f32 %v4284, 0.0
    %v4289 = vmax.f32 %v4285, 0.0
    %v4290 = vmul.f32 %v4247, %v4286
    %v4291 = vmul.f32 %v4248, %v4287
    %v4292 = vmul.f32 %v4249, %v4288
    %v4293 = vmul.f32 %v4250, %v4289
    %4294 = vset.pattern.permute.xlu0 108
    %4295 = vperm.xlu0 %4294, %v3372
    %v4296 = vpop.permute.xlu0 %4295
    %4298 = vset.pattern.permute.xlu0 108
    %4299 = vperm.xlu0 %4298, %v3373
    %v4300 = vpop.permute.xlu0 %4299
    %4302 = vset.pattern.permute.xlu0 108
    %4303 = vperm.xlu0 %4302, %v3374
    %v4304 = vpop.permute.xlu0 %4303
    %4306 = vset.pattern.permute.xlu0 108
    %4307 = vperm.xlu0 %4306, %v3375
    %v4308 = vpop.permute.xlu0 %4307
    %v4310 = vmul.f32 %v4290, %v4296
    %v4311 = vmul.f32 %v4291, %v4300
    %v4312 = vmul.f32 %v4292, %v4304
    %v4313 = vmul.f32 %v4293, %v4308
    %v4314 = vadd.f32 %v4208, %v4310
    %v4315 = vadd.f32 %v4209, %v4311
    %v4316 = vadd.f32 %v4210, %v4312
    %v4317 = vadd.f32 %v4211, %v4313
    %4318 = vset.pattern.permute.xlu0 9
    %4319 = vperm.xlu0 %4318, %v3388
    %v4320 = vpop.permute.xlu0 %4319
    %4322 = vset.pattern.permute.xlu0 9
    %4323 = vperm.xlu0 %4322, %v3389
    %v4324 = vpop.permute.xlu0 %4323
    %4326 = vset.pattern.permute.xlu0 9
    %4327 = vperm.xlu0 %4326, %v3390
    %v4328 = vpop.permute.xlu0 %4327
    %4330 = vset.pattern.permute.xlu0 9
    %4331 = vperm.xlu0 %4330, %v3391
    %v4332 = vpop.permute.xlu0 %4331
    %v4334 = vsub.f32 %v4320, %v4233
    %v4335 = vsub.f32 %v4324, %v4233
    %v4336 = vsub.f32 %v4328, %v4233
    %v4337 = vsub.f32 %v4332, %v4233
    %v4338 = vand.u32 2147483647, %v4334
    %v4339 = vand.u32 2147483647, %v4335
    %v4340 = vand.u32 2147483647, %v4336
    %v4341 = vand.u32 2147483647, %v4337
    %v4342 = vsub.f32 1.0, %v4338
    %v4343 = vsub.f32 1.0, %v4339
    %v4344 = vsub.f32 1.0, %v4340
    %v4345 = vsub.f32 1.0, %v4341
    %v4346 = vmax.f32 %v4342, 0.0
    %v4347 = vmax.f32 %v4343, 0.0
    %v4348 = vmax.f32 %v4344, 0.0
    %v4349 = vmax.f32 %v4345, 0.0
    %4350 = vset.pattern.permute.xlu0 9
    %4351 = vperm.xlu0 %4350, %v3404
    %v4352 = vpop.permute.xlu0 %4351
    %4354 = vset.pattern.permute.xlu0 9
    %4355 = vperm.xlu0 %4354, %v3405
    %v4356 = vpop.permute.xlu0 %4355
    %4358 = vset.pattern.permute.xlu0 9
    %4359 = vperm.xlu0 %4358, %v3406
    %v4360 = vpop.permute.xlu0 %4359
    %4362 = vset.pattern.permute.xlu0 9
    %4363 = vperm.xlu0 %4362, %v3407
    %v4364 = vpop.permute.xlu0 %4363
    %v4366 = vsub.f32 %v4352, %v4272
    %v4367 = vsub.f32 %v4356, %v4272
    %v4368 = vsub.f32 %v4360, %v4272
    %v4369 = vsub.f32 %v4364, %v4272
    %v4370 = vand.u32 2147483647, %v4366
    %v4371 = vand.u32 2147483647, %v4367
    %v4372 = vand.u32 2147483647, %v4368
    %v4373 = vand.u32 2147483647, %v4369
    %v4374 = vsub.f32 1.0, %v4370
    %v4375 = vsub.f32 1.0, %v4371
    %v4376 = vsub.f32 1.0, %v4372
    %v4377 = vsub.f32 1.0, %v4373
    %v4378 = vmax.f32 %v4374, 0.0
    %v4379 = vmax.f32 %v4375, 0.0
    %v4380 = vmax.f32 %v4376, 0.0
    %v4381 = vmax.f32 %v4377, 0.0
    %v4382 = vmul.f32 %v4346, %v4378
    %v4383 = vmul.f32 %v4347, %v4379
    %v4384 = vmul.f32 %v4348, %v4380
    %v4385 = vmul.f32 %v4349, %v4381
    %4386 = vset.pattern.permute.xlu0 109
    %4387 = vperm.xlu0 %4386, %v3372
    %v4388 = vpop.permute.xlu0 %4387
    %4390 = vset.pattern.permute.xlu0 109
    %4391 = vperm.xlu0 %4390, %v3373
    %v4392 = vpop.permute.xlu0 %4391
    %4394 = vset.pattern.permute.xlu0 109
    %4395 = vperm.xlu0 %4394, %v3374
    %v4396 = vpop.permute.xlu0 %4395
    %4398 = vset.pattern.permute.xlu0 109
    %4399 = vperm.xlu0 %4398, %v3375
    %v4400 = vpop.permute.xlu0 %4399
    %v4402 = vmul.f32 %v4382, %v4388
    %v4403 = vmul.f32 %v4383, %v4392
    %v4404 = vmul.f32 %v4384, %v4396
    %v4405 = vmul.f32 %v4385, %v4400
    %v4406 = vadd.f32 %v4314, %v4402
    %v4407 = vadd.f32 %v4315, %v4403
    %v4408 = vadd.f32 %v4316, %v4404
    %v4409 = vadd.f32 %v4317, %v4405
    %v4410 = vld [vmem:[#allocation3] sm:$0xff]
    %v4411 = vld [vmem:[#allocation3 + $0x8] sm:$0xff]
    %v4412 = vld [vmem:[#allocation3 + $0x10] sm:$0xff]
    %v4413 = vld [vmem:[#allocation3 + $0x18] sm:$0xff]
    %v4414 = vld [vmem:[#allocation3 + $0x20] sm:$0xff]
    %v4415 = vld [vmem:[#allocation3 + $0x28] sm:$0xff]
    %v4416 = vld [vmem:[#allocation3 + $0x30] sm:$0xff]
    %v4417 = vld [vmem:[#allocation3 + $0x38] sm:$0xff]
    %v4418 = vld [vmem:[#allocation3 + $0x40] sm:$0xff]
    %v4419 = vld [vmem:[#allocation3 + $0x48] sm:$0xff]
    %v4420 = vld [vmem:[#allocation3 + $0x50] sm:$0xff]
    %v4421 = vld [vmem:[#allocation3 + $0x58] sm:$0xff]
    %v4422 = vld [vmem:[#allocation3 + $0x60] sm:$0xff]
    %v4423 = vld [vmem:[#allocation3 + $0x68] sm:$0xff]
    %v4424 = vld [vmem:[#allocation3 + $0x70] sm:$0xff]
    %v4425 = vld [vmem:[#allocation3 + $0x78] sm:$0xff]
    %4442 = vrot.lane.b32.xlu0 %v4410, 112
    %v4443 = vpop.permute.xlu0 %4442
    %4444 = vrot.lane.b32.xlu0 %v4411, 112
    %v4445 = vpop.permute.xlu0 %4444
    %4446 = vrot.lane.b32.xlu0 %v4412, 112
    %v4447 = vpop.permute.xlu0 %4446
    %4448 = vrot.lane.b32.xlu0 %v4413, 112
    %v4449 = vpop.permute.xlu0 %4448
    %4450 = vrot.lane.b32.xlu0 %v4414, 112
    %v4451 = vpop.permute.xlu0 %4450
    %4452 = vrot.lane.b32.xlu0 %v4415, 112
    %v4453 = vpop.permute.xlu0 %4452
    %4454 = vrot.lane.b32.xlu0 %v4416, 112
    %v4455 = vpop.permute.xlu0 %4454
    %4456 = vrot.lane.b32.xlu0 %v4417, 112
    %v4457 = vpop.permute.xlu0 %4456
    %4458 = vrot.lane.b32.xlu0 %v4418, 112
    %v4459 = vpop.permute.xlu0 %4458
    %4460 = vrot.lane.b32.xlu0 %v4419, 112
    %v4461 = vpop.permute.xlu0 %4460
    %4462 = vrot.lane.b32.xlu0 %v4420, 112
    %v4463 = vpop.permute.xlu0 %4462
    %4464 = vrot.lane.b32.xlu0 %v4421, 112
    %v4465 = vpop.permute.xlu0 %4464
    %4466 = vrot.lane.b32.xlu0 %v4422, 112
    %v4467 = vpop.permute.xlu0 %4466
    %4468 = vrot.lane.b32.xlu0 %v4423, 112
    %v4469 = vpop.permute.xlu0 %4468
    %4470 = vrot.lane.b32.xlu0 %v4424, 112
    %v4471 = vpop.permute.xlu0 %4470
    %4472 = vrot.lane.b32.xlu0 %v4425, 112
    %v4473 = vpop.permute.xlu0 %4472
    %4490 = vmatprep.subr.mxu0 0.0
    %4491 = vmatpush1.msra.mxu0 %v4443
    %4492 = vmatprep.subr.mxu0 0.0
    %4493 = vmatpush1.msra.mxu0 %v4445
    %4494 = vmatprep.subr.mxu0 0.0
    %4495 = vmatpush1.msra.mxu0 %v4447
    %4496 = vmatprep.subr.mxu0 0.0
    %4497 = vmatpush1.msra.mxu0 %v4449
    %4498 = vmatprep.subr.mxu0 0.0
    %4499 = vmatpush1.msra.mxu0 %v4451
    %4500 = vmatprep.subr.mxu0 0.0
    %4501 = vmatpush1.msra.mxu0 %v4453
    %4502 = vmatprep.subr.mxu0 0.0
    %4503 = vmatpush1.msra.mxu0 %v4455
    %4504 = vmatprep.subr.mxu0 0.0
    %4505 = vmatpush1.msra.mxu0 %v4457
    %4506 = vmatprep.subr.mxu0 0.0
    %4507 = vmatpush1.msra.mxu0 %v4459
    %4508 = vmatprep.subr.mxu0 0.0
    %4509 = vmatpush1.msra.mxu0 %v4461
    %4510 = vmatprep.subr.mxu0 0.0
    %4511 = vmatpush1.msra.mxu0 %v4463
    %4512 = vmatprep.subr.mxu0 0.0
    %4513 = vmatpush1.msra.mxu0 %v4465
    %4514 = vmatprep.subr.mxu0 0.0
    %4515 = vmatpush1.msra.mxu0 %v4467
    %4516 = vmatprep.subr.mxu0 0.0
    %4517 = vmatpush1.msra.mxu0 %v4469
    %4518 = vmatprep.subr.mxu0 0.0
    %4519 = vmatpush1.msra.mxu0 %v4471
    %4520 = vmatprep.subr.mxu0 0.0
    %4521 = vmatpush1.msra.mxu0 %v4473
    %4522 = vmatprep.subr.mxu0 0.0
    %4523 = vmatpush1.msra.mxu0 0.0
    %4524 = vmatprep.subr.mxu0 0.0
    %4525 = vmatpush1.msra.mxu0 0.0
    %4526 = vmatprep.subr.mxu0 0.0
    %4527 = vmatpush1.msra.mxu0 0.0
    %4528 = vmatprep.subr.mxu0 0.0
    %4529 = vmatpush1.msra.mxu0 0.0
    %4530 = vmatprep.subr.mxu0 0.0
    %4531 = vmatpush1.msra.mxu0 0.0
    %4532 = vmatprep.subr.mxu0 0.0
    %4533 = vmatpush1.msra.mxu0 0.0
    %4534 = vmatprep.subr.mxu0 0.0
    %4535 = vmatpush1.msra.mxu0 0.0
    %4536 = vmatprep.subr.mxu0 0.0
    %4537 = vmatpush1.msra.mxu0 0.0
    %4538 = vmatprep.subr.mxu0 0.0
    %4539 = vmatpush1.msra.mxu0 0.0
    %4540 = vmatprep.subr.mxu0 0.0
    %4541 = vmatpush1.msra.mxu0 0.0
    %4542 = vmatprep.subr.mxu0 0.0
    %4543 = vmatpush1.msra.mxu0 0.0
    %4544 = vmatprep.subr.mxu0 0.0
    %4545 = vmatpush1.msra.mxu0 0.0
    %4546 = vmatprep.subr.mxu0 0.0
    %4547 = vmatpush1.msra.mxu0 0.0
    %4548 = vmatprep.subr.mxu0 0.0
    %4549 = vmatpush1.msra.mxu0 0.0
    %4550 = vmatprep.subr.mxu0 0.0
    %4551 = vmatpush1.msra.mxu0 0.0
    %4552 = vmatprep.subr.mxu0 0.0
    %4553 = vmatpush1.msra.mxu0 0.0
    %4554 = vmatprep.mubr.f32.mxu0 0.0
    %4555 = vmatmul.mubr.f32.gmra.mrb[0].mxu0 %v4406
    %v4556 = vpop.f32.mrb[0].mxu0
    %v4557 = vadd.f32 0.0, %v4556
    %v4558 = vpop.f32.mrb[0].mxu0
    %4559 = vmatprep.mubr.f32.mxu0 0.0
    %4560 = vmatmul.mubr.f32.gmra.mrb[0].mxu0 %v4407
    %v4561 = vpop.f32.mrb[0].mxu0
    %v4562 = vadd.f32 0.0, %v4561
    %v4563 = vpop.f32.mrb[0].mxu0
    %4564 = vdwg.mxu0
    %4567 = vrot.lane.b32.xlu0 %v4557, 16
    %v4568 = vpop.permute.xlu0 %4567
    %4569 = vrot.lane.b32.xlu0 %v4562, 16
    %v4570 = vpop.permute.xlu0 %4569
    %vm4573 = vcmask 195712
    %4574 = vst.msk [vmem:[#allocation2] sm:$0xff] %vm4573, %v4568
    %4575 = vst.msk [vmem:[#allocation2 + $0x8] sm:$0xff] %vm4573, %v4570
    %v4576 = vld [vmem:[#allocation3 + $0x80] sm:$0xff]
    %v4577 = vld [vmem:[#allocation3 + $0x88] sm:$0xff]
    %v4578 = vld [vmem:[#allocation3 + $0x90] sm:$0xff]
    %v4579 = vld [vmem:[#allocation3 + $0x98] sm:$0xff]
    %v4580 = vld [vmem:[#allocation3 + $0xa0] sm:$0xff]
    %v4581 = vld [vmem:[#allocation3 + $0xa8] sm:$0xff]
    %v4582 = vld [vmem:[#allocation3 + $0xb0] sm:$0xff]
    %v4583 = vld [vmem:[#allocation3 + $0xb8] sm:$0xff]
    %v4584 = vld [vmem:[#allocation3 + $0xc0] sm:$0xff]
    %v4585 = vld [vmem:[#allocation3 + $0xc8] sm:$0xff]
    %v4586 = vld [vmem:[#allocation3 + $0xd0] sm:$0xff]
    %v4587 = vld [vmem:[#allocation3 + $0xd8] sm:$0xff]
    %v4588 = vld [vmem:[#allocation3 + $0xe0] sm:$0xff]
    %v4589 = vld [vmem:[#allocation3 + $0xe8] sm:$0xff]
    %v4590 = vld [vmem:[#allocation3 + $0xf0] sm:$0xff]
    %v4591 = vld [vmem:[#allocation3 + $0xf8] sm:$0xff]
    %4608 = vrot.lane.b32.xlu0 %v4576, 112
    %v4609 = vpop.permute.xlu0 %4608
    %4610 = vrot.lane.b32.xlu0 %v4577, 112
    %v4611 = vpop.permute.xlu0 %4610
    %4612 = vrot.lane.b32.xlu0 %v4578, 112
    %v4613 = vpop.permute.xlu0 %4612
    %4614 = vrot.lane.b32.xlu0 %v4579, 112
    %v4615 = vpop.permute.xlu0 %4614
    %4616 = vrot.lane.b32.xlu0 %v4580, 112
    %v4617 = vpop.permute.xlu0 %4616
    %4618 = vrot.lane.b32.xlu0 %v4581, 112
    %v4619 = vpop.permute.xlu0 %4618
    %4620 = vrot.lane.b32.xlu0 %v4582, 112
    %v4621 = vpop.permute.xlu0 %4620
    %4622 = vrot.lane.b32.xlu0 %v4583, 112
    %v4623 = vpop.permute.xlu0 %4622
    %4624 = vrot.lane.b32.xlu0 %v4584, 112
    %v4625 = vpop.permute.xlu0 %4624
    %4626 = vrot.lane.b32.xlu0 %v4585, 112
    %v4627 = vpop.permute.xlu0 %4626
    %4628 = vrot.lane.b32.xlu0 %v4586, 112
    %v4629 = vpop.permute.xlu0 %4628
    %4630 = vrot.lane.b32.xlu0 %v4587, 112
    %v4631 = vpop.permute.xlu0 %4630
    %4632 = vrot.lane.b32.xlu0 %v4588, 112
    %v4633 = vpop.permute.xlu0 %4632
    %4634 = vrot.lane.b32.xlu0 %v4589, 112
    %v4635 = vpop.permute.xlu0 %4634
    %4636 = vrot.lane.b32.xlu0 %v4590, 112
    %v4637 = vpop.permute.xlu0 %4636
    %4638 = vrot.lane.b32.xlu0 %v4591, 112
    %v4639 = vpop.permute.xlu0 %4638
    %4656 = vmatprep.subr.mxu0 0.0
    %4657 = vmatpush1.msra.mxu0 %v4609
    %4658 = vmatprep.subr.mxu0 0.0
    %4659 = vmatpush1.msra.mxu0 %v4611
    %4660 = vmatprep.subr.mxu0 0.0
    %4661 = vmatpush1.msra.mxu0 %v4613
    %4662 = vmatprep.subr.mxu0 0.0
    %4663 = vmatpush1.msra.mxu0 %v4615
    %4664 = vmatprep.subr.mxu0 0.0
    %4665 = vmatpush1.msra.mxu0 %v4617
    %4666 = vmatprep.subr.mxu0 0.0
    %4667 = vmatpush1.msra.mxu0 %v4619
    %4668 = vmatprep.subr.mxu0 0.0
    %4669 = vmatpush1.msra.mxu0 %v4621
    %4670 = vmatprep.subr.mxu0 0.0
    %4671 = vmatpush1.msra.mxu0 %v4623
    %4672 = vmatprep.subr.mxu0 0.0
    %4673 = vmatpush1.msra.mxu0 %v4625
    %4674 = vmatprep.subr.mxu0 0.0
    %4675 = vmatpush1.msra.mxu0 %v4627
    %4676 = vmatprep.subr.mxu0 0.0
    %4677 = vmatpush1.msra.mxu0 %v4629
    %4678 = vmatprep.subr.mxu0 0.0
    %4679 = vmatpush1.msra.mxu0 %v4631
    %4680 = vmatprep.subr.mxu0 0.0
    %4681 = vmatpush1.msra.mxu0 %v4633
    %4682 = vmatprep.subr.mxu0 0.0
    %4683 = vmatpush1.msra.mxu0 %v4635
    %4684 = vmatprep.subr.mxu0 0.0
    %4685 = vmatpush1.msra.mxu0 %v4637
    %4686 = vmatprep.subr.mxu0 0.0
    %4687 = vmatpush1.msra.mxu0 %v4639
    %4688 = vmatprep.subr.mxu0 0.0
    %4689 = vmatpush1.msra.mxu0 0.0
    %4690 = vmatprep.subr.mxu0 0.0
    %4691 = vmatpush1.msra.mxu0 0.0
    %4692 = vmatprep.subr.mxu0 0.0
    %4693 = vmatpush1.msra.mxu0 0.0
    %4694 = vmatprep.subr.mxu0 0.0
    %4695 = vmatpush1.msra.mxu0 0.0
    %4696 = vmatprep.subr.mxu0 0.0
    %4697 = vmatpush1.msra.mxu0 0.0
    %4698 = vmatprep.subr.mxu0 0.0
    %4699 = vmatpush1.msra.mxu0 0.0
    %4700 = vmatprep.subr.mxu0 0.0
    %4701 = vmatpush1.msra.mxu0 0.0
    %4702 = vmatprep.subr.mxu0 0.0
    %4703 = vmatpush1.msra.mxu0 0.0
    %4704 = vmatprep.subr.mxu0 0.0
    %4705 = vmatpush1.msra.mxu0 0.0
    %4706 = vmatprep.subr.mxu0 0.0
    %4707 = vmatpush1.msra.mxu0 0.0
    %4708 = vmatprep.subr.mxu0 0.0
    %4709 = vmatpush1.msra.mxu0 0.0
    %4710 = vmatprep.subr.mxu0 0.0
    %4711 = vmatpush1.msra.mxu0 0.0
    %4712 = vmatprep.subr.mxu0 0.0
    %4713 = vmatpush1.msra.mxu0 0.0
    %4714 = vmatprep.subr.mxu0 0.0
    %4715 = vmatpush1.msra.mxu0 0.0
    %4716 = vmatprep.subr.mxu0 0.0
    %4717 = vmatpush1.msra.mxu0 0.0
    %4718 = vmatprep.subr.mxu0 0.0
    %4719 = vmatpush1.msra.mxu0 0.0
    %4720 = vmatprep.mubr.f32.mxu0 0.0
    %4721 = vmatmul.mubr.f32.gmra.mrb[0].mxu0 %v4408
    %v4722 = vpop.f32.mrb[0].mxu0
    %v4723 = vadd.f32 0.0, %v4722
    %v4724 = vpop.f32.mrb[0].mxu0
    %4725 = vmatprep.mubr.f32.mxu0 0.0
    %4726 = vmatmul.mubr.f32.gmra.mrb[0].mxu0 %v4409
    %v4727 = vpop.f32.mrb[0].mxu0
    %v4728 = vadd.f32 0.0, %v4727
    %v4729 = vpop.f32.mrb[0].mxu0
    %4730 = vdwg.mxu0
    %4733 = vrot.lane.b32.xlu0 %v4723, 16
    %v4734 = vpop.permute.xlu0 %4733
    %4735 = vrot.lane.b32.xlu0 %v4728, 16
    %v4736 = vpop.permute.xlu0 %4735
    %4739 = vst.msk [vmem:[#allocation2 + $0x10] sm:$0xff] %vm4573, %v4734
    %4740 = vst.msk [vmem:[#allocation2 + $0x18] sm:$0xff] %vm4573, %v4736
    %vm4741 = vcmask 982896
    %v4742 = vsel %vm4741, %v550, -inf
    %4743 = vmax.xlane.f32.xlu0 %v4742
    %v4744 = vpop.xlane.xlu0 %4743
    %v4745 = vsel %vm4741, %v555, -inf
    %4746 = vmax.xlane.f32.xlu0 %v4745
    %v4747 = vpop.xlane.xlu0 %4746
    %v4748 = vsel %vm4741, %v560, -inf
    %4749 = vmax.xlane.f32.xlu0 %v4748
    %v4750 = vpop.xlane.xlu0 %4749
    %v4751 = vsel %vm4741, %v565, -inf
    %4752 = vmax.xlane.f32.xlu0 %v4751
    %v4753 = vpop.xlane.xlu0 %4752
    %v4754 = vsub.f32 %v550, %v4744
    %v4755 = vsub.f32 %v555, %v4747
    %v4756 = vsub.f32 %v560, %v4750
    %v4757 = vsub.f32 %v565, %v4753
    %v4758 = vmul.f32 %v4754, 1.442695
    %v4759 = vpow.pop %v4758
    %v4760 = vmul.f32 %v4755, 1.442695
    %v4761 = vpow.pop %v4760
    %v4762 = vmul.f32 %v4756, 1.442695
    %v4763 = vpow.pop %v4762
    %v4764 = vmul.f32 %v4757, 1.442695
    %v4765 = vpow.pop %v4764
    %4770 = vrot.lane.b32.xlu0 %v4759, 18
    %v4771 = vpop.permute.xlu0 %4770
    %4772 = vrot.lane.b32.xlu0 %v4761, 18
    %v4773 = vpop.permute.xlu0 %4772
    %4774 = vrot.lane.b32.xlu0 %v4763, 18
    %v4775 = vpop.permute.xlu0 %4774
    %4776 = vrot.lane.b32.xlu0 %v4765, 18
    %v4777 = vpop.permute.xlu0 %4776
    %v4782 = vsel %vm647, %v4771, 0.0
    %4783 = vadd.xlane.f32.xlu0 %v4782
    %v4784 = vpop.xlane.xlu0 %4783
    %v4785 = vsel %vm647, %v4773, 0.0
    %4786 = vadd.xlane.f32.xlu0 %v4785
    %v4787 = vpop.xlane.xlu0 %4786
    %v4788 = vsel %vm647, %v4775, 0.0
    %4789 = vadd.xlane.f32.xlu0 %v4788
    %v4790 = vpop.xlane.xlu0 %4789
    %v4791 = vsel %vm647, %v4777, 0.0
    %4792 = vadd.xlane.f32.xlu0 %v4791
    %v4793 = vpop.xlane.xlu0 %4792
    %v4794 = vrcp.pop %v4784
    %v4795 = vrcp.pop %v4787
    %v4796 = vrcp.pop %v4790
    %v4797 = vrcp.pop %v4793
    %v4798 = vmul.f32 %v4759, %v4794
    %v4799 = vmul.f32 %v4761, %v4795
    %v4800 = vmul.f32 %v4763, %v4796
    %v4801 = vmul.f32 %v4765, %v4797
    %4802 = vrot.lane.b32.xlu0 %v550, 68
    %v4803 = vpop.permute.xlu0 %4802
    %4804 = vrot.lane.b32.xlu0 %v555, 68
    %v4805 = vpop.permute.xlu0 %4804
    %4806 = vrot.lane.b32.xlu0 %v560, 68
    %v4807 = vpop.permute.xlu0 %4806
    %4808 = vrot.lane.b32.xlu0 %v565, 68
    %v4809 = vpop.permute.xlu0 %4808
    %v4814 = vadd.f32 %v583, %v4803
    %v4815 = vadd.f32 %v584, %v4805
    %v4816 = vadd.f32 %v585, %v4807
    %v4817 = vadd.f32 %v586, %v4809
    %4818 = vrot.lane.b32.xlu0 %v550, 58
    %v4819 = vpop.permute.xlu0 %4818
    %4820 = vrot.lane.b32.xlu0 %v555, 58
    %v4821 = vpop.permute.xlu0 %4820
    %4822 = vrot.lane.b32.xlu0 %v560, 58
    %v4823 = vpop.permute.xlu0 %4822
    %4824 = vrot.lane.b32.xlu0 %v565, 58
    %v4825 = vpop.permute.xlu0 %4824
    %v4830 = vadd.f32 %v602, %v4819
    %v4831 = vadd.f32 %v603, %v4821
    %v4832 = vadd.f32 %v604, %v4823
    %v4833 = vadd.f32 %v605, %v4825
    %v4834 = vld [vmem:[%s13] sm:$0x1]
    %4836 = vset.pattern.permute.xlu0 0
    %4837 = vperm.xlu0 %4836, %v4814
    %v4838 = vpop.permute.xlu0 %4837
    %4841 = vset.pattern.permute.xlu0 0
    %4842 = vperm.xlu0 %4841, %v4815
    %v4843 = vpop.permute.xlu0 %4842
    %4846 = vset.pattern.permute.xlu0 0
    %4847 = vperm.xlu0 %4846, %v4816
    %v4848 = vpop.permute.xlu0 %4847
    %4851 = vset.pattern.permute.xlu0 0
    %4852 = vperm.xlu0 %4851, %v4817
    %v4853 = vpop.permute.xlu0 %4852
    %v4856 = vlaneseq
    %v4857 = vshrl.u32 %v4856, 7
    %v4858 = vsub.s32 0, %v4857
    %v4859 = vrot.slane %v4834, %v4858
    %v4861 = vsub.f32 %v4838, %v4859
    %v4862 = vsub.f32 %v4843, %v4859
    %v4863 = vsub.f32 %v4848, %v4859
    %v4864 = vsub.f32 %v4853, %v4859
    %v4865 = vand.u32 2147483647, %v4861
    %v4866 = vand.u32 2147483647, %v4862
    %v4867 = vand.u32 2147483647, %v4863
    %v4868 = vand.u32 2147483647, %v4864
    %v4869 = vsub.f32 1.0, %v4865
    %v4870 = vsub.f32 1.0, %v4866
    %v4871 = vsub.f32 1.0, %v4867
    %v4872 = vsub.f32 1.0, %v4868
    %v4873 = vmax.f32 %v4869, 0.0
    %v4874 = vmax.f32 %v4870, 0.0
    %v4875 = vmax.f32 %v4871, 0.0
    %v4876 = vmax.f32 %v4872, 0.0
    %v4877 = vld [vmem:[%s14] sm:$0x1]
    %4879 = vset.pattern.permute.xlu0 0
    %4880 = vperm.xlu0 %4879, %v4830
    %v4881 = vpop.permute.xlu0 %4880
    %4884 = vset.pattern.permute.xlu0 0
    %4885 = vperm.xlu0 %4884, %v4831
    %v4886 = vpop.permute.xlu0 %4885
    %4889 = vset.pattern.permute.xlu0 0
    %4890 = vperm.xlu0 %4889, %v4832
    %v4891 = vpop.permute.xlu0 %4890
    %4894 = vset.pattern.permute.xlu0 0
    %4895 = vperm.xlu0 %4894, %v4833
    %v4896 = vpop.permute.xlu0 %4895
    %v4899 = vlaneseq
    %v4900 = vshrl.u32 %v4899, 7
    %v4901 = vsub.s32 0, %v4900
    %v4902 = vrot.slane %v4877, %v4901
    %v4904 = vsub.f32 %v4881, %v4902
    %v4905 = vsub.f32 %v4886, %v4902
    %v4906 = vsub.f32 %v4891, %v4902
    %v4907 = vsub.f32 %v4896, %v4902
    %v4908 = vand.u32 2147483647, %v4904
    %v4909 = vand.u32 2147483647, %v4905
    %v4910 = vand.u32 2147483647, %v4906
    %v4911 = vand.u32 2147483647, %v4907
    %v4912 = vsub.f32 1.0, %v4908
    %v4913 = vsub.f32 1.0, %v4909
    %v4914 = vsub.f32 1.0, %v4910
    %v4915 = vsub.f32 1.0, %v4911
    %v4916 = vmax.f32 %v4912, 0.0
    %v4917 = vmax.f32 %v4913, 0.0
    %v4918 = vmax.f32 %v4914, 0.0
    %v4919 = vmax.f32 %v4915, 0.0
    %v4920 = vmul.f32 %v4873, %v4916
    %v4921 = vmul.f32 %v4874, %v4917
    %v4922 = vmul.f32 %v4875, %v4918
    %v4923 = vmul.f32 %v4876, %v4919
    %4925 = vset.pattern.permute.xlu0 110
    %4926 = vperm.xlu0 %4925, %v4798
    %v4927 = vpop.permute.xlu0 %4926
    %4930 = vset.pattern.permute.xlu0 110
    %4931 = vperm.xlu0 %4930, %v4799
    %v4932 = vpop.permute.xlu0 %4931
    %4935 = vset.pattern.permute.xlu0 110
    %4936 = vperm.xlu0 %4935, %v4800
    %v4937 = vpop.permute.xlu0 %4936
    %4940 = vset.pattern.permute.xlu0 110
    %4941 = vperm.xlu0 %4940, %v4801
    %v4942 = vpop.permute.xlu0 %4941
    %v4944 = vmul.f32 %v4920, %v4927
    %v4945 = vmul.f32 %v4921, %v4932
    %v4946 = vmul.f32 %v4922, %v4937
    %v4947 = vmul.f32 %v4923, %v4942
    %v4948 = vadd.f32 %v4944, 0.0
    %v4949 = vadd.f32 %v4945, 0.0
    %v4950 = vadd.f32 %v4946, 0.0
    %v4951 = vadd.f32 %v4947, 0.0
    %4952 = vset.pattern.permute.xlu0 1
    %4953 = vperm.xlu0 %4952, %v4814
    %v4954 = vpop.permute.xlu0 %4953
    %4956 = vset.pattern.permute.xlu0 1
    %4957 = vperm.xlu0 %4956, %v4815
    %v4958 = vpop.permute.xlu0 %4957
    %4960 = vset.pattern.permute.xlu0 1
    %4961 = vperm.xlu0 %4960, %v4816
    %v4962 = vpop.permute.xlu0 %4961
    %4964 = vset.pattern.permute.xlu0 1
    %4965 = vperm.xlu0 %4964, %v4817
    %v4966 = vpop.permute.xlu0 %4965
    %v4968 = vsub.f32 %v4954, %v4859
    %v4969 = vsub.f32 %v4958, %v4859
    %v4970 = vsub.f32 %v4962, %v4859
    %v4971 = vsub.f32 %v4966, %v4859
    %v4972 = vand.u32 2147483647, %v4968
    %v4973 = vand.u32 2147483647, %v4969
    %v4974 = vand.u32 2147483647, %v4970
    %v4975 = vand.u32 2147483647, %v4971
    %v4976 = vsub.f32 1.0, %v4972
    %v4977 = vsub.f32 1.0, %v4973
    %v4978 = vsub.f32 1.0, %v4974
    %v4979 = vsub.f32 1.0, %v4975
    %v4980 = vmax.f32 %v4976, 0.0
    %v4981 = vmax.f32 %v4977, 0.0
    %v4982 = vmax.f32 %v4978, 0.0
    %v4983 = vmax.f32 %v4979, 0.0
    %4984 = vset.pattern.permute.xlu0 1
    %4985 = vperm.xlu0 %4984, %v4830
    %v4986 = vpop.permute.xlu0 %4985
    %4988 = vset.pattern.permute.xlu0 1
    %4989 = vperm.xlu0 %4988, %v4831
    %v4990 = vpop.permute.xlu0 %4989
    %4992 = vset.pattern.permute.xlu0 1
    %4993 = vperm.xlu0 %4992, %v4832
    %v4994 = vpop.permute.xlu0 %4993
    %4996 = vset.pattern.permute.xlu0 1
    %4997 = vperm.xlu0 %4996, %v4833
    %v4998 = vpop.permute.xlu0 %4997
    %v5000 = vsub.f32 %v4986, %v4902
    %v5001 = vsub.f32 %v4990, %v4902
    %v5002 = vsub.f32 %v4994, %v4902
    %v5003 = vsub.f32 %v4998, %v4902
    %v5004 = vand.u32 2147483647, %v5000
    %v5005 = vand.u32 2147483647, %v5001
    %v5006 = vand.u32 2147483647, %v5002
    %v5007 = vand.u32 2147483647, %v5003
    %v5008 = vsub.f32 1.0, %v5004
    %v5009 = vsub.f32 1.0, %v5005
    %v5010 = vsub.f32 1.0, %v5006
    %v5011 = vsub.f32 1.0, %v5007
    %v5012 = vmax.f32 %v5008, 0.0
    %v5013 = vmax.f32 %v5009, 0.0
    %v5014 = vmax.f32 %v5010, 0.0
    %v5015 = vmax.f32 %v5011, 0.0
    %v5016 = vmul.f32 %v4980, %v5012
    %v5017 = vmul.f32 %v4981, %v5013
    %v5018 = vmul.f32 %v4982, %v5014
    %v5019 = vmul.f32 %v4983, %v5015
    %5020 = vset.pattern.permute.xlu0 111
    %5021 = vperm.xlu0 %5020, %v4798
    %v5022 = vpop.permute.xlu0 %5021
    %5024 = vset.pattern.permute.xlu0 111
    %5025 = vperm.xlu0 %5024, %v4799
    %v5026 = vpop.permute.xlu0 %5025
    %5028 = vset.pattern.permute.xlu0 111
    %5029 = vperm.xlu0 %5028, %v4800
    %v5030 = vpop.permute.xlu0 %5029
    %5032 = vset.pattern.permute.xlu0 111
    %5033 = vperm.xlu0 %5032, %v4801
    %v5034 = vpop.permute.xlu0 %5033
    %v5036 = vmul.f32 %v5016, %v5022
    %v5037 = vmul.f32 %v5017, %v5026
    %v5038 = vmul.f32 %v5018, %v5030
    %v5039 = vmul.f32 %v5019, %v5034
    %v5040 = vadd.f32 %v4948, %v5036
    %v5041 = vadd.f32 %v4949, %v5037
    %v5042 = vadd.f32 %v4950, %v5038
    %v5043 = vadd.f32 %v4951, %v5039
    %v5044 = vld [vmem:[%s902] sm:$0x1]
    %5045 = vset.pattern.permute.xlu0 2
    %5046 = vperm.xlu0 %5045, %v4814
    %v5047 = vpop.permute.xlu0 %5046
    %5049 = vset.pattern.permute.xlu0 2
    %5050 = vperm.xlu0 %5049, %v4815
    %v5051 = vpop.permute.xlu0 %5050
    %5053 = vset.pattern.permute.xlu0 2
    %5054 = vperm.xlu0 %5053, %v4816
    %v5055 = vpop.permute.xlu0 %5054
    %5057 = vset.pattern.permute.xlu0 2
    %5058 = vperm.xlu0 %5057, %v4817
    %v5059 = vpop.permute.xlu0 %5058
    %v5062 = vlaneseq
    %v5063 = vshrl.u32 %v5062, 7
    %v5064 = vsub.s32 0, %v5063
    %v5065 = vrot.slane %v5044, %v5064
    %v5067 = vsub.f32 %v5047, %v5065
    %v5068 = vsub.f32 %v5051, %v5065
    %v5069 = vsub.f32 %v5055, %v5065
    %v5070 = vsub.f32 %v5059, %v5065
    %v5071 = vand.u32 2147483647, %v5067
    %v5072 = vand.u32 2147483647, %v5068
    %v5073 = vand.u32 2147483647, %v5069
    %v5074 = vand.u32 2147483647, %v5070
    %v5075 = vsub.f32 1.0, %v5071
    %v5076 = vsub.f32 1.0, %v5072
    %v5077 = vsub.f32 1.0, %v5073
    %v5078 = vsub.f32 1.0, %v5074
    %v5079 = vmax.f32 %v5075, 0.0
    %v5080 = vmax.f32 %v5076, 0.0
    %v5081 = vmax.f32 %v5077, 0.0
    %v5082 = vmax.f32 %v5078, 0.0
    %v5083 = vld [vmem:[%s942] sm:$0x1]
    %5084 = vset.pattern.permute.xlu0 2
    %5085 = vperm.xlu0 %5084, %v4830
    %v5086 = vpop.permute.xlu0 %5085
    %5088 = vset.pattern.permute.xlu0 2
    %5089 = vperm.xlu0 %5088, %v4831
    %v5090 = vpop.permute.xlu0 %5089
    %5092 = vset.pattern.permute.xlu0 2
    %5093 = vperm.xlu0 %5092, %v4832
    %v5094 = vpop.permute.xlu0 %5093
    %5096 = vset.pattern.permute.xlu0 2
    %5097 = vperm.xlu0 %5096, %v4833
    %v5098 = vpop.permute.xlu0 %5097
    %v5101 = vlaneseq
    %v5102 = vshrl.u32 %v5101, 7
    %v5103 = vsub.s32 0, %v5102
    %v5104 = vrot.slane %v5083, %v5103
    %v5106 = vsub.f32 %v5086, %v5104
    %v5107 = vsub.f32 %v5090, %v5104
    %v5108 = vsub.f32 %v5094, %v5104
    %v5109 = vsub.f32 %v5098, %v5104
    %v5110 = vand.u32 2147483647, %v5106
    %v5111 = vand.u32 2147483647, %v5107
    %v5112 = vand.u32 2147483647, %v5108
    %v5113 = vand.u32 2147483647, %v5109
    %v5114 = vsub.f32 1.0, %v5110
    %v5115 = vsub.f32 1.0, %v5111
    %v5116 = vsub.f32 1.0, %v5112
    %v5117 = vsub.f32 1.0, %v5113
    %v5118 = vmax.f32 %v5114, 0.0
    %v5119 = vmax.f32 %v5115, 0.0
    %v5120 = vmax.f32 %v5116, 0.0
    %v5121 = vmax.f32 %v5117, 0.0
    %v5122 = vmul.f32 %v5079, %v5118
    %v5123 = vmul.f32 %v5080, %v5119
    %v5124 = vmul.f32 %v5081, %v5120
    %v5125 = vmul.f32 %v5082, %v5121
    %5126 = vset.pattern.permute.xlu0 112
    %5127 = vperm.xlu0 %5126, %v4798
    %v5128 = vpop.permute.xlu0 %5127
    %5130 = vset.pattern.permute.xlu0 112
    %5131 = vperm.xlu0 %5130, %v4799
    %v5132 = vpop.permute.xlu0 %5131
    %5134 = vset.pattern.permute.xlu0 112
    %5135 = vperm.xlu0 %5134, %v4800
    %v5136 = vpop.permute.xlu0 %5135
    %5138 = vset.pattern.permute.xlu0 112
    %5139 = vperm.xlu0 %5138, %v4801
    %v5140 = vpop.permute.xlu0 %5139
    %v5142 = vmul.f32 %v5122, %v5128
    %v5143 = vmul.f32 %v5123, %v5132
    %v5144 = vmul.f32 %v5124, %v5136
    %v5145 = vmul.f32 %v5125, %v5140
    %v5146 = vadd.f32 %v5040, %v5142
    %v5147 = vadd.f32 %v5041, %v5143
    %v5148 = vadd.f32 %v5042, %v5144
    %v5149 = vadd.f32 %v5043, %v5145
    %5150 = vset.pattern.permute.xlu0 3
    %5151 = vperm.xlu0 %5150, %v4814
    %v5152 = vpop.permute.xlu0 %5151
    %5154 = vset.pattern.permute.xlu0 3
    %5155 = vperm.xlu0 %5154, %v4815
    %v5156 = vpop.permute.xlu0 %5155
    %5158 = vset.pattern.permute.xlu0 3
    %5159 = vperm.xlu0 %5158, %v4816
    %v5160 = vpop.permute.xlu0 %5159
    %5162 = vset.pattern.permute.xlu0 3
    %5163 = vperm.xlu0 %5162, %v4817
    %v5164 = vpop.permute.xlu0 %5163
    %v5166 = vsub.f32 %v5152, %v5065
    %v5167 = vsub.f32 %v5156, %v5065
    %v5168 = vsub.f32 %v5160, %v5065
    %v5169 = vsub.f32 %v5164, %v5065
    %v5170 = vand.u32 2147483647, %v5166
    %v5171 = vand.u32 2147483647, %v5167
    %v5172 = vand.u32 2147483647, %v5168
    %v5173 = vand.u32 2147483647, %v5169
    %v5174 = vsub.f32 1.0, %v5170
    %v5175 = vsub.f32 1.0, %v5171
    %v5176 = vsub.f32 1.0, %v5172
    %v5177 = vsub.f32 1.0, %v5173
    %v5178 = vmax.f32 %v5174, 0.0
    %v5179 = vmax.f32 %v5175, 0.0
    %v5180 = vmax.f32 %v5176, 0.0
    %v5181 = vmax.f32 %v5177, 0.0
    %5182 = vset.pattern.permute.xlu0 3
    %5183 = vperm.xlu0 %5182, %v4830
    %v5184 = vpop.permute.xlu0 %5183
    %5186 = vset.pattern.permute.xlu0 3
    %5187 = vperm.xlu0 %5186, %v4831
    %v5188 = vpop.permute.xlu0 %5187
    %5190 = vset.pattern.permute.xlu0 3
    %5191 = vperm.xlu0 %5190, %v4832
    %v5192 = vpop.permute.xlu0 %5191
    %5194 = vset.pattern.permute.xlu0 3
    %5195 = vperm.xlu0 %5194, %v4833
    %v5196 = vpop.permute.xlu0 %5195
    %v5198 = vsub.f32 %v5184, %v5104
    %v5199 = vsub.f32 %v5188, %v5104
    %v5200 = vsub.f32 %v5192, %v5104
    %v5201 = vsub.f32 %v5196, %v5104
    %v5202 = vand.u32 2147483647, %v5198
    %v5203 = vand.u32 2147483647, %v5199
    %v5204 = vand.u32 2147483647, %v5200
    %v5205 = vand.u32 2147483647, %v5201
    %v5206 = vsub.f32 1.0, %v5202
    %v5207 = vsub.f32 1.0, %v5203
    %v5208 = vsub.f32 1.0, %v5204
    %v5209 = vsub.f32 1.0, %v5205
    %v5210 = vmax.f32 %v5206, 0.0
    %v5211 = vmax.f32 %v5207, 0.0
    %v5212 = vmax.f32 %v5208, 0.0
    %v5213 = vmax.f32 %v5209, 0.0
    %v5214 = vmul.f32 %v5178, %v5210
    %v5215 = vmul.f32 %v5179, %v5211
    %v5216 = vmul.f32 %v5180, %v5212
    %v5217 = vmul.f32 %v5181, %v5213
    %5218 = vset.pattern.permute.xlu0 113
    %5219 = vperm.xlu0 %5218, %v4798
    %v5220 = vpop.permute.xlu0 %5219
    %5222 = vset.pattern.permute.xlu0 113
    %5223 = vperm.xlu0 %5222, %v4799
    %v5224 = vpop.permute.xlu0 %5223
    %5226 = vset.pattern.permute.xlu0 113
    %5227 = vperm.xlu0 %5226, %v4800
    %v5228 = vpop.permute.xlu0 %5227
    %5230 = vset.pattern.permute.xlu0 113
    %5231 = vperm.xlu0 %5230, %v4801
    %v5232 = vpop.permute.xlu0 %5231
    %v5234 = vmul.f32 %v5214, %v5220
    %v5235 = vmul.f32 %v5215, %v5224
    %v5236 = vmul.f32 %v5216, %v5228
    %v5237 = vmul.f32 %v5217, %v5232
    %v5238 = vadd.f32 %v5146, %v5234
    %v5239 = vadd.f32 %v5147, %v5235
    %v5240 = vadd.f32 %v5148, %v5236
    %v5241 = vadd.f32 %v5149, %v5237
    %v5242 = vld [vmem:[%s1102] sm:$0x1]
    %5243 = vset.pattern.permute.xlu0 4
    %5244 = vperm.xlu0 %5243, %v4814
    %v5245 = vpop.permute.xlu0 %5244
    %5247 = vset.pattern.permute.xlu0 4
    %5248 = vperm.xlu0 %5247, %v4815
    %v5249 = vpop.permute.xlu0 %5248
    %5251 = vset.pattern.permute.xlu0 4
    %5252 = vperm.xlu0 %5251, %v4816
    %v5253 = vpop.permute.xlu0 %5252
    %5255 = vset.pattern.permute.xlu0 4
    %5256 = vperm.xlu0 %5255, %v4817
    %v5257 = vpop.permute.xlu0 %5256
    %v5260 = vlaneseq
    %v5261 = vshrl.u32 %v5260, 7
    %v5262 = vsub.s32 0, %v5261
    %v5263 = vrot.slane %v5242, %v5262
    %v5265 = vsub.f32 %v5245, %v5263
    %v5266 = vsub.f32 %v5249, %v5263
    %v5267 = vsub.f32 %v5253, %v5263
    %v5268 = vsub.f32 %v5257, %v5263
    %v5269 = vand.u32 2147483647, %v5265
    %v5270 = vand.u32 2147483647, %v5266
    %v5271 = vand.u32 2147483647, %v5267
    %v5272 = vand.u32 2147483647, %v5268
    %v5273 = vsub.f32 1.0, %v5269
    %v5274 = vsub.f32 1.0, %v5270
    %v5275 = vsub.f32 1.0, %v5271
    %v5276 = vsub.f32 1.0, %v5272
    %v5277 = vmax.f32 %v5273, 0.0
    %v5278 = vmax.f32 %v5274, 0.0
    %v5279 = vmax.f32 %v5275, 0.0
    %v5280 = vmax.f32 %v5276, 0.0
    %v5281 = vld [vmem:[%s1142] sm:$0x1]
    %5282 = vset.pattern.permute.xlu0 4
    %5283 = vperm.xlu0 %5282, %v4830
    %v5284 = vpop.permute.xlu0 %5283
    %5286 = vset.pattern.permute.xlu0 4
    %5287 = vperm.xlu0 %5286, %v4831
    %v5288 = vpop.permute.xlu0 %5287
    %5290 = vset.pattern.permute.xlu0 4
    %5291 = vperm.xlu0 %5290, %v4832
    %v5292 = vpop.permute.xlu0 %5291
    %5294 = vset.pattern.permute.xlu0 4
    %5295 = vperm.xlu0 %5294, %v4833
    %v5296 = vpop.permute.xlu0 %5295
    %v5299 = vlaneseq
    %v5300 = vshrl.u32 %v5299, 7
    %v5301 = vsub.s32 0, %v5300
    %v5302 = vrot.slane %v5281, %v5301
    %v5304 = vsub.f32 %v5284, %v5302
    %v5305 = vsub.f32 %v5288, %v5302
    %v5306 = vsub.f32 %v5292, %v5302
    %v5307 = vsub.f32 %v5296, %v5302
    %v5308 = vand.u32 2147483647, %v5304
    %v5309 = vand.u32 2147483647, %v5305
    %v5310 = vand.u32 2147483647, %v5306
    %v5311 = vand.u32 2147483647, %v5307
    %v5312 = vsub.f32 1.0, %v5308
    %v5313 = vsub.f32 1.0, %v5309
    %v5314 = vsub.f32 1.0, %v5310
    %v5315 = vsub.f32 1.0, %v5311
    %v5316 = vmax.f32 %v5312, 0.0
    %v5317 = vmax.f32 %v5313, 0.0
    %v5318 = vmax.f32 %v5314, 0.0
    %v5319 = vmax.f32 %v5315, 0.0
    %v5320 = vmul.f32 %v5277, %v5316
    %v5321 = vmul.f32 %v5278, %v5317
    %v5322 = vmul.f32 %v5279, %v5318
    %v5323 = vmul.f32 %v5280, %v5319
    %5324 = vset.pattern.permute.xlu0 114
    %5325 = vperm.xlu0 %5324, %v4798
    %v5326 = vpop.permute.xlu0 %5325
    %5328 = vset.pattern.permute.xlu0 114
    %5329 = vperm.xlu0 %5328, %v4799
    %v5330 = vpop.permute.xlu0 %5329
    %5332 = vset.pattern.permute.xlu0 114
    %5333 = vperm.xlu0 %5332, %v4800
    %v5334 = vpop.permute.xlu0 %5333
    %5336 = vset.pattern.permute.xlu0 114
    %5337 = vperm.xlu0 %5336, %v4801
    %v5338 = vpop.permute.xlu0 %5337
    %v5340 = vmul.f32 %v5320, %v5326
    %v5341 = vmul.f32 %v5321, %v5330
    %v5342 = vmul.f32 %v5322, %v5334
    %v5343 = vmul.f32 %v5323, %v5338
    %v5344 = vadd.f32 %v5238, %v5340
    %v5345 = vadd.f32 %v5239, %v5341
    %v5346 = vadd.f32 %v5240, %v5342
    %v5347 = vadd.f32 %v5241, %v5343
    %5348 = vset.pattern.permute.xlu0 5
    %5349 = vperm.xlu0 %5348, %v4814
    %v5350 = vpop.permute.xlu0 %5349
    %5352 = vset.pattern.permute.xlu0 5
    %5353 = vperm.xlu0 %5352, %v4815
    %v5354 = vpop.permute.xlu0 %5353
    %5356 = vset.pattern.permute.xlu0 5
    %5357 = vperm.xlu0 %5356, %v4816
    %v5358 = vpop.permute.xlu0 %5357
    %5360 = vset.pattern.permute.xlu0 5
    %5361 = vperm.xlu0 %5360, %v4817
    %v5362 = vpop.permute.xlu0 %5361
    %v5364 = vsub.f32 %v5350, %v5263
    %v5365 = vsub.f32 %v5354, %v5263
    %v5366 = vsub.f32 %v5358, %v5263
    %v5367 = vsub.f32 %v5362, %v5263
    %v5368 = vand.u32 2147483647, %v5364
    %v5369 = vand.u32 2147483647, %v5365
    %v5370 = vand.u32 2147483647, %v5366
    %v5371 = vand.u32 2147483647, %v5367
    %v5372 = vsub.f32 1.0, %v5368
    %v5373 = vsub.f32 1.0, %v5369
    %v5374 = vsub.f32 1.0, %v5370
    %v5375 = vsub.f32 1.0, %v5371
    %v5376 = vmax.f32 %v5372, 0.0
    %v5377 = vmax.f32 %v5373, 0.0
    %v5378 = vmax.f32 %v5374, 0.0
    %v5379 = vmax.f32 %v5375, 0.0
    %5380 = vset.pattern.permute.xlu0 5
    %5381 = vperm.xlu0 %5380, %v4830
    %v5382 = vpop.permute.xlu0 %5381
    %5384 = vset.pattern.permute.xlu0 5
    %5385 = vperm.xlu0 %5384, %v4831
    %v5386 = vpop.permute.xlu0 %5385
    %5388 = vset.pattern.permute.xlu0 5
    %5389 = vperm.xlu0 %5388, %v4832
    %v5390 = vpop.permute.xlu0 %5389
    %5392 = vset.pattern.permute.xlu0 5
    %5393 = vperm.xlu0 %5392, %v4833
    %v5394 = vpop.permute.xlu0 %5393
    %v5396 = vsub.f32 %v5382, %v5302
    %v5397 = vsub.f32 %v5386, %v5302
    %v5398 = vsub.f32 %v5390, %v5302
    %v5399 = vsub.f32 %v5394, %v5302
    %v5400 = vand.u32 2147483647, %v5396
    %v5401 = vand.u32 2147483647, %v5397
    %v5402 = vand.u32 2147483647, %v5398
    %v5403 = vand.u32 2147483647, %v5399
    %v5404 = vsub.f32 1.0, %v5400
    %v5405 = vsub.f32 1.0, %v5401
    %v5406 = vsub.f32 1.0, %v5402
    %v5407 = vsub.f32 1.0, %v5403
    %v5408 = vmax.f32 %v5404, 0.0
    %v5409 = vmax.f32 %v5405, 0.0
    %v5410 = vmax.f32 %v5406, 0.0
    %v5411 = vmax.f32 %v5407, 0.0
    %v5412 = vmul.f32 %v5376, %v5408
    %v5413 = vmul.f32 %v5377, %v5409
    %v5414 = vmul.f32 %v5378, %v5410
    %v5415 = vmul.f32 %v5379, %v5411
    %5416 = vset.pattern.permute.xlu0 115
    %5417 = vperm.xlu0 %5416, %v4798
    %v5418 = vpop.permute.xlu0 %5417
    %5420 = vset.pattern.permute.xlu0 115
    %5421 = vperm.xlu0 %5420, %v4799
    %v5422 = vpop.permute.xlu0 %5421
    %5424 = vset.pattern.permute.xlu0 115
    %5425 = vperm.xlu0 %5424, %v4800
    %v5426 = vpop.permute.xlu0 %5425
    %5428 = vset.pattern.permute.xlu0 115
    %5429 = vperm.xlu0 %5428, %v4801
    %v5430 = vpop.permute.xlu0 %5429
    %v5432 = vmul.f32 %v5412, %v5418
    %v5433 = vmul.f32 %v5413, %v5422
    %v5434 = vmul.f32 %v5414, %v5426
    %v5435 = vmul.f32 %v5415, %v5430
    %v5436 = vadd.f32 %v5344, %v5432
    %v5437 = vadd.f32 %v5345, %v5433
    %v5438 = vadd.f32 %v5346, %v5434
    %v5439 = vadd.f32 %v5347, %v5435
    %v5440 = vld [vmem:[%s1302] sm:$0x1]
    %5441 = vset.pattern.permute.xlu0 6
    %5442 = vperm.xlu0 %5441, %v4814
    %v5443 = vpop.permute.xlu0 %5442
    %5445 = vset.pattern.permute.xlu0 6
    %5446 = vperm.xlu0 %5445, %v4815
    %v5447 = vpop.permute.xlu0 %5446
    %5449 = vset.pattern.permute.xlu0 6
    %5450 = vperm.xlu0 %5449, %v4816
    %v5451 = vpop.permute.xlu0 %5450
    %5453 = vset.pattern.permute.xlu0 6
    %5454 = vperm.xlu0 %5453, %v4817
    %v5455 = vpop.permute.xlu0 %5454
    %v5458 = vlaneseq
    %v5459 = vshrl.u32 %v5458, 7
    %v5460 = vsub.s32 0, %v5459
    %v5461 = vrot.slane %v5440, %v5460
    %v5463 = vsub.f32 %v5443, %v5461
    %v5464 = vsub.f32 %v5447, %v5461
    %v5465 = vsub.f32 %v5451, %v5461
    %v5466 = vsub.f32 %v5455, %v5461
    %v5467 = vand.u32 2147483647, %v5463
    %v5468 = vand.u32 2147483647, %v5464
    %v5469 = vand.u32 2147483647, %v5465
    %v5470 = vand.u32 2147483647, %v5466
    %v5471 = vsub.f32 1.0, %v5467
    %v5472 = vsub.f32 1.0, %v5468
    %v5473 = vsub.f32 1.0, %v5469
    %v5474 = vsub.f32 1.0, %v5470
    %v5475 = vmax.f32 %v5471, 0.0
    %v5476 = vmax.f32 %v5472, 0.0
    %v5477 = vmax.f32 %v5473, 0.0
    %v5478 = vmax.f32 %v5474, 0.0
    %v5479 = vld [vmem:[%s1342] sm:$0x1]
    %5480 = vset.pattern.permute.xlu0 6
    %5481 = vperm.xlu0 %5480, %v4830
    %v5482 = vpop.permute.xlu0 %5481
    %5484 = vset.pattern.permute.xlu0 6
    %5485 = vperm.xlu0 %5484, %v4831
    %v5486 = vpop.permute.xlu0 %5485
    %5488 = vset.pattern.permute.xlu0 6
    %5489 = vperm.xlu0 %5488, %v4832
    %v5490 = vpop.permute.xlu0 %5489
    %5492 = vset.pattern.permute.xlu0 6
    %5493 = vperm.xlu0 %5492, %v4833
    %v5494 = vpop.permute.xlu0 %5493
    %v5497 = vlaneseq
    %v5498 = vshrl.u32 %v5497, 7
    %v5499 = vsub.s32 0, %v5498
    %v5500 = vrot.slane %v5479, %v5499
    %v5502 = vsub.f32 %v5482, %v5500
    %v5503 = vsub.f32 %v5486, %v5500
    %v5504 = vsub.f32 %v5490, %v5500
    %v5505 = vsub.f32 %v5494, %v5500
    %v5506 = vand.u32 2147483647, %v5502
    %v5507 = vand.u32 2147483647, %v5503
    %v5508 = vand.u32 2147483647, %v5504
    %v5509 = vand.u32 2147483647, %v5505
    %v5510 = vsub.f32 1.0, %v5506
    %v5511 = vsub.f32 1.0, %v5507
    %v5512 = vsub.f32 1.0, %v5508
    %v5513 = vsub.f32 1.0, %v5509
    %v5514 = vmax.f32 %v5510, 0.0
    %v5515 = vmax.f32 %v5511, 0.0
    %v5516 = vmax.f32 %v5512, 0.0
    %v5517 = vmax.f32 %v5513, 0.0
    %v5518 = vmul.f32 %v5475, %v5514
    %v5519 = vmul.f32 %v5476, %v5515
    %v5520 = vmul.f32 %v5477, %v5516
    %v5521 = vmul.f32 %v5478, %v5517
    %5522 = vset.pattern.permute.xlu0 116
    %5523 = vperm.xlu0 %5522, %v4798
    %v5524 = vpop.permute.xlu0 %5523
    %5526 = vset.pattern.permute.xlu0 116
    %5527 = vperm.xlu0 %5526, %v4799
    %v5528 = vpop.permute.xlu0 %5527
    %5530 = vset.pattern.permute.xlu0 116
    %5531 = vperm.xlu0 %5530, %v4800
    %v5532 = vpop.permute.xlu0 %5531
    %5534 = vset.pattern.permute.xlu0 116
    %5535 = vperm.xlu0 %5534, %v4801
    %v5536 = vpop.permute.xlu0 %5535
    %v5538 = vmul.f32 %v5518, %v5524
    %v5539 = vmul.f32 %v5519, %v5528
    %v5540 = vmul.f32 %v5520, %v5532
    %v5541 = vmul.f32 %v5521, %v5536
    %v5542 = vadd.f32 %v5436, %v5538
    %v5543 = vadd.f32 %v5437, %v5539
    %v5544 = vadd.f32 %v5438, %v5540
    %v5545 = vadd.f32 %v5439, %v5541
    %5546 = vset.pattern.permute.xlu0 7
    %5547 = vperm.xlu0 %5546, %v4814
    %v5548 = vpop.permute.xlu0 %5547
    %5550 = vset.pattern.permute.xlu0 7
    %5551 = vperm.xlu0 %5550, %v4815
    %v5552 = vpop.permute.xlu0 %5551
    %5554 = vset.pattern.permute.xlu0 7
    %5555 = vperm.xlu0 %5554, %v4816
    %v5556 = vpop.permute.xlu0 %5555
    %5558 = vset.pattern.permute.xlu0 7
    %5559 = vperm.xlu0 %5558, %v4817
    %v5560 = vpop.permute.xlu0 %5559
    %v5562 = vsub.f32 %v5548, %v5461
    %v5563 = vsub.f32 %v5552, %v5461
    %v5564 = vsub.f32 %v5556, %v5461
    %v5565 = vsub.f32 %v5560, %v5461
    %v5566 = vand.u32 2147483647, %v5562
    %v5567 = vand.u32 2147483647, %v5563
    %v5568 = vand.u32 2147483647, %v5564
    %v5569 = vand.u32 2147483647, %v5565
    %v5570 = vsub.f32 1.0, %v5566
    %v5571 = vsub.f32 1.0, %v5567
    %v5572 = vsub.f32 1.0, %v5568
    %v5573 = vsub.f32 1.0, %v5569
    %v5574 = vmax.f32 %v5570, 0.0
    %v5575 = vmax.f32 %v5571, 0.0
    %v5576 = vmax.f32 %v5572, 0.0
    %v5577 = vmax.f32 %v5573, 0.0
    %5578 = vset.pattern.permute.xlu0 7
    %5579 = vperm.xlu0 %5578, %v4830
    %v5580 = vpop.permute.xlu0 %5579
    %5582 = vset.pattern.permute.xlu0 7
    %5583 = vperm.xlu0 %5582, %v4831
    %v5584 = vpop.permute.xlu0 %5583
    %5586 = vset.pattern.permute.xlu0 7
    %5587 = vperm.xlu0 %5586, %v4832
    %v5588 = vpop.permute.xlu0 %5587
    %5590 = vset.pattern.permute.xlu0 7
    %5591 = vperm.xlu0 %5590, %v4833
    %v5592 = vpop.permute.xlu0 %5591
    %v5594 = vsub.f32 %v5580, %v5500
    %v5595 = vsub.f32 %v5584, %v5500
    %v5596 = vsub.f32 %v5588, %v5500
    %v5597 = vsub.f32 %v5592, %v5500
    %v5598 = vand.u32 2147483647, %v5594
    %v5599 = vand.u32 2147483647, %v5595
    %v5600 = vand.u32 2147483647, %v5596
    %v5601 = vand.u32 2147483647, %v5597
    %v5602 = vsub.f32 1.0, %v5598
    %v5603 = vsub.f32 1.0, %v5599
    %v5604 = vsub.f32 1.0, %v5600
    %v5605 = vsub.f32 1.0, %v5601
    %v5606 = vmax.f32 %v5602, 0.0
    %v5607 = vmax.f32 %v5603, 0.0
    %v5608 = vmax.f32 %v5604, 0.0
    %v5609 = vmax.f32 %v5605, 0.0
    %v5610 = vmul.f32 %v5574, %v5606
    %v5611 = vmul.f32 %v5575, %v5607
    %v5612 = vmul.f32 %v5576, %v5608
    %v5613 = vmul.f32 %v5577, %v5609
    %5614 = vset.pattern.permute.xlu0 117
    %5615 = vperm.xlu0 %5614, %v4798
    %v5616 = vpop.permute.xlu0 %5615
    %5618 = vset.pattern.permute.xlu0 117
    %5619 = vperm.xlu0 %5618, %v4799
    %v5620 = vpop.permute.xlu0 %5619
    %5622 = vset.pattern.permute.xlu0 117
    %5623 = vperm.xlu0 %5622, %v4800
    %v5624 = vpop.permute.xlu0 %5623
    %5626 = vset.pattern.permute.xlu0 117
    %5627 = vperm.xlu0 %5626, %v4801
    %v5628 = vpop.permute.xlu0 %5627
    %v5630 = vmul.f32 %v5610, %v5616
    %v5631 = vmul.f32 %v5611, %v5620
    %v5632 = vmul.f32 %v5612, %v5624
    %v5633 = vmul.f32 %v5613, %v5628
    %v5634 = vadd.f32 %v5542, %v5630
    %v5635 = vadd.f32 %v5543, %v5631
    %v5636 = vadd.f32 %v5544, %v5632
    %v5637 = vadd.f32 %v5545, %v5633
    %v5638 = vld [vmem:[%s1502] sm:$0x1]
    %5639 = vset.pattern.permute.xlu0 8
    %5640 = vperm.xlu0 %5639, %v4814
    %v5641 = vpop.permute.xlu0 %5640
    %5643 = vset.pattern.permute.xlu0 8
    %5644 = vperm.xlu0 %5643, %v4815
    %v5645 = vpop.permute.xlu0 %5644
    %5647 = vset.pattern.permute.xlu0 8
    %5648 = vperm.xlu0 %5647, %v4816
    %v5649 = vpop.permute.xlu0 %5648
    %5651 = vset.pattern.permute.xlu0 8
    %5652 = vperm.xlu0 %5651, %v4817
    %v5653 = vpop.permute.xlu0 %5652
    %v5656 = vlaneseq
    %v5657 = vshrl.u32 %v5656, 7
    %v5658 = vsub.s32 0, %v5657
    %v5659 = vrot.slane %v5638, %v5658
    %v5661 = vsub.f32 %v5641, %v5659
    %v5662 = vsub.f32 %v5645, %v5659
    %v5663 = vsub.f32 %v5649, %v5659
    %v5664 = vsub.f32 %v5653, %v5659
    %v5665 = vand.u32 2147483647, %v5661
    %v5666 = vand.u32 2147483647, %v5662
    %v5667 = vand.u32 2147483647, %v5663
    %v5668 = vand.u32 2147483647, %v5664
    %v5669 = vsub.f32 1.0, %v5665
    %v5670 = vsub.f32 1.0, %v5666
    %v5671 = vsub.f32 1.0, %v5667
    %v5672 = vsub.f32 1.0, %v5668
    %v5673 = vmax.f32 %v5669, 0.0
    %v5674 = vmax.f32 %v5670, 0.0
    %v5675 = vmax.f32 %v5671, 0.0
    %v5676 = vmax.f32 %v5672, 0.0
    %v5677 = vld [vmem:[%s1542] sm:$0x1]
    %5678 = vset.pattern.permute.xlu0 8
    %5679 = vperm.xlu0 %5678, %v4830
    %v5680 = vpop.permute.xlu0 %5679
    %5682 = vset.pattern.permute.xlu0 8
    %5683 = vperm.xlu0 %5682, %v4831
    %v5684 = vpop.permute.xlu0 %5683
    %5686 = vset.pattern.permute.xlu0 8
    %5687 = vperm.xlu0 %5686, %v4832
    %v5688 = vpop.permute.xlu0 %5687
    %5690 = vset.pattern.permute.xlu0 8
    %5691 = vperm.xlu0 %5690, %v4833
    %v5692 = vpop.permute.xlu0 %5691
    %v5695 = vlaneseq
    %v5696 = vshrl.u32 %v5695, 7
    %v5697 = vsub.s32 0, %v5696
    %v5698 = vrot.slane %v5677, %v5697
    %v5700 = vsub.f32 %v5680, %v5698
    %v5701 = vsub.f32 %v5684, %v5698
    %v5702 = vsub.f32 %v5688, %v5698
    %v5703 = vsub.f32 %v5692, %v5698
    %v5704 = vand.u32 2147483647, %v5700
    %v5705 = vand.u32 2147483647, %v5701
    %v5706 = vand.u32 2147483647, %v5702
    %v5707 = vand.u32 2147483647, %v5703
    %v5708 = vsub.f32 1.0, %v5704
    %v5709 = vsub.f32 1.0, %v5705
    %v5710 = vsub.f32 1.0, %v5706
    %v5711 = vsub.f32 1.0, %v5707
    %v5712 = vmax.f32 %v5708, 0.0
    %v5713 = vmax.f32 %v5709, 0.0
    %v5714 = vmax.f32 %v5710, 0.0
    %v5715 = vmax.f32 %v5711, 0.0
    %v5716 = vmul.f32 %v5673, %v5712
    %v5717 = vmul.f32 %v5674, %v5713
    %v5718 = vmul.f32 %v5675, %v5714
    %v5719 = vmul.f32 %v5676, %v5715
    %5720 = vset.pattern.permute.xlu0 118
    %5721 = vperm.xlu0 %5720, %v4798
    %v5722 = vpop.permute.xlu0 %5721
    %5724 = vset.pattern.permute.xlu0 118
    %5725 = vperm.xlu0 %5724, %v4799
    %v5726 = vpop.permute.xlu0 %5725
    %5728 = vset.pattern.permute.xlu0 118
    %5729 = vperm.xlu0 %5728, %v4800
    %v5730 = vpop.permute.xlu0 %5729
    %5732 = vset.pattern.permute.xlu0 118
    %5733 = vperm.xlu0 %5732, %v4801
    %v5734 = vpop.permute.xlu0 %5733
    %v5736 = vmul.f32 %v5716, %v5722
    %v5737 = vmul.f32 %v5717, %v5726
    %v5738 = vmul.f32 %v5718, %v5730
    %v5739 = vmul.f32 %v5719, %v5734
    %v5740 = vadd.f32 %v5634, %v5736
    %v5741 = vadd.f32 %v5635, %v5737
    %v5742 = vadd.f32 %v5636, %v5738
    %v5743 = vadd.f32 %v5637, %v5739
    %5744 = vset.pattern.permute.xlu0 9
    %5745 = vperm.xlu0 %5744, %v4814
    %v5746 = vpop.permute.xlu0 %5745
    %5748 = vset.pattern.permute.xlu0 9
    %5749 = vperm.xlu0 %5748, %v4815
    %v5750 = vpop.permute.xlu0 %5749
    %5752 = vset.pattern.permute.xlu0 9
    %5753 = vperm.xlu0 %5752, %v4816
    %v5754 = vpop.permute.xlu0 %5753
    %5756 = vset.pattern.permute.xlu0 9
    %5757 = vperm.xlu0 %5756, %v4817
    %v5758 = vpop.permute.xlu0 %5757
    %v5760 = vsub.f32 %v5746, %v5659
    %v5761 = vsub.f32 %v5750, %v5659
    %v5762 = vsub.f32 %v5754, %v5659
    %v5763 = vsub.f32 %v5758, %v5659
    %v5764 = vand.u32 2147483647, %v5760
    %v5765 = vand.u32 2147483647, %v5761
    %v5766 = vand.u32 2147483647, %v5762
    %v5767 = vand.u32 2147483647, %v5763
    %v5768 = vsub.f32 1.0, %v5764
    %v5769 = vsub.f32 1.0, %v5765
    %v5770 = vsub.f32 1.0, %v5766
    %v5771 = vsub.f32 1.0, %v5767
    %v5772 = vmax.f32 %v5768, 0.0
    %v5773 = vmax.f32 %v5769, 0.0
    %v5774 = vmax.f32 %v5770, 0.0
    %v5775 = vmax.f32 %v5771, 0.0
    %5776 = vset.pattern.permute.xlu0 9
    %5777 = vperm.xlu0 %5776, %v4830
    %v5778 = vpop.permute.xlu0 %5777
    %5780 = vset.pattern.permute.xlu0 9
    %5781 = vperm.xlu0 %5780, %v4831
    %v5782 = vpop.permute.xlu0 %5781
    %5784 = vset.pattern.permute.xlu0 9
    %5785 = vperm.xlu0 %5784, %v4832
    %v5786 = vpop.permute.xlu0 %5785
    %5788 = vset.pattern.permute.xlu0 9
    %5789 = vperm.xlu0 %5788, %v4833
    %v5790 = vpop.permute.xlu0 %5789
    %v5792 = vsub.f32 %v5778, %v5698
    %v5793 = vsub.f32 %v5782, %v5698
    %v5794 = vsub.f32 %v5786, %v5698
    %v5795 = vsub.f32 %v5790, %v5698
    %v5796 = vand.u32 2147483647, %v5792
    %v5797 = vand.u32 2147483647, %v5793
    %v5798 = vand.u32 2147483647, %v5794
    %v5799 = vand.u32 2147483647, %v5795
    %v5800 = vsub.f32 1.0, %v5796
    %v5801 = vsub.f32 1.0, %v5797
    %v5802 = vsub.f32 1.0, %v5798
    %v5803 = vsub.f32 1.0, %v5799
    %v5804 = vmax.f32 %v5800, 0.0
    %v5805 = vmax.f32 %v5801, 0.0
    %v5806 = vmax.f32 %v5802, 0.0
    %v5807 = vmax.f32 %v5803, 0.0
    %v5808 = vmul.f32 %v5772, %v5804
    %v5809 = vmul.f32 %v5773, %v5805
    %v5810 = vmul.f32 %v5774, %v5806
    %v5811 = vmul.f32 %v5775, %v5807
    %5812 = vset.pattern.permute.xlu0 119
    %5813 = vperm.xlu0 %5812, %v4798
    %v5814 = vpop.permute.xlu0 %5813
    %5816 = vset.pattern.permute.xlu0 119
    %5817 = vperm.xlu0 %5816, %v4799
    %v5818 = vpop.permute.xlu0 %5817
    %5820 = vset.pattern.permute.xlu0 119
    %5821 = vperm.xlu0 %5820, %v4800
    %v5822 = vpop.permute.xlu0 %5821
    %5824 = vset.pattern.permute.xlu0 119
    %5825 = vperm.xlu0 %5824, %v4801
    %v5826 = vpop.permute.xlu0 %5825
    %v5828 = vmul.f32 %v5808, %v5814
    %v5829 = vmul.f32 %v5809, %v5818
    %v5830 = vmul.f32 %v5810, %v5822
    %v5831 = vmul.f32 %v5811, %v5826
    %v5832 = vadd.f32 %v5740, %v5828
    %v5833 = vadd.f32 %v5741, %v5829
    %v5834 = vadd.f32 %v5742, %v5830
    %v5835 = vadd.f32 %v5743, %v5831
    %v5836 = vld [vmem:[#allocation3] sm:$0xff]
    %v5837 = vld [vmem:[#allocation3 + $0x8] sm:$0xff]
    %v5838 = vld [vmem:[#allocation3 + $0x10] sm:$0xff]
    %v5839 = vld [vmem:[#allocation3 + $0x18] sm:$0xff]
    %v5840 = vld [vmem:[#allocation3 + $0x20] sm:$0xff]
    %v5841 = vld [vmem:[#allocation3 + $0x28] sm:$0xff]
    %v5842 = vld [vmem:[#allocation3 + $0x30] sm:$0xff]
    %v5843 = vld [vmem:[#allocation3 + $0x38] sm:$0xff]
    %v5844 = vld [vmem:[#allocation3 + $0x40] sm:$0xff]
    %v5845 = vld [vmem:[#allocation3 + $0x48] sm:$0xff]
    %v5846 = vld [vmem:[#allocation3 + $0x50] sm:$0xff]
    %v5847 = vld [vmem:[#allocation3 + $0x58] sm:$0xff]
    %v5848 = vld [vmem:[#allocation3 + $0x60] sm:$0xff]
    %v5849 = vld [vmem:[#allocation3 + $0x68] sm:$0xff]
    %v5850 = vld [vmem:[#allocation3 + $0x70] sm:$0xff]
    %v5851 = vld [vmem:[#allocation3 + $0x78] sm:$0xff]
    %5868 = vrot.lane.b32.xlu0 %v5836, 104
    %v5869 = vpop.permute.xlu0 %5868
    %5870 = vrot.lane.b32.xlu0 %v5837, 104
    %v5871 = vpop.permute.xlu0 %5870
    %5872 = vrot.lane.b32.xlu0 %v5838, 104
    %v5873 = vpop.permute.xlu0 %5872
    %5874 = vrot.lane.b32.xlu0 %v5839, 104
    %v5875 = vpop.permute.xlu0 %5874
    %5876 = vrot.lane.b32.xlu0 %v5840, 104
    %v5877 = vpop.permute.xlu0 %5876
    %5878 = vrot.lane.b32.xlu0 %v5841, 104
    %v5879 = vpop.permute.xlu0 %5878
    %5880 = vrot.lane.b32.xlu0 %v5842, 104
    %v5881 = vpop.permute.xlu0 %5880
    %5882 = vrot.lane.b32.xlu0 %v5843, 104
    %v5883 = vpop.permute.xlu0 %5882
    %5884 = vrot.lane.b32.xlu0 %v5844, 104
    %v5885 = vpop.permute.xlu0 %5884
    %5886 = vrot.lane.b32.xlu0 %v5845, 104
    %v5887 = vpop.permute.xlu0 %5886
    %5888 = vrot.lane.b32.xlu0 %v5846, 104
    %v5889 = vpop.permute.xlu0 %5888
    %5890 = vrot.lane.b32.xlu0 %v5847, 104
    %v5891 = vpop.permute.xlu0 %5890
    %5892 = vrot.lane.b32.xlu0 %v5848, 104
    %v5893 = vpop.permute.xlu0 %5892
    %5894 = vrot.lane.b32.xlu0 %v5849, 104
    %v5895 = vpop.permute.xlu0 %5894
    %5896 = vrot.lane.b32.xlu0 %v5850, 104
    %v5897 = vpop.permute.xlu0 %5896
    %5898 = vrot.lane.b32.xlu0 %v5851, 104
    %v5899 = vpop.permute.xlu0 %5898
    %5916 = vmatprep.subr.mxu0 0.0
    %5917 = vmatpush1.msra.mxu0 %v5869
    %5918 = vmatprep.subr.mxu0 0.0
    %5919 = vmatpush1.msra.mxu0 %v5871
    %5920 = vmatprep.subr.mxu0 0.0
    %5921 = vmatpush1.msra.mxu0 %v5873
    %5922 = vmatprep.subr.mxu0 0.0
    %5923 = vmatpush1.msra.mxu0 %v5875
    %5924 = vmatprep.subr.mxu0 0.0
    %5925 = vmatpush1.msra.mxu0 %v5877
    %5926 = vmatprep.subr.mxu0 0.0
    %5927 = vmatpush1.msra.mxu0 %v5879
    %5928 = vmatprep.subr.mxu0 0.0
    %5929 = vmatpush1.msra.mxu0 %v5881
    %5930 = vmatprep.subr.mxu0 0.0
    %5931 = vmatpush1.msra.mxu0 %v5883
    %5932 = vmatprep.subr.mxu0 0.0
    %5933 = vmatpush1.msra.mxu0 %v5885
    %5934 = vmatprep.subr.mxu0 0.0
    %5935 = vmatpush1.msra.mxu0 %v5887
    %5936 = vmatprep.subr.mxu0 0.0
    %5937 = vmatpush1.msra.mxu0 %v5889
    %5938 = vmatprep.subr.mxu0 0.0
    %5939 = vmatpush1.msra.mxu0 %v5891
    %5940 = vmatprep.subr.mxu0 0.0
    %5941 = vmatpush1.msra.mxu0 %v5893
    %5942 = vmatprep.subr.mxu0 0.0
    %5943 = vmatpush1.msra.mxu0 %v5895
    %5944 = vmatprep.subr.mxu0 0.0
    %5945 = vmatpush1.msra.mxu0 %v5897
    %5946 = vmatprep.subr.mxu0 0.0
    %5947 = vmatpush1.msra.mxu0 %v5899
    %5948 = vmatprep.subr.mxu0 0.0
    %5949 = vmatpush1.msra.mxu0 0.0
    %5950 = vmatprep.subr.mxu0 0.0
    %5951 = vmatpush1.msra.mxu0 0.0
    %5952 = vmatprep.subr.mxu0 0.0
    %5953 = vmatpush1.msra.mxu0 0.0
    %5954 = vmatprep.subr.mxu0 0.0
    %5955 = vmatpush1.msra.mxu0 0.0
    %5956 = vmatprep.subr.mxu0 0.0
    %5957 = vmatpush1.msra.mxu0 0.0
    %5958 = vmatprep.subr.mxu0 0.0
    %5959 = vmatpush1.msra.mxu0 0.0
    %5960 = vmatprep.subr.mxu0 0.0
    %5961 = vmatpush1.msra.mxu0 0.0
    %5962 = vmatprep.subr.mxu0 0.0
    %5963 = vmatpush1.msra.mxu0 0.0
    %5964 = vmatprep.subr.mxu0 0.0
    %5965 = vmatpush1.msra.mxu0 0.0
    %5966 = vmatprep.subr.mxu0 0.0
    %5967 = vmatpush1.msra.mxu0 0.0
    %5968 = vmatprep.subr.mxu0 0.0
    %5969 = vmatpush1.msra.mxu0 0.0
    %5970 = vmatprep.subr.mxu0 0.0
    %5971 = vmatpush1.msra.mxu0 0.0
    %5972 = vmatprep.subr.mxu0 0.0
    %5973 = vmatpush1.msra.mxu0 0.0
    %5974 = vmatprep.subr.mxu0 0.0
    %5975 = vmatpush1.msra.mxu0 0.0
    %5976 = vmatprep.subr.mxu0 0.0
    %5977 = vmatpush1.msra.mxu0 0.0
    %5978 = vmatprep.subr.mxu0 0.0
    %5979 = vmatpush1.msra.mxu0 0.0
    %5980 = vmatprep.mubr.f32.mxu0 0.0
    %5981 = vmatmul.mubr.f32.gmra.mrb[0].mxu0 %v5832
    %v5982 = vpop.f32.mrb[0].mxu0
    %v5983 = vadd.f32 0.0, %v5982
    %v5984 = vpop.f32.mrb[0].mxu0
    %5985 = vmatprep.mubr.f32.mxu0 0.0
    %5986 = vmatmul.mubr.f32.gmra.mrb[0].mxu0 %v5833
    %v5987 = vpop.f32.mrb[0].mxu0
    %v5988 = vadd.f32 0.0, %v5987
    %v5989 = vpop.f32.mrb[0].mxu0
    %5990 = vdwg.mxu0
    %5993 = vrot.lane.b32.xlu0 %v5983, 24
    %v5994 = vpop.permute.xlu0 %5993
    %5995 = vrot.lane.b32.xlu0 %v5988, 24
    %v5996 = vpop.permute.xlu0 %5995
    %vm5999 = vcmask 261312
    %6000 = vst.msk [vmem:[#allocation2] sm:$0xff] %vm5999, %v5994
    %6001 = vst.msk [vmem:[#allocation2 + $0x8] sm:$0xff] %vm5999, %v5996
    %v6002 = vld [vmem:[#allocation3 + $0x80] sm:$0xff]
    %v6003 = vld [vmem:[#allocation3 + $0x88] sm:$0xff]
    %v6004 = vld [vmem:[#allocation3 + $0x90] sm:$0xff]
    %v6005 = vld [vmem:[#allocation3 + $0x98] sm:$0xff]
    %v6006 = vld [vmem:[#allocation3 + $0xa0] sm:$0xff]
    %v6007 = vld [vmem:[#allocation3 + $0xa8] sm:$0xff]
    %v6008 = vld [vmem:[#allocation3 + $0xb0] sm:$0xff]
    %v6009 = vld [vmem:[#allocation3 + $0xb8] sm:$0xff]
    %v6010 = vld [vmem:[#allocation3 + $0xc0] sm:$0xff]
    %v6011 = vld [vmem:[#allocation3 + $0xc8] sm:$0xff]
    %v6012 = vld [vmem:[#allocation3 + $0xd0] sm:$0xff]
    %v6013 = vld [vmem:[#allocation3 + $0xd8] sm:$0xff]
    %v6014 = vld [vmem:[#allocation3 + $0xe0] sm:$0xff]
    %v6015 = vld [vmem:[#allocation3 + $0xe8] sm:$0xff]
    %v6016 = vld [vmem:[#allocation3 + $0xf0] sm:$0xff]
    %v6017 = vld [vmem:[#allocation3 + $0xf8] sm:$0xff]
    %6034 = vrot.lane.b32.xlu0 %v6002, 104
    %v6035 = vpop.permute.xlu0 %6034
    %6036 = vrot.lane.b32.xlu0 %v6003, 104
    %v6037 = vpop.permute.xlu0 %6036
    %6038 = vrot.lane.b32.xlu0 %v6004, 104
    %v6039 = vpop.permute.xlu0 %6038
    %6040 = vrot.lane.b32.xlu0 %v6005, 104
    %v6041 = vpop.permute.xlu0 %6040
    %6042 = vrot.lane.b32.xlu0 %v6006, 104
    %v6043 = vpop.permute.xlu0 %6042
    %6044 = vrot.lane.b32.xlu0 %v6007, 104
    %v6045 = vpop.permute.xlu0 %6044
    %6046 = vrot.lane.b32.xlu0 %v6008, 104
    %v6047 = vpop.permute.xlu0 %6046
    %6048 = vrot.lane.b32.xlu0 %v6009, 104
    %v6049 = vpop.permute.xlu0 %6048
    %6050 = vrot.lane.b32.xlu0 %v6010, 104
    %v6051 = vpop.permute.xlu0 %6050
    %6052 = vrot.lane.b32.xlu0 %v6011, 104
    %v6053 = vpop.permute.xlu0 %6052
    %6054 = vrot.lane.b32.xlu0 %v6012, 104
    %v6055 = vpop.permute.xlu0 %6054
    %6056 = vrot.lane.b32.xlu0 %v6013, 104
    %v6057 = vpop.permute.xlu0 %6056
    %6058 = vrot.lane.b32.xlu0 %v6014, 104
    %v6059 = vpop.permute.xlu0 %6058
    %6060 = vrot.lane.b32.xlu0 %v6015, 104
    %v6061 = vpop.permute.xlu0 %6060
    %6062 = vrot.lane.b32.xlu0 %v6016, 104
    %v6063 = vpop.permute.xlu0 %6062
    %6064 = vrot.lane.b32.xlu0 %v6017, 104
    %v6065 = vpop.permute.xlu0 %6064
    %6082 = vmatprep.subr.mxu0 0.0
    %6083 = vmatpush1.msra.mxu0 %v6035
    %6084 = vmatprep.subr.mxu0 0.0
    %6085 = vmatpush1.msra.mxu0 %v6037
    %6086 = vmatprep.subr.mxu0 0.0
    %6087 = vmatpush1.msra.mxu0 %v6039
    %6088 = vmatprep.subr.mxu0 0.0
    %6089 = vmatpush1.msra.mxu0 %v6041
    %6090 = vmatprep.subr.mxu0 0.0
    %6091 = vmatpush1.msra.mxu0 %v6043
    %6092 = vmatprep.subr.mxu0 0.0
    %6093 = vmatpush1.msra.mxu0 %v6045
    %6094 = vmatprep.subr.mxu0 0.0
    %6095 = vmatpush1.msra.mxu0 %v6047
    %6096 = vmatprep.subr.mxu0 0.0
    %6097 = vmatpush1.msra.mxu0 %v6049
    %6098 = vmatprep.subr.mxu0 0.0
    %6099 = vmatpush1.msra.mxu0 %v6051
    %6100 = vmatprep.subr.mxu0 0.0
    %6101 = vmatpush1.msra.mxu0 %v6053
    %6102 = vmatprep.subr.mxu0 0.0
    %6103 = vmatpush1.msra.mxu0 %v6055
    %6104 = vmatprep.subr.mxu0 0.0
    %6105 = vmatpush1.msra.mxu0 %v6057
    %6106 = vmatprep.subr.mxu0 0.0
    %6107 = vmatpush1.msra.mxu0 %v6059
    %6108 = vmatprep.subr.mxu0 0.0
    %6109 = vmatpush1.msra.mxu0 %v6061
    %6110 = vmatprep.subr.mxu0 0.0
    %6111 = vmatpush1.msra.mxu0 %v6063
    %6112 = vmatprep.subr.mxu0 0.0
    %6113 = vmatpush1.msra.mxu0 %v6065
    %6114 = vmatprep.subr.mxu0 0.0
    %6115 = vmatpush1.msra.mxu0 0.0
    %6116 = vmatprep.subr.mxu0 0.0
    %6117 = vmatpush1.msra.mxu0 0.0
    %6118 = vmatprep.subr.mxu0 0.0
    %6119 = vmatpush1.msra.mxu0 0.0
    %6120 = vmatprep.subr.mxu0 0.0
    %6121 = vmatpush1.msra.mxu0 0.0
    %6122 = vmatprep.subr.mxu0 0.0
    %6123 = vmatpush1.msra.mxu0 0.0
    %6124 = vmatprep.subr.mxu0 0.0
    %6125 = vmatpush1.msra.mxu0 0.0
    %6126 = vmatprep.subr.mxu0 0.0
    %6127 = vmatpush1.msra.mxu0 0.0
    %6128 = vmatprep.subr.mxu0 0.0
    %6129 = vmatpush1.msra.mxu0 0.0
    %6130 = vmatprep.subr.mxu0 0.0
    %6131 = vmatpush1.msra.mxu0 0.0
    %6132 = vmatprep.subr.mxu0 0.0
    %6133 = vmatpush1.msra.mxu0 0.0
    %6134 = vmatprep.subr.mxu0 0.0
    %6135 = vmatpush1.msra.mxu0 0.0
    %6136 = vmatprep.subr.mxu0 0.0
    %6137 = vmatpush1.msra.mxu0 0.0
    %6138 = vmatprep.subr.mxu0 0.0
    %6139 = vmatpush1.msra.mxu0 0.0
    %6140 = vmatprep.subr.mxu0 0.0
    %6141 = vmatpush1.msra.mxu0 0.0
    %6142 = vmatprep.subr.mxu0 0.0
    %6143 = vmatpush1.msra.mxu0 0.0
    %6144 = vmatprep.subr.mxu0 0.0
    %6145 = vmatpush1.msra.mxu0 0.0
    %6146 = vmatprep.mubr.f32.mxu0 0.0
    %6147 = vmatmul.mubr.f32.gmra.mrb[0].mxu0 %v5834
    %v6148 = vpop.f32.mrb[0].mxu0
    %v6149 = vadd.f32 0.0, %v6148
    %v6150 = vpop.f32.mrb[0].mxu0
    %6151 = vmatprep.mubr.f32.mxu0 0.0
    %6152 = vmatmul.mubr.f32.gmra.mrb[0].mxu0 %v5835
    %v6153 = vpop.f32.mrb[0].mxu0
    %v6154 = vadd.f32 0.0, %v6153
    %v6155 = vpop.f32.mrb[0].mxu0
    %6156 = vdwg.mxu0
    %6159 = vrot.lane.b32.xlu0 %v6149, 24
    %v6160 = vpop.permute.xlu0 %6159
    %6161 = vrot.lane.b32.xlu0 %v6154, 24
    %v6162 = vpop.permute.xlu0 %6161
    %6165 = vst.msk [vmem:[#allocation2 + $0x10] sm:$0xff] %vm5999, %v6160
    %6166 = vst.msk [vmem:[#allocation2 + $0x18] sm:$0xff] %vm5999, %v6162
    %v6167 = vld [vmem:[#allocation2] sm:$0xff]
    %v6168 = vld [vmem:[#allocation2 + $0x8] sm:$0xff]
    %v6169 = vld [vmem:[#allocation2 + $0x10] sm:$0xff]
    %v6170 = vld [vmem:[#allocation2 + $0x18] sm:$0xff]
    %v6171 = vld [vmem:[%s9] sm:$0xff]
    %v6172 = vld [vmem:[%s9 + $0x8] sm:$0xff]
    %v6173 = vld [vmem:[%s9 + $0x10] sm:$0xff]
    %v6174 = vld [vmem:[%s9 + $0x18] sm:$0xff]
    %v6175 = vld [vmem:[%s10] sm:$0x1]
    %v6177 = vlaneseq
    %v6178 = vshrl.u32 %v6177, 7
    %v6179 = vsub.s32 0, %v6178
    %v6180 = vrot.slane %v6175, %v6179
    %v6183 = vsel %vm106, %v6167, 0
    %v6186 = vsel %vm106, %v6168, 0
    %v6189 = vsel %vm106, %v6169, 0
    %v6192 = vsel %vm106, %v6170, 0
    %6194 = vmatprep.subr.mxu0 0.0
    %6195 = vmatpush1.msra.mxu0 %v6171
    %6196 = vmatprep.subr.mxu0 0.0
    %6197 = vmatpush1.msra.mxu0 %v6172
    %6198 = vmatprep.subr.mxu0 0.0
    %6199 = vmatpush1.msra.mxu0 %v6173
    %6200 = vmatprep.subr.mxu0 0.0
    %6201 = vmatpush1.msra.mxu0 %v6174
    %6202 = vmatprep.subr.mxu0 0.0
    %6203 = vmatpush1.msra.mxu0 0.0
    %6204 = vmatprep.subr.mxu0 0.0
    %6205 = vmatpush1.msra.mxu0 0.0
    %6206 = vmatprep.subr.mxu0 0.0
    %6207 = vmatpush1.msra.mxu0 0.0
    %6208 = vmatprep.subr.mxu0 0.0
    %6209 = vmatpush1.msra.mxu0 0.0
    %6210 = vmatprep.subr.mxu0 0.0
    %6211 = vmatpush1.msra.mxu0 0.0
    %6212 = vmatprep.subr.mxu0 0.0
    %6213 = vmatpush1.msra.mxu0 0.0
    %6214 = vmatprep.subr.mxu0 0.0
    %6215 = vmatpush1.msra.mxu0 0.0
    %6216 = vmatprep.subr.mxu0 0.0
    %6217 = vmatpush1.msra.mxu0 0.0
    %6218 = vmatprep.subr.mxu0 0.0
    %6219 = vmatpush1.msra.mxu0 0.0
    %6220 = vmatprep.subr.mxu0 0.0
    %6221 = vmatpush1.msra.mxu0 0.0
    %6222 = vmatprep.subr.mxu0 0.0
    %6223 = vmatpush1.msra.mxu0 0.0
    %6224 = vmatprep.subr.mxu0 0.0
    %6225 = vmatpush1.msra.mxu0 0.0
    %6226 = vmatprep.subr.mxu0 0.0
    %6227 = vmatpush1.msra.mxu0 0.0
    %6228 = vmatprep.subr.mxu0 0.0
    %6229 = vmatpush1.msra.mxu0 0.0
    %6230 = vmatprep.subr.mxu0 0.0
    %6231 = vmatpush1.msra.mxu0 0.0
    %6232 = vmatprep.subr.mxu0 0.0
    %6233 = vmatpush1.msra.mxu0 0.0
    %6234 = vmatprep.subr.mxu0 0.0
    %6235 = vmatpush1.msra.mxu0 0.0
    %6236 = vmatprep.subr.mxu0 0.0
    %6237 = vmatpush1.msra.mxu0 0.0
    %6238 = vmatprep.subr.mxu0 0.0
    %6239 = vmatpush1.msra.mxu0 0.0
    %6240 = vmatprep.subr.mxu0 0.0
    %6241 = vmatpush1.msra.mxu0 0.0
    %6242 = vmatprep.subr.mxu0 0.0
    %6243 = vmatpush1.msra.mxu0 0.0
    %6244 = vmatprep.subr.mxu0 0.0
    %6245 = vmatpush1.msra.mxu0 0.0
    %6246 = vmatprep.subr.mxu0 0.0
    %6247 = vmatpush1.msra.mxu0 0.0
    %6248 = vmatprep.subr.mxu0 0.0
    %6249 = vmatpush1.msra.mxu0 0.0
    %6250 = vmatprep.subr.mxu0 0.0
    %6251 = vmatpush1.msra.mxu0 0.0
    %6252 = vmatprep.subr.mxu0 0.0
    %6253 = vmatpush1.msra.mxu0 0.0
    %6254 = vmatprep.subr.mxu0 0.0
    %6255 = vmatpush1.msra.mxu0 0.0
    %6256 = vmatprep.subr.mxu0 0.0
    %6257 = vmatpush1.msra.mxu0 0.0
    %6258 = vmatprep.mubr.f32.mxu0 0.0
    %6259 = vmatmul.mubr.f32.gmra.mrb[0].mxu0 %v6183
    %v6260 = vpop.f32.mrb[0].mxu0
    %v6261 = vadd.f32 %v6180, %v6260
    %v6262 = vpop.f32.mrb[0].mxu0
    %6263 = vmatprep.mubr.f32.mxu0 0.0
    %6264 = vmatmul.mubr.f32.gmra.mrb[0].mxu0 %v6186
    %v6265 = vpop.f32.mrb[0].mxu0
    %v6266 = vadd.f32 %v6180, %v6265
    %v6267 = vpop.f32.mrb[0].mxu0
    %6268 = vmatprep.mubr.f32.mxu0 0.0
    %6269 = vmatmul.mubr.f32.gmra.mrb[0].mxu0 %v6189
    %v6270 = vpop.f32.mrb[0].mxu0
    %v6271 = vadd.f32 %v6180, %v6270
    %v6272 = vpop.f32.mrb[0].mxu0
    %6273 = vmatprep.mubr.f32.mxu0 0.0
    %6274 = vmatmul.mubr.f32.gmra.mrb[0].mxu0 %v6192
    %v6275 = vpop.f32.mrb[0].mxu0
    %v6276 = vadd.f32 %v6180, %v6275
    %v6277 = vpop.f32.mrb[0].mxu0
    %6278 = vdwg.mxu0
    %6279 = vst.msk [vmem:[#allocation4] sm:$0xff] %vm106, %v6261
    %6280 = vst.msk [vmem:[#allocation4 + $0x8] sm:$0xff] %vm106, %v6266
    %6281 = vst.msk [vmem:[#allocation4 + $0x10] sm:$0xff] %vm106, %v6271
    %6282 = vst.msk [vmem:[#allocation4 + $0x18] sm:$0xff] %vm106, %v6276
    // Predicated region
    $region62: #{tpu_custom_call.1} parent=1 // pred_check
      _
    $region63: #{tpu_custom_call.1} parent=1 // pred_check_branch
      %6284 = sbr.rel (0) target = $region65
    $region64: #{tpu_custom_call.1} parent=1 // pred_region
      %s6286 = ssub.s32 512, 512
      %6287 = vsyncadd [#allocation5], %s6286
      %s6288 = sshll.u32 [#allocation4], 4
      %s6289 = int_to_ptr.vmem [resolvable:$true] %s6288
      %6294 = dma.vmem_to_hbm [thread:$0]  %s6289, 512, %s15, [#allocation5], 128, 128, 8
    $region65: #{tpu_custom_call.1} parent=1 // pred_fallthru
      _
    // Predicated region
    $region66: #{tpu_custom_call.1} parent=1 // pred_check
      _
    $region67: #{tpu_custom_call.1} parent=1 // pred_check_branch
      %6296 = sbr.rel (0) target = $region69
    $region68: #{tpu_custom_call.1} parent=1 // pred_region
      %6297 = dma.done [#allocation5], 512
    $region69: #{tpu_custom_call.1} parent=1 // pred_fallthru
      _
    %6298 = vsyncpa [#allocation5], 1

</llo_original>
